<compile_context>
chip_gen: v6e
topology: v6e:2x2x1
jax: 0.10.0
libtpu: 0.0.40
codegen_flags: <defaults>
</compile_context>

<pallas_src>
import functools

import numpy as np
import jax
import jax.numpy as jnp
from jax.experimental import pallas as pl
from jax.experimental.pallas import tpu as pltpu


# ----------------------------------------------------------------------------
# Pallas kernels
# ----------------------------------------------------------------------------
def _matmul_bias_act_kernel(x_ref, w_ref, b_ref, o_ref, *, relu):
    # x: (TM, K) row tile, w: (K, N) resident, b: (1, N) resident
    acc = jnp.dot(x_ref[...], w_ref[...], preferred_element_type=jnp.float32)
    acc = acc + b_ref[...]
    if relu:
        acc = jnp.maximum(acc, 0.0)
    o_ref[...] = acc.astype(o_ref.dtype)


def matmul_bias(x, w, b, relu=True, tm=512):
    """(M,K) @ (K,N) + b (+ReLU).  M is tiled over a 1-D 'parallel' grid; the (K,N)
    weight and (1,N) bias stay resident in VMEM across the row tiles."""
    M, K = x.shape
    K2, N = w.shape
    assert K == K2
    bm = M if M <= tm else tm          # full-array block when small, else 8-aligned tile
    grid = (pl.cdiv(M, bm),)
    kern = functools.partial(_matmul_bias_act_kernel, relu=relu)
    return pl.pallas_call(
        kern,
        out_shape=jax.ShapeDtypeStruct((M, N), jnp.float32),
        grid=grid,
        in_specs=[
            pl.BlockSpec((bm, K), lambda i: (i, 0)),   # streamed row tile of patches
            pl.BlockSpec((K, N), lambda i: (0, 0)),    # resident weights
            pl.BlockSpec((1, N), lambda i: (0, 0)),    # resident bias
        ],
        out_specs=pl.BlockSpec((bm, N), lambda i: (i, 0)),
        compiler_params=pltpu.CompilerParams(dimension_semantics=("parallel",)),
    )(x, w, b.reshape(1, N))


def _fc_head_kernel(y_ref, w4_ref, b4_ref, wh_ref, bh_ref, pi_ref, v_ref, *, action_dim):
    # y: (B, 3136), w4: (3136, 512), wh: (512, A+1)  -- all resident in VMEM.
    feat = jnp.dot(y_ref[...], w4_ref[...], preferred_element_type=jnp.float32)
    feat = jnp.maximum(feat + b4_ref[...], 0.0)                        # ReLU(fc4)
    hv = jnp.dot(feat, wh_ref[...], preferred_element_type=jnp.float32) + bh_ref[...]
    logits = hv[:, :action_dim]
    m = jnp.max(logits, axis=-1, keepdims=True)
    e = jnp.exp(logits - m)
    inv = pl.reciprocal(jnp.sum(e, axis=-1, keepdims=True), approx=True)  # EUP slot
    pi_ref[...] = e * inv                                              # softmax(dim=1)
    v_ref[...] = hv[:, action_dim:action_dim + 1]                      # critic value


def fc_head(y_flat, w4, b4, wh, bh, action_dim):
    """Fused fc4(+ReLU) + merged policy/value head + softmax in one Pallas kernel."""
    B = y_flat.shape[0]
    F = w4.shape[1]
    kern = functools.partial(_fc_head_kernel, action_dim=action_dim)
    return pl.pallas_call(
        kern,
        out_shape=(jax.ShapeDtypeStruct((B, action_dim), jnp.float32),
                   jax.ShapeDtypeStruct((B, 1), jnp.float32)),
        in_specs=[pl.BlockSpec(memory_space=pltpu.MemorySpace.VMEM)] * 5,
        out_specs=(pl.BlockSpec(memory_space=pltpu.MemorySpace.VMEM),
                   pl.BlockSpec(memory_space=pltpu.MemorySpace.VMEM)),
    )(y_flat, w4, b4.reshape(1, F), wh, bh.reshape(1, -1))


# ----------------------------------------------------------------------------
# Conv via NHWC im2col (glue) + tiled Pallas matmul kernel
# ----------------------------------------------------------------------------
def conv2d_relu_nhwc(x, w_mat, b, kh, kw, stride):
    """x: (B,H,W,Cin) NHWC; w_mat: (kh*kw*Cin, Cout).  Returns ReLU(conv) as (B,Ho,Wo,Cout)."""
    B, H, W, C = x.shape
    Ho = (H - kh) // stride + 1
    Wo = (W - kw) // stride + 1
    cols = []
    for i in range(kh):
        for j in range(kw):
            cols.append(x[:, i:i + stride * Ho:stride, j:j + stride * Wo:stride, :])
    patches = jnp.stack(cols, axis=3)                     # (B, Ho, Wo, kh*kw, C)
    patches = patches.reshape(B * Ho * Wo, kh * kw * C)   # channels innermost (lane-dense)
    out = matmul_bias(patches, w_mat, b, relu=True)       # (B*Ho*Wo, Cout)
    return out.reshape(B, Ho, Wo, w_mat.shape[1])         # stay NHWC: no transpose back


# ----------------------------------------------------------------------------
# Deterministic parameter init (orthogonal, like layer_init; bias = 0) — PyTorch layout
# ----------------------------------------------------------------------------
def layer_init_params(key, out_dim, in_dims, w_scale=1.0):
    fan_in = int(np.prod(in_dims))
    a = np.asarray(jax.random.normal(key, (out_dim, fan_in)), dtype=np.float64)
    if out_dim <= fan_in:
        q, r = np.linalg.qr(a.T)
        q = q * np.sign(np.diag(r))
        w = q.T[:out_dim]
    else:
        q, r = np.linalg.qr(a)
        q = q * np.sign(np.diag(r))
        w = q[:, :fan_in]
    w = (w * w_scale).astype(np.float32).reshape((out_dim,) + tuple(in_dims))
    b = np.zeros((out_dim,), np.float32)
    return jnp.asarray(w), jnp.asarray(b)


def init_mynet_params(in_channels=4, feature_dim=512, action_dim=4):
    keys = jax.random.split(jax.random.PRNGKey(42), 6)
    p = {}
    p["conv1_w"], p["conv1_b"] = layer_init_params(keys[0], 32, (in_channels, 8, 8))
    p["conv2_w"], p["conv2_b"] = layer_init_params(keys[1], 64, (32, 4, 4))
    p["conv3_w"], p["conv3_b"] = layer_init_params(keys[2], 64, (64, 3, 3))
    p["fc4_w"],   p["fc4_b"]   = layer_init_params(keys[3], feature_dim, (7 * 7 * 64,))
    p["fca_w"],   p["fca_b"]   = layer_init_params(keys[4], action_dim, (feature_dim,), 0.001)
    p["fcc_w"],   p["fcc_b"]   = layer_init_params(keys[5], 1, (feature_dim,), 0.001)
    return p


def prepare_kernel_params(p, conv3_out_hw=7, conv3_out_c=64, feature_dim=512):
    """One-time conversion from PyTorch layout to the kernel (NHWC / matmul) layout."""
    def conv_w_to_mat(w):   # (Cout, Cin, kh, kw) -> (kh*kw*Cin, Cout), rows = (i,j) outer, c inner
        cout, cin, kh, kw = w.shape
        return jnp.transpose(w, (2, 3, 1, 0)).reshape(kh * kw * cin, cout)

    kp = {}
    kp["conv1_w"], kp["conv1_b"] = conv_w_to_mat(p["conv1_w"]), p["conv1_b"]
    kp["conv2_w"], kp["conv2_b"] = conv_w_to_mat(p["conv2_w"]), p["conv2_b"]
    kp["conv3_w"], kp["conv3_b"] = conv_w_to_mat(p["conv3_w"]), p["conv3_b"]
    # fc4 columns are laid out for PyTorch's NCHW flatten (c,h,w); permute once to the
    # NHWC flatten (h,w,c) used at runtime, and pre-transpose to (K, F).
    hw, c3 = conv3_out_hw, conv3_out_c
    w4 = p["fc4_w"].reshape(feature_dim, c3, hw, hw)
    w4 = jnp.transpose(w4, (0, 2, 3, 1)).reshape(feature_dim, hw * hw * c3)
    kp["fc4_w"] = w4.T                      # (3136, 512)
    kp["fc4_b"] = p["fc4_b"]
    # fc_action || fc_critic merged into a single (F, A+1) head matmul.
    kp["head_w"] = jnp.concatenate([p["fca_w"].T, p["fcc_w"].T], axis=1)   # (512, A+1)
    kp["head_b"] = jnp.concatenate([p["fca_b"], p["fcc_b"]])               # (A+1,)
    return kp


# ----------------------------------------------------------------------------
# Forward pass (matches MyNet.forward)
# ----------------------------------------------------------------------------
def mynet_forward(kp, x_nchw, action_dim=4):
    x = jnp.transpose(x_nchw, (0, 2, 3, 1))                             # NCHW -> NHWC, once
    y = conv2d_relu_nhwc(x, kp["conv1_w"], kp["conv1_b"], 8, 8, 4)      # (B,20,20,32)
    y = conv2d_relu_nhwc(y, kp["conv2_w"], kp["conv2_b"], 4, 4, 2)      # (B, 9, 9,64)
    y = conv2d_relu_nhwc(y, kp["conv3_w"], kp["conv3_b"], 3, 3, 1)      # (B, 7, 7,64)
    B = y.shape[0]
    y_flat = y.reshape(B, -1)                                           # NHWC flatten (fc4 cols permuted)
    pi, v = fc_head(y_flat, kp["fc4_w"], kp["fc4_b"], kp["head_w"], kp["head_b"], action_dim)
    return {"pi": pi, "v": v}


# ----------------------------------------------------------------------------
# Pure-JAX reference (PyTorch-layout params) for correctness validation
# ----------------------------------------------------------------------------
def mynet_forward_reference(p, x):
    hp = jax.lax.Precision.HIGHEST
    dn = ("NCHW", "OIHW", "NCHW")
    y = jax.lax.conv_general_dilated(x, p["conv1_w"], (4, 4), "VALID",
                                     dimension_numbers=dn, precision=hp)
    y = jax.nn.relu(y + p["conv1_b"][None, :, None, None])
    y = jax.lax.conv_general_dilated(y, p["conv2_w"], (2, 2), "VALID",
                                     dimension_numbers=dn, precision=hp)
    y = jax.nn.relu(y + p["conv2_b"][None, :, None, None])
    y = jax.lax.conv_general_dilated(y, p["conv3_w"], (1, 1), "VALID",
                                     dimension_numbers=dn, precision=hp)
    y = jax.nn.relu(y + p["conv3_b"][None, :, None, None])
    y = y.reshape(y.shape[0], -1)
    feat = jax.nn.relu(jnp.dot(y, p["fc4_w"].T, precision=hp) + p["fc4_b"])
    logits = jnp.dot(feat, p["fca_w"].T, precision=hp) + p["fca_b"]
    v = jnp.dot(feat, p["fcc_w"].T, precision=hp) + p["fcc_b"]
    return jax.nn.softmax(logits, axis=1), v


if __name__ == "__main__":
    # Input spatial size must be 84x84 so the conv stack yields 7*7*64 = 3136 (fc4 input).
    B, C, H, W = 2, 4, 84, 84
    x = jax.random.normal(jax.random.PRNGKey(0), (B, C, H, W), dtype=jnp.float32)

    params = init_mynet_params(in_channels=C)
    kparams = prepare_kernel_params(params)

    fwd = jax.jit(mynet_forward)
    out = jax.block_until_ready(fwd(kparams, x))

    pi, v = out["pi"], out["v"]
    assert pi.shape == (B, 4) and v.shape == (B, 1)
    assert bool(jnp.all(jnp.isfinite(pi))) and bool(jnp.all(jnp.isfinite(v)))
    # softmax rows sum to ~1 (approx EUP reciprocal -> loose tolerance)
    assert bool(jnp.allclose(jnp.sum(pi, axis=1), 1.0, atol=2e-3))

    # Validate against a pure-JAX reference of the original (NCHW) module.
    pi_ref, v_ref = mynet_forward_reference(params, x)
    assert bool(jnp.allclose(pi, pi_ref, atol=2e-3))
    assert bool(jnp.allclose(v, v_ref, rtol=5e-2, atol=1e-3))

    print("KERNEL_OK")
</pallas_src>

<mosaic_0001>
module attributes {stable_mosaic.version = 11 : i64} {
  func.func @_matmul_bias_act_kernel(%arg0: i32, %arg1: memref<512x256xf32, #tpu.memory_space<vmem>>, %arg2: memref<256x32xf32, #tpu.memory_space<vmem>>, %arg3: memref<1x32xf32, #tpu.memory_space<vmem>>, %arg4: memref<512x32xf32, #tpu.memory_space<vmem>>) attributes {dimension_semantics = [#tpu.dimension_semantics<parallel>], iteration_bounds = array<i64: 2>, scalar_prefetch = 0 : i64, scratch_operands = 0 : i64, tpu.core_type = #tpu.core_type<tc>, window_params = [{transform_indices = @transform_0, window_bounds = array<i64: 512, 256>}, {pipeline_mode = #tpu.pipeline_mode<synchronous>, transform_indices = @transform_1, window_bounds = array<i64: 256, 32>}, {pipeline_mode = #tpu.pipeline_mode<synchronous>, transform_indices = @transform_2, window_bounds = array<i64: 1, 32>}, {transform_indices = @transform_3, window_bounds = array<i64: 512, 32>}]} {
    %c0 = arith.constant 0 : index
    %c0_0 = arith.constant 0 : index
    %0 = vector.load %arg1[%c0, %c0_0] : memref<512x256xf32, #tpu.memory_space<vmem>>, vector<512x256xf32>
    %c0_1 = arith.constant 0 : index
    %c0_2 = arith.constant 0 : index
    %1 = vector.load %arg2[%c0_1, %c0_2] : memref<256x32xf32, #tpu.memory_space<vmem>>, vector<256x32xf32>
    %cst = arith.constant dense<0.000000e+00> : vector<512x32xf32>
    %2 = tpu.matmul %0, %1, %cst {dimension_numbers = #tpu.dot_dimension_numbers<[1], [0], [0], [1], [0, 0, 1, 1], [], []>} : vector<512x256xf32>, vector<256x32xf32>, vector<512x32xf32> -> vector<512x32xf32>
    %c0_3 = arith.constant 0 : index
    %c0_4 = arith.constant 0 : index
    %3 = vector.load %arg3[%c0_3, %c0_4] : memref<1x32xf32, #tpu.memory_space<vmem>>, vector<1x32xf32>
    %4 = vector.broadcast %3 : vector<1x32xf32> to vector<512x32xf32>
    %5 = arith.addf %2, %4 : vector<512x32xf32>
    %cst_5 = arith.constant 0.000000e+00 : f32
    %6 = vector.broadcast %cst_5 : f32 to vector<512x32xf32>
    %7 = arith.maximumf %5, %6 : vector<512x32xf32>
    %c0_6 = arith.constant 0 : index
    %c0_7 = arith.constant 0 : index
    %8 = vector.load %arg4[%c0_6, %c0_7] : memref<512x32xf32, #tpu.memory_space<vmem>>, vector<512x32xf32>
    tpu.vector_store %arg4[%c0_6, %c0_7], %7 {strides = array<i32>} : memref<512x32xf32, #tpu.memory_space<vmem>>, vector<512x32xf32>,
    return
  }
  func.func @transform_0(%arg0: i32) -> (i32, i32) {
    %c0_i32 = arith.constant 0 : i32
    %c0_i32_0 = arith.constant 0 : i32
    return %arg0, %c0_i32 : i32, i32
  }
  func.func @transform_1(%arg0: i32) -> (i32, i32) {
    %c0_i32 = arith.constant 0 : i32
    %c0_i32_0 = arith.constant 0 : i32
    %c0_i32_1 = arith.constant 0 : i32
    return %c0_i32, %c0_i32_0 : i32, i32
  }
  func.func @transform_2(%arg0: i32) -> (i32, i32) {
    %c0_i32 = arith.constant 0 : i32
    %c0_i32_0 = arith.constant 0 : i32
    %c0_i32_1 = arith.constant 0 : i32
    return %c0_i32, %c0_i32_0 : i32, i32
  }
  func.func @transform_3(%arg0: i32) -> (i32, i32) {
    %c0_i32 = arith.constant 0 : i32
    %c0_i32_0 = arith.constant 0 : i32
    return %arg0, %c0_i32 : i32, i32
  }
}

module attributes {stable_mosaic.version = 11 : i64} {
  func.func @_matmul_bias_act_kernel(%arg0: i32, %arg1: memref<162x512xf32, #tpu.memory_space<vmem>>, %arg2: memref<512x64xf32, #tpu.memory_space<vmem>>, %arg3: memref<1x64xf32, #tpu.memory_space<vmem>>, %arg4: memref<162x64xf32, #tpu.memory_space<vmem>>) attributes {dimension_semantics = [#tpu.dimension_semantics<parallel>], iteration_bounds = array<i64: 1>, scalar_prefetch = 0 : i64, scratch_operands = 0 : i64, tpu.core_type = #tpu.core_type<tc>, window_params = [{transform_indices = @transform_0, window_bounds = array<i64: 162, 512>}, {pipeline_mode = #tpu.pipeline_mode<synchronous>, transform_indices = @transform_1, window_bounds = array<i64: 512, 64>}, {pipeline_mode = #tpu.pipeline_mode<synchronous>, transform_indices = @transform_2, window_bounds = array<i64: 1, 64>}, {transform_indices = @transform_3, window_bounds = array<i64: 162, 64>}]} {
    %c0 = arith.constant 0 : index
    %c0_0 = arith.constant 0 : index
    %0 = vector.load %arg1[%c0, %c0_0] : memref<162x512xf32, #tpu.memory_space<vmem>>, vector<162x512xf32>
    %c0_1 = arith.constant 0 : index
    %c0_2 = arith.constant 0 : index
    %1 = vector.load %arg2[%c0_1, %c0_2] : memref<512x64xf32, #tpu.memory_space<vmem>>, vector<512x64xf32>
    %cst = arith.constant dense<0.000000e+00> : vector<162x64xf32>
    %2 = tpu.matmul %0, %1, %cst {dimension_numbers = #tpu.dot_dimension_numbers<[1], [0], [0], [1], [0, 0, 1, 1], [], []>} : vector<162x512xf32>, vector<512x64xf32>, vector<162x64xf32> -> vector<162x64xf32>
    %c0_3 = arith.constant 0 : index
    %c0_4 = arith.constant 0 : index
    %3 = vector.load %arg3[%c0_3, %c0_4] : memref<1x64xf32, #tpu.memory_space<vmem>>, vector<1x64xf32>
    %4 = vector.broadcast %3 : vector<1x64xf32> to vector<162x64xf32>
    %5 = arith.addf %2, %4 : vector<162x64xf32>
    %cst_5 = arith.constant 0.000000e+00 : f32
    %6 = vector.broadcast %cst_5 : f32 to vector<162x64xf32>
    %7 = arith.maximumf %5, %6 : vector<162x64xf32>
    %c0_6 = arith.constant 0 : index
    %c0_7 = arith.constant 0 : index
    %8 = vector.load %arg4[%c0_6, %c0_7] : memref<162x64xf32, #tpu.memory_space<vmem>>, vector<162x64xf32>
    tpu.vector_store %arg4[%c0_6, %c0_7], %7 {strides = array<i32>} : memref<162x64xf32, #tpu.memory_space<vmem>>, vector<162x64xf32>,
    return
  }
  func.func @transform_0(%arg0: i32) -> (i32, i32) {
    %c0_i32 = arith.constant 0 : i32
    %c0_i32_0 = arith.constant 0 : i32
    return %arg0, %c0_i32 : i32, i32
  }
  func.func @transform_1(%arg0: i32) -> (i32, i32) {
    %c0_i32 = arith.constant 0 : i32
    %c0_i32_0 = arith.constant 0 : i32
    %c0_i32_1 = arith.constant 0 : i32
    return %c0_i32, %c0_i32_0 : i32, i32
  }
  func.func @transform_2(%arg0: i32) -> (i32, i32) {
    %c0_i32 = arith.constant 0 : i32
    %c0_i32_0 = arith.constant 0 : i32
    %c0_i32_1 = arith.constant 0 : i32
    return %c0_i32, %c0_i32_0 : i32, i32
  }
  func.func @transform_3(%arg0: i32) -> (i32, i32) {
    %c0_i32 = arith.constant 0 : i32
    %c0_i32_0 = arith.constant 0 : i32
    return %arg0, %c0_i32 : i32, i32
  }
}

module attributes {stable_mosaic.version = 11 : i64} {
  func.func @_matmul_bias_act_kernel(%arg0: i32, %arg1: memref<98x576xf32, #tpu.memory_space<vmem>>, %arg2: memref<576x64xf32, #tpu.memory_space<vmem>>, %arg3: memref<1x64xf32, #tpu.memory_space<vmem>>, %arg4: memref<98x64xf32, #tpu.memory_space<vmem>>) attributes {dimension_semantics = [#tpu.dimension_semantics<parallel>], iteration_bounds = array<i64: 1>, scalar_prefetch = 0 : i64, scratch_operands = 0 : i64, tpu.core_type = #tpu.core_type<tc>, window_params = [{transform_indices = @transform_0, window_bounds = array<i64: 98, 576>}, {pipeline_mode = #tpu.pipeline_mode<synchronous>, transform_indices = @transform_1, window_bounds = array<i64: 576, 64>}, {pipeline_mode = #tpu.pipeline_mode<synchronous>, transform_indices = @transform_2, window_bounds = array<i64: 1, 64>}, {transform_indices = @transform_3, window_bounds = array<i64: 98, 64>}]} {
    %c0 = arith.constant 0 : index
    %c0_0 = arith.constant 0 : index
    %0 = vector.load %arg1[%c0, %c0_0] : memref<98x576xf32, #tpu.memory_space<vmem>>, vector<98x576xf32>
    %c0_1 = arith.constant 0 : index
    %c0_2 = arith.constant 0 : index
    %1 = vector.load %arg2[%c0_1, %c0_2] : memref<576x64xf32, #tpu.memory_space<vmem>>, vector<576x64xf32>
    %cst = arith.constant dense<0.000000e+00> : vector<98x64xf32>
    %2 = tpu.matmul %0, %1, %cst {dimension_numbers = #tpu.dot_dimension_numbers<[1], [0], [0], [1], [0, 0, 1, 1], [], []>} : vector<98x576xf32>, vector<576x64xf32>, vector<98x64xf32> -> vector<98x64xf32>
    %c0_3 = arith.constant 0 : index
    %c0_4 = arith.constant 0 : index
    %3 = vector.load %arg3[%c0_3, %c0_4] : memref<1x64xf32, #tpu.memory_space<vmem>>, vector<1x64xf32>
    %4 = vector.broadcast %3 : vector<1x64xf32> to vector<98x64xf32>
    %5 = arith.addf %2, %4 : vector<98x64xf32>
    %cst_5 = arith.constant 0.000000e+00 : f32
    %6 = vector.broadcast %cst_5 : f32 to vector<98x64xf32>
    %7 = arith.maximumf %5, %6 : vector<98x64xf32>
    %c0_6 = arith.constant 0 : index
    %c0_7 = arith.constant 0 : index
    %8 = vector.load %arg4[%c0_6, %c0_7] : memref<98x64xf32, #tpu.memory_space<vmem>>, vector<98x64xf32>
    tpu.vector_store %arg4[%c0_6, %c0_7], %7 {strides = array<i32>} : memref<98x64xf32, #tpu.memory_space<vmem>>, vector<98x64xf32>,
    return
  }
  func.func @transform_0(%arg0: i32) -> (i32, i32) {
    %c0_i32 = arith.constant 0 : i32
    %c0_i32_0 = arith.constant 0 : i32
    return %arg0, %c0_i32 : i32, i32
  }
  func.func @transform_1(%arg0: i32) -> (i32, i32) {
    %c0_i32 = arith.constant 0 : i32
    %c0_i32_0 = arith.constant 0 : i32
    %c0_i32_1 = arith.constant 0 : i32
    return %c0_i32, %c0_i32_0 : i32, i32
  }
  func.func @transform_2(%arg0: i32) -> (i32, i32) {
    %c0_i32 = arith.constant 0 : i32
    %c0_i32_0 = arith.constant 0 : i32
    %c0_i32_1 = arith.constant 0 : i32
    return %c0_i32, %c0_i32_0 : i32, i32
  }
  func.func @transform_3(%arg0: i32) -> (i32, i32) {
    %c0_i32 = arith.constant 0 : i32
    %c0_i32_0 = arith.constant 0 : i32
    return %arg0, %c0_i32 : i32, i32
  }
}

module attributes {stable_mosaic.version = 11 : i64} {
  func.func @_fc_head_kernel(%arg0: memref<2x3136xf32, #tpu.memory_space<vmem>>, %arg1: memref<3136x512xf32, #tpu.memory_space<vmem>>, %arg2: memref<1x512xf32, #tpu.memory_space<vmem>>, %arg3: memref<512x5xf32, #tpu.memory_space<vmem>>, %arg4: memref<1x5xf32, #tpu.memory_space<vmem>>, %arg5: memref<2x4xf32, #tpu.memory_space<vmem>>, %arg6: memref<2x1xf32, #tpu.memory_space<vmem>>) attributes {dimension_semantics = [], scalar_prefetch = 0 : i64, scratch_operands = 0 : i64, tpu.core_type = #tpu.core_type<tc>} {
    %c0 = arith.constant 0 : index
    %c0_0 = arith.constant 0 : index
    %0 = vector.load %arg0[%c0, %c0_0] : memref<2x3136xf32, #tpu.memory_space<vmem>>, vector<2x3136xf32>
    %c0_1 = arith.constant 0 : index
    %c0_2 = arith.constant 0 : index
    %1 = vector.load %arg1[%c0_1, %c0_2] : memref<3136x512xf32, #tpu.memory_space<vmem>>, vector<3136x512xf32>
    %cst = arith.constant dense<0.000000e+00> : vector<2x512xf32>
    %2 = tpu.matmul %0, %1, %cst {dimension_numbers = #tpu.dot_dimension_numbers<[1], [0], [0], [1], [0, 0, 1, 1], [], []>} : vector<2x3136xf32>, vector<3136x512xf32>, vector<2x512xf32> -> vector<2x512xf32>
    %c0_3 = arith.constant 0 : index
    %c0_4 = arith.constant 0 : index
    %3 = vector.load %arg2[%c0_3, %c0_4] : memref<1x512xf32, #tpu.memory_space<vmem>>, vector<1x512xf32>
    %4 = vector.broadcast %3 : vector<1x512xf32> to vector<2x512xf32>
    %5 = arith.addf %2, %4 : vector<2x512xf32>
    %cst_5 = arith.constant 0.000000e+00 : f32
    %6 = vector.broadcast %cst_5 : f32 to vector<2x512xf32>
    %7 = arith.maximumf %5, %6 : vector<2x512xf32>
    %c0_6 = arith.constant 0 : index
    %c0_7 = arith.constant 0 : index
    %8 = vector.load %arg3[%c0_6, %c0_7] : memref<512x5xf32, #tpu.memory_space<vmem>>, vector<512x5xf32>
    %cst_8 = arith.constant dense<0.000000e+00> : vector<2x5xf32>
    %9 = tpu.matmul %7, %8, %cst_8 {dimension_numbers = #tpu.dot_dimension_numbers<[1], [0], [0], [1], [0, 0, 1, 1], [], []>} : vector<2x512xf32>, vector<512x5xf32>, vector<2x5xf32> -> vector<2x5xf32>
    %c0_9 = arith.constant 0 : index
    %c0_10 = arith.constant 0 : index
    %10 = vector.load %arg4[%c0_9, %c0_10] : memref<1x5xf32, #tpu.memory_space<vmem>>, vector<1x5xf32>
    %11 = vector.broadcast %10 : vector<1x5xf32> to vector<2x5xf32>
    %12 = arith.addf %9, %11 : vector<2x5xf32>
    %13 = vector.extract_strided_slice %12 {offsets = [0, 0], sizes = [2, 4], strides = [1, 1]} : vector<2x5xf32> to vector<2x4xf32>
    %cst_11 = arith.constant dense<0xFF800000> : vector<2xf32>
    %14 = vector.multi_reduction <maximumf>, %13, %cst_11 [1] : vector<2x4xf32> to vector<2xf32>
    %15 = vector.shape_cast %14 : vector<2xf32> to vector<2x1xf32>
    %16 = vector.broadcast %15 : vector<2x1xf32> to vector<2x4xf32>
    %17 = arith.subf %13, %16 : vector<2x4xf32>
    %18 = math.exp %17 : vector<2x4xf32>
    %cst_12 = arith.constant dense<0.000000e+00> : vector<2xf32>
    %19 = vector.multi_reduction <add>, %18, %cst_12 [1] : vector<2x4xf32> to vector<2xf32>
    %20 = vector.shape_cast %19 : vector<2xf32> to vector<2x1xf32>
    %21 = tpu.reciprocal %20 {approx = true} : vector<2x1xf32> -> vector<2x1xf32>
    %22 = vector.broadcast %21 : vector<2x1xf32> to vector<2x4xf32>
    %23 = arith.mulf %18, %22 : vector<2x4xf32>
    %c0_13 = arith.constant 0 : index
    %c0_14 = arith.constant 0 : index
    %24 = vector.load %arg5[%c0_13, %c0_14] : memref<2x4xf32, #tpu.memory_space<vmem>>, vector<2x4xf32>
    tpu.vector_store %arg5[%c0_13, %c0_14], %23 {strides = array<i32>} : memref<2x4xf32, #tpu.memory_space<vmem>>, vector<2x4xf32>,
    %25 = vector.extract_strided_slice %12 {offsets = [0, 4], sizes = [2, 1], strides = [1, 1]} : vector<2x5xf32> to vector<2x1xf32>
    %c0_15 = arith.constant 0 : index
    %c0_16 = arith.constant 0 : index
    %26 = vector.load %arg6[%c0_15, %c0_16] : memref<2x1xf32, #tpu.memory_space<vmem>>, vector<2x1xf32>
    tpu.vector_store %arg6[%c0_15, %c0_16], %25 {strides = array<i32>} : memref<2x1xf32, #tpu.memory_space<vmem>>, vector<2x1xf32>,
    return
  }
}

</mosaic_0001>

<llo_original>
// kernel: mynet_forward.4
$region0: #{mynet_forward.4}
  #allocation0 [shape = 'u32[]', space=smem, size = 0x4, offset = 0x4, fixed_abs, tag = 'smem constant byte address 0x4 - core index']
  #allocation1 [shape = 'u32[144,128]{1,0:T(1,128)}', space=vmem, size = 0x12000, scoped, tag = 'internal scratch']
  %s0 = inlined_call_operand.vmem [shape: f32[800,256], index: 0, kind: input, shape index: {}]
  %s1 = inlined_call_operand.vmem [shape: f32[256,32], index: 1, kind: input, shape index: {}]
  %s2 = inlined_call_operand.vmem [shape: f32[1,32], index: 2, kind: input, shape index: {}]
  %s3 = inlined_call_operand.vmem [shape: f32[800,32], index: 3, kind: output, shape index: {}]
  %s4 = sld [smem:[#allocation0]]
  $region93: #{mynet_forward.4} parent=0
    _
  %s6 = ssub.s32 1, %s4
  %s7 = scalar_select 0, %s6, %s4
  $region1: #{mynet_forward.4} parent=0
    #allocation2 [shape = 'u8[524288]{0}', space=vmem, size = 0x80000, scoped, tag = 'output window, operand 0']
    loop: start=0, step=1, limit=4
    $region2: #{mynet_forward.4} parent=1 // loop_pre_header
      _
    $region3: #{mynet_forward.4} parent=1 // loop_header
      %s9 = sphi 0, %s13
      %p10 = scmp.ge.s32.totalorder %s9, 4
      %s19 = sphi 0, %s21
      %s22 = sphi 0, %s19
      %s23 = sphi 0, %s22
      %s39 = sphi 0, %s23
      %s43 = sphi 0, %s43
      %s45 = sphi 0, %s43
      %s46 = sphi 0, %s45
      %s60 = sphi 0, %s46
      %s64 = sphi 0, %s64
      %s66 = sphi 0, %s64
      %s67 = sphi 0, %s66
      %s81 = sphi 0, %s67
      %s87 = sphi 0, %s89
      %s90 = sphi 0, %s87
      %s91 = sphi 0, %s90
      %s107 = sphi 0, %s91
    $region4: #{mynet_forward.4} parent=1 // loop_header_branch
      %12 = sbr.rel (%p10) target = $region8
    $region5: #{mynet_forward.4} parent=1 // loop_body
      %s14 = ssub.s32 %s9, 1
      %s15 = ssub.s32 %s9, 2
      %s16 = sadd.s32 %s9, 1
      %s17 = ssub.s32 %s9, %s16
      %p18 = scmp.eq.s32.totalorder %s17, 0
      %s20 = sadd.s32 %s19, 1
      %s21 = scalar_select %p18, %s19, %s20
      %p24 = pneg %p18
      %p25 = scmp.eq.s32.totalorder %s9, 1
      %p26 = por %p24, %p25
      %p27 = scmp.ne.s32.totalorder %s19, %s22
      %p28 = scmp.eq.s32.totalorder %s9, 0
      %p29 = por %p27, %p28
      %p30 = scmp.ne.s32.totalorder %s19, %s22
      %p31 = scmp.eq.s32.totalorder %s14, 1
      %p32 = por %p30, %p31
      %p33 = scmp.ne.s32.totalorder %s22, %s23
      %p34 = scmp.eq.s32.totalorder %s14, 0
      %p35 = por %p33, %p34
      %p36 = scmp.ne.s32.totalorder %s22, %s23
      %p37 = scmp.eq.s32.totalorder %s15, 1
      %p38 = por %p36, %p37
      %p40 = scmp.ne.s32.totalorder %s23, %s39
      %p41 = scmp.eq.s32.totalorder %s15, 0
      %p42 = por %p40, %p41
      %s44 = sadd.s32 %s43, 1
      %p47 = scmp.eq.s32.totalorder %s9, 1
      %p48 = scmp.ne.s32.totalorder %s43, %s45
      %p49 = scmp.eq.s32.totalorder %s9, 0
      %p50 = por %p48, %p49
      %p51 = scmp.ne.s32.totalorder %s43, %s45
      %p52 = scmp.eq.s32.totalorder %s14, 1
      %p53 = por %p51, %p52
      %p54 = scmp.ne.s32.totalorder %s45, %s46
      %p55 = scmp.eq.s32.totalorder %s14, 0
      %p56 = por %p54, %p55
      %p57 = scmp.ne.s32.totalorder %s45, %s46
      %p58 = scmp.eq.s32.totalorder %s15, 1
      %p59 = por %p57, %p58
      %p61 = scmp.ne.s32.totalorder %s46, %s60
      %p62 = scmp.eq.s32.totalorder %s15, 0
      %p63 = por %p61, %p62
      %s65 = sadd.s32 %s64, 1
      %p68 = scmp.eq.s32.totalorder %s9, 1
      %p69 = scmp.ne.s32.totalorder %s64, %s66
      %p70 = scmp.eq.s32.totalorder %s9, 0
      %p71 = por %p69, %p70
      %p72 = scmp.ne.s32.totalorder %s64, %s66
      %p73 = scmp.eq.s32.totalorder %s14, 1
      %p74 = por %p72, %p73
      %p75 = scmp.ne.s32.totalorder %s66, %s67
      %p76 = scmp.eq.s32.totalorder %s14, 0
      %p77 = por %p75, %p76
      %p78 = scmp.ne.s32.totalorder %s66, %s67
      %p79 = scmp.eq.s32.totalorder %s15, 1
      %p80 = por %p78, %p79
      %p82 = scmp.ne.s32.totalorder %s67, %s81
      %p83 = scmp.eq.s32.totalorder %s15, 0
      %p84 = por %p82, %p83
      %s85 = ssub.s32 %s9, %s16
      %p86 = scmp.eq.s32.totalorder %s85, 0
      %s88 = sadd.s32 %s87, 1
      %s89 = scalar_select %p86, %s87, %s88
      %p92 = pneg %p86
      %p93 = scmp.eq.s32.totalorder %s9, 1
      %p94 = por %p92, %p93
      %p95 = scmp.ne.s32.totalorder %s87, %s90
      %p96 = scmp.eq.s32.totalorder %s9, 0
      %p97 = por %p95, %p96
      %p98 = scmp.ne.s32.totalorder %s87, %s90
      %p99 = scmp.eq.s32.totalorder %s14, 1
      %p100 = por %p98, %p99
      %p101 = scmp.ne.s32.totalorder %s90, %s91
      %p102 = scmp.eq.s32.totalorder %s14, 0
      %p103 = por %p101, %p102
      %p104 = scmp.ne.s32.totalorder %s90, %s91
      %p105 = scmp.eq.s32.totalorder %s15, 1
      %p106 = por %p104, %p105
      %p108 = scmp.ne.s32.totalorder %s91, %s107
      %p109 = scmp.eq.s32.totalorder %s15, 0
      %p110 = por %p108, %p109
      %p111 = scmp.le.s32.totalorder 1, %s9
      %p112 = scmp.lt.s32.totalorder %s9, 3
      %p113 = pnand %p111, %p112
      %p114 = pneg %p113
      // Predicated region
      $region9: #{mynet_forward.4} parent=5 // pred_check
        _
      $region10: #{mynet_forward.4} parent=5 // pred_check_branch
        %116 = sbr.rel (%p113) target = $region12
      $region11: #{mynet_forward.4} parent=5 // pred_region
        %s117 = ssub.s32 %s9, 1
        // Predicated region
        $region13: #{mynet_forward.4} parent=11 // pred_check
          %p118 = pneg %p56
        $region14: #{mynet_forward.4} parent=11 // pred_check_branch
          %120 = sbr.rel (%p118) target = $region16
        $region15: #{mynet_forward.4} parent=11 // pred_region
          _
        $region16: #{mynet_forward.4} parent=11 // pred_fallthru
          _
        // Predicated region
        $region17: #{mynet_forward.4} parent=11 // pred_check
          %p121 = pneg %p77
        $region18: #{mynet_forward.4} parent=11 // pred_check_branch
          %123 = sbr.rel (%p121) target = $region20
        $region19: #{mynet_forward.4} parent=11 // pred_region
          _
        $region20: #{mynet_forward.4} parent=11 // pred_fallthru
          _
      $region12: #{mynet_forward.4} parent=5 // pred_fallthru
        _
      %p124 = scmp.lt.s32.totalorder %s9, 2
      // Predicated region
      $region21: #{mynet_forward.4} parent=5 // pred_check
        %p125 = pneg %p124
      $region22: #{mynet_forward.4} parent=5 // pred_check_branch
        %127 = sbr.rel (%p125) target = $region24
      $region23: #{mynet_forward.4} parent=5 // pred_region
        // Predicated region
        $region25: #{mynet_forward.4} parent=23 // pred_check
          %p128 = pneg %p29
        $region26: #{mynet_forward.4} parent=23 // pred_check_branch
          %130 = sbr.rel (%p128) target = $region28
        $region27: #{mynet_forward.4} parent=23 // pred_region
          %s131 = smul.u32 64, %s9
          %s132 = ssub.s32 100, %s131
          %p133 = scmp.lt.s32.totalorder %s132, 64
          %s134 = scalar_select %p133, %s132, 64
          %s135 = smul.u32 128, %s134
          %s136 = smul.u32 %s135, 2
          %p137 = scmp.lt.s32.totalorder %s131, 99
          %s138 = scalar_select %p137, %s131, 99
          %s139 = smul.addr %s138, 2
          %s140 = smul.addr %s139, 8
          %s141 = scalar_lea.vmem %s0, %s140
          %s142 = smul.u32 64, %s9
          %s143 = ssub.s32 100, %s142
          %p144 = scmp.lt.s32.totalorder %s143, 64
          %s145 = scalar_select %p144, %s143, 64
          %s146 = smul.u32 128, %s145
          %s147 = smul.u32 %s146, 2
        $region28: #{mynet_forward.4} parent=23 // pred_fallthru
          _
      $region24: #{mynet_forward.4} parent=5 // pred_fallthru
        _
      %p148 = scmp.le.s32.totalorder 1, %s9
      %p149 = scmp.lt.s32.totalorder %s9, 3
      %p150 = pnand %p148, %p149
      %p151 = pneg %p150
      // Predicated region
      $region29: #{mynet_forward.4} parent=5 // pred_check
        _
      $region30: #{mynet_forward.4} parent=5 // pred_check_branch
        %153 = sbr.rel (%p150) target = $region32
      $region31: #{mynet_forward.4} parent=5 // pred_region
        %s154 = ssub.s32 %s9, 1
        %s155 = smul.u32 64, %s14
        %s156 = ssub.s32 100, %s155
        %p157 = scmp.lt.s32.totalorder %s156, 64
        %s158 = scalar_select %p157, %s156, 64
        %s159 = smul.u32 128, %s158
        %s160 = smul.u32 %s159, 2
        %p161 = scmp.lt.s32.totalorder %s155, 99
        %s162 = scalar_select %p161, %s155, 99
        %s163 = smul.addr %s162, 2
        %s164 = smul.addr %s163, 8
        %s165 = scalar_lea.vmem %s0, %s164
        %p166 = pneg %p35
        %p167 = pneg %p32
        %p168 = pneg %p56
        %p169 = pneg %p53
        %p170 = pneg %p77
        %p171 = pneg %p74
        %p172 = pneg %p103
        %p173 = pneg %p100
        %s174 = sand.u32 %s90, 1
        %s175 = sand.u32 %s90, 1
        %s176 = smul.addr %s175, 512
        %s177 = scalar_lea.vmem [#allocation2], %s176
        %s178 = smul.u32 64, %s14
        %s179 = ssub.s32 100, %s178
        %p180 = scmp.lt.s32.totalorder %s179, 64
        %s181 = scalar_select %p180, %s179, 64
        %s182 = smul.u32 128, %s181
        %s183 = smul.u32 %s182, 2
        %p184 = scmp.lt.s32.totalorder %s178, 99
        %s185 = scalar_select %p184, %s178, 99
        %s186 = smul.addr %s185, 2
        %s187 = smul.addr %s186, 8
        %s188 = scalar_lea.vmem %s0, %s187
        %s189 = smul.u32 64, %s14
        %s190 = ssub.s32 100, %s189
        %p191 = scmp.lt.s32.totalorder %s190, 64
        %s192 = scalar_select %p191, %s190, 64
        %s193 = smul.u32 128, %s192
        %s194 = smul.u32 %s193, 2
        %s195 = smul.u32 64, %s14
        %s196 = ssub.s32 100, %s195
        %p197 = scmp.lt.s32.totalorder %s196, 64
        %s198 = scalar_select %p197, %s196, 64
        %s199 = smul.u32 128, %s198
        %v200 = vld [vmem:[%s188] sm:$0xff]
        %v201 = vld [vmem:[%s188 + $0x8] sm:$0xff]
        %v202 = vld [vmem:[%s188 + $0x10] sm:$0xff]
        %v203 = vld [vmem:[%s188 + $0x18] sm:$0xff]
        %v204 = vld [vmem:[%s188 + $0x20] sm:$0xff]
        %v205 = vld [vmem:[%s188 + $0x28] sm:$0xff]
        %v206 = vld [vmem:[%s188 + $0x30] sm:$0xff]
        %v207 = vld [vmem:[%s188 + $0x38] sm:$0xff]
        %v208 = vld [vmem:[%s188 + $0x40] sm:$0xff]
        %v209 = vld [vmem:[%s188 + $0x48] sm:$0xff]
        %v210 = vld [vmem:[%s188 + $0x50] sm:$0xff]
        %v211 = vld [vmem:[%s188 + $0x58] sm:$0xff]
        %v212 = vld [vmem:[%s188 + $0x60] sm:$0xff]
        %v213 = vld [vmem:[%s188 + $0x68] sm:$0xff]
        %v214 = vld [vmem:[%s188 + $0x70] sm:$0xff]
        %v215 = vld [vmem:[%s188 + $0x78] sm:$0xff]
        %v216 = vld [vmem:[%s188 + $0x80] sm:$0xff]
        %v217 = vld [vmem:[%s188 + $0x88] sm:$0xff]
        %v218 = vld [vmem:[%s188 + $0x90] sm:$0xff]
        %v219 = vld [vmem:[%s188 + $0x98] sm:$0xff]
        %v220 = vld [vmem:[%s188 + $0xa0] sm:$0xff]
        %v221 = vld [vmem:[%s188 + $0xa8] sm:$0xff]
        %v222 = vld [vmem:[%s188 + $0xb0] sm:$0xff]
        %v223 = vld [vmem:[%s188 + $0xb8] sm:$0xff]
        %v224 = vld [vmem:[%s188 + $0xc0] sm:$0xff]
        %v225 = vld [vmem:[%s188 + $0xc8] sm:$0xff]
        %v226 = vld [vmem:[%s188 + $0xd0] sm:$0xff]
        %v227 = vld [vmem:[%s188 + $0xd8] sm:$0xff]
        %v228 = vld [vmem:[%s188 + $0xe0] sm:$0xff]
        %v229 = vld [vmem:[%s188 + $0xe8] sm:$0xff]
        %v230 = vld [vmem:[%s188 + $0xf0] sm:$0xff]
        %v231 = vld [vmem:[%s188 + $0xf8] sm:$0xff]
        %v232 = vld [vmem:[%s188 + $0x100] sm:$0xff]
        %v233 = vld [vmem:[%s188 + $0x108] sm:$0xff]
        %v234 = vld [vmem:[%s188 + $0x110] sm:$0xff]
        %v235 = vld [vmem:[%s188 + $0x118] sm:$0xff]
        %v236 = vld [vmem:[%s188 + $0x120] sm:$0xff]
        %v237 = vld [vmem:[%s188 + $0x128] sm:$0xff]
        %v238 = vld [vmem:[%s188 + $0x130] sm:$0xff]
        %v239 = vld [vmem:[%s188 + $0x138] sm:$0xff]
        %v240 = vld [vmem:[%s188 + $0x140] sm:$0xff]
        %v241 = vld [vmem:[%s188 + $0x148] sm:$0xff]
        %v242 = vld [vmem:[%s188 + $0x150] sm:$0xff]
        %v243 = vld [vmem:[%s188 + $0x158] sm:$0xff]
        %v244 = vld [vmem:[%s188 + $0x160] sm:$0xff]
        %v245 = vld [vmem:[%s188 + $0x168] sm:$0xff]
        %v246 = vld [vmem:[%s188 + $0x170] sm:$0xff]
        %v247 = vld [vmem:[%s188 + $0x178] sm:$0xff]
        %v248 = vld [vmem:[%s188 + $0x180] sm:$0xff]
        %v249 = vld [vmem:[%s188 + $0x188] sm:$0xff]
        %v250 = vld [vmem:[%s188 + $0x190] sm:$0xff]
        %v251 = vld [vmem:[%s188 + $0x198] sm:$0xff]
        %v252 = vld [vmem:[%s188 + $0x1a0] sm:$0xff]
        %v253 = vld [vmem:[%s188 + $0x1a8] sm:$0xff]
        %v254 = vld [vmem:[%s188 + $0x1b0] sm:$0xff]
        %v255 = vld [vmem:[%s188 + $0x1b8] sm:$0xff]
        %v256 = vld [vmem:[%s188 + $0x1c0] sm:$0xff]
        %v257 = vld [vmem:[%s188 + $0x1c8] sm:$0xff]
        %v258 = vld [vmem:[%s188 + $0x1d0] sm:$0xff]
        %v259 = vld [vmem:[%s188 + $0x1d8] sm:$0xff]
        %v260 = vld [vmem:[%s188 + $0x1e0] sm:$0xff]
        %v261 = vld [vmem:[%s188 + $0x1e8] sm:$0xff]
        %v262 = vld [vmem:[%s188 + $0x1f0] sm:$0xff]
        %v263 = vld [vmem:[%s188 + $0x1f8] sm:$0xff]
        %v264 = vld [vmem:[%s188 + $0x200] sm:$0xff]
        %v265 = vld [vmem:[%s188 + $0x208] sm:$0xff]
        %v266 = vld [vmem:[%s188 + $0x210] sm:$0xff]
        %v267 = vld [vmem:[%s188 + $0x218] sm:$0xff]
        %v268 = vld [vmem:[%s188 + $0x220] sm:$0xff]
        %v269 = vld [vmem:[%s188 + $0x228] sm:$0xff]
        %v270 = vld [vmem:[%s188 + $0x230] sm:$0xff]
        %v271 = vld [vmem:[%s188 + $0x238] sm:$0xff]
        %v272 = vld [vmem:[%s188 + $0x240] sm:$0xff]
        %v273 = vld [vmem:[%s188 + $0x248] sm:$0xff]
        %v274 = vld [vmem:[%s188 + $0x250] sm:$0xff]
        %v275 = vld [vmem:[%s188 + $0x258] sm:$0xff]
        %v276 = vld [vmem:[%s188 + $0x260] sm:$0xff]
        %v277 = vld [vmem:[%s188 + $0x268] sm:$0xff]
        %v278 = vld [vmem:[%s188 + $0x270] sm:$0xff]
        %v279 = vld [vmem:[%s188 + $0x278] sm:$0xff]
        %v280 = vld [vmem:[%s188 + $0x280] sm:$0xff]
        %v281 = vld [vmem:[%s188 + $0x288] sm:$0xff]
        %v282 = vld [vmem:[%s188 + $0x290] sm:$0xff]
        %v283 = vld [vmem:[%s188 + $0x298] sm:$0xff]
        %v284 = vld [vmem:[%s188 + $0x2a0] sm:$0xff]
        %v285 = vld [vmem:[%s188 + $0x2a8] sm:$0xff]
        %v286 = vld [vmem:[%s188 + $0x2b0] sm:$0xff]
        %v287 = vld [vmem:[%s188 + $0x2b8] sm:$0xff]
        %v288 = vld [vmem:[%s188 + $0x2c0] sm:$0xff]
        %v289 = vld [vmem:[%s188 + $0x2c8] sm:$0xff]
        %v290 = vld [vmem:[%s188 + $0x2d0] sm:$0xff]
        %v291 = vld [vmem:[%s188 + $0x2d8] sm:$0xff]
        %v292 = vld [vmem:[%s188 + $0x2e0] sm:$0xff]
        %v293 = vld [vmem:[%s188 + $0x2e8] sm:$0xff]
        %v294 = vld [vmem:[%s188 + $0x2f0] sm:$0xff]
        %v295 = vld [vmem:[%s188 + $0x2f8] sm:$0xff]
        %v296 = vld [vmem:[%s188 + $0x300] sm:$0xff]
        %v297 = vld [vmem:[%s188 + $0x308] sm:$0xff]
        %v298 = vld [vmem:[%s188 + $0x310] sm:$0xff]
        %v299 = vld [vmem:[%s188 + $0x318] sm:$0xff]
        %v300 = vld [vmem:[%s188 + $0x320] sm:$0xff]
        %v301 = vld [vmem:[%s188 + $0x328] sm:$0xff]
        %v302 = vld [vmem:[%s188 + $0x330] sm:$0xff]
        %v303 = vld [vmem:[%s188 + $0x338] sm:$0xff]
        %v304 = vld [vmem:[%s188 + $0x340] sm:$0xff]
        %v305 = vld [vmem:[%s188 + $0x348] sm:$0xff]
        %v306 = vld [vmem:[%s188 + $0x350] sm:$0xff]
        %v307 = vld [vmem:[%s188 + $0x358] sm:$0xff]
        %v308 = vld [vmem:[%s188 + $0x360] sm:$0xff]
        %v309 = vld [vmem:[%s188 + $0x368] sm:$0xff]
        %v310 = vld [vmem:[%s188 + $0x370] sm:$0xff]
        %v311 = vld [vmem:[%s188 + $0x378] sm:$0xff]
        %v312 = vld [vmem:[%s188 + $0x380] sm:$0xff]
        %v313 = vld [vmem:[%s188 + $0x388] sm:$0xff]
        %v314 = vld [vmem:[%s188 + $0x390] sm:$0xff]
        %v315 = vld [vmem:[%s188 + $0x398] sm:$0xff]
        %v316 = vld [vmem:[%s188 + $0x3a0] sm:$0xff]
        %v317 = vld [vmem:[%s188 + $0x3a8] sm:$0xff]
        %v318 = vld [vmem:[%s188 + $0x3b0] sm:$0xff]
        %v319 = vld [vmem:[%s188 + $0x3b8] sm:$0xff]
        %v320 = vld [vmem:[%s188 + $0x3c0] sm:$0xff]
        %v321 = vld [vmem:[%s188 + $0x3c8] sm:$0xff]
        %v322 = vld [vmem:[%s188 + $0x3d0] sm:$0xff]
        %v323 = vld [vmem:[%s188 + $0x3d8] sm:$0xff]
        %v324 = vld [vmem:[%s188 + $0x3e0] sm:$0xff]
        %v325 = vld [vmem:[%s188 + $0x3e8] sm:$0xff]
        %v326 = vld [vmem:[%s188 + $0x3f0] sm:$0xff]
        %v327 = vld [vmem:[%s188 + $0x3f8] sm:$0xff]
        %v328 = vld [vmem:[%s1] sm:$0xff]
        %v329 = vld [vmem:[%s1 + $0x8] sm:$0xff]
        %v330 = vld [vmem:[%s1 + $0x10] sm:$0xff]
        %v331 = vld [vmem:[%s1 + $0x18] sm:$0xff]
        %v332 = vld [vmem:[%s1 + $0x20] sm:$0xff]
        %v333 = vld [vmem:[%s1 + $0x28] sm:$0xff]
        %v334 = vld [vmem:[%s1 + $0x30] sm:$0xff]
        %v335 = vld [vmem:[%s1 + $0x38] sm:$0xff]
        %v336 = vld [vmem:[%s1 + $0x40] sm:$0xff]
        %v337 = vld [vmem:[%s1 + $0x48] sm:$0xff]
        %v338 = vld [vmem:[%s1 + $0x50] sm:$0xff]
        %v339 = vld [vmem:[%s1 + $0x58] sm:$0xff]
        %v340 = vld [vmem:[%s1 + $0x60] sm:$0xff]
        %v341 = vld [vmem:[%s1 + $0x68] sm:$0xff]
        %v342 = vld [vmem:[%s1 + $0x70] sm:$0xff]
        %v343 = vld [vmem:[%s1 + $0x78] sm:$0xff]
        %v344 = vld [vmem:[%s1 + $0x80] sm:$0xff]
        %v345 = vld [vmem:[%s1 + $0x88] sm:$0xff]
        %v346 = vld [vmem:[%s1 + $0x90] sm:$0xff]
        %v347 = vld [vmem:[%s1 + $0x98] sm:$0xff]
        %v348 = vld [vmem:[%s1 + $0xa0] sm:$0xff]
        %v349 = vld [vmem:[%s1 + $0xa8] sm:$0xff]
        %v350 = vld [vmem:[%s1 + $0xb0] sm:$0xff]
        %v351 = vld [vmem:[%s1 + $0xb8] sm:$0xff]
        %v352 = vld [vmem:[%s1 + $0xc0] sm:$0xff]
        %v353 = vld [vmem:[%s1 + $0xc8] sm:$0xff]
        %v354 = vld [vmem:[%s1 + $0xd0] sm:$0xff]
        %v355 = vld [vmem:[%s1 + $0xd8] sm:$0xff]
        %v356 = vld [vmem:[%s1 + $0xe0] sm:$0xff]
        %v357 = vld [vmem:[%s1 + $0xe8] sm:$0xff]
        %v358 = vld [vmem:[%s1 + $0xf0] sm:$0xff]
        %v359 = vld [vmem:[%s1 + $0xf8] sm:$0xff]
        %v360 = vld [vmem:[%s2] sm:$0x1]
        %v362 = vlaneseq
        %v363 = vshrl.u32 %v362, 7
        %v364 = vsub.s32 0, %v363
        %v365 = vrot.slane %v360, %v364
        %367 = vmatprep.subr.mxu0 0.0
        %368 = vmatpush1.msra.mxu0 %v343
        %369 = vmatprep.subr.mxu0 0.0
        %370 = vmatpush1.msra.mxu0 %v342
        %371 = vmatprep.subr.mxu0 0.0
        %372 = vmatpush1.msra.mxu0 %v341
        %373 = vmatprep.subr.mxu0 0.0
        %374 = vmatpush1.msra.mxu0 %v340
        %375 = vmatprep.subr.mxu0 0.0
        %376 = vmatpush1.msra.mxu0 %v339
        %377 = vmatprep.subr.mxu0 0.0
        %378 = vmatpush1.msra.mxu0 %v338
        %379 = vmatprep.subr.mxu0 0.0
        %380 = vmatpush1.msra.mxu0 %v337
        %381 = vmatprep.subr.mxu0 0.0
        %382 = vmatpush1.msra.mxu0 %v336
        %383 = vmatprep.subr.mxu0 0.0
        %384 = vmatpush1.msra.mxu0 %v335
        %385 = vmatprep.subr.mxu0 0.0
        %386 = vmatpush1.msra.mxu0 %v334
        %387 = vmatprep.subr.mxu0 0.0
        %388 = vmatpush1.msra.mxu0 %v333
        %389 = vmatprep.subr.mxu0 0.0
        %390 = vmatpush1.msra.mxu0 %v332
        %391 = vmatprep.subr.mxu0 0.0
        %392 = vmatpush1.msra.mxu0 %v331
        %393 = vmatprep.subr.mxu0 0.0
        %394 = vmatpush1.msra.mxu0 %v330
        %395 = vmatprep.subr.mxu0 0.0
        %396 = vmatpush1.msra.mxu0 %v329
        %397 = vmatprep.subr.mxu0 0.0
        %398 = vmatpush1.msra.mxu0 %v328
        %399 = vmatprep.subr.mxu0 0.0
        %400 = vmatpush2.msra.mxu0 %v359
        %401 = vmatprep.subr.mxu0 0.0
        %402 = vmatpush2.msra.mxu0 %v358
        %403 = vmatprep.subr.mxu0 0.0
        %404 = vmatpush2.msra.mxu0 %v357
        %405 = vmatprep.subr.mxu0 0.0
        %406 = vmatpush2.msra.mxu0 %v356
        %407 = vmatprep.subr.mxu0 0.0
        %408 = vmatpush2.msra.mxu0 %v355
        %409 = vmatprep.subr.mxu0 0.0
        %410 = vmatpush2.msra.mxu0 %v354
        %411 = vmatprep.subr.mxu0 0.0
        %412 = vmatpush2.msra.mxu0 %v353
        %413 = vmatprep.subr.mxu0 0.0
        %414 = vmatpush2.msra.mxu0 %v352
        %415 = vmatprep.subr.mxu0 0.0
        %416 = vmatpush2.msra.mxu0 %v351
        %417 = vmatprep.subr.mxu0 0.0
        %418 = vmatpush2.msra.mxu0 %v350
        %419 = vmatprep.subr.mxu0 0.0
        %420 = vmatpush2.msra.mxu0 %v349
        %421 = vmatprep.subr.mxu0 0.0
        %422 = vmatpush2.msra.mxu0 %v348
        %423 = vmatprep.subr.mxu0 0.0
        %424 = vmatpush2.msra.mxu0 %v347
        %425 = vmatprep.subr.mxu0 0.0
        %426 = vmatpush2.msra.mxu0 %v346
        %427 = vmatprep.subr.mxu0 0.0
        %428 = vmatpush2.msra.mxu0 %v345
        %429 = vmatprep.subr.mxu0 0.0
        %430 = vmatpush2.msra.mxu0 %v344
        %431 = vmatprep.mubr.f32.mxu0 %v201
        %432 = vmatmul.mubr.f32.gmra.mxu0 %v200
        %v433 = vpop.f32.mrf.mxu0
        %v434 = vadd.f32 %v365, %v433
        %v435 = vpop.f32.mrf.mxu0
        %436 = vmatprep.mubr.f32.mxu0 %v203
        %437 = vmatmul.mubr.f32.gmra.mxu0 %v202
        %v438 = vpop.f32.mrf.mxu0
        %v439 = vadd.f32 %v365, %v438
        %v440 = vpop.f32.mrf.mxu0
        %441 = vmatprep.mubr.f32.mxu0 %v205
        %442 = vmatmul.mubr.f32.gmra.mxu0 %v204
        %v443 = vpop.f32.mrf.mxu0
        %v444 = vadd.f32 %v365, %v443
        %v445 = vpop.f32.mrf.mxu0
        %446 = vmatprep.mubr.f32.mxu0 %v207
        %447 = vmatmul.mubr.f32.gmra.mxu0 %v206
        %v448 = vpop.f32.mrf.mxu0
        %v449 = vadd.f32 %v365, %v448
        %v450 = vpop.f32.mrf.mxu0
        %451 = vmatprep.mubr.f32.mxu0 %v209
        %452 = vmatmul.mubr.f32.gmra.mxu0 %v208
        %v453 = vpop.f32.mrf.mxu0
        %v454 = vadd.f32 %v365, %v453
        %v455 = vpop.f32.mrf.mxu0
        %456 = vmatprep.mubr.f32.mxu0 %v211
        %457 = vmatmul.mubr.f32.gmra.mxu0 %v210
        %v458 = vpop.f32.mrf.mxu0
        %v459 = vadd.f32 %v365, %v458
        %v460 = vpop.f32.mrf.mxu0
        %461 = vmatprep.mubr.f32.mxu0 %v213
        %462 = vmatmul.mubr.f32.gmra.mxu0 %v212
        %v463 = vpop.f32.mrf.mxu0
        %v464 = vadd.f32 %v365, %v463
        %v465 = vpop.f32.mrf.mxu0
        %466 = vmatprep.mubr.f32.mxu0 %v215
        %467 = vmatmul.mubr.f32.gmra.mxu0 %v214
        %v468 = vpop.f32.mrf.mxu0
        %v469 = vadd.f32 %v365, %v468
        %v470 = vpop.f32.mrf.mxu0
        %471 = vmatprep.mubr.f32.mxu0 %v217
        %472 = vmatmul.mubr.f32.gmra.mxu0 %v216
        %v473 = vpop.f32.mrf.mxu0
        %v474 = vadd.f32 %v365, %v473
        %v475 = vpop.f32.mrf.mxu0
        %476 = vmatprep.mubr.f32.mxu0 %v219
        %477 = vmatmul.mubr.f32.gmra.mxu0 %v218
        %v478 = vpop.f32.mrf.mxu0
        %v479 = vadd.f32 %v365, %v478
        %v480 = vpop.f32.mrf.mxu0
        %481 = vmatprep.mubr.f32.mxu0 %v221
        %482 = vmatmul.mubr.f32.gmra.mxu0 %v220
        %v483 = vpop.f32.mrf.mxu0
        %v484 = vadd.f32 %v365, %v483
        %v485 = vpop.f32.mrf.mxu0
        %486 = vmatprep.mubr.f32.mxu0 %v223
        %487 = vmatmul.mubr.f32.gmra.mxu0 %v222
        %v488 = vpop.f32.mrf.mxu0
        %v489 = vadd.f32 %v365, %v488
        %v490 = vpop.f32.mrf.mxu0
        %491 = vmatprep.mubr.f32.mxu0 %v225
        %492 = vmatmul.mubr.f32.gmra.mxu0 %v224
        %v493 = vpop.f32.mrf.mxu0
        %v494 = vadd.f32 %v365, %v493
        %v495 = vpop.f32.mrf.mxu0
        %496 = vmatprep.mubr.f32.mxu0 %v227
        %497 = vmatmul.mubr.f32.gmra.mxu0 %v226
        %v498 = vpop.f32.mrf.mxu0
        %v499 = vadd.f32 %v365, %v498
        %v500 = vpop.f32.mrf.mxu0
        %501 = vmatprep.mubr.f32.mxu0 %v229
        %502 = vmatmul.mubr.f32.gmra.mxu0 %v228
        %v503 = vpop.f32.mrf.mxu0
        %v504 = vadd.f32 %v365, %v503
        %v505 = vpop.f32.mrf.mxu0
        %506 = vmatprep.mubr.f32.mxu0 %v231
        %507 = vmatmul.mubr.f32.gmra.mxu0 %v230
        %v508 = vpop.f32.mrf.mxu0
        %v509 = vadd.f32 %v365, %v508
        %v510 = vpop.f32.mrf.mxu0
        %511 = vmatprep.mubr.f32.mxu0 %v233
        %512 = vmatmul.mubr.f32.gmra.mxu0 %v232
        %v513 = vpop.f32.mrf.mxu0
        %v514 = vadd.f32 %v365, %v513
        %v515 = vpop.f32.mrf.mxu0
        %516 = vmatprep.mubr.f32.mxu0 %v235
        %517 = vmatmul.mubr.f32.gmra.mxu0 %v234
        %v518 = vpop.f32.mrf.mxu0
        %v519 = vadd.f32 %v365, %v518
        %v520 = vpop.f32.mrf.mxu0
        %521 = vmatprep.mubr.f32.mxu0 %v237
        %522 = vmatmul.mubr.f32.gmra.mxu0 %v236
        %v523 = vpop.f32.mrf.mxu0
        %v524 = vadd.f32 %v365, %v523
        %v525 = vpop.f32.mrf.mxu0
        %526 = vmatprep.mubr.f32.mxu0 %v239
        %527 = vmatmul.mubr.f32.gmra.mxu0 %v238
        %v528 = vpop.f32.mrf.mxu0
        %v529 = vadd.f32 %v365, %v528
        %v530 = vpop.f32.mrf.mxu0
        %531 = vmatprep.mubr.f32.mxu0 %v241
        %532 = vmatmul.mubr.f32.gmra.mxu0 %v240
        %v533 = vpop.f32.mrf.mxu0
        %v534 = vadd.f32 %v365, %v533
        %v535 = vpop.f32.mrf.mxu0
        %536 = vmatprep.mubr.f32.mxu0 %v243
        %537 = vmatmul.mubr.f32.gmra.mxu0 %v242
        %v538 = vpop.f32.mrf.mxu0
        %v539 = vadd.f32 %v365, %v538
        %v540 = vpop.f32.mrf.mxu0
        %541 = vmatprep.mubr.f32.mxu0 %v245
        %542 = vmatmul.mubr.f32.gmra.mxu0 %v244
        %v543 = vpop.f32.mrf.mxu0
        %v544 = vadd.f32 %v365, %v543
        %v545 = vpop.f32.mrf.mxu0
        %546 = vmatprep.mubr.f32.mxu0 %v247
        %547 = vmatmul.mubr.f32.gmra.mxu0 %v246
        %v548 = vpop.f32.mrf.mxu0
        %v549 = vadd.f32 %v365, %v548
        %v550 = vpop.f32.mrf.mxu0
        %551 = vmatprep.mubr.f32.mxu0 %v249
        %552 = vmatmul.mubr.f32.gmra.mxu0 %v248
        %v553 = vpop.f32.mrf.mxu0
        %v554 = vadd.f32 %v365, %v553
        %v555 = vpop.f32.mrf.mxu0
        %556 = vmatprep.mubr.f32.mxu0 %v251
        %557 = vmatmul.mubr.f32.gmra.mxu0 %v250
        %v558 = vpop.f32.mrf.mxu0
        %v559 = vadd.f32 %v365, %v558
        %v560 = vpop.f32.mrf.mxu0
        %561 = vmatprep.mubr.f32.mxu0 %v253
        %562 = vmatmul.mubr.f32.gmra.mxu0 %v252
        %v563 = vpop.f32.mrf.mxu0
        %v564 = vadd.f32 %v365, %v563
        %v565 = vpop.f32.mrf.mxu0
        %566 = vmatprep.mubr.f32.mxu0 %v255
        %567 = vmatmul.mubr.f32.gmra.mxu0 %v254
        %v568 = vpop.f32.mrf.mxu0
        %v569 = vadd.f32 %v365, %v568
        %v570 = vpop.f32.mrf.mxu0
        %571 = vmatprep.mubr.f32.mxu0 %v257
        %572 = vmatmul.mubr.f32.gmra.mxu0 %v256
        %v573 = vpop.f32.mrf.mxu0
        %v574 = vadd.f32 %v365, %v573
        %v575 = vpop.f32.mrf.mxu0
        %576 = vmatprep.mubr.f32.mxu0 %v259
        %577 = vmatmul.mubr.f32.gmra.mxu0 %v258
        %v578 = vpop.f32.mrf.mxu0
        %v579 = vadd.f32 %v365, %v578
        %v580 = vpop.f32.mrf.mxu0
        %581 = vmatprep.mubr.f32.mxu0 %v261
        %582 = vmatmul.mubr.f32.gmra.mxu0 %v260
        %v583 = vpop.f32.mrf.mxu0
        %v584 = vadd.f32 %v365, %v583
        %v585 = vpop.f32.mrf.mxu0
        %586 = vmatprep.mubr.f32.mxu0 %v263
        %587 = vmatmul.mubr.f32.gmra.mxu0 %v262
        %v588 = vpop.f32.mrf.mxu0
        %v589 = vadd.f32 %v365, %v588
        %v590 = vpop.f32.mrf.mxu0
        %591 = vmatprep.mubr.f32.mxu0 %v265
        %592 = vmatmul.mubr.f32.gmra.mxu0 %v264
        %v593 = vpop.f32.mrf.mxu0
        %v594 = vadd.f32 %v365, %v593
        %v595 = vpop.f32.mrf.mxu0
        %596 = vmatprep.mubr.f32.mxu0 %v267
        %597 = vmatmul.mubr.f32.gmra.mxu0 %v266
        %v598 = vpop.f32.mrf.mxu0
        %v599 = vadd.f32 %v365, %v598
        %v600 = vpop.f32.mrf.mxu0
        %601 = vmatprep.mubr.f32.mxu0 %v269
        %602 = vmatmul.mubr.f32.gmra.mxu0 %v268
        %v603 = vpop.f32.mrf.mxu0
        %v604 = vadd.f32 %v365, %v603
        %v605 = vpop.f32.mrf.mxu0
        %606 = vmatprep.mubr.f32.mxu0 %v271
        %607 = vmatmul.mubr.f32.gmra.mxu0 %v270
        %v608 = vpop.f32.mrf.mxu0
        %v609 = vadd.f32 %v365, %v608
        %v610 = vpop.f32.mrf.mxu0
        %611 = vmatprep.mubr.f32.mxu0 %v273
        %612 = vmatmul.mubr.f32.gmra.mxu0 %v272
        %v613 = vpop.f32.mrf.mxu0
        %v614 = vadd.f32 %v365, %v613
        %v615 = vpop.f32.mrf.mxu0
        %616 = vmatprep.mubr.f32.mxu0 %v275
        %617 = vmatmul.mubr.f32.gmra.mxu0 %v274
        %v618 = vpop.f32.mrf.mxu0
        %v619 = vadd.f32 %v365, %v618
        %v620 = vpop.f32.mrf.mxu0
        %621 = vmatprep.mubr.f32.mxu0 %v277
        %622 = vmatmul.mubr.f32.gmra.mxu0 %v276
        %v623 = vpop.f32.mrf.mxu0
        %v624 = vadd.f32 %v365, %v623
        %v625 = vpop.f32.mrf.mxu0
        %626 = vmatprep.mubr.f32.mxu0 %v279
        %627 = vmatmul.mubr.f32.gmra.mxu0 %v278
        %v628 = vpop.f32.mrf.mxu0
        %v629 = vadd.f32 %v365, %v628
        %v630 = vpop.f32.mrf.mxu0
        %631 = vmatprep.mubr.f32.mxu0 %v281
        %632 = vmatmul.mubr.f32.gmra.mxu0 %v280
        %v633 = vpop.f32.mrf.mxu0
        %v634 = vadd.f32 %v365, %v633
        %v635 = vpop.f32.mrf.mxu0
        %636 = vmatprep.mubr.f32.mxu0 %v283
        %637 = vmatmul.mubr.f32.gmra.mxu0 %v282
        %v638 = vpop.f32.mrf.mxu0
        %v639 = vadd.f32 %v365, %v638
        %v640 = vpop.f32.mrf.mxu0
        %641 = vmatprep.mubr.f32.mxu0 %v285
        %642 = vmatmul.mubr.f32.gmra.mxu0 %v284
        %v643 = vpop.f32.mrf.mxu0
        %v644 = vadd.f32 %v365, %v643
        %v645 = vpop.f32.mrf.mxu0
        %646 = vmatprep.mubr.f32.mxu0 %v287
        %647 = vmatmul.mubr.f32.gmra.mxu0 %v286
        %v648 = vpop.f32.mrf.mxu0
        %v649 = vadd.f32 %v365, %v648
        %v650 = vpop.f32.mrf.mxu0
        %651 = vmatprep.mubr.f32.mxu0 %v289
        %652 = vmatmul.mubr.f32.gmra.mxu0 %v288
        %v653 = vpop.f32.mrf.mxu0
        %v654 = vadd.f32 %v365, %v653
        %v655 = vpop.f32.mrf.mxu0
        %656 = vmatprep.mubr.f32.mxu0 %v291
        %657 = vmatmul.mubr.f32.gmra.mxu0 %v290
        %v658 = vpop.f32.mrf.mxu0
        %v659 = vadd.f32 %v365, %v658
        %v660 = vpop.f32.mrf.mxu0
        %661 = vmatprep.mubr.f32.mxu0 %v293
        %662 = vmatmul.mubr.f32.gmra.mxu0 %v292
        %v663 = vpop.f32.mrf.mxu0
        %v664 = vadd.f32 %v365, %v663
        %v665 = vpop.f32.mrf.mxu0
        %666 = vmatprep.mubr.f32.mxu0 %v295
        %667 = vmatmul.mubr.f32.gmra.mxu0 %v294
        %v668 = vpop.f32.mrf.mxu0
        %v669 = vadd.f32 %v365, %v668
        %v670 = vpop.f32.mrf.mxu0
        %671 = vmatprep.mubr.f32.mxu0 %v297
        %672 = vmatmul.mubr.f32.gmra.mxu0 %v296
        %v673 = vpop.f32.mrf.mxu0
        %v674 = vadd.f32 %v365, %v673
        %v675 = vpop.f32.mrf.mxu0
        %676 = vmatprep.mubr.f32.mxu0 %v299
        %677 = vmatmul.mubr.f32.gmra.mxu0 %v298
        %v678 = vpop.f32.mrf.mxu0
        %v679 = vadd.f32 %v365, %v678
        %v680 = vpop.f32.mrf.mxu0
        %681 = vmatprep.mubr.f32.mxu0 %v301
        %682 = vmatmul.mubr.f32.gmra.mxu0 %v300
        %v683 = vpop.f32.mrf.mxu0
        %v684 = vadd.f32 %v365, %v683
        %v685 = vpop.f32.mrf.mxu0
        %686 = vmatprep.mubr.f32.mxu0 %v303
        %687 = vmatmul.mubr.f32.gmra.mxu0 %v302
        %v688 = vpop.f32.mrf.mxu0
        %v689 = vadd.f32 %v365, %v688
        %v690 = vpop.f32.mrf.mxu0
        %691 = vmatprep.mubr.f32.mxu0 %v305
        %692 = vmatmul.mubr.f32.gmra.mxu0 %v304
        %v693 = vpop.f32.mrf.mxu0
        %v694 = vadd.f32 %v365, %v693
        %v695 = vpop.f32.mrf.mxu0
        %696 = vmatprep.mubr.f32.mxu0 %v307
        %697 = vmatmul.mubr.f32.gmra.mxu0 %v306
        %v698 = vpop.f32.mrf.mxu0
        %v699 = vadd.f32 %v365, %v698
        %v700 = vpop.f32.mrf.mxu0
        %701 = vmatprep.mubr.f32.mxu0 %v309
        %702 = vmatmul.mubr.f32.gmra.mxu0 %v308
        %v703 = vpop.f32.mrf.mxu0
        %v704 = vadd.f32 %v365, %v703
        %v705 = vpop.f32.mrf.mxu0
        %706 = vmatprep.mubr.f32.mxu0 %v311
        %707 = vmatmul.mubr.f32.gmra.mxu0 %v310
        %v708 = vpop.f32.mrf.mxu0
        %v709 = vadd.f32 %v365, %v708
        %v710 = vpop.f32.mrf.mxu0
        %711 = vmatprep.mubr.f32.mxu0 %v313
        %712 = vmatmul.mubr.f32.gmra.mxu0 %v312
        %v713 = vpop.f32.mrf.mxu0
        %v714 = vadd.f32 %v365, %v713
        %v715 = vpop.f32.mrf.mxu0
        %716 = vmatprep.mubr.f32.mxu0 %v315
        %717 = vmatmul.mubr.f32.gmra.mxu0 %v314
        %v718 = vpop.f32.mrf.mxu0
        %v719 = vadd.f32 %v365, %v718
        %v720 = vpop.f32.mrf.mxu0
        %721 = vmatprep.mubr.f32.mxu0 %v317
        %722 = vmatmul.mubr.f32.gmra.mxu0 %v316
        %v723 = vpop.f32.mrf.mxu0
        %v724 = vadd.f32 %v365, %v723
        %v725 = vpop.f32.mrf.mxu0
        %726 = vmatprep.mubr.f32.mxu0 %v319
        %727 = vmatmul.mubr.f32.gmra.mxu0 %v318
        %v728 = vpop.f32.mrf.mxu0
        %v729 = vadd.f32 %v365, %v728
        %v730 = vpop.f32.mrf.mxu0
        %731 = vmatprep.mubr.f32.mxu0 %v321
        %732 = vmatmul.mubr.f32.gmra.mxu0 %v320
        %v733 = vpop.f32.mrf.mxu0
        %v734 = vadd.f32 %v365, %v733
        %v735 = vpop.f32.mrf.mxu0
        %736 = vmatprep.mubr.f32.mxu0 %v323
        %737 = vmatmul.mubr.f32.gmra.mxu0 %v322
        %v738 = vpop.f32.mrf.mxu0
        %v739 = vadd.f32 %v365, %v738
        %v740 = vpop.f32.mrf.mxu0
        %741 = vmatprep.mubr.f32.mxu0 %v325
        %742 = vmatmul.mubr.f32.gmra.mxu0 %v324
        %v743 = vpop.f32.mrf.mxu0
        %v744 = vadd.f32 %v365, %v743
        %v745 = vpop.f32.mrf.mxu0
        %746 = vmatprep.mubr.f32.mxu0 %v327
        %747 = vmatmul.mubr.f32.gmra.mxu0 %v326
        %v748 = vpop.f32.mrf.mxu0
        %v749 = vadd.f32 %v365, %v748
        %v750 = vpop.f32.mrf.mxu0
        %751 = vdwg.mxu0
        %v752 = vmax.f32 %v434, 0.0
        %v753 = vmax.f32 %v439, 0.0
        %v754 = vmax.f32 %v444, 0.0
        %v755 = vmax.f32 %v449, 0.0
        %v756 = vmax.f32 %v454, 0.0
        %v757 = vmax.f32 %v459, 0.0
        %v758 = vmax.f32 %v464, 0.0
        %v759 = vmax.f32 %v469, 0.0
        %v760 = vmax.f32 %v474, 0.0
        %v761 = vmax.f32 %v479, 0.0
        %v762 = vmax.f32 %v484, 0.0
        %v763 = vmax.f32 %v489, 0.0
        %v764 = vmax.f32 %v494, 0.0
        %v765 = vmax.f32 %v499, 0.0
        %v766 = vmax.f32 %v504, 0.0
        %v767 = vmax.f32 %v509, 0.0
        %v768 = vmax.f32 %v514, 0.0
        %v769 = vmax.f32 %v519, 0.0
        %v770 = vmax.f32 %v524, 0.0
        %v771 = vmax.f32 %v529, 0.0
        %v772 = vmax.f32 %v534, 0.0
        %v773 = vmax.f32 %v539, 0.0
        %v774 = vmax.f32 %v544, 0.0
        %v775 = vmax.f32 %v549, 0.0
        %v776 = vmax.f32 %v554, 0.0
        %v777 = vmax.f32 %v559, 0.0
        %v778 = vmax.f32 %v564, 0.0
        %v779 = vmax.f32 %v569, 0.0
        %v780 = vmax.f32 %v574, 0.0
        %v781 = vmax.f32 %v579, 0.0
        %v782 = vmax.f32 %v584, 0.0
        %v783 = vmax.f32 %v589, 0.0
        %v784 = vmax.f32 %v594, 0.0
        %v785 = vmax.f32 %v599, 0.0
        %v786 = vmax.f32 %v604, 0.0
        %v787 = vmax.f32 %v609, 0.0
        %v788 = vmax.f32 %v614, 0.0
        %v789 = vmax.f32 %v619, 0.0
        %v790 = vmax.f32 %v624, 0.0
        %v791 = vmax.f32 %v629, 0.0
        %v792 = vmax.f32 %v634, 0.0
        %v793 = vmax.f32 %v639, 0.0
        %v794 = vmax.f32 %v644, 0.0
        %v795 = vmax.f32 %v649, 0.0
        %v796 = vmax.f32 %v654, 0.0
        %v797 = vmax.f32 %v659, 0.0
        %v798 = vmax.f32 %v664, 0.0
        %v799 = vmax.f32 %v669, 0.0
        %v800 = vmax.f32 %v674, 0.0
        %v801 = vmax.f32 %v679, 0.0
        %v802 = vmax.f32 %v684, 0.0
        %v803 = vmax.f32 %v689, 0.0
        %v804 = vmax.f32 %v694, 0.0
        %v805 = vmax.f32 %v699, 0.0
        %v806 = vmax.f32 %v704, 0.0
        %v807 = vmax.f32 %v709, 0.0
        %v808 = vmax.f32 %v714, 0.0
        %v809 = vmax.f32 %v719, 0.0
        %v810 = vmax.f32 %v724, 0.0
        %v811 = vmax.f32 %v729, 0.0
        %v812 = vmax.f32 %v734, 0.0
        %v813 = vmax.f32 %v739, 0.0
        %v814 = vmax.f32 %v744, 0.0
        %v815 = vmax.f32 %v749, 0.0
        %vm816 = vcmask 261120
        %817 = vst.msk [vmem:[%s177] sm:$0xff] %vm816, %v752
        %818 = vst.msk [vmem:[%s177 + $0x8] sm:$0xff] %vm816, %v753
        %819 = vst.msk [vmem:[%s177 + $0x10] sm:$0xff] %vm816, %v754
        %820 = vst.msk [vmem:[%s177 + $0x18] sm:$0xff] %vm816, %v755
        %821 = vst.msk [vmem:[%s177 + $0x20] sm:$0xff] %vm816, %v756
        %822 = vst.msk [vmem:[%s177 + $0x28] sm:$0xff] %vm816, %v757
        %823 = vst.msk [vmem:[%s177 + $0x30] sm:$0xff] %vm816, %v758
        %824 = vst.msk [vmem:[%s177 + $0x38] sm:$0xff] %vm816, %v759
        %825 = vst.msk [vmem:[%s177 + $0x40] sm:$0xff] %vm816, %v760
        %826 = vst.msk [vmem:[%s177 + $0x48] sm:$0xff] %vm816, %v761
        %827 = vst.msk [vmem:[%s177 + $0x50] sm:$0xff] %vm816, %v762
        %828 = vst.msk [vmem:[%s177 + $0x58] sm:$0xff] %vm816, %v763
        %829 = vst.msk [vmem:[%s177 + $0x60] sm:$0xff] %vm816, %v764
        %830 = vst.msk [vmem:[%s177 + $0x68] sm:$0xff] %vm816, %v765
        %831 = vst.msk [vmem:[%s177 + $0x70] sm:$0xff] %vm816, %v766
        %832 = vst.msk [vmem:[%s177 + $0x78] sm:$0xff] %vm816, %v767
        %833 = vst.msk [vmem:[%s177 + $0x80] sm:$0xff] %vm816, %v768
        %834 = vst.msk [vmem:[%s177 + $0x88] sm:$0xff] %vm816, %v769
        %835 = vst.msk [vmem:[%s177 + $0x90] sm:$0xff] %vm816, %v770
        %836 = vst.msk [vmem:[%s177 + $0x98] sm:$0xff] %vm816, %v771
        %837 = vst.msk [vmem:[%s177 + $0xa0] sm:$0xff] %vm816, %v772
        %838 = vst.msk [vmem:[%s177 + $0xa8] sm:$0xff] %vm816, %v773
        %839 = vst.msk [vmem:[%s177 + $0xb0] sm:$0xff] %vm816, %v774
        %840 = vst.msk [vmem:[%s177 + $0xb8] sm:$0xff] %vm816, %v775
        %841 = vst.msk [vmem:[%s177 + $0xc0] sm:$0xff] %vm816, %v776
        %842 = vst.msk [vmem:[%s177 + $0xc8] sm:$0xff] %vm816, %v777
        %843 = vst.msk [vmem:[%s177 + $0xd0] sm:$0xff] %vm816, %v778
        %844 = vst.msk [vmem:[%s177 + $0xd8] sm:$0xff] %vm816, %v779
        %845 = vst.msk [vmem:[%s177 + $0xe0] sm:$0xff] %vm816, %v780
        %846 = vst.msk [vmem:[%s177 + $0xe8] sm:$0xff] %vm816, %v781
        %847 = vst.msk [vmem:[%s177 + $0xf0] sm:$0xff] %vm816, %v782
        %848 = vst.msk [vmem:[%s177 + $0xf8] sm:$0xff] %vm816, %v783
        %849 = vst.msk [vmem:[%s177 + $0x100] sm:$0xff] %vm816, %v784
        %850 = vst.msk [vmem:[%s177 + $0x108] sm:$0xff] %vm816, %v785
        %851 = vst.msk [vmem:[%s177 + $0x110] sm:$0xff] %vm816, %v786
        %852 = vst.msk [vmem:[%s177 + $0x118] sm:$0xff] %vm816, %v787
        %853 = vst.msk [vmem:[%s177 + $0x120] sm:$0xff] %vm816, %v788
        %854 = vst.msk [vmem:[%s177 + $0x128] sm:$0xff] %vm816, %v789
        %855 = vst.msk [vmem:[%s177 + $0x130] sm:$0xff] %vm816, %v790
        %856 = vst.msk [vmem:[%s177 + $0x138] sm:$0xff] %vm816, %v791
        %857 = vst.msk [vmem:[%s177 + $0x140] sm:$0xff] %vm816, %v792
        %858 = vst.msk [vmem:[%s177 + $0x148] sm:$0xff] %vm816, %v793
        %859 = vst.msk [vmem:[%s177 + $0x150] sm:$0xff] %vm816, %v794
        %860 = vst.msk [vmem:[%s177 + $0x158] sm:$0xff] %vm816, %v795
        %861 = vst.msk [vmem:[%s177 + $0x160] sm:$0xff] %vm816, %v796
        %862 = vst.msk [vmem:[%s177 + $0x168] sm:$0xff] %vm816, %v797
        %863 = vst.msk [vmem:[%s177 + $0x170] sm:$0xff] %vm816, %v798
        %864 = vst.msk [vmem:[%s177 + $0x178] sm:$0xff] %vm816, %v799
        %865 = vst.msk [vmem:[%s177 + $0x180] sm:$0xff] %vm816, %v800
        %866 = vst.msk [vmem:[%s177 + $0x188] sm:$0xff] %vm816, %v801
        %867 = vst.msk [vmem:[%s177 + $0x190] sm:$0xff] %vm816, %v802
        %868 = vst.msk [vmem:[%s177 + $0x198] sm:$0xff] %vm816, %v803
        %869 = vst.msk [vmem:[%s177 + $0x1a0] sm:$0xff] %vm816, %v804
        %870 = vst.msk [vmem:[%s177 + $0x1a8] sm:$0xff] %vm816, %v805
        %871 = vst.msk [vmem:[%s177 + $0x1b0] sm:$0xff] %vm816, %v806
        %872 = vst.msk [vmem:[%s177 + $0x1b8] sm:$0xff] %vm816, %v807
        %873 = vst.msk [vmem:[%s177 + $0x1c0] sm:$0xff] %vm816, %v808
        %874 = vst.msk [vmem:[%s177 + $0x1c8] sm:$0xff] %vm816, %v809
        %875 = vst.msk [vmem:[%s177 + $0x1d0] sm:$0xff] %vm816, %v810
        %876 = vst.msk [vmem:[%s177 + $0x1d8] sm:$0xff] %vm816, %v811
        %877 = vst.msk [vmem:[%s177 + $0x1e0] sm:$0xff] %vm816, %v812
        %878 = vst.msk [vmem:[%s177 + $0x1e8] sm:$0xff] %vm816, %v813
        %879 = vst.msk [vmem:[%s177 + $0x1f0] sm:$0xff] %vm816, %v814
        %880 = vst.msk [vmem:[%s177 + $0x1f8] sm:$0xff] %vm816, %v815
        %s881 = sand.u32 %s90, 1
        %s882 = sand.u32 %s90, 1
        %s883 = smul.addr %s882, 512
        %s884 = scalar_lea.vmem [#allocation2], %s883
        // Predicated region
        $region33: #{mynet_forward.4} parent=31 // pred_check
          %p885 = pneg %p100
        $region34: #{mynet_forward.4} parent=31 // pred_check_branch
          %887 = sbr.rel (%p885) target = $region36
        $region35: #{mynet_forward.4} parent=31 // pred_region
          %s888 = smul.u32 64, %s14
          %s889 = ssub.s32 100, %s888
          %p890 = scmp.lt.s32.totalorder %s889, 64
          %s891 = scalar_select %p890, %s889, 64
          %s892 = smul.u32 128, %s891
          %p893 = scmp.ne.s32.totalorder 0, %s892
          %s894 = smul.addr %s888, 8
          %s895 = scalar_lea.vmem %s3, %s894
          // Predicated region
          $region37: #{mynet_forward.4} parent=35 // pred_check
            %p896 = pneg %p893
          $region38: #{mynet_forward.4} parent=35 // pred_check_branch
            %898 = sbr.rel (%p896) target = $region40
          $region39: #{mynet_forward.4} parent=35 // pred_region
            // Predicated region
            $region41: #{mynet_forward.4} parent=39 // pred_check
              _
            $region42: #{mynet_forward.4} parent=39 // pred_check_branch
              %900 = sbr.rel (0) target = $region44
            $region43: #{mynet_forward.4} parent=39 // pred_region
              // Predicated region
              $region63: #{mynet_forward.4} parent=43 // pred_check
                _
              $region64: #{mynet_forward.4} parent=43 // pred_check_branch
                %1076 = sbr.rel (0) target = $region66
              $region65: #{mynet_forward.4} parent=43 // pred_region
                %s1077 = sshrl.u32 %s891, 6
                // While loop
                $region67: #{mynet_forward.4} parent=65 // loop_pre_header
                  _
                $region68: #{mynet_forward.4} parent=65 // loop_header
                  %s1079 = sphi 0, %s1081
                  %p1080 = scmp.ge.s32.totalorder %s1079, %s1077
                  %s1084 = sphi 0, %s1217
                  %s1085 = sphi %s884, %s1220
                  %s1086 = sphi %s895, %s1221
                $region69: #{mynet_forward.4} parent=65 // loop_header_branch
                  %1083 = sbr.rel (%p1080) target = $region73
                $region70: #{mynet_forward.4} parent=65 // loop_body
                  %v1087 = vld [vmem:[%s1085] sm:$0xff]
                  %1088 = vst [vmem:[%s1086] sm:$0xff] %v1087
                  %v1089 = vld [vmem:[%s1085 + $0x8] sm:$0xff]
                  %1090 = vst [vmem:[%s1086 + $0x8] sm:$0xff] %v1089
                  %v1091 = vld [vmem:[%s1085 + $0x10] sm:$0xff]
                  %1092 = vst [vmem:[%s1086 + $0x10] sm:$0xff] %v1091
                  %v1093 = vld [vmem:[%s1085 + $0x18] sm:$0xff]
                  %1094 = vst [vmem:[%s1086 + $0x18] sm:$0xff] %v1093
                  %v1095 = vld [vmem:[%s1085 + $0x20] sm:$0xff]
                  %1096 = vst [vmem:[%s1086 + $0x20] sm:$0xff] %v1095
                  %v1097 = vld [vmem:[%s1085 + $0x28] sm:$0xff]
                  %1098 = vst [vmem:[%s1086 + $0x28] sm:$0xff] %v1097
                  %v1099 = vld [vmem:[%s1085 + $0x30] sm:$0xff]
                  %1100 = vst [vmem:[%s1086 + $0x30] sm:$0xff] %v1099
                  %v1101 = vld [vmem:[%s1085 + $0x38] sm:$0xff]
                  %1102 = vst [vmem:[%s1086 + $0x38] sm:$0xff] %v1101
                  %v1103 = vld [vmem:[%s1085 + $0x40] sm:$0xff]
                  %1104 = vst [vmem:[%s1086 + $0x40] sm:$0xff] %v1103
                  %v1105 = vld [vmem:[%s1085 + $0x48] sm:$0xff]
                  %1106 = vst [vmem:[%s1086 + $0x48] sm:$0xff] %v1105
                  %v1107 = vld [vmem:[%s1085 + $0x50] sm:$0xff]
                  %1108 = vst [vmem:[%s1086 + $0x50] sm:$0xff] %v1107
                  %v1109 = vld [vmem:[%s1085 + $0x58] sm:$0xff]
                  %1110 = vst [vmem:[%s1086 + $0x58] sm:$0xff] %v1109
                  %v1111 = vld [vmem:[%s1085 + $0x60] sm:$0xff]
                  %1112 = vst [vmem:[%s1086 + $0x60] sm:$0xff] %v1111
                  %v1113 = vld [vmem:[%s1085 + $0x68] sm:$0xff]
                  %1114 = vst [vmem:[%s1086 + $0x68] sm:$0xff] %v1113
                  %v1115 = vld [vmem:[%s1085 + $0x70] sm:$0xff]
                  %1116 = vst [vmem:[%s1086 + $0x70] sm:$0xff] %v1115
                  %v1117 = vld [vmem:[%s1085 + $0x78] sm:$0xff]
                  %1118 = vst [vmem:[%s1086 + $0x78] sm:$0xff] %v1117
                  %v1119 = vld [vmem:[%s1085 + $0x80] sm:$0xff]
                  %1120 = vst [vmem:[%s1086 + $0x80] sm:$0xff] %v1119
                  %v1121 = vld [vmem:[%s1085 + $0x88] sm:$0xff]
                  %1122 = vst [vmem:[%s1086 + $0x88] sm:$0xff] %v1121
                  %v1123 = vld [vmem:[%s1085 + $0x90] sm:$0xff]
                  %1124 = vst [vmem:[%s1086 + $0x90] sm:$0xff] %v1123
                  %v1125 = vld [vmem:[%s1085 + $0x98] sm:$0xff]
                  %1126 = vst [vmem:[%s1086 + $0x98] sm:$0xff] %v1125
                  %v1127 = vld [vmem:[%s1085 + $0xa0] sm:$0xff]
                  %1128 = vst [vmem:[%s1086 + $0xa0] sm:$0xff] %v1127
                  %v1129 = vld [vmem:[%s1085 + $0xa8] sm:$0xff]
                  %1130 = vst [vmem:[%s1086 + $0xa8] sm:$0xff] %v1129
                  %v1131 = vld [vmem:[%s1085 + $0xb0] sm:$0xff]
                  %1132 = vst [vmem:[%s1086 + $0xb0] sm:$0xff] %v1131
                  %v1133 = vld [vmem:[%s1085 + $0xb8] sm:$0xff]
                  %1134 = vst [vmem:[%s1086 + $0xb8] sm:$0xff] %v1133
                  %v1135 = vld [vmem:[%s1085 + $0xc0] sm:$0xff]
                  %1136 = vst [vmem:[%s1086 + $0xc0] sm:$0xff] %v1135
                  %v1137 = vld [vmem:[%s1085 + $0xc8] sm:$0xff]
                  %1138 = vst [vmem:[%s1086 + $0xc8] sm:$0xff] %v1137
                  %v1139 = vld [vmem:[%s1085 + $0xd0] sm:$0xff]
                  %1140 = vst [vmem:[%s1086 + $0xd0] sm:$0xff] %v1139
                  %v1141 = vld [vmem:[%s1085 + $0xd8] sm:$0xff]
                  %1142 = vst [vmem:[%s1086 + $0xd8] sm:$0xff] %v1141
                  %v1143 = vld [vmem:[%s1085 + $0xe0] sm:$0xff]
                  %1144 = vst [vmem:[%s1086 + $0xe0] sm:$0xff] %v1143
                  %v1145 = vld [vmem:[%s1085 + $0xe8] sm:$0xff]
                  %1146 = vst [vmem:[%s1086 + $0xe8] sm:$0xff] %v1145
                  %v1147 = vld [vmem:[%s1085 + $0xf0] sm:$0xff]
                  %1148 = vst [vmem:[%s1086 + $0xf0] sm:$0xff] %v1147
                  %v1149 = vld [vmem:[%s1085 + $0xf8] sm:$0xff]
                  %1150 = vst [vmem:[%s1086 + $0xf8] sm:$0xff] %v1149
                  %v1151 = vld [vmem:[%s1085 + $0x100] sm:$0xff]
                  %1152 = vst [vmem:[%s1086 + $0x100] sm:$0xff] %v1151
                  %v1153 = vld [vmem:[%s1085 + $0x108] sm:$0xff]
                  %1154 = vst [vmem:[%s1086 + $0x108] sm:$0xff] %v1153
                  %v1155 = vld [vmem:[%s1085 + $0x110] sm:$0xff]
                  %1156 = vst [vmem:[%s1086 + $0x110] sm:$0xff] %v1155
                  %v1157 = vld [vmem:[%s1085 + $0x118] sm:$0xff]
                  %1158 = vst [vmem:[%s1086 + $0x118] sm:$0xff] %v1157
                  %v1159 = vld [vmem:[%s1085 + $0x120] sm:$0xff]
                  %1160 = vst [vmem:[%s1086 + $0x120] sm:$0xff] %v1159
                  %v1161 = vld [vmem:[%s1085 + $0x128] sm:$0xff]
                  %1162 = vst [vmem:[%s1086 + $0x128] sm:$0xff] %v1161
                  %v1163 = vld [vmem:[%s1085 + $0x130] sm:$0xff]
                  %1164 = vst [vmem:[%s1086 + $0x130] sm:$0xff] %v1163
                  %v1165 = vld [vmem:[%s1085 + $0x138] sm:$0xff]
                  %1166 = vst [vmem:[%s1086 + $0x138] sm:$0xff] %v1165
                  %v1167 = vld [vmem:[%s1085 + $0x140] sm:$0xff]
                  %1168 = vst [vmem:[%s1086 + $0x140] sm:$0xff] %v1167
                  %v1169 = vld [vmem:[%s1085 + $0x148] sm:$0xff]
                  %1170 = vst [vmem:[%s1086 + $0x148] sm:$0xff] %v1169
                  %v1171 = vld [vmem:[%s1085 + $0x150] sm:$0xff]
                  %1172 = vst [vmem:[%s1086 + $0x150] sm:$0xff] %v1171
                  %v1173 = vld [vmem:[%s1085 + $0x158] sm:$0xff]
                  %1174 = vst [vmem:[%s1086 + $0x158] sm:$0xff] %v1173
                  %v1175 = vld [vmem:[%s1085 + $0x160] sm:$0xff]
                  %1176 = vst [vmem:[%s1086 + $0x160] sm:$0xff] %v1175
                  %v1177 = vld [vmem:[%s1085 + $0x168] sm:$0xff]
                  %1178 = vst [vmem:[%s1086 + $0x168] sm:$0xff] %v1177
                  %v1179 = vld [vmem:[%s1085 + $0x170] sm:$0xff]
                  %1180 = vst [vmem:[%s1086 + $0x170] sm:$0xff] %v1179
                  %v1181 = vld [vmem:[%s1085 + $0x178] sm:$0xff]
                  %1182 = vst [vmem:[%s1086 + $0x178] sm:$0xff] %v1181
                  %v1183 = vld [vmem:[%s1085 + $0x180] sm:$0xff]
                  %1184 = vst [vmem:[%s1086 + $0x180] sm:$0xff] %v1183
                  %v1185 = vld [vmem:[%s1085 + $0x188] sm:$0xff]
                  %1186 = vst [vmem:[%s1086 + $0x188] sm:$0xff] %v1185
                  %v1187 = vld [vmem:[%s1085 + $0x190] sm:$0xff]
                  %1188 = vst [vmem:[%s1086 + $0x190] sm:$0xff] %v1187
                  %v1189 = vld [vmem:[%s1085 + $0x198] sm:$0xff]
                  %1190 = vst [vmem:[%s1086 + $0x198] sm:$0xff] %v1189
                  %v1191 = vld [vmem:[%s1085 + $0x1a0] sm:$0xff]
                  %1192 = vst [vmem:[%s1086 + $0x1a0] sm:$0xff] %v1191
                  %v1193 = vld [vmem:[%s1085 + $0x1a8] sm:$0xff]
                  %1194 = vst [vmem:[%s1086 + $0x1a8] sm:$0xff] %v1193
                  %v1195 = vld [vmem:[%s1085 + $0x1b0] sm:$0xff]
                  %1196 = vst [vmem:[%s1086 + $0x1b0] sm:$0xff] %v1195
                  %v1197 = vld [vmem:[%s1085 + $0x1b8] sm:$0xff]
                  %1198 = vst [vmem:[%s1086 + $0x1b8] sm:$0xff] %v1197
                  %v1199 = vld [vmem:[%s1085 + $0x1c0] sm:$0xff]
                  %1200 = vst [vmem:[%s1086 + $0x1c0] sm:$0xff] %v1199
                  %v1201 = vld [vmem:[%s1085 + $0x1c8] sm:$0xff]
                  %1202 = vst [vmem:[%s1086 + $0x1c8] sm:$0xff] %v1201
                  %v1203 = vld [vmem:[%s1085 + $0x1d0] sm:$0xff]
                  %1204 = vst [vmem:[%s1086 + $0x1d0] sm:$0xff] %v1203
                  %v1205 = vld [vmem:[%s1085 + $0x1d8] sm:$0xff]
                  %1206 = vst [vmem:[%s1086 + $0x1d8] sm:$0xff] %v1205
                  %v1207 = vld [vmem:[%s1085 + $0x1e0] sm:$0xff]
                  %1208 = vst [vmem:[%s1086 + $0x1e0] sm:$0xff] %v1207
                  %v1209 = vld [vmem:[%s1085 + $0x1e8] sm:$0xff]
                  %1210 = vst [vmem:[%s1086 + $0x1e8] sm:$0xff] %v1209
                  %v1211 = vld [vmem:[%s1085 + $0x1f0] sm:$0xff]
                  %1212 = vst [vmem:[%s1086 + $0x1f0] sm:$0xff] %v1211
                  %v1213 = vld [vmem:[%s1085 + $0x1f8] sm:$0xff]
                  %1214 = vst [vmem:[%s1086 + $0x1f8] sm:$0xff] %v1213
                  %s1215 = sadd.s32 1, %s1084
                  %p1216 = scmp.ge.s32.totalorder %s1215, %s1077
                  %s1217 = scalar_select %p1216, 0, %s1215
                  %s1218 = smul.u32 %s1217, 512
                  %s1219 = smul.u32 %s1217, 512
                  %s1220 = scalar_lea.vmem %s884, %s1218 [#allocation2]
                  %s1221 = scalar_lea.vmem %s895, %s1219
                $region71: #{mynet_forward.4} parent=65 // loop_footer
                  %s1081 = sadd.s32 %s1079, 1
                $region72: #{mynet_forward.4} parent=65 // loop_footer_branch
                  %1078 = sbr.rel target = $region68
                $region73: #{mynet_forward.4} parent=65 // loop_exit
                  _
                %s1222 = sshrl.u32 %s891, 6
                %s1223 = sand.u32 %s891, 63
                %s1224 = smul.u32 %s1222, 64
                %s1225 = smul.u32 8, %s1224
                %s1226 = scalar_lea.vmem %s884, %s1225 [#allocation2]
                %s1227 = smul.u32 8, %s1224
                %s1228 = scalar_lea.vmem %s895, %s1227
                // While loop
                $region74: #{mynet_forward.4} parent=65 // loop_pre_header
                  _
                $region75: #{mynet_forward.4} parent=65 // loop_header
                  %s1230 = sphi 0, %s1232
                  %p1231 = scmp.ge.s32.totalorder %s1230, %s1223
                  %s1235 = sphi 0, %s1242
                  %s1236 = sphi %s1226, %s1245
                  %s1237 = sphi %s1228, %s1246
                $region76: #{mynet_forward.4} parent=65 // loop_header_branch
                  %1234 = sbr.rel (%p1231) target = $region80
                $region77: #{mynet_forward.4} parent=65 // loop_body
                  %v1238 = vld [vmem:[%s1236] sm:$0xff]
                  %1239 = vst [vmem:[%s1237] sm:$0xff] %v1238
                  %s1240 = sadd.s32 1, %s1235
                  %p1241 = scmp.ge.s32.totalorder %s1240, %s1223
                  %s1242 = scalar_select %p1241, 0, %s1240
                  %s1243 = smul.u32 %s1242, 8
                  %s1244 = smul.u32 %s1242, 8
                  %s1245 = scalar_lea.vmem %s1226, %s1243 [#allocation2]
                  %s1246 = scalar_lea.vmem %s1228, %s1244
                $region78: #{mynet_forward.4} parent=65 // loop_footer
                  %s1232 = sadd.s32 %s1230, 1
                $region79: #{mynet_forward.4} parent=65 // loop_footer_branch
                  %1229 = sbr.rel target = $region75
                $region80: #{mynet_forward.4} parent=65 // loop_exit
                  _
              $region66: #{mynet_forward.4} parent=43 // pred_fallthru
                _
              // Predicated region
              $region81: #{mynet_forward.4} parent=43 // pred_check
                _
              $region82: #{mynet_forward.4} parent=43 // pred_check_branch
                %1248 = sbr.rel target = $region84
              $region83: #{mynet_forward.4} parent=43 // pred_region
                _
              $region84: #{mynet_forward.4} parent=43 // pred_fallthru
                _
            $region44: #{mynet_forward.4} parent=39 // pred_fallthru
              _
            // Predicated region
            $region45: #{mynet_forward.4} parent=39 // pred_check
              _
            $region46: #{mynet_forward.4} parent=39 // pred_check_branch
              %902 = sbr.rel target = $region48
            $region47: #{mynet_forward.4} parent=39 // pred_region
              %s904 = ssub.s32 256, 1
              %s905 = sshrl.u32 %s891, 6
              // While loop
              $region49: #{mynet_forward.4} parent=47 // loop_pre_header
                _
              $region50: #{mynet_forward.4} parent=47 // loop_header
                %s907 = sphi 0, %s909
                %p908 = scmp.ge.s32.totalorder %s907, %s905
                %s912 = sphi 0, %s1045
                %s913 = sphi %s884, %s1048
                %s914 = sphi %s895, %s1049
              $region51: #{mynet_forward.4} parent=47 // loop_header_branch
                %911 = sbr.rel (%p908) target = $region55
              $region52: #{mynet_forward.4} parent=47 // loop_body
                %v915 = vld [vmem:[%s913] sm:%s904]
                %916 = vst [vmem:[%s914] sm:%s904] %v915
                %v917 = vld [vmem:[%s913 + $0x8] sm:%s904]
                %918 = vst [vmem:[%s914 + $0x8] sm:%s904] %v917
                %v919 = vld [vmem:[%s913 + $0x10] sm:%s904]
                %920 = vst [vmem:[%s914 + $0x10] sm:%s904] %v919
                %v921 = vld [vmem:[%s913 + $0x18] sm:%s904]
                %922 = vst [vmem:[%s914 + $0x18] sm:%s904] %v921
                %v923 = vld [vmem:[%s913 + $0x20] sm:%s904]
                %924 = vst [vmem:[%s914 + $0x20] sm:%s904] %v923
                %v925 = vld [vmem:[%s913 + $0x28] sm:%s904]
                %926 = vst [vmem:[%s914 + $0x28] sm:%s904] %v925
                %v927 = vld [vmem:[%s913 + $0x30] sm:%s904]
                %928 = vst [vmem:[%s914 + $0x30] sm:%s904] %v927
                %v929 = vld [vmem:[%s913 + $0x38] sm:%s904]
                %930 = vst [vmem:[%s914 + $0x38] sm:%s904] %v929
                %v931 = vld [vmem:[%s913 + $0x40] sm:%s904]
                %932 = vst [vmem:[%s914 + $0x40] sm:%s904] %v931
                %v933 = vld [vmem:[%s913 + $0x48] sm:%s904]
                %934 = vst [vmem:[%s914 + $0x48] sm:%s904] %v933
                %v935 = vld [vmem:[%s913 + $0x50] sm:%s904]
                %936 = vst [vmem:[%s914 + $0x50] sm:%s904] %v935
                %v937 = vld [vmem:[%s913 + $0x58] sm:%s904]
                %938 = vst [vmem:[%s914 + $0x58] sm:%s904] %v937
                %v939 = vld [vmem:[%s913 + $0x60] sm:%s904]
                %940 = vst [vmem:[%s914 + $0x60] sm:%s904] %v939
                %v941 = vld [vmem:[%s913 + $0x68] sm:%s904]
                %942 = vst [vmem:[%s914 + $0x68] sm:%s904] %v941
                %v943 = vld [vmem:[%s913 + $0x70] sm:%s904]
                %944 = vst [vmem:[%s914 + $0x70] sm:%s904] %v943
                %v945 = vld [vmem:[%s913 + $0x78] sm:%s904]
                %946 = vst [vmem:[%s914 + $0x78] sm:%s904] %v945
                %v947 = vld [vmem:[%s913 + $0x80] sm:%s904]
                %948 = vst [vmem:[%s914 + $0x80] sm:%s904] %v947
                %v949 = vld [vmem:[%s913 + $0x88] sm:%s904]
                %950 = vst [vmem:[%s914 + $0x88] sm:%s904] %v949
                %v951 = vld [vmem:[%s913 + $0x90] sm:%s904]
                %952 = vst [vmem:[%s914 + $0x90] sm:%s904] %v951
                %v953 = vld [vmem:[%s913 + $0x98] sm:%s904]
                %954 = vst [vmem:[%s914 + $0x98] sm:%s904] %v953
                %v955 = vld [vmem:[%s913 + $0xa0] sm:%s904]
                %956 = vst [vmem:[%s914 + $0xa0] sm:%s904] %v955
                %v957 = vld [vmem:[%s913 + $0xa8] sm:%s904]
                %958 = vst [vmem:[%s914 + $0xa8] sm:%s904] %v957
                %v959 = vld [vmem:[%s913 + $0xb0] sm:%s904]
                %960 = vst [vmem:[%s914 + $0xb0] sm:%s904] %v959
                %v961 = vld [vmem:[%s913 + $0xb8] sm:%s904]
                %962 = vst [vmem:[%s914 + $0xb8] sm:%s904] %v961
                %v963 = vld [vmem:[%s913 + $0xc0] sm:%s904]
                %964 = vst [vmem:[%s914 + $0xc0] sm:%s904] %v963
                %v965 = vld [vmem:[%s913 + $0xc8] sm:%s904]
                %966 = vst [vmem:[%s914 + $0xc8] sm:%s904] %v965
                %v967 = vld [vmem:[%s913 + $0xd0] sm:%s904]
                %968 = vst [vmem:[%s914 + $0xd0] sm:%s904] %v967
                %v969 = vld [vmem:[%s913 + $0xd8] sm:%s904]
                %970 = vst [vmem:[%s914 + $0xd8] sm:%s904] %v969
                %v971 = vld [vmem:[%s913 + $0xe0] sm:%s904]
                %972 = vst [vmem:[%s914 + $0xe0] sm:%s904] %v971
                %v973 = vld [vmem:[%s913 + $0xe8] sm:%s904]
                %974 = vst [vmem:[%s914 + $0xe8] sm:%s904] %v973
                %v975 = vld [vmem:[%s913 + $0xf0] sm:%s904]
                %976 = vst [vmem:[%s914 + $0xf0] sm:%s904] %v975
                %v977 = vld [vmem:[%s913 + $0xf8] sm:%s904]
                %978 = vst [vmem:[%s914 + $0xf8] sm:%s904] %v977
                %v979 = vld [vmem:[%s913 + $0x100] sm:%s904]
                %980 = vst [vmem:[%s914 + $0x100] sm:%s904] %v979
                %v981 = vld [vmem:[%s913 + $0x108] sm:%s904]
                %982 = vst [vmem:[%s914 + $0x108] sm:%s904] %v981
                %v983 = vld [vmem:[%s913 + $0x110] sm:%s904]
                %984 = vst [vmem:[%s914 + $0x110] sm:%s904] %v983
                %v985 = vld [vmem:[%s913 + $0x118] sm:%s904]
                %986 = vst [vmem:[%s914 + $0x118] sm:%s904] %v985
                %v987 = vld [vmem:[%s913 + $0x120] sm:%s904]
                %988 = vst [vmem:[%s914 + $0x120] sm:%s904] %v987
                %v989 = vld [vmem:[%s913 + $0x128] sm:%s904]
                %990 = vst [vmem:[%s914 + $0x128] sm:%s904] %v989
                %v991 = vld [vmem:[%s913 + $0x130] sm:%s904]
                %992 = vst [vmem:[%s914 + $0x130] sm:%s904] %v991
                %v993 = vld [vmem:[%s913 + $0x138] sm:%s904]
                %994 = vst [vmem:[%s914 + $0x138] sm:%s904] %v993
                %v995 = vld [vmem:[%s913 + $0x140] sm:%s904]
                %996 = vst [vmem:[%s914 + $0x140] sm:%s904] %v995
                %v997 = vld [vmem:[%s913 + $0x148] sm:%s904]
                %998 = vst [vmem:[%s914 + $0x148] sm:%s904] %v997
                %v999 = vld [vmem:[%s913 + $0x150] sm:%s904]
                %1000 = vst [vmem:[%s914 + $0x150] sm:%s904] %v999
                %v1001 = vld [vmem:[%s913 + $0x158] sm:%s904]
                %1002 = vst [vmem:[%s914 + $0x158] sm:%s904] %v1001
                %v1003 = vld [vmem:[%s913 + $0x160] sm:%s904]
                %1004 = vst [vmem:[%s914 + $0x160] sm:%s904] %v1003
                %v1005 = vld [vmem:[%s913 + $0x168] sm:%s904]
                %1006 = vst [vmem:[%s914 + $0x168] sm:%s904] %v1005
                %v1007 = vld [vmem:[%s913 + $0x170] sm:%s904]
                %1008 = vst [vmem:[%s914 + $0x170] sm:%s904] %v1007
                %v1009 = vld [vmem:[%s913 + $0x178] sm:%s904]
                %1010 = vst [vmem:[%s914 + $0x178] sm:%s904] %v1009
                %v1011 = vld [vmem:[%s913 + $0x180] sm:%s904]
                %1012 = vst [vmem:[%s914 + $0x180] sm:%s904] %v1011
                %v1013 = vld [vmem:[%s913 + $0x188] sm:%s904]
                %1014 = vst [vmem:[%s914 + $0x188] sm:%s904] %v1013
                %v1015 = vld [vmem:[%s913 + $0x190] sm:%s904]
                %1016 = vst [vmem:[%s914 + $0x190] sm:%s904] %v1015
                %v1017 = vld [vmem:[%s913 + $0x198] sm:%s904]
                %1018 = vst [vmem:[%s914 + $0x198] sm:%s904] %v1017
                %v1019 = vld [vmem:[%s913 + $0x1a0] sm:%s904]
                %1020 = vst [vmem:[%s914 + $0x1a0] sm:%s904] %v1019
                %v1021 = vld [vmem:[%s913 + $0x1a8] sm:%s904]
                %1022 = vst [vmem:[%s914 + $0x1a8] sm:%s904] %v1021
                %v1023 = vld [vmem:[%s913 + $0x1b0] sm:%s904]
                %1024 = vst [vmem:[%s914 + $0x1b0] sm:%s904] %v1023
                %v1025 = vld [vmem:[%s913 + $0x1b8] sm:%s904]
                %1026 = vst [vmem:[%s914 + $0x1b8] sm:%s904] %v1025
                %v1027 = vld [vmem:[%s913 + $0x1c0] sm:%s904]
                %1028 = vst [vmem:[%s914 + $0x1c0] sm:%s904] %v1027
                %v1029 = vld [vmem:[%s913 + $0x1c8] sm:%s904]
                %1030 = vst [vmem:[%s914 + $0x1c8] sm:%s904] %v1029
                %v1031 = vld [vmem:[%s913 + $0x1d0] sm:%s904]
                %1032 = vst [vmem:[%s914 + $0x1d0] sm:%s904] %v1031
                %v1033 = vld [vmem:[%s913 + $0x1d8] sm:%s904]
                %1034 = vst [vmem:[%s914 + $0x1d8] sm:%s904] %v1033
                %v1035 = vld [vmem:[%s913 + $0x1e0] sm:%s904]
                %1036 = vst [vmem:[%s914 + $0x1e0] sm:%s904] %v1035
                %v1037 = vld [vmem:[%s913 + $0x1e8] sm:%s904]
                %1038 = vst [vmem:[%s914 + $0x1e8] sm:%s904] %v1037
                %v1039 = vld [vmem:[%s913 + $0x1f0] sm:%s904]
                %1040 = vst [vmem:[%s914 + $0x1f0] sm:%s904] %v1039
                %v1041 = vld [vmem:[%s913 + $0x1f8] sm:%s904]
                %1042 = vst [vmem:[%s914 + $0x1f8] sm:%s904] %v1041
                %s1043 = sadd.s32 1, %s912
                %p1044 = scmp.ge.s32.totalorder %s1043, %s905
                %s1045 = scalar_select %p1044, 0, %s1043
                %s1046 = smul.u32 %s1045, 512
                %s1047 = smul.u32 %s1045, 512
                %s1048 = scalar_lea.vmem %s884, %s1046 [#allocation2]
                %s1049 = scalar_lea.vmem %s895, %s1047
              $region53: #{mynet_forward.4} parent=47 // loop_footer
                %s909 = sadd.s32 %s907, 1
              $region54: #{mynet_forward.4} parent=47 // loop_footer_branch
                %906 = sbr.rel target = $region50
              $region55: #{mynet_forward.4} parent=47 // loop_exit
                _
              %s1050 = sshrl.u32 %s891, 6
              %s1051 = sand.u32 %s891, 63
              %s1052 = smul.u32 %s1050, 64
              %s1053 = smul.u32 8, %s1052
              %s1054 = scalar_lea.vmem %s884, %s1053 [#allocation2]
              %s1055 = smul.u32 8, %s1052
              %s1056 = scalar_lea.vmem %s895, %s1055
              // While loop
              $region56: #{mynet_forward.4} parent=47 // loop_pre_header
                _
              $region57: #{mynet_forward.4} parent=47 // loop_header
                %s1058 = sphi 0, %s1060
                %p1059 = scmp.ge.s32.totalorder %s1058, %s1051
                %s1063 = sphi 0, %s1070
                %s1064 = sphi %s1054, %s1073
                %s1065 = sphi %s1056, %s1074
              $region58: #{mynet_forward.4} parent=47 // loop_header_branch
                %1062 = sbr.rel (%p1059) target = $region62
              $region59: #{mynet_forward.4} parent=47 // loop_body
                %v1066 = vld [vmem:[%s1064] sm:%s904]
                %1067 = vst [vmem:[%s1065] sm:%s904] %v1066
                %s1068 = sadd.s32 1, %s1063
                %p1069 = scmp.ge.s32.totalorder %s1068, %s1051
                %s1070 = scalar_select %p1069, 0, %s1068
                %s1071 = smul.u32 %s1070, 8
                %s1072 = smul.u32 %s1070, 8
                %s1073 = scalar_lea.vmem %s1054, %s1071 [#allocation2]
                %s1074 = scalar_lea.vmem %s1056, %s1072
              $region60: #{mynet_forward.4} parent=47 // loop_footer
                %s1060 = sadd.s32 %s1058, 1
              $region61: #{mynet_forward.4} parent=47 // loop_footer_branch
                %1057 = sbr.rel target = $region57
              $region62: #{mynet_forward.4} parent=47 // loop_exit
                _
            $region48: #{mynet_forward.4} parent=39 // pred_fallthru
              _
          $region40: #{mynet_forward.4} parent=35 // pred_fallthru
            _
          %1249 = vnop
        $region36: #{mynet_forward.4} parent=31 // pred_fallthru
          _
      $region32: #{mynet_forward.4} parent=5 // pred_fallthru
        _
      %p1250 = scmp.le.s32.totalorder 2, %s9
      // Predicated region
      $region85: #{mynet_forward.4} parent=5 // pred_check
        %p1251 = pneg %p1250
      $region86: #{mynet_forward.4} parent=5 // pred_check_branch
        %1253 = sbr.rel (%p1251) target = $region88
      $region87: #{mynet_forward.4} parent=5 // pred_region
        %s1254 = ssub.s32 %s9, 2
        // Predicated region
        $region89: #{mynet_forward.4} parent=87 // pred_check
          %p1255 = pneg %p106
        $region90: #{mynet_forward.4} parent=87 // pred_check_branch
          %1257 = sbr.rel (%p1255) target = $region92
        $region91: #{mynet_forward.4} parent=87 // pred_region
          %s1258 = sand.u32 %s91, 1
          %s1259 = sand.u32 %s91, 1
          %s1260 = smul.addr %s1259, 512
          %s1261 = scalar_lea.vmem [#allocation2], %s1260
        $region92: #{mynet_forward.4} parent=87 // pred_fallthru
          _
      $region88: #{mynet_forward.4} parent=5 // pred_fallthru
        _
    $region6: #{mynet_forward.4} parent=1 // loop_footer
      %s13 = sadd.s32 1, %s9
    $region7: #{mynet_forward.4} parent=1 // loop_footer_branch
      %8 = sbr.rel target = $region3
    $region8: #{mynet_forward.4} parent=1 // loop_exit
      _

// kernel: mynet_forward.5
$region0: #{mynet_forward.5}
  #allocation0 [shape = 'u32[]', space=smem, size = 0x4, offset = 0x4, fixed_abs, tag = 'smem constant byte address 0x4 - core index']
  #allocation1 [shape = 'u32[144,128]{1,0:T(1,128)}', space=vmem, size = 0x12000, scoped, tag = 'internal scratch']
  %s0 = inlined_call_operand.vmem [shape: f32[162,512], index: 0, kind: input, shape index: {}]
  %s1 = inlined_call_operand.vmem [shape: f32[512,64], index: 1, kind: input, shape index: {}]
  %s2 = inlined_call_operand.vmem [shape: f32[1,64], index: 2, kind: input, shape index: {}]
  %s3 = inlined_call_operand.vmem [shape: f32[162,64], index: 3, kind: output, shape index: {}]
  %s4 = sld [smem:[#allocation0]]
  $region22: #{mynet_forward.5} parent=0
    _
  %s6 = ssub.s32 1, %s4
  %s7 = scalar_select 0, %s6, %s4
  // Predicated region
  $region2: #{mynet_forward.5} parent=0 // pred_check
    _
  $region3: #{mynet_forward.5} parent=0 // pred_check_branch
    %9 = sbr.rel (0) target = $region5
  $region4: #{mynet_forward.5} parent=0 // pred_region
    _
  $region5: #{mynet_forward.5} parent=0 // pred_fallthru
    _
  // Predicated region
  $region6: #{mynet_forward.5} parent=0 // pred_check
    _
  $region7: #{mynet_forward.5} parent=0 // pred_check_branch
    %11 = sbr.rel (0) target = $region9
  $region8: #{mynet_forward.5} parent=0 // pred_region
    _
  $region9: #{mynet_forward.5} parent=0 // pred_fallthru
    _
  // Predicated region
  $region10: #{mynet_forward.5} parent=0 // pred_check
    _
  $region11: #{mynet_forward.5} parent=0 // pred_check_branch
    %13 = sbr.rel (0) target = $region13
  $region12: #{mynet_forward.5} parent=0 // pred_region
    _
  $region13: #{mynet_forward.5} parent=0 // pred_fallthru
    _
  %v14 = vld [vmem:[%s0] sm:$0xff]
  %v15 = vld [vmem:[%s0 + $0x8] sm:$0xff]
  %v16 = vld [vmem:[%s0 + $0x10] sm:$0xff]
  %v17 = vld [vmem:[%s0 + $0x18] sm:$0xff]
  %v18 = vld [vmem:[%s0 + $0x20] sm:$0xff]
  %v19 = vld [vmem:[%s0 + $0x28] sm:$0xff]
  %v20 = vld [vmem:[%s0 + $0x30] sm:$0xff]
  %v21 = vld [vmem:[%s0 + $0x38] sm:$0xff]
  %v22 = vld [vmem:[%s0 + $0x40] sm:$0xff]
  %v23 = vld [vmem:[%s0 + $0x48] sm:$0xff]
  %v24 = vld [vmem:[%s0 + $0x50] sm:$0xff]
  %v25 = vld [vmem:[%s0 + $0x58] sm:$0xff]
  %v26 = vld [vmem:[%s0 + $0x60] sm:$0xff]
  %v27 = vld [vmem:[%s0 + $0x68] sm:$0xff]
  %v28 = vld [vmem:[%s0 + $0x70] sm:$0xff]
  %v29 = vld [vmem:[%s0 + $0x78] sm:$0xff]
  %v30 = vld [vmem:[%s0 + $0x80] sm:$0xff]
  %v31 = vld [vmem:[%s0 + $0x88] sm:$0xff]
  %v32 = vld [vmem:[%s0 + $0x90] sm:$0xff]
  %v33 = vld [vmem:[%s0 + $0x98] sm:$0xff]
  %v34 = vld [vmem:[%s0 + $0xa0] sm:$0xff]
  %v35 = vld [vmem:[%s0 + $0xa8] sm:$0xff]
  %v36 = vld [vmem:[%s0 + $0xb0] sm:$0xff]
  %v37 = vld [vmem:[%s0 + $0xb8] sm:$0xff]
  %v38 = vld [vmem:[%s0 + $0xc0] sm:$0xff]
  %v39 = vld [vmem:[%s0 + $0xc8] sm:$0xff]
  %v40 = vld [vmem:[%s0 + $0xd0] sm:$0xff]
  %v41 = vld [vmem:[%s0 + $0xd8] sm:$0xff]
  %v42 = vld [vmem:[%s0 + $0xe0] sm:$0xff]
  %v43 = vld [vmem:[%s0 + $0xe8] sm:$0xff]
  %v44 = vld [vmem:[%s0 + $0xf0] sm:$0xff]
  %v45 = vld [vmem:[%s0 + $0xf8] sm:$0xff]
  %v46 = vld [vmem:[%s0 + $0x100] sm:$0xff]
  %v47 = vld [vmem:[%s0 + $0x108] sm:$0xff]
  %v48 = vld [vmem:[%s0 + $0x110] sm:$0xff]
  %v49 = vld [vmem:[%s0 + $0x118] sm:$0xff]
  %v50 = vld [vmem:[%s0 + $0x120] sm:$0xff]
  %v51 = vld [vmem:[%s0 + $0x128] sm:$0xff]
  %v52 = vld [vmem:[%s0 + $0x130] sm:$0xff]
  %v53 = vld [vmem:[%s0 + $0x138] sm:$0xff]
  %v54 = vld [vmem:[%s0 + $0x140] sm:$0xff]
  %v55 = vld [vmem:[%s0 + $0x148] sm:$0xff]
  %v56 = vld [vmem:[%s0 + $0x150] sm:$0xff]
  %v57 = vld [vmem:[%s0 + $0x158] sm:$0xff]
  %v58 = vld [vmem:[%s0 + $0x160] sm:$0xff]
  %v59 = vld [vmem:[%s0 + $0x168] sm:$0xff]
  %v60 = vld [vmem:[%s0 + $0x170] sm:$0xff]
  %v61 = vld [vmem:[%s0 + $0x178] sm:$0xff]
  %v62 = vld [vmem:[%s0 + $0x180] sm:$0xff]
  %v63 = vld [vmem:[%s0 + $0x188] sm:$0xff]
  %v64 = vld [vmem:[%s0 + $0x190] sm:$0xff]
  %v65 = vld [vmem:[%s0 + $0x198] sm:$0xff]
  %v66 = vld [vmem:[%s0 + $0x1a0] sm:$0xff]
  %v67 = vld [vmem:[%s0 + $0x1a8] sm:$0xff]
  %v68 = vld [vmem:[%s0 + $0x1b0] sm:$0xff]
  %v69 = vld [vmem:[%s0 + $0x1b8] sm:$0xff]
  %v70 = vld [vmem:[%s0 + $0x1c0] sm:$0xff]
  %v71 = vld [vmem:[%s0 + $0x1c8] sm:$0xff]
  %v72 = vld [vmem:[%s0 + $0x1d0] sm:$0xff]
  %v73 = vld [vmem:[%s0 + $0x1d8] sm:$0xff]
  %v74 = vld [vmem:[%s0 + $0x1e0] sm:$0xff]
  %v75 = vld [vmem:[%s0 + $0x1e8] sm:$0xff]
  %v76 = vld [vmem:[%s0 + $0x1f0] sm:$0xff]
  %v77 = vld [vmem:[%s0 + $0x1f8] sm:$0xff]
  %v78 = vld [vmem:[%s0 + $0x200] sm:$0xff]
  %v79 = vld [vmem:[%s0 + $0x208] sm:$0xff]
  %v80 = vld [vmem:[%s0 + $0x210] sm:$0xff]
  %v81 = vld [vmem:[%s0 + $0x218] sm:$0xff]
  %v82 = vld [vmem:[%s0 + $0x220] sm:$0xff]
  %v83 = vld [vmem:[%s0 + $0x228] sm:$0xff]
  %v84 = vld [vmem:[%s0 + $0x230] sm:$0xff]
  %v85 = vld [vmem:[%s0 + $0x238] sm:$0xff]
  %v86 = vld [vmem:[%s0 + $0x240] sm:$0xff]
  %v87 = vld [vmem:[%s0 + $0x248] sm:$0xff]
  %v88 = vld [vmem:[%s0 + $0x250] sm:$0xff]
  %v89 = vld [vmem:[%s0 + $0x258] sm:$0xff]
  %v90 = vld [vmem:[%s0 + $0x260] sm:$0xff]
  %v91 = vld [vmem:[%s0 + $0x268] sm:$0xff]
  %v92 = vld [vmem:[%s0 + $0x270] sm:$0xff]
  %v93 = vld [vmem:[%s0 + $0x278] sm:$0xff]
  %v94 = vld [vmem:[%s0 + $0x280] sm:$0x3]
  %v95 = vld [vmem:[%s0 + $0x288] sm:$0x3]
  %v96 = vld [vmem:[%s0 + $0x290] sm:$0x3]
  %v97 = vld [vmem:[%s0 + $0x298] sm:$0x3]
  %v98 = vld [vmem:[%s1] sm:$0xff]
  %v99 = vld [vmem:[%s1 + $0x8] sm:$0xff]
  %v100 = vld [vmem:[%s1 + $0x10] sm:$0xff]
  %v101 = vld [vmem:[%s1 + $0x18] sm:$0xff]
  %v102 = vld [vmem:[%s1 + $0x20] sm:$0xff]
  %v103 = vld [vmem:[%s1 + $0x28] sm:$0xff]
  %v104 = vld [vmem:[%s1 + $0x30] sm:$0xff]
  %v105 = vld [vmem:[%s1 + $0x38] sm:$0xff]
  %v106 = vld [vmem:[%s1 + $0x40] sm:$0xff]
  %v107 = vld [vmem:[%s1 + $0x48] sm:$0xff]
  %v108 = vld [vmem:[%s1 + $0x50] sm:$0xff]
  %v109 = vld [vmem:[%s1 + $0x58] sm:$0xff]
  %v110 = vld [vmem:[%s1 + $0x60] sm:$0xff]
  %v111 = vld [vmem:[%s1 + $0x68] sm:$0xff]
  %v112 = vld [vmem:[%s1 + $0x70] sm:$0xff]
  %v113 = vld [vmem:[%s1 + $0x78] sm:$0xff]
  %v114 = vld [vmem:[%s1 + $0x80] sm:$0xff]
  %v115 = vld [vmem:[%s1 + $0x88] sm:$0xff]
  %v116 = vld [vmem:[%s1 + $0x90] sm:$0xff]
  %v117 = vld [vmem:[%s1 + $0x98] sm:$0xff]
  %v118 = vld [vmem:[%s1 + $0xa0] sm:$0xff]
  %v119 = vld [vmem:[%s1 + $0xa8] sm:$0xff]
  %v120 = vld [vmem:[%s1 + $0xb0] sm:$0xff]
  %v121 = vld [vmem:[%s1 + $0xb8] sm:$0xff]
  %v122 = vld [vmem:[%s1 + $0xc0] sm:$0xff]
  %v123 = vld [vmem:[%s1 + $0xc8] sm:$0xff]
  %v124 = vld [vmem:[%s1 + $0xd0] sm:$0xff]
  %v125 = vld [vmem:[%s1 + $0xd8] sm:$0xff]
  %v126 = vld [vmem:[%s1 + $0xe0] sm:$0xff]
  %v127 = vld [vmem:[%s1 + $0xe8] sm:$0xff]
  %v128 = vld [vmem:[%s1 + $0xf0] sm:$0xff]
  %v129 = vld [vmem:[%s1 + $0xf8] sm:$0xff]
  %v130 = vld [vmem:[%s1 + $0x100] sm:$0xff]
  %v131 = vld [vmem:[%s1 + $0x108] sm:$0xff]
  %v132 = vld [vmem:[%s1 + $0x110] sm:$0xff]
  %v133 = vld [vmem:[%s1 + $0x118] sm:$0xff]
  %v134 = vld [vmem:[%s1 + $0x120] sm:$0xff]
  %v135 = vld [vmem:[%s1 + $0x128] sm:$0xff]
  %v136 = vld [vmem:[%s1 + $0x130] sm:$0xff]
  %v137 = vld [vmem:[%s1 + $0x138] sm:$0xff]
  %v138 = vld [vmem:[%s1 + $0x140] sm:$0xff]
  %v139 = vld [vmem:[%s1 + $0x148] sm:$0xff]
  %v140 = vld [vmem:[%s1 + $0x150] sm:$0xff]
  %v141 = vld [vmem:[%s1 + $0x158] sm:$0xff]
  %v142 = vld [vmem:[%s1 + $0x160] sm:$0xff]
  %v143 = vld [vmem:[%s1 + $0x168] sm:$0xff]
  %v144 = vld [vmem:[%s1 + $0x170] sm:$0xff]
  %v145 = vld [vmem:[%s1 + $0x178] sm:$0xff]
  %v146 = vld [vmem:[%s1 + $0x180] sm:$0xff]
  %v147 = vld [vmem:[%s1 + $0x188] sm:$0xff]
  %v148 = vld [vmem:[%s1 + $0x190] sm:$0xff]
  %v149 = vld [vmem:[%s1 + $0x198] sm:$0xff]
  %v150 = vld [vmem:[%s1 + $0x1a0] sm:$0xff]
  %v151 = vld [vmem:[%s1 + $0x1a8] sm:$0xff]
  %v152 = vld [vmem:[%s1 + $0x1b0] sm:$0xff]
  %v153 = vld [vmem:[%s1 + $0x1b8] sm:$0xff]
  %v154 = vld [vmem:[%s1 + $0x1c0] sm:$0xff]
  %v155 = vld [vmem:[%s1 + $0x1c8] sm:$0xff]
  %v156 = vld [vmem:[%s1 + $0x1d0] sm:$0xff]
  %v157 = vld [vmem:[%s1 + $0x1d8] sm:$0xff]
  %v158 = vld [vmem:[%s1 + $0x1e0] sm:$0xff]
  %v159 = vld [vmem:[%s1 + $0x1e8] sm:$0xff]
  %v160 = vld [vmem:[%s1 + $0x1f0] sm:$0xff]
  %v161 = vld [vmem:[%s1 + $0x1f8] sm:$0xff]
  %v162 = vld [vmem:[%s2] sm:$0x1]
  %v164 = vlaneseq
  %v165 = vshrl.u32 %v164, 7
  %v166 = vsub.s32 0, %v165
  %v167 = vrot.slane %v162, %v166
  %169 = vmatprep.subr.mxu0 0.0
  %170 = vmatpush1.msra.mxu0 %v113
  %171 = vmatprep.subr.mxu0 0.0
  %172 = vmatpush1.msra.mxu0 %v112
  %173 = vmatprep.subr.mxu0 0.0
  %174 = vmatpush1.msra.mxu0 %v111
  %175 = vmatprep.subr.mxu0 0.0
  %176 = vmatpush1.msra.mxu0 %v110
  %177 = vmatprep.subr.mxu0 0.0
  %178 = vmatpush1.msra.mxu0 %v109
  %179 = vmatprep.subr.mxu0 0.0
  %180 = vmatpush1.msra.mxu0 %v108
  %181 = vmatprep.subr.mxu0 0.0
  %182 = vmatpush1.msra.mxu0 %v107
  %183 = vmatprep.subr.mxu0 0.0
  %184 = vmatpush1.msra.mxu0 %v106
  %185 = vmatprep.subr.mxu0 0.0
  %186 = vmatpush1.msra.mxu0 %v105
  %187 = vmatprep.subr.mxu0 0.0
  %188 = vmatpush1.msra.mxu0 %v104
  %189 = vmatprep.subr.mxu0 0.0
  %190 = vmatpush1.msra.mxu0 %v103
  %191 = vmatprep.subr.mxu0 0.0
  %192 = vmatpush1.msra.mxu0 %v102
  %193 = vmatprep.subr.mxu0 0.0
  %194 = vmatpush1.msra.mxu0 %v101
  %195 = vmatprep.subr.mxu0 0.0
  %196 = vmatpush1.msra.mxu0 %v100
  %197 = vmatprep.subr.mxu0 0.0
  %198 = vmatpush1.msra.mxu0 %v99
  %199 = vmatprep.subr.mxu0 0.0
  %200 = vmatpush1.msra.mxu0 %v98
  %201 = vmatprep.subr.mxu0 0.0
  %202 = vmatpush2.msra.mxu0 %v129
  %203 = vmatprep.subr.mxu0 0.0
  %204 = vmatpush2.msra.mxu0 %v128
  %205 = vmatprep.subr.mxu0 0.0
  %206 = vmatpush2.msra.mxu0 %v127
  %207 = vmatprep.subr.mxu0 0.0
  %208 = vmatpush2.msra.mxu0 %v126
  %209 = vmatprep.subr.mxu0 0.0
  %210 = vmatpush2.msra.mxu0 %v125
  %211 = vmatprep.subr.mxu0 0.0
  %212 = vmatpush2.msra.mxu0 %v124
  %213 = vmatprep.subr.mxu0 0.0
  %214 = vmatpush2.msra.mxu0 %v123
  %215 = vmatprep.subr.mxu0 0.0
  %216 = vmatpush2.msra.mxu0 %v122
  %217 = vmatprep.subr.mxu0 0.0
  %218 = vmatpush2.msra.mxu0 %v121
  %219 = vmatprep.subr.mxu0 0.0
  %220 = vmatpush2.msra.mxu0 %v120
  %221 = vmatprep.subr.mxu0 0.0
  %222 = vmatpush2.msra.mxu0 %v119
  %223 = vmatprep.subr.mxu0 0.0
  %224 = vmatpush2.msra.mxu0 %v118
  %225 = vmatprep.subr.mxu0 0.0
  %226 = vmatpush2.msra.mxu0 %v117
  %227 = vmatprep.subr.mxu0 0.0
  %228 = vmatpush2.msra.mxu0 %v116
  %229 = vmatprep.subr.mxu0 0.0
  %230 = vmatpush2.msra.mxu0 %v115
  %231 = vmatprep.subr.mxu0 0.0
  %232 = vmatpush2.msra.mxu0 %v114
  %233 = vmatprep.mubr.f32.mxu0 %v15
  %234 = vmatmul.mubr.f32.gmra.mxu0 %v14
  %v235 = vpop.f32.mrf.mxu0
  %v236 = vadd.f32 %v167, %v235
  %v237 = vpop.f32.mrf.mxu0
  %238 = vmatprep.mubr.f32.mxu0 %v19
  %239 = vmatmul.mubr.f32.gmra.mxu0 %v18
  %v240 = vpop.f32.mrf.mxu0
  %v241 = vadd.f32 %v167, %v240
  %v242 = vpop.f32.mrf.mxu0
  %243 = vmatprep.mubr.f32.mxu0 %v23
  %244 = vmatmul.mubr.f32.gmra.mxu0 %v22
  %v245 = vpop.f32.mrf.mxu0
  %v246 = vadd.f32 %v167, %v245
  %v247 = vpop.f32.mrf.mxu0
  %248 = vmatprep.mubr.f32.mxu0 %v27
  %249 = vmatmul.mubr.f32.gmra.mxu0 %v26
  %v250 = vpop.f32.mrf.mxu0
  %v251 = vadd.f32 %v167, %v250
  %v252 = vpop.f32.mrf.mxu0
  %253 = vmatprep.mubr.f32.mxu0 %v31
  %254 = vmatmul.mubr.f32.gmra.mxu0 %v30
  %v255 = vpop.f32.mrf.mxu0
  %v256 = vadd.f32 %v167, %v255
  %v257 = vpop.f32.mrf.mxu0
  %258 = vmatprep.mubr.f32.mxu0 %v35
  %259 = vmatmul.mubr.f32.gmra.mxu0 %v34
  %v260 = vpop.f32.mrf.mxu0
  %v261 = vadd.f32 %v167, %v260
  %v262 = vpop.f32.mrf.mxu0
  %263 = vmatprep.mubr.f32.mxu0 %v39
  %264 = vmatmul.mubr.f32.gmra.mxu0 %v38
  %v265 = vpop.f32.mrf.mxu0
  %v266 = vadd.f32 %v167, %v265
  %v267 = vpop.f32.mrf.mxu0
  %268 = vmatprep.mubr.f32.mxu0 %v43
  %269 = vmatmul.mubr.f32.gmra.mxu0 %v42
  %v270 = vpop.f32.mrf.mxu0
  %v271 = vadd.f32 %v167, %v270
  %v272 = vpop.f32.mrf.mxu0
  %273 = vmatprep.mubr.f32.mxu0 %v47
  %274 = vmatmul.mubr.f32.gmra.mxu0 %v46
  %v275 = vpop.f32.mrf.mxu0
  %v276 = vadd.f32 %v167, %v275
  %v277 = vpop.f32.mrf.mxu0
  %278 = vmatprep.mubr.f32.mxu0 %v51
  %279 = vmatmul.mubr.f32.gmra.mxu0 %v50
  %v280 = vpop.f32.mrf.mxu0
  %v281 = vadd.f32 %v167, %v280
  %v282 = vpop.f32.mrf.mxu0
  %283 = vmatprep.mubr.f32.mxu0 %v55
  %284 = vmatmul.mubr.f32.gmra.mxu0 %v54
  %v285 = vpop.f32.mrf.mxu0
  %v286 = vadd.f32 %v167, %v285
  %v287 = vpop.f32.mrf.mxu0
  %288 = vmatprep.mubr.f32.mxu0 %v59
  %289 = vmatmul.mubr.f32.gmra.mxu0 %v58
  %v290 = vpop.f32.mrf.mxu0
  %v291 = vadd.f32 %v167, %v290
  %v292 = vpop.f32.mrf.mxu0
  %293 = vmatprep.mubr.f32.mxu0 %v63
  %294 = vmatmul.mubr.f32.gmra.mxu0 %v62
  %v295 = vpop.f32.mrf.mxu0
  %v296 = vadd.f32 %v167, %v295
  %v297 = vpop.f32.mrf.mxu0
  %298 = vmatprep.mubr.f32.mxu0 %v67
  %299 = vmatmul.mubr.f32.gmra.mxu0 %v66
  %v300 = vpop.f32.mrf.mxu0
  %v301 = vadd.f32 %v167, %v300
  %v302 = vpop.f32.mrf.mxu0
  %303 = vmatprep.mubr.f32.mxu0 %v71
  %304 = vmatmul.mubr.f32.gmra.mxu0 %v70
  %v305 = vpop.f32.mrf.mxu0
  %v306 = vadd.f32 %v167, %v305
  %v307 = vpop.f32.mrf.mxu0
  %308 = vmatprep.mubr.f32.mxu0 %v75
  %309 = vmatmul.mubr.f32.gmra.mxu0 %v74
  %v310 = vpop.f32.mrf.mxu0
  %v311 = vadd.f32 %v167, %v310
  %v312 = vpop.f32.mrf.mxu0
  %313 = vmatprep.mubr.f32.mxu0 %v79
  %314 = vmatmul.mubr.f32.gmra.mxu0 %v78
  %v315 = vpop.f32.mrf.mxu0
  %v316 = vadd.f32 %v167, %v315
  %v317 = vpop.f32.mrf.mxu0
  %318 = vmatprep.mubr.f32.mxu0 %v83
  %319 = vmatmul.mubr.f32.gmra.mxu0 %v82
  %v320 = vpop.f32.mrf.mxu0
  %v321 = vadd.f32 %v167, %v320
  %v322 = vpop.f32.mrf.mxu0
  %323 = vmatprep.mubr.f32.mxu0 %v87
  %324 = vmatmul.mubr.f32.gmra.mxu0 %v86
  %v325 = vpop.f32.mrf.mxu0
  %v326 = vadd.f32 %v167, %v325
  %v327 = vpop.f32.mrf.mxu0
  %328 = vmatprep.mubr.f32.mxu0 %v91
  %329 = vmatmul.mubr.f32.gmra.mxu0 %v90
  %v330 = vpop.f32.mrf.mxu0
  %v331 = vadd.f32 %v167, %v330
  %v332 = vpop.f32.mrf.mxu0
  %333 = vmatprep.mubr.f32.mxu0 %v95
  %334 = vmatmul.mubr.f32.gmra.mxu0 %v94
  %v335 = vpop.f32.mrf.mxu0
  %v336 = vadd.f32 %v167, %v335
  %v337 = vpop.f32.mrf.mxu0
  %338 = vdwg.mxu0
  %339 = vmatprep.subr.mxu0 0.0
  %340 = vmatpush1.msra.mxu0 %v145
  %341 = vmatprep.subr.mxu0 0.0
  %342 = vmatpush1.msra.mxu0 %v144
  %343 = vmatprep.subr.mxu0 0.0
  %344 = vmatpush1.msra.mxu0 %v143
  %345 = vmatprep.subr.mxu0 0.0
  %346 = vmatpush1.msra.mxu0 %v142
  %347 = vmatprep.subr.mxu0 0.0
  %348 = vmatpush1.msra.mxu0 %v141
  %349 = vmatprep.subr.mxu0 0.0
  %350 = vmatpush1.msra.mxu0 %v140
  %351 = vmatprep.subr.mxu0 0.0
  %352 = vmatpush1.msra.mxu0 %v139
  %353 = vmatprep.subr.mxu0 0.0
  %354 = vmatpush1.msra.mxu0 %v138
  %355 = vmatprep.subr.mxu0 0.0
  %356 = vmatpush1.msra.mxu0 %v137
  %357 = vmatprep.subr.mxu0 0.0
  %358 = vmatpush1.msra.mxu0 %v136
  %359 = vmatprep.subr.mxu0 0.0
  %360 = vmatpush1.msra.mxu0 %v135
  %361 = vmatprep.subr.mxu0 0.0
  %362 = vmatpush1.msra.mxu0 %v134
  %363 = vmatprep.subr.mxu0 0.0
  %364 = vmatpush1.msra.mxu0 %v133
  %365 = vmatprep.subr.mxu0 0.0
  %366 = vmatpush1.msra.mxu0 %v132
  %367 = vmatprep.subr.mxu0 0.0
  %368 = vmatpush1.msra.mxu0 %v131
  %369 = vmatprep.subr.mxu0 0.0
  %370 = vmatpush1.msra.mxu0 %v130
  %371 = vmatprep.subr.mxu0 0.0
  %372 = vmatpush2.msra.mxu0 %v161
  %373 = vmatprep.subr.mxu0 0.0
  %374 = vmatpush2.msra.mxu0 %v160
  %375 = vmatprep.subr.mxu0 0.0
  %376 = vmatpush2.msra.mxu0 %v159
  %377 = vmatprep.subr.mxu0 0.0
  %378 = vmatpush2.msra.mxu0 %v158
  %379 = vmatprep.subr.mxu0 0.0
  %380 = vmatpush2.msra.mxu0 %v157
  %381 = vmatprep.subr.mxu0 0.0
  %382 = vmatpush2.msra.mxu0 %v156
  %383 = vmatprep.subr.mxu0 0.0
  %384 = vmatpush2.msra.mxu0 %v155
  %385 = vmatprep.subr.mxu0 0.0
  %386 = vmatpush2.msra.mxu0 %v154
  %387 = vmatprep.subr.mxu0 0.0
  %388 = vmatpush2.msra.mxu0 %v153
  %389 = vmatprep.subr.mxu0 0.0
  %390 = vmatpush2.msra.mxu0 %v152
  %391 = vmatprep.subr.mxu0 0.0
  %392 = vmatpush2.msra.mxu0 %v151
  %393 = vmatprep.subr.mxu0 0.0
  %394 = vmatpush2.msra.mxu0 %v150
  %395 = vmatprep.subr.mxu0 0.0
  %396 = vmatpush2.msra.mxu0 %v149
  %397 = vmatprep.subr.mxu0 0.0
  %398 = vmatpush2.msra.mxu0 %v148
  %399 = vmatprep.subr.mxu0 0.0
  %400 = vmatpush2.msra.mxu0 %v147
  %401 = vmatprep.subr.mxu0 0.0
  %402 = vmatpush2.msra.mxu0 %v146
  %403 = vmatprep.mubr.f32.mxu0 %v17
  %404 = vmatmul.mubr.f32.gmra.mxu0 %v16
  %v405 = vpop.f32.mrf.mxu0
  %v406 = vadd.f32 %v236, %v405
  %v407 = vpop.f32.mrf.mxu0
  %408 = vmatprep.mubr.f32.mxu0 %v21
  %409 = vmatmul.mubr.f32.gmra.mxu0 %v20
  %v410 = vpop.f32.mrf.mxu0
  %v411 = vadd.f32 %v241, %v410
  %v412 = vpop.f32.mrf.mxu0
  %413 = vmatprep.mubr.f32.mxu0 %v25
  %414 = vmatmul.mubr.f32.gmra.mxu0 %v24
  %v415 = vpop.f32.mrf.mxu0
  %v416 = vadd.f32 %v246, %v415
  %v417 = vpop.f32.mrf.mxu0
  %418 = vmatprep.mubr.f32.mxu0 %v29
  %419 = vmatmul.mubr.f32.gmra.mxu0 %v28
  %v420 = vpop.f32.mrf.mxu0
  %v421 = vadd.f32 %v251, %v420
  %v422 = vpop.f32.mrf.mxu0
  %423 = vmatprep.mubr.f32.mxu0 %v33
  %424 = vmatmul.mubr.f32.gmra.mxu0 %v32
  %v425 = vpop.f32.mrf.mxu0
  %v426 = vadd.f32 %v256, %v425
  %v427 = vpop.f32.mrf.mxu0
  %428 = vmatprep.mubr.f32.mxu0 %v37
  %429 = vmatmul.mubr.f32.gmra.mxu0 %v36
  %v430 = vpop.f32.mrf.mxu0
  %v431 = vadd.f32 %v261, %v430
  %v432 = vpop.f32.mrf.mxu0
  %433 = vmatprep.mubr.f32.mxu0 %v41
  %434 = vmatmul.mubr.f32.gmra.mxu0 %v40
  %v435 = vpop.f32.mrf.mxu0
  %v436 = vadd.f32 %v266, %v435
  %v437 = vpop.f32.mrf.mxu0
  %438 = vmatprep.mubr.f32.mxu0 %v45
  %439 = vmatmul.mubr.f32.gmra.mxu0 %v44
  %v440 = vpop.f32.mrf.mxu0
  %v441 = vadd.f32 %v271, %v440
  %v442 = vpop.f32.mrf.mxu0
  %443 = vmatprep.mubr.f32.mxu0 %v49
  %444 = vmatmul.mubr.f32.gmra.mxu0 %v48
  %v445 = vpop.f32.mrf.mxu0
  %v446 = vadd.f32 %v276, %v445
  %v447 = vpop.f32.mrf.mxu0
  %448 = vmatprep.mubr.f32.mxu0 %v53
  %449 = vmatmul.mubr.f32.gmra.mxu0 %v52
  %v450 = vpop.f32.mrf.mxu0
  %v451 = vadd.f32 %v281, %v450
  %v452 = vpop.f32.mrf.mxu0
  %453 = vmatprep.mubr.f32.mxu0 %v57
  %454 = vmatmul.mubr.f32.gmra.mxu0 %v56
  %v455 = vpop.f32.mrf.mxu0
  %v456 = vadd.f32 %v286, %v455
  %v457 = vpop.f32.mrf.mxu0
  %458 = vmatprep.mubr.f32.mxu0 %v61
  %459 = vmatmul.mubr.f32.gmra.mxu0 %v60
  %v460 = vpop.f32.mrf.mxu0
  %v461 = vadd.f32 %v291, %v460
  %v462 = vpop.f32.mrf.mxu0
  %463 = vmatprep.mubr.f32.mxu0 %v65
  %464 = vmatmul.mubr.f32.gmra.mxu0 %v64
  %v465 = vpop.f32.mrf.mxu0
  %v466 = vadd.f32 %v296, %v465
  %v467 = vpop.f32.mrf.mxu0
  %468 = vmatprep.mubr.f32.mxu0 %v69
  %469 = vmatmul.mubr.f32.gmra.mxu0 %v68
  %v470 = vpop.f32.mrf.mxu0
  %v471 = vadd.f32 %v301, %v470
  %v472 = vpop.f32.mrf.mxu0
  %473 = vmatprep.mubr.f32.mxu0 %v73
  %474 = vmatmul.mubr.f32.gmra.mxu0 %v72
  %v475 = vpop.f32.mrf.mxu0
  %v476 = vadd.f32 %v306, %v475
  %v477 = vpop.f32.mrf.mxu0
  %478 = vmatprep.mubr.f32.mxu0 %v77
  %479 = vmatmul.mubr.f32.gmra.mxu0 %v76
  %v480 = vpop.f32.mrf.mxu0
  %v481 = vadd.f32 %v311, %v480
  %v482 = vpop.f32.mrf.mxu0
  %483 = vmatprep.mubr.f32.mxu0 %v81
  %484 = vmatmul.mubr.f32.gmra.mxu0 %v80
  %v485 = vpop.f32.mrf.mxu0
  %v486 = vadd.f32 %v316, %v485
  %v487 = vpop.f32.mrf.mxu0
  %488 = vmatprep.mubr.f32.mxu0 %v85
  %489 = vmatmul.mubr.f32.gmra.mxu0 %v84
  %v490 = vpop.f32.mrf.mxu0
  %v491 = vadd.f32 %v321, %v490
  %v492 = vpop.f32.mrf.mxu0
  %493 = vmatprep.mubr.f32.mxu0 %v89
  %494 = vmatmul.mubr.f32.gmra.mxu0 %v88
  %v495 = vpop.f32.mrf.mxu0
  %v496 = vadd.f32 %v326, %v495
  %v497 = vpop.f32.mrf.mxu0
  %498 = vmatprep.mubr.f32.mxu0 %v93
  %499 = vmatmul.mubr.f32.gmra.mxu0 %v92
  %v500 = vpop.f32.mrf.mxu0
  %v501 = vadd.f32 %v331, %v500
  %v502 = vpop.f32.mrf.mxu0
  %503 = vmatprep.mubr.f32.mxu0 %v97
  %504 = vmatmul.mubr.f32.gmra.mxu0 %v96
  %v505 = vpop.f32.mrf.mxu0
  %v506 = vadd.f32 %v336, %v505
  %v507 = vpop.f32.mrf.mxu0
  %508 = vdwg.mxu0
  %v509 = vmax.f32 %v406, 0.0
  %v510 = vmax.f32 %v411, 0.0
  %v511 = vmax.f32 %v416, 0.0
  %v512 = vmax.f32 %v421, 0.0
  %v513 = vmax.f32 %v426, 0.0
  %v514 = vmax.f32 %v431, 0.0
  %v515 = vmax.f32 %v436, 0.0
  %v516 = vmax.f32 %v441, 0.0
  %v517 = vmax.f32 %v446, 0.0
  %v518 = vmax.f32 %v451, 0.0
  %v519 = vmax.f32 %v456, 0.0
  %v520 = vmax.f32 %v461, 0.0
  %v521 = vmax.f32 %v466, 0.0
  %v522 = vmax.f32 %v471, 0.0
  %v523 = vmax.f32 %v476, 0.0
  %v524 = vmax.f32 %v481, 0.0
  %v525 = vmax.f32 %v486, 0.0
  %v526 = vmax.f32 %v491, 0.0
  %v527 = vmax.f32 %v496, 0.0
  %v528 = vmax.f32 %v501, 0.0
  %v529 = vmax.f32 %v506, 0.0
  %vm530 = vcmask 523264
  %531 = vst.msk [vmem:[%s3] sm:$0xff] %vm530, %v509
  %532 = vst.msk [vmem:[%s3 + $0x8] sm:$0xff] %vm530, %v510
  %533 = vst.msk [vmem:[%s3 + $0x10] sm:$0xff] %vm530, %v511
  %534 = vst.msk [vmem:[%s3 + $0x18] sm:$0xff] %vm530, %v512
  %535 = vst.msk [vmem:[%s3 + $0x20] sm:$0xff] %vm530, %v513
  %536 = vst.msk [vmem:[%s3 + $0x28] sm:$0xff] %vm530, %v514
  %537 = vst.msk [vmem:[%s3 + $0x30] sm:$0xff] %vm530, %v515
  %538 = vst.msk [vmem:[%s3 + $0x38] sm:$0xff] %vm530, %v516
  %539 = vst.msk [vmem:[%s3 + $0x40] sm:$0xff] %vm530, %v517
  %540 = vst.msk [vmem:[%s3 + $0x48] sm:$0xff] %vm530, %v518
  %541 = vst.msk [vmem:[%s3 + $0x50] sm:$0xff] %vm530, %v519
  %542 = vst.msk [vmem:[%s3 + $0x58] sm:$0xff] %vm530, %v520
  %543 = vst.msk [vmem:[%s3 + $0x60] sm:$0xff] %vm530, %v521
  %544 = vst.msk [vmem:[%s3 + $0x68] sm:$0xff] %vm530, %v522
  %545 = vst.msk [vmem:[%s3 + $0x70] sm:$0xff] %vm530, %v523
  %546 = vst.msk [vmem:[%s3 + $0x78] sm:$0xff] %vm530, %v524
  %547 = vst.msk [vmem:[%s3 + $0x80] sm:$0xff] %vm530, %v525
  %548 = vst.msk [vmem:[%s3 + $0x88] sm:$0xff] %vm530, %v526
  %549 = vst.msk [vmem:[%s3 + $0x90] sm:$0xff] %vm530, %v527
  %550 = vst.msk [vmem:[%s3 + $0x98] sm:$0xff] %vm530, %v528
  %vm551 = vcmask 517120
  %552 = vst.msk [vmem:[%s3 + $0xa0] sm:$0x3] %vm551, %v529
  // Predicated region
  $region14: #{mynet_forward.5} parent=0 // pred_check
    _
  $region15: #{mynet_forward.5} parent=0 // pred_check_branch
    %554 = sbr.rel (0) target = $region17
  $region16: #{mynet_forward.5} parent=0 // pred_region
    _
  $region17: #{mynet_forward.5} parent=0 // pred_fallthru
    _
  // Predicated region
  $region18: #{mynet_forward.5} parent=0 // pred_check
    _
  $region19: #{mynet_forward.5} parent=0 // pred_check_branch
    %556 = sbr.rel (0) target = $region21
  $region20: #{mynet_forward.5} parent=0 // pred_region
    _
  $region21: #{mynet_forward.5} parent=0 // pred_fallthru
    _

// kernel: mynet_forward.6
$region0: #{mynet_forward.6}
  #allocation0 [shape = 'u32[]', space=smem, size = 0x4, offset = 0x4, fixed_abs, tag = 'smem constant byte address 0x4 - core index']
  #allocation1 [shape = 'u32[144,128]{1,0:T(1,128)}', space=vmem, size = 0x12000, scoped, tag = 'internal scratch']
  %s0 = inlined_call_operand.vmem [shape: f32[98,576], index: 0, kind: input, shape index: {}]
  %s1 = inlined_call_operand.vmem [shape: f32[576,64], index: 1, kind: input, shape index: {}]
  %s2 = inlined_call_operand.vmem [shape: f32[1,64], index: 2, kind: input, shape index: {}]
  %s3 = inlined_call_operand.vmem [shape: f32[98,64], index: 3, kind: output, shape index: {}]
  %s4 = sld [smem:[#allocation0]]
  $region22: #{mynet_forward.6} parent=0
    _
  %s6 = ssub.s32 1, %s4
  %s7 = scalar_select 0, %s6, %s4
  // Predicated region
  $region2: #{mynet_forward.6} parent=0 // pred_check
    _
  $region3: #{mynet_forward.6} parent=0 // pred_check_branch
    %9 = sbr.rel (0) target = $region5
  $region4: #{mynet_forward.6} parent=0 // pred_region
    _
  $region5: #{mynet_forward.6} parent=0 // pred_fallthru
    _
  // Predicated region
  $region6: #{mynet_forward.6} parent=0 // pred_check
    _
  $region7: #{mynet_forward.6} parent=0 // pred_check_branch
    %11 = sbr.rel (0) target = $region9
  $region8: #{mynet_forward.6} parent=0 // pred_region
    _
  $region9: #{mynet_forward.6} parent=0 // pred_fallthru
    _
  // Predicated region
  $region10: #{mynet_forward.6} parent=0 // pred_check
    _
  $region11: #{mynet_forward.6} parent=0 // pred_check_branch
    %13 = sbr.rel (0) target = $region13
  $region12: #{mynet_forward.6} parent=0 // pred_region
    _
  $region13: #{mynet_forward.6} parent=0 // pred_fallthru
    _
  %v14 = vld [vmem:[%s0] sm:$0xff]
  %v15 = vld [vmem:[%s0 + $0x8] sm:$0xff]
  %v16 = vld [vmem:[%s0 + $0x10] sm:$0xff]
  %v17 = vld [vmem:[%s0 + $0x18] sm:$0xff]
  %v18 = vld [vmem:[%s0 + $0x20] sm:$0xff]
  %v19 = vld [vmem:[%s0 + $0x28] sm:$0xff]
  %v20 = vld [vmem:[%s0 + $0x30] sm:$0xff]
  %v21 = vld [vmem:[%s0 + $0x38] sm:$0xff]
  %v22 = vld [vmem:[%s0 + $0x40] sm:$0xff]
  %v23 = vld [vmem:[%s0 + $0x48] sm:$0xff]
  %v24 = vld [vmem:[%s0 + $0x50] sm:$0xff]
  %v25 = vld [vmem:[%s0 + $0x58] sm:$0xff]
  %v26 = vld [vmem:[%s0 + $0x60] sm:$0xff]
  %v27 = vld [vmem:[%s0 + $0x68] sm:$0xff]
  %v28 = vld [vmem:[%s0 + $0x70] sm:$0xff]
  %v29 = vld [vmem:[%s0 + $0x78] sm:$0xff]
  %v30 = vld [vmem:[%s0 + $0x80] sm:$0xff]
  %v31 = vld [vmem:[%s0 + $0x88] sm:$0xff]
  %v32 = vld [vmem:[%s0 + $0x90] sm:$0xff]
  %v33 = vld [vmem:[%s0 + $0x98] sm:$0xff]
  %v34 = vld [vmem:[%s0 + $0xa0] sm:$0xff]
  %v35 = vld [vmem:[%s0 + $0xa8] sm:$0xff]
  %v36 = vld [vmem:[%s0 + $0xb0] sm:$0xff]
  %v37 = vld [vmem:[%s0 + $0xb8] sm:$0xff]
  %v38 = vld [vmem:[%s0 + $0xc0] sm:$0xff]
  %v39 = vld [vmem:[%s0 + $0xc8] sm:$0xff]
  %v40 = vld [vmem:[%s0 + $0xd0] sm:$0xff]
  %v41 = vld [vmem:[%s0 + $0xd8] sm:$0xff]
  %v42 = vld [vmem:[%s0 + $0xe0] sm:$0xff]
  %v43 = vld [vmem:[%s0 + $0xe8] sm:$0xff]
  %v44 = vld [vmem:[%s0 + $0xf0] sm:$0xff]
  %v45 = vld [vmem:[%s0 + $0xf8] sm:$0xff]
  %v46 = vld [vmem:[%s0 + $0x100] sm:$0xff]
  %v47 = vld [vmem:[%s0 + $0x108] sm:$0xff]
  %v48 = vld [vmem:[%s0 + $0x110] sm:$0xff]
  %v49 = vld [vmem:[%s0 + $0x118] sm:$0xff]
  %v50 = vld [vmem:[%s0 + $0x120] sm:$0xff]
  %v51 = vld [vmem:[%s0 + $0x128] sm:$0xff]
  %v52 = vld [vmem:[%s0 + $0x130] sm:$0xff]
  %v53 = vld [vmem:[%s0 + $0x138] sm:$0xff]
  %v54 = vld [vmem:[%s0 + $0x140] sm:$0xff]
  %v55 = vld [vmem:[%s0 + $0x148] sm:$0xff]
  %v56 = vld [vmem:[%s0 + $0x150] sm:$0xff]
  %v57 = vld [vmem:[%s0 + $0x158] sm:$0xff]
  %v58 = vld [vmem:[%s0 + $0x160] sm:$0xff]
  %v59 = vld [vmem:[%s0 + $0x168] sm:$0xff]
  %v60 = vld [vmem:[%s0 + $0x170] sm:$0xff]
  %v61 = vld [vmem:[%s0 + $0x178] sm:$0xff]
  %v62 = vld [vmem:[%s0 + $0x180] sm:$0xff]
  %v63 = vld [vmem:[%s0 + $0x188] sm:$0xff]
  %v64 = vld [vmem:[%s0 + $0x190] sm:$0xff]
  %v65 = vld [vmem:[%s0 + $0x198] sm:$0xff]
  %v66 = vld [vmem:[%s0 + $0x1a0] sm:$0xff]
  %v67 = vld [vmem:[%s0 + $0x1a8] sm:$0xff]
  %v68 = vld [vmem:[%s0 + $0x1b0] sm:$0xff]
  %v69 = vld [vmem:[%s0 + $0x1b8] sm:$0xff]
  %v70 = vld [vmem:[%s0 + $0x1c0] sm:$0xff]
  %v71 = vld [vmem:[%s0 + $0x1c8] sm:$0xff]
  %v72 = vld [vmem:[%s0 + $0x1d0] sm:$0xff]
  %v73 = vld [vmem:[%s0 + $0x1d8] sm:$0xff]
  %v74 = vld [vmem:[%s0 + $0x1e0] sm:$0x3]
  %v75 = vld [vmem:[%s0 + $0x1e8] sm:$0x3]
  %v76 = vld [vmem:[%s0 + $0x1f0] sm:$0x3]
  %v77 = vld [vmem:[%s0 + $0x1f8] sm:$0x3]
  %v78 = vld [vmem:[%s0 + $0x200] sm:$0x3]
  %v79 = vld [vmem:[%s1] sm:$0xff]
  %v80 = vld [vmem:[%s1 + $0x8] sm:$0xff]
  %v81 = vld [vmem:[%s1 + $0x10] sm:$0xff]
  %v82 = vld [vmem:[%s1 + $0x18] sm:$0xff]
  %v83 = vld [vmem:[%s1 + $0x20] sm:$0xff]
  %v84 = vld [vmem:[%s1 + $0x28] sm:$0xff]
  %v85 = vld [vmem:[%s1 + $0x30] sm:$0xff]
  %v86 = vld [vmem:[%s1 + $0x38] sm:$0xff]
  %v87 = vld [vmem:[%s1 + $0x40] sm:$0xff]
  %v88 = vld [vmem:[%s1 + $0x48] sm:$0xff]
  %v89 = vld [vmem:[%s1 + $0x50] sm:$0xff]
  %v90 = vld [vmem:[%s1 + $0x58] sm:$0xff]
  %v91 = vld [vmem:[%s1 + $0x60] sm:$0xff]
  %v92 = vld [vmem:[%s1 + $0x68] sm:$0xff]
  %v93 = vld [vmem:[%s1 + $0x70] sm:$0xff]
  %v94 = vld [vmem:[%s1 + $0x78] sm:$0xff]
  %v95 = vld [vmem:[%s1 + $0x80] sm:$0xff]
  %v96 = vld [vmem:[%s1 + $0x88] sm:$0xff]
  %v97 = vld [vmem:[%s1 + $0x90] sm:$0xff]
  %v98 = vld [vmem:[%s1 + $0x98] sm:$0xff]
  %v99 = vld [vmem:[%s1 + $0xa0] sm:$0xff]
  %v100 = vld [vmem:[%s1 + $0xa8] sm:$0xff]
  %v101 = vld [vmem:[%s1 + $0xb0] sm:$0xff]
  %v102 = vld [vmem:[%s1 + $0xb8] sm:$0xff]
  %v103 = vld [vmem:[%s1 + $0xc0] sm:$0xff]
  %v104 = vld [vmem:[%s1 + $0xc8] sm:$0xff]
  %v105 = vld [vmem:[%s1 + $0xd0] sm:$0xff]
  %v106 = vld [vmem:[%s1 + $0xd8] sm:$0xff]
  %v107 = vld [vmem:[%s1 + $0xe0] sm:$0xff]
  %v108 = vld [vmem:[%s1 + $0xe8] sm:$0xff]
  %v109 = vld [vmem:[%s1 + $0xf0] sm:$0xff]
  %v110 = vld [vmem:[%s1 + $0xf8] sm:$0xff]
  %v111 = vld [vmem:[%s1 + $0x100] sm:$0xff]
  %v112 = vld [vmem:[%s1 + $0x108] sm:$0xff]
  %v113 = vld [vmem:[%s1 + $0x110] sm:$0xff]
  %v114 = vld [vmem:[%s1 + $0x118] sm:$0xff]
  %v115 = vld [vmem:[%s1 + $0x120] sm:$0xff]
  %v116 = vld [vmem:[%s1 + $0x128] sm:$0xff]
  %v117 = vld [vmem:[%s1 + $0x130] sm:$0xff]
  %v118 = vld [vmem:[%s1 + $0x138] sm:$0xff]
  %v119 = vld [vmem:[%s1 + $0x140] sm:$0xff]
  %v120 = vld [vmem:[%s1 + $0x148] sm:$0xff]
  %v121 = vld [vmem:[%s1 + $0x150] sm:$0xff]
  %v122 = vld [vmem:[%s1 + $0x158] sm:$0xff]
  %v123 = vld [vmem:[%s1 + $0x160] sm:$0xff]
  %v124 = vld [vmem:[%s1 + $0x168] sm:$0xff]
  %v125 = vld [vmem:[%s1 + $0x170] sm:$0xff]
  %v126 = vld [vmem:[%s1 + $0x178] sm:$0xff]
  %v127 = vld [vmem:[%s1 + $0x180] sm:$0xff]
  %v128 = vld [vmem:[%s1 + $0x188] sm:$0xff]
  %v129 = vld [vmem:[%s1 + $0x190] sm:$0xff]
  %v130 = vld [vmem:[%s1 + $0x198] sm:$0xff]
  %v131 = vld [vmem:[%s1 + $0x1a0] sm:$0xff]
  %v132 = vld [vmem:[%s1 + $0x1a8] sm:$0xff]
  %v133 = vld [vmem:[%s1 + $0x1b0] sm:$0xff]
  %v134 = vld [vmem:[%s1 + $0x1b8] sm:$0xff]
  %v135 = vld [vmem:[%s1 + $0x1c0] sm:$0xff]
  %v136 = vld [vmem:[%s1 + $0x1c8] sm:$0xff]
  %v137 = vld [vmem:[%s1 + $0x1d0] sm:$0xff]
  %v138 = vld [vmem:[%s1 + $0x1d8] sm:$0xff]
  %v139 = vld [vmem:[%s1 + $0x1e0] sm:$0xff]
  %v140 = vld [vmem:[%s1 + $0x1e8] sm:$0xff]
  %v141 = vld [vmem:[%s1 + $0x1f0] sm:$0xff]
  %v142 = vld [vmem:[%s1 + $0x1f8] sm:$0xff]
  %v143 = vld [vmem:[%s1 + $0x200] sm:$0xff]
  %v144 = vld [vmem:[%s1 + $0x208] sm:$0xff]
  %v145 = vld [vmem:[%s1 + $0x210] sm:$0xff]
  %v146 = vld [vmem:[%s1 + $0x218] sm:$0xff]
  %v147 = vld [vmem:[%s1 + $0x220] sm:$0xff]
  %v148 = vld [vmem:[%s1 + $0x228] sm:$0xff]
  %v149 = vld [vmem:[%s1 + $0x230] sm:$0xff]
  %v150 = vld [vmem:[%s1 + $0x238] sm:$0xff]
  %v151 = vld [vmem:[%s2] sm:$0x1]
  %v153 = vlaneseq
  %v154 = vshrl.u32 %v153, 7
  %v155 = vsub.s32 0, %v154
  %v156 = vrot.slane %v151, %v155
  %vm158 = vcmask 523264
  %v160 = vsel %vm158, %v18, 0
  %v163 = vsel %vm158, %v23, 0
  %v166 = vsel %vm158, %v28, 0
  %v169 = vsel %vm158, %v33, 0
  %v172 = vsel %vm158, %v38, 0
  %v175 = vsel %vm158, %v43, 0
  %v178 = vsel %vm158, %v48, 0
  %v181 = vsel %vm158, %v53, 0
  %v184 = vsel %vm158, %v58, 0
  %v187 = vsel %vm158, %v63, 0
  %v190 = vsel %vm158, %v68, 0
  %v193 = vsel %vm158, %v73, 0
  %v196 = vsel %vm158, %v78, 0
  %198 = vmatprep.subr.mxu0 0.0
  %199 = vmatpush1.msra.mxu0 %v94
  %200 = vmatprep.subr.mxu0 0.0
  %201 = vmatpush1.msra.mxu0 %v93
  %202 = vmatprep.subr.mxu0 0.0
  %203 = vmatpush1.msra.mxu0 %v92
  %204 = vmatprep.subr.mxu0 0.0
  %205 = vmatpush1.msra.mxu0 %v91
  %206 = vmatprep.subr.mxu0 0.0
  %207 = vmatpush1.msra.mxu0 %v90
  %208 = vmatprep.subr.mxu0 0.0
  %209 = vmatpush1.msra.mxu0 %v89
  %210 = vmatprep.subr.mxu0 0.0
  %211 = vmatpush1.msra.mxu0 %v88
  %212 = vmatprep.subr.mxu0 0.0
  %213 = vmatpush1.msra.mxu0 %v87
  %214 = vmatprep.subr.mxu0 0.0
  %215 = vmatpush1.msra.mxu0 %v86
  %216 = vmatprep.subr.mxu0 0.0
  %217 = vmatpush1.msra.mxu0 %v85
  %218 = vmatprep.subr.mxu0 0.0
  %219 = vmatpush1.msra.mxu0 %v84
  %220 = vmatprep.subr.mxu0 0.0
  %221 = vmatpush1.msra.mxu0 %v83
  %222 = vmatprep.subr.mxu0 0.0
  %223 = vmatpush1.msra.mxu0 %v82
  %224 = vmatprep.subr.mxu0 0.0
  %225 = vmatpush1.msra.mxu0 %v81
  %226 = vmatprep.subr.mxu0 0.0
  %227 = vmatpush1.msra.mxu0 %v80
  %228 = vmatprep.subr.mxu0 0.0
  %229 = vmatpush1.msra.mxu0 %v79
  %230 = vmatprep.subr.mxu0 0.0
  %231 = vmatpush2.msra.mxu0 %v110
  %232 = vmatprep.subr.mxu0 0.0
  %233 = vmatpush2.msra.mxu0 %v109
  %234 = vmatprep.subr.mxu0 0.0
  %235 = vmatpush2.msra.mxu0 %v108
  %236 = vmatprep.subr.mxu0 0.0
  %237 = vmatpush2.msra.mxu0 %v107
  %238 = vmatprep.subr.mxu0 0.0
  %239 = vmatpush2.msra.mxu0 %v106
  %240 = vmatprep.subr.mxu0 0.0
  %241 = vmatpush2.msra.mxu0 %v105
  %242 = vmatprep.subr.mxu0 0.0
  %243 = vmatpush2.msra.mxu0 %v104
  %244 = vmatprep.subr.mxu0 0.0
  %245 = vmatpush2.msra.mxu0 %v103
  %246 = vmatprep.subr.mxu0 0.0
  %247 = vmatpush2.msra.mxu0 %v102
  %248 = vmatprep.subr.mxu0 0.0
  %249 = vmatpush2.msra.mxu0 %v101
  %250 = vmatprep.subr.mxu0 0.0
  %251 = vmatpush2.msra.mxu0 %v100
  %252 = vmatprep.subr.mxu0 0.0
  %253 = vmatpush2.msra.mxu0 %v99
  %254 = vmatprep.subr.mxu0 0.0
  %255 = vmatpush2.msra.mxu0 %v98
  %256 = vmatprep.subr.mxu0 0.0
  %257 = vmatpush2.msra.mxu0 %v97
  %258 = vmatprep.subr.mxu0 0.0
  %259 = vmatpush2.msra.mxu0 %v96
  %260 = vmatprep.subr.mxu0 0.0
  %261 = vmatpush2.msra.mxu0 %v95
  %262 = vmatprep.mubr.f32.mxu0 %v15
  %263 = vmatmul.mubr.f32.gmra.mxu0 %v14
  %v264 = vpop.f32.mrf.mxu0
  %v265 = vadd.f32 %v156, %v264
  %v266 = vpop.f32.mrf.mxu0
  %267 = vmatprep.mubr.f32.mxu0 %v20
  %268 = vmatmul.mubr.f32.gmra.mxu0 %v19
  %v269 = vpop.f32.mrf.mxu0
  %v270 = vadd.f32 %v156, %v269
  %v271 = vpop.f32.mrf.mxu0
  %272 = vmatprep.mubr.f32.mxu0 %v25
  %273 = vmatmul.mubr.f32.gmra.mxu0 %v24
  %v274 = vpop.f32.mrf.mxu0
  %v275 = vadd.f32 %v156, %v274
  %v276 = vpop.f32.mrf.mxu0
  %277 = vmatprep.mubr.f32.mxu0 %v30
  %278 = vmatmul.mubr.f32.gmra.mxu0 %v29
  %v279 = vpop.f32.mrf.mxu0
  %v280 = vadd.f32 %v156, %v279
  %v281 = vpop.f32.mrf.mxu0
  %282 = vmatprep.mubr.f32.mxu0 %v35
  %283 = vmatmul.mubr.f32.gmra.mxu0 %v34
  %v284 = vpop.f32.mrf.mxu0
  %v285 = vadd.f32 %v156, %v284
  %v286 = vpop.f32.mrf.mxu0
  %287 = vmatprep.mubr.f32.mxu0 %v40
  %288 = vmatmul.mubr.f32.gmra.mxu0 %v39
  %v289 = vpop.f32.mrf.mxu0
  %v290 = vadd.f32 %v156, %v289
  %v291 = vpop.f32.mrf.mxu0
  %292 = vmatprep.mubr.f32.mxu0 %v45
  %293 = vmatmul.mubr.f32.gmra.mxu0 %v44
  %v294 = vpop.f32.mrf.mxu0
  %v295 = vadd.f32 %v156, %v294
  %v296 = vpop.f32.mrf.mxu0
  %297 = vmatprep.mubr.f32.mxu0 %v50
  %298 = vmatmul.mubr.f32.gmra.mxu0 %v49
  %v299 = vpop.f32.mrf.mxu0
  %v300 = vadd.f32 %v156, %v299
  %v301 = vpop.f32.mrf.mxu0
  %302 = vmatprep.mubr.f32.mxu0 %v55
  %303 = vmatmul.mubr.f32.gmra.mxu0 %v54
  %v304 = vpop.f32.mrf.mxu0
  %v305 = vadd.f32 %v156, %v304
  %v306 = vpop.f32.mrf.mxu0
  %307 = vmatprep.mubr.f32.mxu0 %v60
  %308 = vmatmul.mubr.f32.gmra.mxu0 %v59
  %v309 = vpop.f32.mrf.mxu0
  %v310 = vadd.f32 %v156, %v309
  %v311 = vpop.f32.mrf.mxu0
  %312 = vmatprep.mubr.f32.mxu0 %v65
  %313 = vmatmul.mubr.f32.gmra.mxu0 %v64
  %v314 = vpop.f32.mrf.mxu0
  %v315 = vadd.f32 %v156, %v314
  %v316 = vpop.f32.mrf.mxu0
  %317 = vmatprep.mubr.f32.mxu0 %v70
  %318 = vmatmul.mubr.f32.gmra.mxu0 %v69
  %v319 = vpop.f32.mrf.mxu0
  %v320 = vadd.f32 %v156, %v319
  %v321 = vpop.f32.mrf.mxu0
  %322 = vmatprep.mubr.f32.mxu0 %v75
  %323 = vmatmul.mubr.f32.gmra.mxu0 %v74
  %v324 = vpop.f32.mrf.mxu0
  %v325 = vadd.f32 %v156, %v324
  %v326 = vpop.f32.mrf.mxu0
  %327 = vdwg.mxu0
  %328 = vmatprep.subr.mxu0 0.0
  %329 = vmatpush1.msra.mxu0 %v126
  %330 = vmatprep.subr.mxu0 0.0
  %331 = vmatpush1.msra.mxu0 %v125
  %332 = vmatprep.subr.mxu0 0.0
  %333 = vmatpush1.msra.mxu0 %v124
  %334 = vmatprep.subr.mxu0 0.0
  %335 = vmatpush1.msra.mxu0 %v123
  %336 = vmatprep.subr.mxu0 0.0
  %337 = vmatpush1.msra.mxu0 %v122
  %338 = vmatprep.subr.mxu0 0.0
  %339 = vmatpush1.msra.mxu0 %v121
  %340 = vmatprep.subr.mxu0 0.0
  %341 = vmatpush1.msra.mxu0 %v120
  %342 = vmatprep.subr.mxu0 0.0
  %343 = vmatpush1.msra.mxu0 %v119
  %344 = vmatprep.subr.mxu0 0.0
  %345 = vmatpush1.msra.mxu0 %v118
  %346 = vmatprep.subr.mxu0 0.0
  %347 = vmatpush1.msra.mxu0 %v117
  %348 = vmatprep.subr.mxu0 0.0
  %349 = vmatpush1.msra.mxu0 %v116
  %350 = vmatprep.subr.mxu0 0.0
  %351 = vmatpush1.msra.mxu0 %v115
  %352 = vmatprep.subr.mxu0 0.0
  %353 = vmatpush1.msra.mxu0 %v114
  %354 = vmatprep.subr.mxu0 0.0
  %355 = vmatpush1.msra.mxu0 %v113
  %356 = vmatprep.subr.mxu0 0.0
  %357 = vmatpush1.msra.mxu0 %v112
  %358 = vmatprep.subr.mxu0 0.0
  %359 = vmatpush1.msra.mxu0 %v111
  %360 = vmatprep.subr.mxu0 0.0
  %361 = vmatpush2.msra.mxu0 %v142
  %362 = vmatprep.subr.mxu0 0.0
  %363 = vmatpush2.msra.mxu0 %v141
  %364 = vmatprep.subr.mxu0 0.0
  %365 = vmatpush2.msra.mxu0 %v140
  %366 = vmatprep.subr.mxu0 0.0
  %367 = vmatpush2.msra.mxu0 %v139
  %368 = vmatprep.subr.mxu0 0.0
  %369 = vmatpush2.msra.mxu0 %v138
  %370 = vmatprep.subr.mxu0 0.0
  %371 = vmatpush2.msra.mxu0 %v137
  %372 = vmatprep.subr.mxu0 0.0
  %373 = vmatpush2.msra.mxu0 %v136
  %374 = vmatprep.subr.mxu0 0.0
  %375 = vmatpush2.msra.mxu0 %v135
  %376 = vmatprep.subr.mxu0 0.0
  %377 = vmatpush2.msra.mxu0 %v134
  %378 = vmatprep.subr.mxu0 0.0
  %379 = vmatpush2.msra.mxu0 %v133
  %380 = vmatprep.subr.mxu0 0.0
  %381 = vmatpush2.msra.mxu0 %v132
  %382 = vmatprep.subr.mxu0 0.0
  %383 = vmatpush2.msra.mxu0 %v131
  %384 = vmatprep.subr.mxu0 0.0
  %385 = vmatpush2.msra.mxu0 %v130
  %386 = vmatprep.subr.mxu0 0.0
  %387 = vmatpush2.msra.mxu0 %v129
  %388 = vmatprep.subr.mxu0 0.0
  %389 = vmatpush2.msra.mxu0 %v128
  %390 = vmatprep.subr.mxu0 0.0
  %391 = vmatpush2.msra.mxu0 %v127
  %392 = vmatprep.mubr.f32.mxu0 %v17
  %393 = vmatmul.mubr.f32.gmra.mxu0 %v16
  %v394 = vpop.f32.mrf.mxu0
  %v395 = vadd.f32 %v265, %v394
  %v396 = vpop.f32.mrf.mxu0
  %397 = vmatprep.mubr.f32.mxu0 %v22
  %398 = vmatmul.mubr.f32.gmra.mxu0 %v21
  %v399 = vpop.f32.mrf.mxu0
  %v400 = vadd.f32 %v270, %v399
  %v401 = vpop.f32.mrf.mxu0
  %402 = vmatprep.mubr.f32.mxu0 %v27
  %403 = vmatmul.mubr.f32.gmra.mxu0 %v26
  %v404 = vpop.f32.mrf.mxu0
  %v405 = vadd.f32 %v275, %v404
  %v406 = vpop.f32.mrf.mxu0
  %407 = vmatprep.mubr.f32.mxu0 %v32
  %408 = vmatmul.mubr.f32.gmra.mxu0 %v31
  %v409 = vpop.f32.mrf.mxu0
  %v410 = vadd.f32 %v280, %v409
  %v411 = vpop.f32.mrf.mxu0
  %412 = vmatprep.mubr.f32.mxu0 %v37
  %413 = vmatmul.mubr.f32.gmra.mxu0 %v36
  %v414 = vpop.f32.mrf.mxu0
  %v415 = vadd.f32 %v285, %v414
  %v416 = vpop.f32.mrf.mxu0
  %417 = vmatprep.mubr.f32.mxu0 %v42
  %418 = vmatmul.mubr.f32.gmra.mxu0 %v41
  %v419 = vpop.f32.mrf.mxu0
  %v420 = vadd.f32 %v290, %v419
  %v421 = vpop.f32.mrf.mxu0
  %422 = vmatprep.mubr.f32.mxu0 %v47
  %423 = vmatmul.mubr.f32.gmra.mxu0 %v46
  %v424 = vpop.f32.mrf.mxu0
  %v425 = vadd.f32 %v295, %v424
  %v426 = vpop.f32.mrf.mxu0
  %427 = vmatprep.mubr.f32.mxu0 %v52
  %428 = vmatmul.mubr.f32.gmra.mxu0 %v51
  %v429 = vpop.f32.mrf.mxu0
  %v430 = vadd.f32 %v300, %v429
  %v431 = vpop.f32.mrf.mxu0
  %432 = vmatprep.mubr.f32.mxu0 %v57
  %433 = vmatmul.mubr.f32.gmra.mxu0 %v56
  %v434 = vpop.f32.mrf.mxu0
  %v435 = vadd.f32 %v305, %v434
  %v436 = vpop.f32.mrf.mxu0
  %437 = vmatprep.mubr.f32.mxu0 %v62
  %438 = vmatmul.mubr.f32.gmra.mxu0 %v61
  %v439 = vpop.f32.mrf.mxu0
  %v440 = vadd.f32 %v310, %v439
  %v441 = vpop.f32.mrf.mxu0
  %442 = vmatprep.mubr.f32.mxu0 %v67
  %443 = vmatmul.mubr.f32.gmra.mxu0 %v66
  %v444 = vpop.f32.mrf.mxu0
  %v445 = vadd.f32 %v315, %v444
  %v446 = vpop.f32.mrf.mxu0
  %447 = vmatprep.mubr.f32.mxu0 %v72
  %448 = vmatmul.mubr.f32.gmra.mxu0 %v71
  %v449 = vpop.f32.mrf.mxu0
  %v450 = vadd.f32 %v320, %v449
  %v451 = vpop.f32.mrf.mxu0
  %452 = vmatprep.mubr.f32.mxu0 %v77
  %453 = vmatmul.mubr.f32.gmra.mxu0 %v76
  %v454 = vpop.f32.mrf.mxu0
  %v455 = vadd.f32 %v325, %v454
  %v456 = vpop.f32.mrf.mxu0
  %457 = vdwg.mxu0
  %458 = vmatprep.subr.mxu0 0.0
  %459 = vmatpush1.msra.mxu0 0.0
  %460 = vmatprep.subr.mxu0 0.0
  %461 = vmatpush1.msra.mxu0 0.0
  %462 = vmatprep.subr.mxu0 0.0
  %463 = vmatpush1.msra.mxu0 0.0
  %464 = vmatprep.subr.mxu0 0.0
  %465 = vmatpush1.msra.mxu0 0.0
  %466 = vmatprep.subr.mxu0 0.0
  %467 = vmatpush1.msra.mxu0 0.0
  %468 = vmatprep.subr.mxu0 0.0
  %469 = vmatpush1.msra.mxu0 0.0
  %470 = vmatprep.subr.mxu0 0.0
  %471 = vmatpush1.msra.mxu0 0.0
  %472 = vmatprep.subr.mxu0 0.0
  %473 = vmatpush1.msra.mxu0 0.0
  %474 = vmatprep.subr.mxu0 0.0
  %475 = vmatpush1.msra.mxu0 %v150
  %476 = vmatprep.subr.mxu0 0.0
  %477 = vmatpush1.msra.mxu0 %v149
  %478 = vmatprep.subr.mxu0 0.0
  %479 = vmatpush1.msra.mxu0 %v148
  %480 = vmatprep.subr.mxu0 0.0
  %481 = vmatpush1.msra.mxu0 %v147
  %482 = vmatprep.subr.mxu0 0.0
  %483 = vmatpush1.msra.mxu0 %v146
  %484 = vmatprep.subr.mxu0 0.0
  %485 = vmatpush1.msra.mxu0 %v145
  %486 = vmatprep.subr.mxu0 0.0
  %487 = vmatpush1.msra.mxu0 %v144
  %488 = vmatprep.subr.mxu0 0.0
  %489 = vmatpush1.msra.mxu0 %v143
  %490 = vmatprep.subr.mxu0 0.0
  %491 = vmatpush2.msra.mxu0 0.0
  %492 = vmatprep.subr.mxu0 0.0
  %493 = vmatpush2.msra.mxu0 0.0
  %494 = vmatprep.subr.mxu0 0.0
  %495 = vmatpush2.msra.mxu0 0.0
  %496 = vmatprep.subr.mxu0 0.0
  %497 = vmatpush2.msra.mxu0 0.0
  %498 = vmatprep.subr.mxu0 0.0
  %499 = vmatpush2.msra.mxu0 0.0
  %500 = vmatprep.subr.mxu0 0.0
  %501 = vmatpush2.msra.mxu0 0.0
  %502 = vmatprep.subr.mxu0 0.0
  %503 = vmatpush2.msra.mxu0 0.0
  %504 = vmatprep.subr.mxu0 0.0
  %505 = vmatpush2.msra.mxu0 0.0
  %506 = vmatprep.subr.mxu0 0.0
  %507 = vmatpush2.msra.mxu0 0.0
  %508 = vmatprep.subr.mxu0 0.0
  %509 = vmatpush2.msra.mxu0 0.0
  %510 = vmatprep.subr.mxu0 0.0
  %511 = vmatpush2.msra.mxu0 0.0
  %512 = vmatprep.subr.mxu0 0.0
  %513 = vmatpush2.msra.mxu0 0.0
  %514 = vmatprep.subr.mxu0 0.0
  %515 = vmatpush2.msra.mxu0 0.0
  %516 = vmatprep.subr.mxu0 0.0
  %517 = vmatpush2.msra.mxu0 0.0
  %518 = vmatprep.subr.mxu0 0.0
  %519 = vmatpush2.msra.mxu0 0.0
  %520 = vmatprep.subr.mxu0 0.0
  %521 = vmatpush2.msra.mxu0 0.0
  %522 = vmatprep.mubr.f32.mxu0 0.0
  %523 = vmatmul.mubr.f32.gmra.mxu0 %v160
  %v524 = vpop.f32.mrf.mxu0
  %v525 = vadd.f32 %v395, %v524
  %v526 = vpop.f32.mrf.mxu0
  %527 = vmatprep.mubr.f32.mxu0 0.0
  %528 = vmatmul.mubr.f32.gmra.mxu0 %v163
  %v529 = vpop.f32.mrf.mxu0
  %v530 = vadd.f32 %v400, %v529
  %v531 = vpop.f32.mrf.mxu0
  %532 = vmatprep.mubr.f32.mxu0 0.0
  %533 = vmatmul.mubr.f32.gmra.mxu0 %v166
  %v534 = vpop.f32.mrf.mxu0
  %v535 = vadd.f32 %v405, %v534
  %v536 = vpop.f32.mrf.mxu0
  %537 = vmatprep.mubr.f32.mxu0 0.0
  %538 = vmatmul.mubr.f32.gmra.mxu0 %v169
  %v539 = vpop.f32.mrf.mxu0
  %v540 = vadd.f32 %v410, %v539
  %v541 = vpop.f32.mrf.mxu0
  %542 = vmatprep.mubr.f32.mxu0 0.0
  %543 = vmatmul.mubr.f32.gmra.mxu0 %v172
  %v544 = vpop.f32.mrf.mxu0
  %v545 = vadd.f32 %v415, %v544
  %v546 = vpop.f32.mrf.mxu0
  %547 = vmatprep.mubr.f32.mxu0 0.0
  %548 = vmatmul.mubr.f32.gmra.mxu0 %v175
  %v549 = vpop.f32.mrf.mxu0
  %v550 = vadd.f32 %v420, %v549
  %v551 = vpop.f32.mrf.mxu0
  %552 = vmatprep.mubr.f32.mxu0 0.0
  %553 = vmatmul.mubr.f32.gmra.mxu0 %v178
  %v554 = vpop.f32.mrf.mxu0
  %v555 = vadd.f32 %v425, %v554
  %v556 = vpop.f32.mrf.mxu0
  %557 = vmatprep.mubr.f32.mxu0 0.0
  %558 = vmatmul.mubr.f32.gmra.mxu0 %v181
  %v559 = vpop.f32.mrf.mxu0
  %v560 = vadd.f32 %v430, %v559
  %v561 = vpop.f32.mrf.mxu0
  %562 = vmatprep.mubr.f32.mxu0 0.0
  %563 = vmatmul.mubr.f32.gmra.mxu0 %v184
  %v564 = vpop.f32.mrf.mxu0
  %v565 = vadd.f32 %v435, %v564
  %v566 = vpop.f32.mrf.mxu0
  %567 = vmatprep.mubr.f32.mxu0 0.0
  %568 = vmatmul.mubr.f32.gmra.mxu0 %v187
  %v569 = vpop.f32.mrf.mxu0
  %v570 = vadd.f32 %v440, %v569
  %v571 = vpop.f32.mrf.mxu0
  %572 = vmatprep.mubr.f32.mxu0 0.0
  %573 = vmatmul.mubr.f32.gmra.mxu0 %v190
  %v574 = vpop.f32.mrf.mxu0
  %v575 = vadd.f32 %v445, %v574
  %v576 = vpop.f32.mrf.mxu0
  %577 = vmatprep.mubr.f32.mxu0 0.0
  %578 = vmatmul.mubr.f32.gmra.mxu0 %v193
  %v579 = vpop.f32.mrf.mxu0
  %v580 = vadd.f32 %v450, %v579
  %v581 = vpop.f32.mrf.mxu0
  %582 = vmatprep.mubr.f32.mxu0 0.0
  %583 = vmatmul.mubr.f32.gmra.mxu0 %v196
  %v584 = vpop.f32.mrf.mxu0
  %v585 = vadd.f32 %v455, %v584
  %v586 = vpop.f32.mrf.mxu0
  %587 = vdwg.mxu0
  %v588 = vmax.f32 %v525, 0.0
  %v589 = vmax.f32 %v530, 0.0
  %v590 = vmax.f32 %v535, 0.0
  %v591 = vmax.f32 %v540, 0.0
  %v592 = vmax.f32 %v545, 0.0
  %v593 = vmax.f32 %v550, 0.0
  %v594 = vmax.f32 %v555, 0.0
  %v595 = vmax.f32 %v560, 0.0
  %v596 = vmax.f32 %v565, 0.0
  %v597 = vmax.f32 %v570, 0.0
  %v598 = vmax.f32 %v575, 0.0
  %v599 = vmax.f32 %v580, 0.0
  %v600 = vmax.f32 %v585, 0.0
  %601 = vst.msk [vmem:[%s3] sm:$0xff] %vm158, %v588
  %602 = vst.msk [vmem:[%s3 + $0x8] sm:$0xff] %vm158, %v589
  %603 = vst.msk [vmem:[%s3 + $0x10] sm:$0xff] %vm158, %v590
  %604 = vst.msk [vmem:[%s3 + $0x18] sm:$0xff] %vm158, %v591
  %605 = vst.msk [vmem:[%s3 + $0x20] sm:$0xff] %vm158, %v592
  %606 = vst.msk [vmem:[%s3 + $0x28] sm:$0xff] %vm158, %v593
  %607 = vst.msk [vmem:[%s3 + $0x30] sm:$0xff] %vm158, %v594
  %608 = vst.msk [vmem:[%s3 + $0x38] sm:$0xff] %vm158, %v595
  %609 = vst.msk [vmem:[%s3 + $0x40] sm:$0xff] %vm158, %v596
  %610 = vst.msk [vmem:[%s3 + $0x48] sm:$0xff] %vm158, %v597
  %611 = vst.msk [vmem:[%s3 + $0x50] sm:$0xff] %vm158, %v598
  %612 = vst.msk [vmem:[%s3 + $0x58] sm:$0xff] %vm158, %v599
  %vm613 = vcmask 517120
  %614 = vst.msk [vmem:[%s3 + $0x60] sm:$0x3] %vm613, %v600
  // Predicated region
  $region14: #{mynet_forward.6} parent=0 // pred_check
    _
  $region15: #{mynet_forward.6} parent=0 // pred_check_branch
    %616 = sbr.rel (0) target = $region17
  $region16: #{mynet_forward.6} parent=0 // pred_region
    _
  $region17: #{mynet_forward.6} parent=0 // pred_fallthru
    _
  // Predicated region
  $region18: #{mynet_forward.6} parent=0 // pred_check
    _
  $region19: #{mynet_forward.6} parent=0 // pred_check_branch
    %618 = sbr.rel (0) target = $region21
  $region20: #{mynet_forward.6} parent=0 // pred_region
    _
  $region21: #{mynet_forward.6} parent=0 // pred_fallthru
    _

// kernel: mynet_forward.7
$region0: #{mynet_forward.7}
  #allocation0 [shape = 'u32[]', space=smem, size = 0x4, offset = 0x4, fixed_abs, tag = 'smem constant byte address 0x4 - core index']
  #allocation1 [shape = 'u32[144,128]{1,0:T(1,128)}', space=vmem, size = 0x12000, scoped, tag = 'internal scratch']
  %s0 = inlined_call_operand.vmem [shape: f32[2,3136], index: 0, kind: input, shape index: {}]
  %s1 = inlined_call_operand.vmem [shape: f32[3136,512], index: 1, kind: input, shape index: {}]
  %s2 = inlined_call_operand.vmem [shape: f32[1,512], index: 2, kind: input, shape index: {}]
  %s3 = inlined_call_operand.vmem [shape: f32[512,5], index: 3, kind: input, shape index: {}]
  %s4 = inlined_call_operand.vmem [shape: f32[1,5], index: 4, kind: input, shape index: {}]
  %s5 = inlined_call_operand.hbm [shape: f32[2,4], index: 5, kind: output, shape index: {0}]
  %s6 = inlined_call_operand.vmem [shape: f32[2,1], index: 6, kind: output, shape index: {1}]
  %7 = xla_tuple %s5, %s6
  %s8 = sld [smem:[#allocation0]]
  $region38: #{mynet_forward.7} parent=0
    _
  %s10 = ssub.s32 1, %s8
  %s11 = scalar_select 0, %s10, %s8
  $region1: #{mynet_forward.7} parent=0
    #allocation2 [shape = 'u8[1024]{0}', space=vmem, size = 0x400, scoped, tag = 'output window, operand 0, single buffered']
    #allocation3 [shape = 's32[1]{0}', space=sflag, size = 0x4, scoped, tag = 'scoped memory for mynet_forward.7']
    %12 = vsyncpa [#allocation3], 0
    // Predicated region
    $region2: #{mynet_forward.7} parent=1 // pred_check
      _
    $region3: #{mynet_forward.7} parent=1 // pred_check_branch
      %14 = sbr.rel (0) target = $region5
    $region4: #{mynet_forward.7} parent=1 // pred_region
      _
    $region5: #{mynet_forward.7} parent=1 // pred_fallthru
      _
    // Predicated region
    $region6: #{mynet_forward.7} parent=1 // pred_check
      _
    $region7: #{mynet_forward.7} parent=1 // pred_check_branch
      %16 = sbr.rel (0) target = $region9
    $region8: #{mynet_forward.7} parent=1 // pred_region
      _
    $region9: #{mynet_forward.7} parent=1 // pred_fallthru
      _
    // Predicated region
    $region10: #{mynet_forward.7} parent=1 // pred_check
      _
    $region11: #{mynet_forward.7} parent=1 // pred_check_branch
      %18 = sbr.rel (0) target = $region13
    $region12: #{mynet_forward.7} parent=1 // pred_region
      _
    $region13: #{mynet_forward.7} parent=1 // pred_fallthru
      _
    // Predicated region
    $region14: #{mynet_forward.7} parent=1 // pred_check
      _
    $region15: #{mynet_forward.7} parent=1 // pred_check_branch
      %20 = sbr.rel (0) target = $region17
    $region16: #{mynet_forward.7} parent=1 // pred_region
      _
    $region17: #{mynet_forward.7} parent=1 // pred_fallthru
      _
    // Predicated region
    $region18: #{mynet_forward.7} parent=1 // pred_check
      _
    $region19: #{mynet_forward.7} parent=1 // pred_check_branch
      %22 = sbr.rel (0) target = $region21
    $region20: #{mynet_forward.7} parent=1 // pred_region
      _
    $region21: #{mynet_forward.7} parent=1 // pred_fallthru
      _
    %v23 = vld [vmem:[%s0] sm:$0xff]
    %v24 = vld [vmem:[%s0 + $0x8] sm:$0xff]
    %v25 = vld [vmem:[%s0 + $0x10] sm:$0xff]
    %v26 = vld [vmem:[%s0 + $0x18] sm:$0xff]
    %v27 = vld [vmem:[%s0 + $0x20] sm:$0xff]
    %v28 = vld [vmem:[%s0 + $0x28] sm:$0xff]
    %v29 = vld [vmem:[%s0 + $0x30] sm:$0x3]
    %v30 = vld [vmem:[%s1] sm:$0xff]
    %v31 = vld [vmem:[%s1 + $0x8] sm:$0xff]
    %v32 = vld [vmem:[%s1 + $0x10] sm:$0xff]
    %v33 = vld [vmem:[%s1 + $0x18] sm:$0xff]
    %v34 = vld [vmem:[%s1 + $0x20] sm:$0xff]
    %v35 = vld [vmem:[%s1 + $0x28] sm:$0xff]
    %v36 = vld [vmem:[%s1 + $0x30] sm:$0xff]
    %v37 = vld [vmem:[%s1 + $0x38] sm:$0xff]
    %v38 = vld [vmem:[%s1 + $0x40] sm:$0xff]
    %v39 = vld [vmem:[%s1 + $0x48] sm:$0xff]
    %v40 = vld [vmem:[%s1 + $0x50] sm:$0xff]
    %v41 = vld [vmem:[%s1 + $0x58] sm:$0xff]
    %v42 = vld [vmem:[%s1 + $0x60] sm:$0xff]
    %v43 = vld [vmem:[%s1 + $0x68] sm:$0xff]
    %v44 = vld [vmem:[%s1 + $0x70] sm:$0xff]
    %v45 = vld [vmem:[%s1 + $0x78] sm:$0xff]
    %v46 = vld [vmem:[%s1 + $0x80] sm:$0xff]
    %v47 = vld [vmem:[%s1 + $0x88] sm:$0xff]
    %v48 = vld [vmem:[%s1 + $0x90] sm:$0xff]
    %v49 = vld [vmem:[%s1 + $0x98] sm:$0xff]
    %v50 = vld [vmem:[%s1 + $0xa0] sm:$0xff]
    %v51 = vld [vmem:[%s1 + $0xa8] sm:$0xff]
    %v52 = vld [vmem:[%s1 + $0xb0] sm:$0xff]
    %v53 = vld [vmem:[%s1 + $0xb8] sm:$0xff]
    %v54 = vld [vmem:[%s1 + $0xc0] sm:$0xff]
    %v55 = vld [vmem:[%s1 + $0xc8] sm:$0xff]
    %v56 = vld [vmem:[%s1 + $0xd0] sm:$0xff]
    %v57 = vld [vmem:[%s1 + $0xd8] sm:$0xff]
    %v58 = vld [vmem:[%s1 + $0xe0] sm:$0xff]
    %v59 = vld [vmem:[%s1 + $0xe8] sm:$0xff]
    %v60 = vld [vmem:[%s1 + $0xf0] sm:$0xff]
    %v61 = vld [vmem:[%s1 + $0xf8] sm:$0xff]
    %v62 = vld [vmem:[%s1 + $0x100] sm:$0xff]
    %v63 = vld [vmem:[%s1 + $0x108] sm:$0xff]
    %v64 = vld [vmem:[%s1 + $0x110] sm:$0xff]
    %v65 = vld [vmem:[%s1 + $0x118] sm:$0xff]
    %v66 = vld [vmem:[%s1 + $0x120] sm:$0xff]
    %v67 = vld [vmem:[%s1 + $0x128] sm:$0xff]
    %v68 = vld [vmem:[%s1 + $0x130] sm:$0xff]
    %v69 = vld [vmem:[%s1 + $0x138] sm:$0xff]
    %v70 = vld [vmem:[%s1 + $0x140] sm:$0xff]
    %v71 = vld [vmem:[%s1 + $0x148] sm:$0xff]
    %v72 = vld [vmem:[%s1 + $0x150] sm:$0xff]
    %v73 = vld [vmem:[%s1 + $0x158] sm:$0xff]
    %v74 = vld [vmem:[%s1 + $0x160] sm:$0xff]
    %v75 = vld [vmem:[%s1 + $0x168] sm:$0xff]
    %v76 = vld [vmem:[%s1 + $0x170] sm:$0xff]
    %v77 = vld [vmem:[%s1 + $0x178] sm:$0xff]
    %v78 = vld [vmem:[%s1 + $0x180] sm:$0xff]
    %v79 = vld [vmem:[%s1 + $0x188] sm:$0xff]
    %v80 = vld [vmem:[%s1 + $0x190] sm:$0xff]
    %v81 = vld [vmem:[%s1 + $0x198] sm:$0xff]
    %v82 = vld [vmem:[%s1 + $0x1a0] sm:$0xff]
    %v83 = vld [vmem:[%s1 + $0x1a8] sm:$0xff]
    %v84 = vld [vmem:[%s1 + $0x1b0] sm:$0xff]
    %v85 = vld [vmem:[%s1 + $0x1b8] sm:$0xff]
    %v86 = vld [vmem:[%s1 + $0x1c0] sm:$0xff]
    %v87 = vld [vmem:[%s1 + $0x1c8] sm:$0xff]
    %v88 = vld [vmem:[%s1 + $0x1d0] sm:$0xff]
    %v89 = vld [vmem:[%s1 + $0x1d8] sm:$0xff]
    %v90 = vld [vmem:[%s1 + $0x1e0] sm:$0xff]
    %v91 = vld [vmem:[%s1 + $0x1e8] sm:$0xff]
    %v92 = vld [vmem:[%s1 + $0x1f0] sm:$0xff]
    %v93 = vld [vmem:[%s1 + $0x1f8] sm:$0xff]
    %v94 = vld [vmem:[%s1 + $0x200] sm:$0xff]
    %v95 = vld [vmem:[%s1 + $0x208] sm:$0xff]
    %v96 = vld [vmem:[%s1 + $0x210] sm:$0xff]
    %v97 = vld [vmem:[%s1 + $0x218] sm:$0xff]
    %v98 = vld [vmem:[%s1 + $0x220] sm:$0xff]
    %v99 = vld [vmem:[%s1 + $0x228] sm:$0xff]
    %v100 = vld [vmem:[%s1 + $0x230] sm:$0xff]
    %v101 = vld [vmem:[%s1 + $0x238] sm:$0xff]
    %v102 = vld [vmem:[%s1 + $0x240] sm:$0xff]
    %v103 = vld [vmem:[%s1 + $0x248] sm:$0xff]
    %v104 = vld [vmem:[%s1 + $0x250] sm:$0xff]
    %v105 = vld [vmem:[%s1 + $0x258] sm:$0xff]
    %v106 = vld [vmem:[%s1 + $0x260] sm:$0xff]
    %v107 = vld [vmem:[%s1 + $0x268] sm:$0xff]
    %v108 = vld [vmem:[%s1 + $0x270] sm:$0xff]
    %v109 = vld [vmem:[%s1 + $0x278] sm:$0xff]
    %v110 = vld [vmem:[%s1 + $0x280] sm:$0xff]
    %v111 = vld [vmem:[%s1 + $0x288] sm:$0xff]
    %v112 = vld [vmem:[%s1 + $0x290] sm:$0xff]
    %v113 = vld [vmem:[%s1 + $0x298] sm:$0xff]
    %v114 = vld [vmem:[%s1 + $0x2a0] sm:$0xff]
    %v115 = vld [vmem:[%s1 + $0x2a8] sm:$0xff]
    %v116 = vld [vmem:[%s1 + $0x2b0] sm:$0xff]
    %v117 = vld [vmem:[%s1 + $0x2b8] sm:$0xff]
    %v118 = vld [vmem:[%s1 + $0x2c0] sm:$0xff]
    %v119 = vld [vmem:[%s1 + $0x2c8] sm:$0xff]
    %v120 = vld [vmem:[%s1 + $0x2d0] sm:$0xff]
    %v121 = vld [vmem:[%s1 + $0x2d8] sm:$0xff]
    %v122 = vld [vmem:[%s1 + $0x2e0] sm:$0xff]
    %v123 = vld [vmem:[%s1 + $0x2e8] sm:$0xff]
    %v124 = vld [vmem:[%s1 + $0x2f0] sm:$0xff]
    %v125 = vld [vmem:[%s1 + $0x2f8] sm:$0xff]
    %v126 = vld [vmem:[%s1 + $0x300] sm:$0xff]
    %v127 = vld [vmem:[%s1 + $0x308] sm:$0xff]
    %v128 = vld [vmem:[%s1 + $0x310] sm:$0xff]
    %v129 = vld [vmem:[%s1 + $0x318] sm:$0xff]
    %v130 = vld [vmem:[%s1 + $0x320] sm:$0xff]
    %v131 = vld [vmem:[%s1 + $0x328] sm:$0xff]
    %v132 = vld [vmem:[%s1 + $0x330] sm:$0xff]
    %v133 = vld [vmem:[%s1 + $0x338] sm:$0xff]
    %v134 = vld [vmem:[%s1 + $0x340] sm:$0xff]
    %v135 = vld [vmem:[%s1 + $0x348] sm:$0xff]
    %v136 = vld [vmem:[%s1 + $0x350] sm:$0xff]
    %v137 = vld [vmem:[%s1 + $0x358] sm:$0xff]
    %v138 = vld [vmem:[%s1 + $0x360] sm:$0xff]
    %v139 = vld [vmem:[%s1 + $0x368] sm:$0xff]
    %v140 = vld [vmem:[%s1 + $0x370] sm:$0xff]
    %v141 = vld [vmem:[%s1 + $0x378] sm:$0xff]
    %v142 = vld [vmem:[%s1 + $0x380] sm:$0xff]
    %v143 = vld [vmem:[%s1 + $0x388] sm:$0xff]
    %v144 = vld [vmem:[%s1 + $0x390] sm:$0xff]
    %v145 = vld [vmem:[%s1 + $0x398] sm:$0xff]
    %v146 = vld [vmem:[%s1 + $0x3a0] sm:$0xff]
    %v147 = vld [vmem:[%s1 + $0x3a8] sm:$0xff]
    %v148 = vld [vmem:[%s1 + $0x3b0] sm:$0xff]
    %v149 = vld [vmem:[%s1 + $0x3b8] sm:$0xff]
    %v150 = vld [vmem:[%s1 + $0x3c0] sm:$0xff]
    %v151 = vld [vmem:[%s1 + $0x3c8] sm:$0xff]
    %v152 = vld [vmem:[%s1 + $0x3d0] sm:$0xff]
    %v153 = vld [vmem:[%s1 + $0x3d8] sm:$0xff]
    %v154 = vld [vmem:[%s1 + $0x3e0] sm:$0xff]
    %v155 = vld [vmem:[%s1 + $0x3e8] sm:$0xff]
    %v156 = vld [vmem:[%s1 + $0x3f0] sm:$0xff]
    %v157 = vld [vmem:[%s1 + $0x3f8] sm:$0xff]
    %v158 = vld [vmem:[%s1 + $0x400] sm:$0xff]
    %v159 = vld [vmem:[%s1 + $0x408] sm:$0xff]
    %v160 = vld [vmem:[%s1 + $0x410] sm:$0xff]
    %v161 = vld [vmem:[%s1 + $0x418] sm:$0xff]
    %v162 = vld [vmem:[%s1 + $0x420] sm:$0xff]
    %v163 = vld [vmem:[%s1 + $0x428] sm:$0xff]
    %v164 = vld [vmem:[%s1 + $0x430] sm:$0xff]
    %v165 = vld [vmem:[%s1 + $0x438] sm:$0xff]
    %v166 = vld [vmem:[%s1 + $0x440] sm:$0xff]
    %v167 = vld [vmem:[%s1 + $0x448] sm:$0xff]
    %v168 = vld [vmem:[%s1 + $0x450] sm:$0xff]
    %v169 = vld [vmem:[%s1 + $0x458] sm:$0xff]
    %v170 = vld [vmem:[%s1 + $0x460] sm:$0xff]
    %v171 = vld [vmem:[%s1 + $0x468] sm:$0xff]
    %v172 = vld [vmem:[%s1 + $0x470] sm:$0xff]
    %v173 = vld [vmem:[%s1 + $0x478] sm:$0xff]
    %v174 = vld [vmem:[%s1 + $0x480] sm:$0xff]
    %v175 = vld [vmem:[%s1 + $0x488] sm:$0xff]
    %v176 = vld [vmem:[%s1 + $0x490] sm:$0xff]
    %v177 = vld [vmem:[%s1 + $0x498] sm:$0xff]
    %v178 = vld [vmem:[%s1 + $0x4a0] sm:$0xff]
    %v179 = vld [vmem:[%s1 + $0x4a8] sm:$0xff]
    %v180 = vld [vmem:[%s1 + $0x4b0] sm:$0xff]
    %v181 = vld [vmem:[%s1 + $0x4b8] sm:$0xff]
    %v182 = vld [vmem:[%s1 + $0x4c0] sm:$0xff]
    %v183 = vld [vmem:[%s1 + $0x4c8] sm:$0xff]
    %v184 = vld [vmem:[%s1 + $0x4d0] sm:$0xff]
    %v185 = vld [vmem:[%s1 + $0x4d8] sm:$0xff]
    %v186 = vld [vmem:[%s1 + $0x4e0] sm:$0xff]
    %v187 = vld [vmem:[%s1 + $0x4e8] sm:$0xff]
    %v188 = vld [vmem:[%s1 + $0x4f0] sm:$0xff]
    %v189 = vld [vmem:[%s1 + $0x4f8] sm:$0xff]
    %v190 = vld [vmem:[%s1 + $0x500] sm:$0xff]
    %v191 = vld [vmem:[%s1 + $0x508] sm:$0xff]
    %v192 = vld [vmem:[%s1 + $0x510] sm:$0xff]
    %v193 = vld [vmem:[%s1 + $0x518] sm:$0xff]
    %v194 = vld [vmem:[%s1 + $0x520] sm:$0xff]
    %v195 = vld [vmem:[%s1 + $0x528] sm:$0xff]
    %v196 = vld [vmem:[%s1 + $0x530] sm:$0xff]
    %v197 = vld [vmem:[%s1 + $0x538] sm:$0xff]
    %v198 = vld [vmem:[%s1 + $0x540] sm:$0xff]
    %v199 = vld [vmem:[%s1 + $0x548] sm:$0xff]
    %v200 = vld [vmem:[%s1 + $0x550] sm:$0xff]
    %v201 = vld [vmem:[%s1 + $0x558] sm:$0xff]
    %v202 = vld [vmem:[%s1 + $0x560] sm:$0xff]
    %v203 = vld [vmem:[%s1 + $0x568] sm:$0xff]
    %v204 = vld [vmem:[%s1 + $0x570] sm:$0xff]
    %v205 = vld [vmem:[%s1 + $0x578] sm:$0xff]
    %v206 = vld [vmem:[%s1 + $0x580] sm:$0xff]
    %v207 = vld [vmem:[%s1 + $0x588] sm:$0xff]
    %v208 = vld [vmem:[%s1 + $0x590] sm:$0xff]
    %v209 = vld [vmem:[%s1 + $0x598] sm:$0xff]
    %v210 = vld [vmem:[%s1 + $0x5a0] sm:$0xff]
    %v211 = vld [vmem:[%s1 + $0x5a8] sm:$0xff]
    %v212 = vld [vmem:[%s1 + $0x5b0] sm:$0xff]
    %v213 = vld [vmem:[%s1 + $0x5b8] sm:$0xff]
    %v214 = vld [vmem:[%s1 + $0x5c0] sm:$0xff]
    %v215 = vld [vmem:[%s1 + $0x5c8] sm:$0xff]
    %v216 = vld [vmem:[%s1 + $0x5d0] sm:$0xff]
    %v217 = vld [vmem:[%s1 + $0x5d8] sm:$0xff]
    %v218 = vld [vmem:[%s1 + $0x5e0] sm:$0xff]
    %v219 = vld [vmem:[%s1 + $0x5e8] sm:$0xff]
    %v220 = vld [vmem:[%s1 + $0x5f0] sm:$0xff]
    %v221 = vld [vmem:[%s1 + $0x5f8] sm:$0xff]
    %v222 = vld [vmem:[%s1 + $0x600] sm:$0xff]
    %v223 = vld [vmem:[%s1 + $0x608] sm:$0xff]
    %v224 = vld [vmem:[%s1 + $0x610] sm:$0xff]
    %v225 = vld [vmem:[%s1 + $0x618] sm:$0xff]
    %v226 = vld [vmem:[%s1 + $0x620] sm:$0xff]
    %v227 = vld [vmem:[%s1 + $0x628] sm:$0xff]
    %v228 = vld [vmem:[%s1 + $0x630] sm:$0xff]
    %v229 = vld [vmem:[%s1 + $0x638] sm:$0xff]
    %v230 = vld [vmem:[%s1 + $0x640] sm:$0xff]
    %v231 = vld [vmem:[%s1 + $0x648] sm:$0xff]
    %v232 = vld [vmem:[%s1 + $0x650] sm:$0xff]
    %v233 = vld [vmem:[%s1 + $0x658] sm:$0xff]
    %v234 = vld [vmem:[%s1 + $0x660] sm:$0xff]
    %v235 = vld [vmem:[%s1 + $0x668] sm:$0xff]
    %v236 = vld [vmem:[%s1 + $0x670] sm:$0xff]
    %v237 = vld [vmem:[%s1 + $0x678] sm:$0xff]
    %v238 = vld [vmem:[%s1 + $0x680] sm:$0xff]
    %v239 = vld [vmem:[%s1 + $0x688] sm:$0xff]
    %v240 = vld [vmem:[%s1 + $0x690] sm:$0xff]
    %v241 = vld [vmem:[%s1 + $0x698] sm:$0xff]
    %v242 = vld [vmem:[%s1 + $0x6a0] sm:$0xff]
    %v243 = vld [vmem:[%s1 + $0x6a8] sm:$0xff]
    %v244 = vld [vmem:[%s1 + $0x6b0] sm:$0xff]
    %v245 = vld [vmem:[%s1 + $0x6b8] sm:$0xff]
    %v246 = vld [vmem:[%s1 + $0x6c0] sm:$0xff]
    %v247 = vld [vmem:[%s1 + $0x6c8] sm:$0xff]
    %v248 = vld [vmem:[%s1 + $0x6d0] sm:$0xff]
    %v249 = vld [vmem:[%s1 + $0x6d8] sm:$0xff]
    %v250 = vld [vmem:[%s1 + $0x6e0] sm:$0xff]
    %v251 = vld [vmem:[%s1 + $0x6e8] sm:$0xff]
    %v252 = vld [vmem:[%s1 + $0x6f0] sm:$0xff]
    %v253 = vld [vmem:[%s1 + $0x6f8] sm:$0xff]
    %v254 = vld [vmem:[%s1 + $0x700] sm:$0xff]
    %v255 = vld [vmem:[%s1 + $0x708] sm:$0xff]
    %v256 = vld [vmem:[%s1 + $0x710] sm:$0xff]
    %v257 = vld [vmem:[%s1 + $0x718] sm:$0xff]
    %v258 = vld [vmem:[%s1 + $0x720] sm:$0xff]
    %v259 = vld [vmem:[%s1 + $0x728] sm:$0xff]
    %v260 = vld [vmem:[%s1 + $0x730] sm:$0xff]
    %v261 = vld [vmem:[%s1 + $0x738] sm:$0xff]
    %v262 = vld [vmem:[%s1 + $0x740] sm:$0xff]
    %v263 = vld [vmem:[%s1 + $0x748] sm:$0xff]
    %v264 = vld [vmem:[%s1 + $0x750] sm:$0xff]
    %v265 = vld [vmem:[%s1 + $0x758] sm:$0xff]
    %v266 = vld [vmem:[%s1 + $0x760] sm:$0xff]
    %v267 = vld [vmem:[%s1 + $0x768] sm:$0xff]
    %v268 = vld [vmem:[%s1 + $0x770] sm:$0xff]
    %v269 = vld [vmem:[%s1 + $0x778] sm:$0xff]
    %v270 = vld [vmem:[%s1 + $0x780] sm:$0xff]
    %v271 = vld [vmem:[%s1 + $0x788] sm:$0xff]
    %v272 = vld [vmem:[%s1 + $0x790] sm:$0xff]
    %v273 = vld [vmem:[%s1 + $0x798] sm:$0xff]
    %v274 = vld [vmem:[%s1 + $0x7a0] sm:$0xff]
    %v275 = vld [vmem:[%s1 + $0x7a8] sm:$0xff]
    %v276 = vld [vmem:[%s1 + $0x7b0] sm:$0xff]
    %v277 = vld [vmem:[%s1 + $0x7b8] sm:$0xff]
    %v278 = vld [vmem:[%s1 + $0x7c0] sm:$0xff]
    %v279 = vld [vmem:[%s1 + $0x7c8] sm:$0xff]
    %v280 = vld [vmem:[%s1 + $0x7d0] sm:$0xff]
    %v281 = vld [vmem:[%s1 + $0x7d8] sm:$0xff]
    %v282 = vld [vmem:[%s1 + $0x7e0] sm:$0xff]
    %v283 = vld [vmem:[%s1 + $0x7e8] sm:$0xff]
    %v284 = vld [vmem:[%s1 + $0x7f0] sm:$0xff]
    %v285 = vld [vmem:[%s1 + $0x7f8] sm:$0xff]
    %v286 = vld [vmem:[%s1 + $0x800] sm:$0xff]
    %v287 = vld [vmem:[%s1 + $0x808] sm:$0xff]
    %v288 = vld [vmem:[%s1 + $0x810] sm:$0xff]
    %v289 = vld [vmem:[%s1 + $0x818] sm:$0xff]
    %v290 = vld [vmem:[%s1 + $0x820] sm:$0xff]
    %v291 = vld [vmem:[%s1 + $0x828] sm:$0xff]
    %v292 = vld [vmem:[%s1 + $0x830] sm:$0xff]
    %v293 = vld [vmem:[%s1 + $0x838] sm:$0xff]
    %v294 = vld [vmem:[%s1 + $0x840] sm:$0xff]
    %v295 = vld [vmem:[%s1 + $0x848] sm:$0xff]
    %v296 = vld [vmem:[%s1 + $0x850] sm:$0xff]
    %v297 = vld [vmem:[%s1 + $0x858] sm:$0xff]
    %v298 = vld [vmem:[%s1 + $0x860] sm:$0xff]
    %v299 = vld [vmem:[%s1 + $0x868] sm:$0xff]
    %v300 = vld [vmem:[%s1 + $0x870] sm:$0xff]
    %v301 = vld [vmem:[%s1 + $0x878] sm:$0xff]
    %v302 = vld [vmem:[%s1 + $0x880] sm:$0xff]
    %v303 = vld [vmem:[%s1 + $0x888] sm:$0xff]
    %v304 = vld [vmem:[%s1 + $0x890] sm:$0xff]
    %v305 = vld [vmem:[%s1 + $0x898] sm:$0xff]
    %v306 = vld [vmem:[%s1 + $0x8a0] sm:$0xff]
    %v307 = vld [vmem:[%s1 + $0x8a8] sm:$0xff]
    %v308 = vld [vmem:[%s1 + $0x8b0] sm:$0xff]
    %v309 = vld [vmem:[%s1 + $0x8b8] sm:$0xff]
    %v310 = vld [vmem:[%s1 + $0x8c0] sm:$0xff]
    %v311 = vld [vmem:[%s1 + $0x8c8] sm:$0xff]
    %v312 = vld [vmem:[%s1 + $0x8d0] sm:$0xff]
    %v313 = vld [vmem:[%s1 + $0x8d8] sm:$0xff]
    %v314 = vld [vmem:[%s1 + $0x8e0] sm:$0xff]
    %v315 = vld [vmem:[%s1 + $0x8e8] sm:$0xff]
    %v316 = vld [vmem:[%s1 + $0x8f0] sm:$0xff]
    %v317 = vld [vmem:[%s1 + $0x8f8] sm:$0xff]
    %v318 = vld [vmem:[%s1 + $0x900] sm:$0xff]
    %v319 = vld [vmem:[%s1 + $0x908] sm:$0xff]
    %v320 = vld [vmem:[%s1 + $0x910] sm:$0xff]
    %v321 = vld [vmem:[%s1 + $0x918] sm:$0xff]
    %v322 = vld [vmem:[%s1 + $0x920] sm:$0xff]
    %v323 = vld [vmem:[%s1 + $0x928] sm:$0xff]
    %v324 = vld [vmem:[%s1 + $0x930] sm:$0xff]
    %v325 = vld [vmem:[%s1 + $0x938] sm:$0xff]
    %v326 = vld [vmem:[%s1 + $0x940] sm:$0xff]
    %v327 = vld [vmem:[%s1 + $0x948] sm:$0xff]
    %v328 = vld [vmem:[%s1 + $0x950] sm:$0xff]
    %v329 = vld [vmem:[%s1 + $0x958] sm:$0xff]
    %v330 = vld [vmem:[%s1 + $0x960] sm:$0xff]
    %v331 = vld [vmem:[%s1 + $0x968] sm:$0xff]
    %v332 = vld [vmem:[%s1 + $0x970] sm:$0xff]
    %v333 = vld [vmem:[%s1 + $0x978] sm:$0xff]
    %v334 = vld [vmem:[%s1 + $0x980] sm:$0xff]
    %v335 = vld [vmem:[%s1 + $0x988] sm:$0xff]
    %v336 = vld [vmem:[%s1 + $0x990] sm:$0xff]
    %v337 = vld [vmem:[%s1 + $0x998] sm:$0xff]
    %v338 = vld [vmem:[%s1 + $0x9a0] sm:$0xff]
    %v339 = vld [vmem:[%s1 + $0x9a8] sm:$0xff]
    %v340 = vld [vmem:[%s1 + $0x9b0] sm:$0xff]
    %v341 = vld [vmem:[%s1 + $0x9b8] sm:$0xff]
    %v342 = vld [vmem:[%s1 + $0x9c0] sm:$0xff]
    %v343 = vld [vmem:[%s1 + $0x9c8] sm:$0xff]
    %v344 = vld [vmem:[%s1 + $0x9d0] sm:$0xff]
    %v345 = vld [vmem:[%s1 + $0x9d8] sm:$0xff]
    %v346 = vld [vmem:[%s1 + $0x9e0] sm:$0xff]
    %v347 = vld [vmem:[%s1 + $0x9e8] sm:$0xff]
    %v348 = vld [vmem:[%s1 + $0x9f0] sm:$0xff]
    %v349 = vld [vmem:[%s1 + $0x9f8] sm:$0xff]
    %v350 = vld [vmem:[%s1 + $0xa00] sm:$0xff]
    %v351 = vld [vmem:[%s1 + $0xa08] sm:$0xff]
    %v352 = vld [vmem:[%s1 + $0xa10] sm:$0xff]
    %v353 = vld [vmem:[%s1 + $0xa18] sm:$0xff]
    %v354 = vld [vmem:[%s1 + $0xa20] sm:$0xff]
    %v355 = vld [vmem:[%s1 + $0xa28] sm:$0xff]
    %v356 = vld [vmem:[%s1 + $0xa30] sm:$0xff]
    %v357 = vld [vmem:[%s1 + $0xa38] sm:$0xff]
    %v358 = vld [vmem:[%s1 + $0xa40] sm:$0xff]
    %v359 = vld [vmem:[%s1 + $0xa48] sm:$0xff]
    %v360 = vld [vmem:[%s1 + $0xa50] sm:$0xff]
    %v361 = vld [vmem:[%s1 + $0xa58] sm:$0xff]
    %v362 = vld [vmem:[%s1 + $0xa60] sm:$0xff]
    %v363 = vld [vmem:[%s1 + $0xa68] sm:$0xff]
    %v364 = vld [vmem:[%s1 + $0xa70] sm:$0xff]
    %v365 = vld [vmem:[%s1 + $0xa78] sm:$0xff]
    %v366 = vld [vmem:[%s1 + $0xa80] sm:$0xff]
    %v367 = vld [vmem:[%s1 + $0xa88] sm:$0xff]
    %v368 = vld [vmem:[%s1 + $0xa90] sm:$0xff]
    %v369 = vld [vmem:[%s1 + $0xa98] sm:$0xff]
    %v370 = vld [vmem:[%s1 + $0xaa0] sm:$0xff]
    %v371 = vld [vmem:[%s1 + $0xaa8] sm:$0xff]
    %v372 = vld [vmem:[%s1 + $0xab0] sm:$0xff]
    %v373 = vld [vmem:[%s1 + $0xab8] sm:$0xff]
    %v374 = vld [vmem:[%s1 + $0xac0] sm:$0xff]
    %v375 = vld [vmem:[%s1 + $0xac8] sm:$0xff]
    %v376 = vld [vmem:[%s1 + $0xad0] sm:$0xff]
    %v377 = vld [vmem:[%s1 + $0xad8] sm:$0xff]
    %v378 = vld [vmem:[%s1 + $0xae0] sm:$0xff]
    %v379 = vld [vmem:[%s1 + $0xae8] sm:$0xff]
    %v380 = vld [vmem:[%s1 + $0xaf0] sm:$0xff]
    %v381 = vld [vmem:[%s1 + $0xaf8] sm:$0xff]
    %v382 = vld [vmem:[%s1 + $0xb00] sm:$0xff]
    %v383 = vld [vmem:[%s1 + $0xb08] sm:$0xff]
    %v384 = vld [vmem:[%s1 + $0xb10] sm:$0xff]
    %v385 = vld [vmem:[%s1 + $0xb18] sm:$0xff]
    %v386 = vld [vmem:[%s1 + $0xb20] sm:$0xff]
    %v387 = vld [vmem:[%s1 + $0xb28] sm:$0xff]
    %v388 = vld [vmem:[%s1 + $0xb30] sm:$0xff]
    %v389 = vld [vmem:[%s1 + $0xb38] sm:$0xff]
    %v390 = vld [vmem:[%s1 + $0xb40] sm:$0xff]
    %v391 = vld [vmem:[%s1 + $0xb48] sm:$0xff]
    %v392 = vld [vmem:[%s1 + $0xb50] sm:$0xff]
    %v393 = vld [vmem:[%s1 + $0xb58] sm:$0xff]
    %v394 = vld [vmem:[%s1 + $0xb60] sm:$0xff]
    %v395 = vld [vmem:[%s1 + $0xb68] sm:$0xff]
    %v396 = vld [vmem:[%s1 + $0xb70] sm:$0xff]
    %v397 = vld [vmem:[%s1 + $0xb78] sm:$0xff]
    %v398 = vld [vmem:[%s1 + $0xb80] sm:$0xff]
    %v399 = vld [vmem:[%s1 + $0xb88] sm:$0xff]
    %v400 = vld [vmem:[%s1 + $0xb90] sm:$0xff]
    %v401 = vld [vmem:[%s1 + $0xb98] sm:$0xff]
    %v402 = vld [vmem:[%s1 + $0xba0] sm:$0xff]
    %v403 = vld [vmem:[%s1 + $0xba8] sm:$0xff]
    %v404 = vld [vmem:[%s1 + $0xbb0] sm:$0xff]
    %v405 = vld [vmem:[%s1 + $0xbb8] sm:$0xff]
    %v406 = vld [vmem:[%s1 + $0xbc0] sm:$0xff]
    %v407 = vld [vmem:[%s1 + $0xbc8] sm:$0xff]
    %v408 = vld [vmem:[%s1 + $0xbd0] sm:$0xff]
    %v409 = vld [vmem:[%s1 + $0xbd8] sm:$0xff]
    %v410 = vld [vmem:[%s1 + $0xbe0] sm:$0xff]
    %v411 = vld [vmem:[%s1 + $0xbe8] sm:$0xff]
    %v412 = vld [vmem:[%s1 + $0xbf0] sm:$0xff]
    %v413 = vld [vmem:[%s1 + $0xbf8] sm:$0xff]
    %v414 = vld [vmem:[%s1 + $0xc00] sm:$0xff]
    %v415 = vld [vmem:[%s1 + $0xc08] sm:$0xff]
    %v416 = vld [vmem:[%s1 + $0xc10] sm:$0xff]
    %v417 = vld [vmem:[%s1 + $0xc18] sm:$0xff]
    %v418 = vld [vmem:[%s1 + $0xc20] sm:$0xff]
    %v419 = vld [vmem:[%s1 + $0xc28] sm:$0xff]
    %v420 = vld [vmem:[%s1 + $0xc30] sm:$0xff]
    %v421 = vld [vmem:[%s1 + $0xc38] sm:$0xff]
    %v422 = vld [vmem:[%s1 + $0xc40] sm:$0xff]
    %v423 = vld [vmem:[%s1 + $0xc48] sm:$0xff]
    %v424 = vld [vmem:[%s1 + $0xc50] sm:$0xff]
    %v425 = vld [vmem:[%s1 + $0xc58] sm:$0xff]
    %v426 = vld [vmem:[%s1 + $0xc60] sm:$0xff]
    %v427 = vld [vmem:[%s1 + $0xc68] sm:$0xff]
    %v428 = vld [vmem:[%s1 + $0xc70] sm:$0xff]
    %v429 = vld [vmem:[%s1 + $0xc78] sm:$0xff]
    %v430 = vld [vmem:[%s1 + $0xc80] sm:$0xff]
    %v431 = vld [vmem:[%s1 + $0xc88] sm:$0xff]
    %v432 = vld [vmem:[%s1 + $0xc90] sm:$0xff]
    %v433 = vld [vmem:[%s1 + $0xc98] sm:$0xff]
    %v434 = vld [vmem:[%s1 + $0xca0] sm:$0xff]
    %v435 = vld [vmem:[%s1 + $0xca8] sm:$0xff]
    %v436 = vld [vmem:[%s1 + $0xcb0] sm:$0xff]
    %v437 = vld [vmem:[%s1 + $0xcb8] sm:$0xff]
    %v438 = vld [vmem:[%s1 + $0xcc0] sm:$0xff]
    %v439 = vld [vmem:[%s1 + $0xcc8] sm:$0xff]
    %v440 = vld [vmem:[%s1 + $0xcd0] sm:$0xff]
    %v441 = vld [vmem:[%s1 + $0xcd8] sm:$0xff]
    %v442 = vld [vmem:[%s1 + $0xce0] sm:$0xff]
    %v443 = vld [vmem:[%s1 + $0xce8] sm:$0xff]
    %v444 = vld [vmem:[%s1 + $0xcf0] sm:$0xff]
    %v445 = vld [vmem:[%s1 + $0xcf8] sm:$0xff]
    %v446 = vld [vmem:[%s1 + $0xd00] sm:$0xff]
    %v447 = vld [vmem:[%s1 + $0xd08] sm:$0xff]
    %v448 = vld [vmem:[%s1 + $0xd10] sm:$0xff]
    %v449 = vld [vmem:[%s1 + $0xd18] sm:$0xff]
    %v450 = vld [vmem:[%s1 + $0xd20] sm:$0xff]
    %v451 = vld [vmem:[%s1 + $0xd28] sm:$0xff]
    %v452 = vld [vmem:[%s1 + $0xd30] sm:$0xff]
    %v453 = vld [vmem:[%s1 + $0xd38] sm:$0xff]
    %v454 = vld [vmem:[%s1 + $0xd40] sm:$0xff]
    %v455 = vld [vmem:[%s1 + $0xd48] sm:$0xff]
    %v456 = vld [vmem:[%s1 + $0xd50] sm:$0xff]
    %v457 = vld [vmem:[%s1 + $0xd58] sm:$0xff]
    %v458 = vld [vmem:[%s1 + $0xd60] sm:$0xff]
    %v459 = vld [vmem:[%s1 + $0xd68] sm:$0xff]
    %v460 = vld [vmem:[%s1 + $0xd70] sm:$0xff]
    %v461 = vld [vmem:[%s1 + $0xd78] sm:$0xff]
    %v462 = vld [vmem:[%s1 + $0xd80] sm:$0xff]
    %v463 = vld [vmem:[%s1 + $0xd88] sm:$0xff]
    %v464 = vld [vmem:[%s1 + $0xd90] sm:$0xff]
    %v465 = vld [vmem:[%s1 + $0xd98] sm:$0xff]
    %v466 = vld [vmem:[%s1 + $0xda0] sm:$0xff]
    %v467 = vld [vmem:[%s1 + $0xda8] sm:$0xff]
    %v468 = vld [vmem:[%s1 + $0xdb0] sm:$0xff]
    %v469 = vld [vmem:[%s1 + $0xdb8] sm:$0xff]
    %v470 = vld [vmem:[%s1 + $0xdc0] sm:$0xff]
    %v471 = vld [vmem:[%s1 + $0xdc8] sm:$0xff]
    %v472 = vld [vmem:[%s1 + $0xdd0] sm:$0xff]
    %v473 = vld [vmem:[%s1 + $0xdd8] sm:$0xff]
    %v474 = vld [vmem:[%s1 + $0xde0] sm:$0xff]
    %v475 = vld [vmem:[%s1 + $0xde8] sm:$0xff]
    %v476 = vld [vmem:[%s1 + $0xdf0] sm:$0xff]
    %v477 = vld [vmem:[%s1 + $0xdf8] sm:$0xff]
    %v478 = vld [vmem:[%s1 + $0xe00] sm:$0xff]
    %v479 = vld [vmem:[%s1 + $0xe08] sm:$0xff]
    %v480 = vld [vmem:[%s1 + $0xe10] sm:$0xff]
    %v481 = vld [vmem:[%s1 + $0xe18] sm:$0xff]
    %v482 = vld [vmem:[%s1 + $0xe20] sm:$0xff]
    %v483 = vld [vmem:[%s1 + $0xe28] sm:$0xff]
    %v484 = vld [vmem:[%s1 + $0xe30] sm:$0xff]
    %v485 = vld [vmem:[%s1 + $0xe38] sm:$0xff]
    %v486 = vld [vmem:[%s1 + $0xe40] sm:$0xff]
    %v487 = vld [vmem:[%s1 + $0xe48] sm:$0xff]
    %v488 = vld [vmem:[%s1 + $0xe50] sm:$0xff]
    %v489 = vld [vmem:[%s1 + $0xe58] sm:$0xff]
    %v490 = vld [vmem:[%s1 + $0xe60] sm:$0xff]
    %v491 = vld [vmem:[%s1 + $0xe68] sm:$0xff]
    %v492 = vld [vmem:[%s1 + $0xe70] sm:$0xff]
    %v493 = vld [vmem:[%s1 + $0xe78] sm:$0xff]
    %v494 = vld [vmem:[%s1 + $0xe80] sm:$0xff]
    %v495 = vld [vmem:[%s1 + $0xe88] sm:$0xff]
    %v496 = vld [vmem:[%s1 + $0xe90] sm:$0xff]
    %v497 = vld [vmem:[%s1 + $0xe98] sm:$0xff]
    %v498 = vld [vmem:[%s1 + $0xea0] sm:$0xff]
    %v499 = vld [vmem:[%s1 + $0xea8] sm:$0xff]
    %v500 = vld [vmem:[%s1 + $0xeb0] sm:$0xff]
    %v501 = vld [vmem:[%s1 + $0xeb8] sm:$0xff]
    %v502 = vld [vmem:[%s1 + $0xec0] sm:$0xff]
    %v503 = vld [vmem:[%s1 + $0xec8] sm:$0xff]
    %v504 = vld [vmem:[%s1 + $0xed0] sm:$0xff]
    %v505 = vld [vmem:[%s1 + $0xed8] sm:$0xff]
    %v506 = vld [vmem:[%s1 + $0xee0] sm:$0xff]
    %v507 = vld [vmem:[%s1 + $0xee8] sm:$0xff]
    %v508 = vld [vmem:[%s1 + $0xef0] sm:$0xff]
    %v509 = vld [vmem:[%s1 + $0xef8] sm:$0xff]
    %v510 = vld [vmem:[%s1 + $0xf00] sm:$0xff]
    %v511 = vld [vmem:[%s1 + $0xf08] sm:$0xff]
    %v512 = vld [vmem:[%s1 + $0xf10] sm:$0xff]
    %v513 = vld [vmem:[%s1 + $0xf18] sm:$0xff]
    %v514 = vld [vmem:[%s1 + $0xf20] sm:$0xff]
    %v515 = vld [vmem:[%s1 + $0xf28] sm:$0xff]
    %v516 = vld [vmem:[%s1 + $0xf30] sm:$0xff]
    %v517 = vld [vmem:[%s1 + $0xf38] sm:$0xff]
    %v518 = vld [vmem:[%s1 + $0xf40] sm:$0xff]
    %v519 = vld [vmem:[%s1 + $0xf48] sm:$0xff]
    %v520 = vld [vmem:[%s1 + $0xf50] sm:$0xff]
    %v521 = vld [vmem:[%s1 + $0xf58] sm:$0xff]
    %v522 = vld [vmem:[%s1 + $0xf60] sm:$0xff]
    %v523 = vld [vmem:[%s1 + $0xf68] sm:$0xff]
    %v524 = vld [vmem:[%s1 + $0xf70] sm:$0xff]
    %v525 = vld [vmem:[%s1 + $0xf78] sm:$0xff]
    %v526 = vld [vmem:[%s1 + $0xf80] sm:$0xff]
    %v527 = vld [vmem:[%s1 + $0xf88] sm:$0xff]
    %v528 = vld [vmem:[%s1 + $0xf90] sm:$0xff]
    %v529 = vld [vmem:[%s1 + $0xf98] sm:$0xff]
    %v530 = vld [vmem:[%s1 + $0xfa0] sm:$0xff]
    %v531 = vld [vmem:[%s1 + $0xfa8] sm:$0xff]
    %v532 = vld [vmem:[%s1 + $0xfb0] sm:$0xff]
    %v533 = vld [vmem:[%s1 + $0xfb8] sm:$0xff]
    %v534 = vld [vmem:[%s1 + $0xfc0] sm:$0xff]
    %v535 = vld [vmem:[%s1 + $0xfc8] sm:$0xff]
    %v536 = vld [vmem:[%s1 + $0xfd0] sm:$0xff]
    %v537 = vld [vmem:[%s1 + $0xfd8] sm:$0xff]
    %v538 = vld [vmem:[%s1 + $0xfe0] sm:$0xff]
    %v539 = vld [vmem:[%s1 + $0xfe8] sm:$0xff]
    %v540 = vld [vmem:[%s1 + $0xff0] sm:$0xff]
    %v541 = vld [vmem:[%s1 + $0xff8] sm:$0xff]
    %v542 = vld [vmem:[%s1 + $0x1000] sm:$0xff]
    %v543 = vld [vmem:[%s1 + $0x1008] sm:$0xff]
    %v544 = vld [vmem:[%s1 + $0x1010] sm:$0xff]
    %v545 = vld [vmem:[%s1 + $0x1018] sm:$0xff]
    %v546 = vld [vmem:[%s1 + $0x1020] sm:$0xff]
    %v547 = vld [vmem:[%s1 + $0x1028] sm:$0xff]
    %v548 = vld [vmem:[%s1 + $0x1030] sm:$0xff]
    %v549 = vld [vmem:[%s1 + $0x1038] sm:$0xff]
    %v550 = vld [vmem:[%s1 + $0x1040] sm:$0xff]
    %v551 = vld [vmem:[%s1 + $0x1048] sm:$0xff]
    %v552 = vld [vmem:[%s1 + $0x1050] sm:$0xff]
    %v553 = vld [vmem:[%s1 + $0x1058] sm:$0xff]
    %v554 = vld [vmem:[%s1 + $0x1060] sm:$0xff]
    %v555 = vld [vmem:[%s1 + $0x1068] sm:$0xff]
    %v556 = vld [vmem:[%s1 + $0x1070] sm:$0xff]
    %v557 = vld [vmem:[%s1 + $0x1078] sm:$0xff]
    %v558 = vld [vmem:[%s1 + $0x1080] sm:$0xff]
    %v559 = vld [vmem:[%s1 + $0x1088] sm:$0xff]
    %v560 = vld [vmem:[%s1 + $0x1090] sm:$0xff]
    %v561 = vld [vmem:[%s1 + $0x1098] sm:$0xff]
    %v562 = vld [vmem:[%s1 + $0x10a0] sm:$0xff]
    %v563 = vld [vmem:[%s1 + $0x10a8] sm:$0xff]
    %v564 = vld [vmem:[%s1 + $0x10b0] sm:$0xff]
    %v565 = vld [vmem:[%s1 + $0x10b8] sm:$0xff]
    %v566 = vld [vmem:[%s1 + $0x10c0] sm:$0xff]
    %v567 = vld [vmem:[%s1 + $0x10c8] sm:$0xff]
    %v568 = vld [vmem:[%s1 + $0x10d0] sm:$0xff]
    %v569 = vld [vmem:[%s1 + $0x10d8] sm:$0xff]
    %v570 = vld [vmem:[%s1 + $0x10e0] sm:$0xff]
    %v571 = vld [vmem:[%s1 + $0x10e8] sm:$0xff]
    %v572 = vld [vmem:[%s1 + $0x10f0] sm:$0xff]
    %v573 = vld [vmem:[%s1 + $0x10f8] sm:$0xff]
    %v574 = vld [vmem:[%s1 + $0x1100] sm:$0xff]
    %v575 = vld [vmem:[%s1 + $0x1108] sm:$0xff]
    %v576 = vld [vmem:[%s1 + $0x1110] sm:$0xff]
    %v577 = vld [vmem:[%s1 + $0x1118] sm:$0xff]
    %v578 = vld [vmem:[%s1 + $0x1120] sm:$0xff]
    %v579 = vld [vmem:[%s1 + $0x1128] sm:$0xff]
    %v580 = vld [vmem:[%s1 + $0x1130] sm:$0xff]
    %v581 = vld [vmem:[%s1 + $0x1138] sm:$0xff]
    %v582 = vld [vmem:[%s1 + $0x1140] sm:$0xff]
    %v583 = vld [vmem:[%s1 + $0x1148] sm:$0xff]
    %v584 = vld [vmem:[%s1 + $0x1150] sm:$0xff]
    %v585 = vld [vmem:[%s1 + $0x1158] sm:$0xff]
    %v586 = vld [vmem:[%s1 + $0x1160] sm:$0xff]
    %v587 = vld [vmem:[%s1 + $0x1168] sm:$0xff]
    %v588 = vld [vmem:[%s1 + $0x1170] sm:$0xff]
    %v589 = vld [vmem:[%s1 + $0x1178] sm:$0xff]
    %v590 = vld [vmem:[%s1 + $0x1180] sm:$0xff]
    %v591 = vld [vmem:[%s1 + $0x1188] sm:$0xff]
    %v592 = vld [vmem:[%s1 + $0x1190] sm:$0xff]
    %v593 = vld [vmem:[%s1 + $0x1198] sm:$0xff]
    %v594 = vld [vmem:[%s1 + $0x11a0] sm:$0xff]
    %v595 = vld [vmem:[%s1 + $0x11a8] sm:$0xff]
    %v596 = vld [vmem:[%s1 + $0x11b0] sm:$0xff]
    %v597 = vld [vmem:[%s1 + $0x11b8] sm:$0xff]
    %v598 = vld [vmem:[%s1 + $0x11c0] sm:$0xff]
    %v599 = vld [vmem:[%s1 + $0x11c8] sm:$0xff]
    %v600 = vld [vmem:[%s1 + $0x11d0] sm:$0xff]
    %v601 = vld [vmem:[%s1 + $0x11d8] sm:$0xff]
    %v602 = vld [vmem:[%s1 + $0x11e0] sm:$0xff]
    %v603 = vld [vmem:[%s1 + $0x11e8] sm:$0xff]
    %v604 = vld [vmem:[%s1 + $0x11f0] sm:$0xff]
    %v605 = vld [vmem:[%s1 + $0x11f8] sm:$0xff]
    %v606 = vld [vmem:[%s1 + $0x1200] sm:$0xff]
    %v607 = vld [vmem:[%s1 + $0x1208] sm:$0xff]
    %v608 = vld [vmem:[%s1 + $0x1210] sm:$0xff]
    %v609 = vld [vmem:[%s1 + $0x1218] sm:$0xff]
    %v610 = vld [vmem:[%s1 + $0x1220] sm:$0xff]
    %v611 = vld [vmem:[%s1 + $0x1228] sm:$0xff]
    %v612 = vld [vmem:[%s1 + $0x1230] sm:$0xff]
    %v613 = vld [vmem:[%s1 + $0x1238] sm:$0xff]
    %v614 = vld [vmem:[%s1 + $0x1240] sm:$0xff]
    %v615 = vld [vmem:[%s1 + $0x1248] sm:$0xff]
    %v616 = vld [vmem:[%s1 + $0x1250] sm:$0xff]
    %v617 = vld [vmem:[%s1 + $0x1258] sm:$0xff]
    %v618 = vld [vmem:[%s1 + $0x1260] sm:$0xff]
    %v619 = vld [vmem:[%s1 + $0x1268] sm:$0xff]
    %v620 = vld [vmem:[%s1 + $0x1270] sm:$0xff]
    %v621 = vld [vmem:[%s1 + $0x1278] sm:$0xff]
    %v622 = vld [vmem:[%s1 + $0x1280] sm:$0xff]
    %v623 = vld [vmem:[%s1 + $0x1288] sm:$0xff]
    %v624 = vld [vmem:[%s1 + $0x1290] sm:$0xff]
    %v625 = vld [vmem:[%s1 + $0x1298] sm:$0xff]
    %v626 = vld [vmem:[%s1 + $0x12a0] sm:$0xff]
    %v627 = vld [vmem:[%s1 + $0x12a8] sm:$0xff]
    %v628 = vld [vmem:[%s1 + $0x12b0] sm:$0xff]
    %v629 = vld [vmem:[%s1 + $0x12b8] sm:$0xff]
    %v630 = vld [vmem:[%s1 + $0x12c0] sm:$0xff]
    %v631 = vld [vmem:[%s1 + $0x12c8] sm:$0xff]
    %v632 = vld [vmem:[%s1 + $0x12d0] sm:$0xff]
    %v633 = vld [vmem:[%s1 + $0x12d8] sm:$0xff]
    %v634 = vld [vmem:[%s1 + $0x12e0] sm:$0xff]
    %v635 = vld [vmem:[%s1 + $0x12e8] sm:$0xff]
    %v636 = vld [vmem:[%s1 + $0x12f0] sm:$0xff]
    %v637 = vld [vmem:[%s1 + $0x12f8] sm:$0xff]
    %v638 = vld [vmem:[%s1 + $0x1300] sm:$0xff]
    %v639 = vld [vmem:[%s1 + $0x1308] sm:$0xff]
    %v640 = vld [vmem:[%s1 + $0x1310] sm:$0xff]
    %v641 = vld [vmem:[%s1 + $0x1318] sm:$0xff]
    %v642 = vld [vmem:[%s1 + $0x1320] sm:$0xff]
    %v643 = vld [vmem:[%s1 + $0x1328] sm:$0xff]
    %v644 = vld [vmem:[%s1 + $0x1330] sm:$0xff]
    %v645 = vld [vmem:[%s1 + $0x1338] sm:$0xff]
    %v646 = vld [vmem:[%s1 + $0x1340] sm:$0xff]
    %v647 = vld [vmem:[%s1 + $0x1348] sm:$0xff]
    %v648 = vld [vmem:[%s1 + $0x1350] sm:$0xff]
    %v649 = vld [vmem:[%s1 + $0x1358] sm:$0xff]
    %v650 = vld [vmem:[%s1 + $0x1360] sm:$0xff]
    %v651 = vld [vmem:[%s1 + $0x1368] sm:$0xff]
    %v652 = vld [vmem:[%s1 + $0x1370] sm:$0xff]
    %v653 = vld [vmem:[%s1 + $0x1378] sm:$0xff]
    %v654 = vld [vmem:[%s1 + $0x1380] sm:$0xff]
    %v655 = vld [vmem:[%s1 + $0x1388] sm:$0xff]
    %v656 = vld [vmem:[%s1 + $0x1390] sm:$0xff]
    %v657 = vld [vmem:[%s1 + $0x1398] sm:$0xff]
    %v658 = vld [vmem:[%s1 + $0x13a0] sm:$0xff]
    %v659 = vld [vmem:[%s1 + $0x13a8] sm:$0xff]
    %v660 = vld [vmem:[%s1 + $0x13b0] sm:$0xff]
    %v661 = vld [vmem:[%s1 + $0x13b8] sm:$0xff]
    %v662 = vld [vmem:[%s1 + $0x13c0] sm:$0xff]
    %v663 = vld [vmem:[%s1 + $0x13c8] sm:$0xff]
    %v664 = vld [vmem:[%s1 + $0x13d0] sm:$0xff]
    %v665 = vld [vmem:[%s1 + $0x13d8] sm:$0xff]
    %v666 = vld [vmem:[%s1 + $0x13e0] sm:$0xff]
    %v667 = vld [vmem:[%s1 + $0x13e8] sm:$0xff]
    %v668 = vld [vmem:[%s1 + $0x13f0] sm:$0xff]
    %v669 = vld [vmem:[%s1 + $0x13f8] sm:$0xff]
    %v670 = vld [vmem:[%s1 + $0x1400] sm:$0xff]
    %v671 = vld [vmem:[%s1 + $0x1408] sm:$0xff]
    %v672 = vld [vmem:[%s1 + $0x1410] sm:$0xff]
    %v673 = vld [vmem:[%s1 + $0x1418] sm:$0xff]
    %v674 = vld [vmem:[%s1 + $0x1420] sm:$0xff]
    %v675 = vld [vmem:[%s1 + $0x1428] sm:$0xff]
    %v676 = vld [vmem:[%s1 + $0x1430] sm:$0xff]
    %v677 = vld [vmem:[%s1 + $0x1438] sm:$0xff]
    %v678 = vld [vmem:[%s1 + $0x1440] sm:$0xff]
    %v679 = vld [vmem:[%s1 + $0x1448] sm:$0xff]
    %v680 = vld [vmem:[%s1 + $0x1450] sm:$0xff]
    %v681 = vld [vmem:[%s1 + $0x1458] sm:$0xff]
    %v682 = vld [vmem:[%s1 + $0x1460] sm:$0xff]
    %v683 = vld [vmem:[%s1 + $0x1468] sm:$0xff]
    %v684 = vld [vmem:[%s1 + $0x1470] sm:$0xff]
    %v685 = vld [vmem:[%s1 + $0x1478] sm:$0xff]
    %v686 = vld [vmem:[%s1 + $0x1480] sm:$0xff]
    %v687 = vld [vmem:[%s1 + $0x1488] sm:$0xff]
    %v688 = vld [vmem:[%s1 + $0x1490] sm:$0xff]
    %v689 = vld [vmem:[%s1 + $0x1498] sm:$0xff]
    %v690 = vld [vmem:[%s1 + $0x14a0] sm:$0xff]
    %v691 = vld [vmem:[%s1 + $0x14a8] sm:$0xff]
    %v692 = vld [vmem:[%s1 + $0x14b0] sm:$0xff]
    %v693 = vld [vmem:[%s1 + $0x14b8] sm:$0xff]
    %v694 = vld [vmem:[%s1 + $0x14c0] sm:$0xff]
    %v695 = vld [vmem:[%s1 + $0x14c8] sm:$0xff]
    %v696 = vld [vmem:[%s1 + $0x14d0] sm:$0xff]
    %v697 = vld [vmem:[%s1 + $0x14d8] sm:$0xff]
    %v698 = vld [vmem:[%s1 + $0x14e0] sm:$0xff]
    %v699 = vld [vmem:[%s1 + $0x14e8] sm:$0xff]
    %v700 = vld [vmem:[%s1 + $0x14f0] sm:$0xff]
    %v701 = vld [vmem:[%s1 + $0x14f8] sm:$0xff]
    %v702 = vld [vmem:[%s1 + $0x1500] sm:$0xff]
    %v703 = vld [vmem:[%s1 + $0x1508] sm:$0xff]
    %v704 = vld [vmem:[%s1 + $0x1510] sm:$0xff]
    %v705 = vld [vmem:[%s1 + $0x1518] sm:$0xff]
    %v706 = vld [vmem:[%s1 + $0x1520] sm:$0xff]
    %v707 = vld [vmem:[%s1 + $0x1528] sm:$0xff]
    %v708 = vld [vmem:[%s1 + $0x1530] sm:$0xff]
    %v709 = vld [vmem:[%s1 + $0x1538] sm:$0xff]
    %v710 = vld [vmem:[%s1 + $0x1540] sm:$0xff]
    %v711 = vld [vmem:[%s1 + $0x1548] sm:$0xff]
    %v712 = vld [vmem:[%s1 + $0x1550] sm:$0xff]
    %v713 = vld [vmem:[%s1 + $0x1558] sm:$0xff]
    %v714 = vld [vmem:[%s1 + $0x1560] sm:$0xff]
    %v715 = vld [vmem:[%s1 + $0x1568] sm:$0xff]
    %v716 = vld [vmem:[%s1 + $0x1570] sm:$0xff]
    %v717 = vld [vmem:[%s1 + $0x1578] sm:$0xff]
    %v718 = vld [vmem:[%s1 + $0x1580] sm:$0xff]
    %v719 = vld [vmem:[%s1 + $0x1588] sm:$0xff]
    %v720 = vld [vmem:[%s1 + $0x1590] sm:$0xff]
    %v721 = vld [vmem:[%s1 + $0x1598] sm:$0xff]
    %v722 = vld [vmem:[%s1 + $0x15a0] sm:$0xff]
    %v723 = vld [vmem:[%s1 + $0x15a8] sm:$0xff]
    %v724 = vld [vmem:[%s1 + $0x15b0] sm:$0xff]
    %v725 = vld [vmem:[%s1 + $0x15b8] sm:$0xff]
    %v726 = vld [vmem:[%s1 + $0x15c0] sm:$0xff]
    %v727 = vld [vmem:[%s1 + $0x15c8] sm:$0xff]
    %v728 = vld [vmem:[%s1 + $0x15d0] sm:$0xff]
    %v729 = vld [vmem:[%s1 + $0x15d8] sm:$0xff]
    %v730 = vld [vmem:[%s1 + $0x15e0] sm:$0xff]
    %v731 = vld [vmem:[%s1 + $0x15e8] sm:$0xff]
    %v732 = vld [vmem:[%s1 + $0x15f0] sm:$0xff]
    %v733 = vld [vmem:[%s1 + $0x15f8] sm:$0xff]
    %v734 = vld [vmem:[%s1 + $0x1600] sm:$0xff]
    %v735 = vld [vmem:[%s1 + $0x1608] sm:$0xff]
    %v736 = vld [vmem:[%s1 + $0x1610] sm:$0xff]
    %v737 = vld [vmem:[%s1 + $0x1618] sm:$0xff]
    %v738 = vld [vmem:[%s1 + $0x1620] sm:$0xff]
    %v739 = vld [vmem:[%s1 + $0x1628] sm:$0xff]
    %v740 = vld [vmem:[%s1 + $0x1630] sm:$0xff]
    %v741 = vld [vmem:[%s1 + $0x1638] sm:$0xff]
    %v742 = vld [vmem:[%s1 + $0x1640] sm:$0xff]
    %v743 = vld [vmem:[%s1 + $0x1648] sm:$0xff]
    %v744 = vld [vmem:[%s1 + $0x1650] sm:$0xff]
    %v745 = vld [vmem:[%s1 + $0x1658] sm:$0xff]
    %v746 = vld [vmem:[%s1 + $0x1660] sm:$0xff]
    %v747 = vld [vmem:[%s1 + $0x1668] sm:$0xff]
    %v748 = vld [vmem:[%s1 + $0x1670] sm:$0xff]
    %v749 = vld [vmem:[%s1 + $0x1678] sm:$0xff]
    %v750 = vld [vmem:[%s1 + $0x1680] sm:$0xff]
    %v751 = vld [vmem:[%s1 + $0x1688] sm:$0xff]
    %v752 = vld [vmem:[%s1 + $0x1690] sm:$0xff]
    %v753 = vld [vmem:[%s1 + $0x1698] sm:$0xff]
    %v754 = vld [vmem:[%s1 + $0x16a0] sm:$0xff]
    %v755 = vld [vmem:[%s1 + $0x16a8] sm:$0xff]
    %v756 = vld [vmem:[%s1 + $0x16b0] sm:$0xff]
    %v757 = vld [vmem:[%s1 + $0x16b8] sm:$0xff]
    %v758 = vld [vmem:[%s1 + $0x16c0] sm:$0xff]
    %v759 = vld [vmem:[%s1 + $0x16c8] sm:$0xff]
    %v760 = vld [vmem:[%s1 + $0x16d0] sm:$0xff]
    %v761 = vld [vmem:[%s1 + $0x16d8] sm:$0xff]
    %v762 = vld [vmem:[%s1 + $0x16e0] sm:$0xff]
    %v763 = vld [vmem:[%s1 + $0x16e8] sm:$0xff]
    %v764 = vld [vmem:[%s1 + $0x16f0] sm:$0xff]
    %v765 = vld [vmem:[%s1 + $0x16f8] sm:$0xff]
    %v766 = vld [vmem:[%s1 + $0x1700] sm:$0xff]
    %v767 = vld [vmem:[%s1 + $0x1708] sm:$0xff]
    %v768 = vld [vmem:[%s1 + $0x1710] sm:$0xff]
    %v769 = vld [vmem:[%s1 + $0x1718] sm:$0xff]
    %v770 = vld [vmem:[%s1 + $0x1720] sm:$0xff]
    %v771 = vld [vmem:[%s1 + $0x1728] sm:$0xff]
    %v772 = vld [vmem:[%s1 + $0x1730] sm:$0xff]
    %v773 = vld [vmem:[%s1 + $0x1738] sm:$0xff]
    %v774 = vld [vmem:[%s1 + $0x1740] sm:$0xff]
    %v775 = vld [vmem:[%s1 + $0x1748] sm:$0xff]
    %v776 = vld [vmem:[%s1 + $0x1750] sm:$0xff]
    %v777 = vld [vmem:[%s1 + $0x1758] sm:$0xff]
    %v778 = vld [vmem:[%s1 + $0x1760] sm:$0xff]
    %v779 = vld [vmem:[%s1 + $0x1768] sm:$0xff]
    %v780 = vld [vmem:[%s1 + $0x1770] sm:$0xff]
    %v781 = vld [vmem:[%s1 + $0x1778] sm:$0xff]
    %v782 = vld [vmem:[%s1 + $0x1780] sm:$0xff]
    %v783 = vld [vmem:[%s1 + $0x1788] sm:$0xff]
    %v784 = vld [vmem:[%s1 + $0x1790] sm:$0xff]
    %v785 = vld [vmem:[%s1 + $0x1798] sm:$0xff]
    %v786 = vld [vmem:[%s1 + $0x17a0] sm:$0xff]
    %v787 = vld [vmem:[%s1 + $0x17a8] sm:$0xff]
    %v788 = vld [vmem:[%s1 + $0x17b0] sm:$0xff]
    %v789 = vld [vmem:[%s1 + $0x17b8] sm:$0xff]
    %v790 = vld [vmem:[%s1 + $0x17c0] sm:$0xff]
    %v791 = vld [vmem:[%s1 + $0x17c8] sm:$0xff]
    %v792 = vld [vmem:[%s1 + $0x17d0] sm:$0xff]
    %v793 = vld [vmem:[%s1 + $0x17d8] sm:$0xff]
    %v794 = vld [vmem:[%s1 + $0x17e0] sm:$0xff]
    %v795 = vld [vmem:[%s1 + $0x17e8] sm:$0xff]
    %v796 = vld [vmem:[%s1 + $0x17f0] sm:$0xff]
    %v797 = vld [vmem:[%s1 + $0x17f8] sm:$0xff]
    %v798 = vld [vmem:[%s1 + $0x1800] sm:$0xff]
    %v799 = vld [vmem:[%s1 + $0x1808] sm:$0xff]
    %v800 = vld [vmem:[%s1 + $0x1810] sm:$0xff]
    %v801 = vld [vmem:[%s1 + $0x1818] sm:$0xff]
    %v802 = vld [vmem:[%s1 + $0x1820] sm:$0xff]
    %v803 = vld [vmem:[%s1 + $0x1828] sm:$0xff]
    %v804 = vld [vmem:[%s1 + $0x1830] sm:$0xff]
    %v805 = vld [vmem:[%s1 + $0x1838] sm:$0xff]
    %v806 = vld [vmem:[%s1 + $0x1840] sm:$0xff]
    %v807 = vld [vmem:[%s1 + $0x1848] sm:$0xff]
    %v808 = vld [vmem:[%s1 + $0x1850] sm:$0xff]
    %v809 = vld [vmem:[%s1 + $0x1858] sm:$0xff]
    %v810 = vld [vmem:[%s1 + $0x1860] sm:$0xff]
    %v811 = vld [vmem:[%s1 + $0x1868] sm:$0xff]
    %v812 = vld [vmem:[%s1 + $0x1870] sm:$0xff]
    %v813 = vld [vmem:[%s1 + $0x1878] sm:$0xff]
    %v814 = vld [vmem:[%s1 + $0x1880] sm:$0xff]
    %v815 = vld [vmem:[%s1 + $0x1888] sm:$0xff]
    %v816 = vld [vmem:[%s1 + $0x1890] sm:$0xff]
    %v817 = vld [vmem:[%s1 + $0x1898] sm:$0xff]
    %v818 = vld [vmem:[%s1 + $0x18a0] sm:$0xff]
    %v819 = vld [vmem:[%s1 + $0x18a8] sm:$0xff]
    %v820 = vld [vmem:[%s1 + $0x18b0] sm:$0xff]
    %v821 = vld [vmem:[%s1 + $0x18b8] sm:$0xff]
    %v822 = vld [vmem:[%s1 + $0x18c0] sm:$0xff]
    %v823 = vld [vmem:[%s1 + $0x18c8] sm:$0xff]
    %v824 = vld [vmem:[%s1 + $0x18d0] sm:$0xff]
    %v825 = vld [vmem:[%s1 + $0x18d8] sm:$0xff]
    %v826 = vld [vmem:[%s1 + $0x18e0] sm:$0xff]
    %v827 = vld [vmem:[%s1 + $0x18e8] sm:$0xff]
    %v828 = vld [vmem:[%s1 + $0x18f0] sm:$0xff]
    %v829 = vld [vmem:[%s1 + $0x18f8] sm:$0xff]
    %v830 = vld [vmem:[%s1 + $0x1900] sm:$0xff]
    %v831 = vld [vmem:[%s1 + $0x1908] sm:$0xff]
    %v832 = vld [vmem:[%s1 + $0x1910] sm:$0xff]
    %v833 = vld [vmem:[%s1 + $0x1918] sm:$0xff]
    %v834 = vld [vmem:[%s1 + $0x1920] sm:$0xff]
    %v835 = vld [vmem:[%s1 + $0x1928] sm:$0xff]
    %v836 = vld [vmem:[%s1 + $0x1930] sm:$0xff]
    %v837 = vld [vmem:[%s1 + $0x1938] sm:$0xff]
    %v838 = vld [vmem:[%s1 + $0x1940] sm:$0xff]
    %v839 = vld [vmem:[%s1 + $0x1948] sm:$0xff]
    %v840 = vld [vmem:[%s1 + $0x1950] sm:$0xff]
    %v841 = vld [vmem:[%s1 + $0x1958] sm:$0xff]
    %v842 = vld [vmem:[%s1 + $0x1960] sm:$0xff]
    %v843 = vld [vmem:[%s1 + $0x1968] sm:$0xff]
    %v844 = vld [vmem:[%s1 + $0x1970] sm:$0xff]
    %v845 = vld [vmem:[%s1 + $0x1978] sm:$0xff]
    %v846 = vld [vmem:[%s1 + $0x1980] sm:$0xff]
    %v847 = vld [vmem:[%s1 + $0x1988] sm:$0xff]
    %v848 = vld [vmem:[%s1 + $0x1990] sm:$0xff]
    %v849 = vld [vmem:[%s1 + $0x1998] sm:$0xff]
    %v850 = vld [vmem:[%s1 + $0x19a0] sm:$0xff]
    %v851 = vld [vmem:[%s1 + $0x19a8] sm:$0xff]
    %v852 = vld [vmem:[%s1 + $0x19b0] sm:$0xff]
    %v853 = vld [vmem:[%s1 + $0x19b8] sm:$0xff]
    %v854 = vld [vmem:[%s1 + $0x19c0] sm:$0xff]
    %v855 = vld [vmem:[%s1 + $0x19c8] sm:$0xff]
    %v856 = vld [vmem:[%s1 + $0x19d0] sm:$0xff]
    %v857 = vld [vmem:[%s1 + $0x19d8] sm:$0xff]
    %v858 = vld [vmem:[%s1 + $0x19e0] sm:$0xff]
    %v859 = vld [vmem:[%s1 + $0x19e8] sm:$0xff]
    %v860 = vld [vmem:[%s1 + $0x19f0] sm:$0xff]
    %v861 = vld [vmem:[%s1 + $0x19f8] sm:$0xff]
    %v862 = vld [vmem:[%s1 + $0x1a00] sm:$0xff]
    %v863 = vld [vmem:[%s1 + $0x1a08] sm:$0xff]
    %v864 = vld [vmem:[%s1 + $0x1a10] sm:$0xff]
    %v865 = vld [vmem:[%s1 + $0x1a18] sm:$0xff]
    %v866 = vld [vmem:[%s1 + $0x1a20] sm:$0xff]
    %v867 = vld [vmem:[%s1 + $0x1a28] sm:$0xff]
    %v868 = vld [vmem:[%s1 + $0x1a30] sm:$0xff]
    %v869 = vld [vmem:[%s1 + $0x1a38] sm:$0xff]
    %v870 = vld [vmem:[%s1 + $0x1a40] sm:$0xff]
    %v871 = vld [vmem:[%s1 + $0x1a48] sm:$0xff]
    %v872 = vld [vmem:[%s1 + $0x1a50] sm:$0xff]
    %v873 = vld [vmem:[%s1 + $0x1a58] sm:$0xff]
    %v874 = vld [vmem:[%s1 + $0x1a60] sm:$0xff]
    %v875 = vld [vmem:[%s1 + $0x1a68] sm:$0xff]
    %v876 = vld [vmem:[%s1 + $0x1a70] sm:$0xff]
    %v877 = vld [vmem:[%s1 + $0x1a78] sm:$0xff]
    %v878 = vld [vmem:[%s1 + $0x1a80] sm:$0xff]
    %v879 = vld [vmem:[%s1 + $0x1a88] sm:$0xff]
    %v880 = vld [vmem:[%s1 + $0x1a90] sm:$0xff]
    %v881 = vld [vmem:[%s1 + $0x1a98] sm:$0xff]
    %v882 = vld [vmem:[%s1 + $0x1aa0] sm:$0xff]
    %v883 = vld [vmem:[%s1 + $0x1aa8] sm:$0xff]
    %v884 = vld [vmem:[%s1 + $0x1ab0] sm:$0xff]
    %v885 = vld [vmem:[%s1 + $0x1ab8] sm:$0xff]
    %v886 = vld [vmem:[%s1 + $0x1ac0] sm:$0xff]
    %v887 = vld [vmem:[%s1 + $0x1ac8] sm:$0xff]
    %v888 = vld [vmem:[%s1 + $0x1ad0] sm:$0xff]
    %v889 = vld [vmem:[%s1 + $0x1ad8] sm:$0xff]
    %v890 = vld [vmem:[%s1 + $0x1ae0] sm:$0xff]
    %v891 = vld [vmem:[%s1 + $0x1ae8] sm:$0xff]
    %v892 = vld [vmem:[%s1 + $0x1af0] sm:$0xff]
    %v893 = vld [vmem:[%s1 + $0x1af8] sm:$0xff]
    %v894 = vld [vmem:[%s1 + $0x1b00] sm:$0xff]
    %v895 = vld [vmem:[%s1 + $0x1b08] sm:$0xff]
    %v896 = vld [vmem:[%s1 + $0x1b10] sm:$0xff]
    %v897 = vld [vmem:[%s1 + $0x1b18] sm:$0xff]
    %v898 = vld [vmem:[%s1 + $0x1b20] sm:$0xff]
    %v899 = vld [vmem:[%s1 + $0x1b28] sm:$0xff]
    %v900 = vld [vmem:[%s1 + $0x1b30] sm:$0xff]
    %v901 = vld [vmem:[%s1 + $0x1b38] sm:$0xff]
    %v902 = vld [vmem:[%s1 + $0x1b40] sm:$0xff]
    %v903 = vld [vmem:[%s1 + $0x1b48] sm:$0xff]
    %v904 = vld [vmem:[%s1 + $0x1b50] sm:$0xff]
    %v905 = vld [vmem:[%s1 + $0x1b58] sm:$0xff]
    %v906 = vld [vmem:[%s1 + $0x1b60] sm:$0xff]
    %v907 = vld [vmem:[%s1 + $0x1b68] sm:$0xff]
    %v908 = vld [vmem:[%s1 + $0x1b70] sm:$0xff]
    %v909 = vld [vmem:[%s1 + $0x1b78] sm:$0xff]
    %v910 = vld [vmem:[%s1 + $0x1b80] sm:$0xff]
    %v911 = vld [vmem:[%s1 + $0x1b88] sm:$0xff]
    %v912 = vld [vmem:[%s1 + $0x1b90] sm:$0xff]
    %v913 = vld [vmem:[%s1 + $0x1b98] sm:$0xff]
    %v914 = vld [vmem:[%s1 + $0x1ba0] sm:$0xff]
    %v915 = vld [vmem:[%s1 + $0x1ba8] sm:$0xff]
    %v916 = vld [vmem:[%s1 + $0x1bb0] sm:$0xff]
    %v917 = vld [vmem:[%s1 + $0x1bb8] sm:$0xff]
    %v918 = vld [vmem:[%s1 + $0x1bc0] sm:$0xff]
    %v919 = vld [vmem:[%s1 + $0x1bc8] sm:$0xff]
    %v920 = vld [vmem:[%s1 + $0x1bd0] sm:$0xff]
    %v921 = vld [vmem:[%s1 + $0x1bd8] sm:$0xff]
    %v922 = vld [vmem:[%s1 + $0x1be0] sm:$0xff]
    %v923 = vld [vmem:[%s1 + $0x1be8] sm:$0xff]
    %v924 = vld [vmem:[%s1 + $0x1bf0] sm:$0xff]
    %v925 = vld [vmem:[%s1 + $0x1bf8] sm:$0xff]
    %v926 = vld [vmem:[%s1 + $0x1c00] sm:$0xff]
    %v927 = vld [vmem:[%s1 + $0x1c08] sm:$0xff]
    %v928 = vld [vmem:[%s1 + $0x1c10] sm:$0xff]
    %v929 = vld [vmem:[%s1 + $0x1c18] sm:$0xff]
    %v930 = vld [vmem:[%s1 + $0x1c20] sm:$0xff]
    %v931 = vld [vmem:[%s1 + $0x1c28] sm:$0xff]
    %v932 = vld [vmem:[%s1 + $0x1c30] sm:$0xff]
    %v933 = vld [vmem:[%s1 + $0x1c38] sm:$0xff]
    %v934 = vld [vmem:[%s1 + $0x1c40] sm:$0xff]
    %v935 = vld [vmem:[%s1 + $0x1c48] sm:$0xff]
    %v936 = vld [vmem:[%s1 + $0x1c50] sm:$0xff]
    %v937 = vld [vmem:[%s1 + $0x1c58] sm:$0xff]
    %v938 = vld [vmem:[%s1 + $0x1c60] sm:$0xff]
    %v939 = vld [vmem:[%s1 + $0x1c68] sm:$0xff]
    %v940 = vld [vmem:[%s1 + $0x1c70] sm:$0xff]
    %v941 = vld [vmem:[%s1 + $0x1c78] sm:$0xff]
    %v942 = vld [vmem:[%s1 + $0x1c80] sm:$0xff]
    %v943 = vld [vmem:[%s1 + $0x1c88] sm:$0xff]
    %v944 = vld [vmem:[%s1 + $0x1c90] sm:$0xff]
    %v945 = vld [vmem:[%s1 + $0x1c98] sm:$0xff]
    %v946 = vld [vmem:[%s1 + $0x1ca0] sm:$0xff]
    %v947 = vld [vmem:[%s1 + $0x1ca8] sm:$0xff]
    %v948 = vld [vmem:[%s1 + $0x1cb0] sm:$0xff]
    %v949 = vld [vmem:[%s1 + $0x1cb8] sm:$0xff]
    %v950 = vld [vmem:[%s1 + $0x1cc0] sm:$0xff]
    %v951 = vld [vmem:[%s1 + $0x1cc8] sm:$0xff]
    %v952 = vld [vmem:[%s1 + $0x1cd0] sm:$0xff]
    %v953 = vld [vmem:[%s1 + $0x1cd8] sm:$0xff]
    %v954 = vld [vmem:[%s1 + $0x1ce0] sm:$0xff]
    %v955 = vld [vmem:[%s1 + $0x1ce8] sm:$0xff]
    %v956 = vld [vmem:[%s1 + $0x1cf0] sm:$0xff]
    %v957 = vld [vmem:[%s1 + $0x1cf8] sm:$0xff]
    %v958 = vld [vmem:[%s1 + $0x1d00] sm:$0xff]
    %v959 = vld [vmem:[%s1 + $0x1d08] sm:$0xff]
    %v960 = vld [vmem:[%s1 + $0x1d10] sm:$0xff]
    %v961 = vld [vmem:[%s1 + $0x1d18] sm:$0xff]
    %v962 = vld [vmem:[%s1 + $0x1d20] sm:$0xff]
    %v963 = vld [vmem:[%s1 + $0x1d28] sm:$0xff]
    %v964 = vld [vmem:[%s1 + $0x1d30] sm:$0xff]
    %v965 = vld [vmem:[%s1 + $0x1d38] sm:$0xff]
    %v966 = vld [vmem:[%s1 + $0x1d40] sm:$0xff]
    %v967 = vld [vmem:[%s1 + $0x1d48] sm:$0xff]
    %v968 = vld [vmem:[%s1 + $0x1d50] sm:$0xff]
    %v969 = vld [vmem:[%s1 + $0x1d58] sm:$0xff]
    %v970 = vld [vmem:[%s1 + $0x1d60] sm:$0xff]
    %v971 = vld [vmem:[%s1 + $0x1d68] sm:$0xff]
    %v972 = vld [vmem:[%s1 + $0x1d70] sm:$0xff]
    %v973 = vld [vmem:[%s1 + $0x1d78] sm:$0xff]
    %v974 = vld [vmem:[%s1 + $0x1d80] sm:$0xff]
    %v975 = vld [vmem:[%s1 + $0x1d88] sm:$0xff]
    %v976 = vld [vmem:[%s1 + $0x1d90] sm:$0xff]
    %v977 = vld [vmem:[%s1 + $0x1d98] sm:$0xff]
    %v978 = vld [vmem:[%s1 + $0x1da0] sm:$0xff]
    %v979 = vld [vmem:[%s1 + $0x1da8] sm:$0xff]
    %v980 = vld [vmem:[%s1 + $0x1db0] sm:$0xff]
    %v981 = vld [vmem:[%s1 + $0x1db8] sm:$0xff]
    %v982 = vld [vmem:[%s1 + $0x1dc0] sm:$0xff]
    %v983 = vld [vmem:[%s1 + $0x1dc8] sm:$0xff]
    %v984 = vld [vmem:[%s1 + $0x1dd0] sm:$0xff]
    %v985 = vld [vmem:[%s1 + $0x1dd8] sm:$0xff]
    %v986 = vld [vmem:[%s1 + $0x1de0] sm:$0xff]
    %v987 = vld [vmem:[%s1 + $0x1de8] sm:$0xff]
    %v988 = vld [vmem:[%s1 + $0x1df0] sm:$0xff]
    %v989 = vld [vmem:[%s1 + $0x1df8] sm:$0xff]
    %v990 = vld [vmem:[%s1 + $0x1e00] sm:$0xff]
    %v991 = vld [vmem:[%s1 + $0x1e08] sm:$0xff]
    %v992 = vld [vmem:[%s1 + $0x1e10] sm:$0xff]
    %v993 = vld [vmem:[%s1 + $0x1e18] sm:$0xff]
    %v994 = vld [vmem:[%s1 + $0x1e20] sm:$0xff]
    %v995 = vld [vmem:[%s1 + $0x1e28] sm:$0xff]
    %v996 = vld [vmem:[%s1 + $0x1e30] sm:$0xff]
    %v997 = vld [vmem:[%s1 + $0x1e38] sm:$0xff]
    %v998 = vld [vmem:[%s1 + $0x1e40] sm:$0xff]
    %v999 = vld [vmem:[%s1 + $0x1e48] sm:$0xff]
    %v1000 = vld [vmem:[%s1 + $0x1e50] sm:$0xff]
    %v1001 = vld [vmem:[%s1 + $0x1e58] sm:$0xff]
    %v1002 = vld [vmem:[%s1 + $0x1e60] sm:$0xff]
    %v1003 = vld [vmem:[%s1 + $0x1e68] sm:$0xff]
    %v1004 = vld [vmem:[%s1 + $0x1e70] sm:$0xff]
    %v1005 = vld [vmem:[%s1 + $0x1e78] sm:$0xff]
    %v1006 = vld [vmem:[%s1 + $0x1e80] sm:$0xff]
    %v1007 = vld [vmem:[%s1 + $0x1e88] sm:$0xff]
    %v1008 = vld [vmem:[%s1 + $0x1e90] sm:$0xff]
    %v1009 = vld [vmem:[%s1 + $0x1e98] sm:$0xff]
    %v1010 = vld [vmem:[%s1 + $0x1ea0] sm:$0xff]
    %v1011 = vld [vmem:[%s1 + $0x1ea8] sm:$0xff]
    %v1012 = vld [vmem:[%s1 + $0x1eb0] sm:$0xff]
    %v1013 = vld [vmem:[%s1 + $0x1eb8] sm:$0xff]
    %v1014 = vld [vmem:[%s1 + $0x1ec0] sm:$0xff]
    %v1015 = vld [vmem:[%s1 + $0x1ec8] sm:$0xff]
    %v1016 = vld [vmem:[%s1 + $0x1ed0] sm:$0xff]
    %v1017 = vld [vmem:[%s1 + $0x1ed8] sm:$0xff]
    %v1018 = vld [vmem:[%s1 + $0x1ee0] sm:$0xff]
    %v1019 = vld [vmem:[%s1 + $0x1ee8] sm:$0xff]
    %v1020 = vld [vmem:[%s1 + $0x1ef0] sm:$0xff]
    %v1021 = vld [vmem:[%s1 + $0x1ef8] sm:$0xff]
    %v1022 = vld [vmem:[%s1 + $0x1f00] sm:$0xff]
    %v1023 = vld [vmem:[%s1 + $0x1f08] sm:$0xff]
    %v1024 = vld [vmem:[%s1 + $0x1f10] sm:$0xff]
    %v1025 = vld [vmem:[%s1 + $0x1f18] sm:$0xff]
    %v1026 = vld [vmem:[%s1 + $0x1f20] sm:$0xff]
    %v1027 = vld [vmem:[%s1 + $0x1f28] sm:$0xff]
    %v1028 = vld [vmem:[%s1 + $0x1f30] sm:$0xff]
    %v1029 = vld [vmem:[%s1 + $0x1f38] sm:$0xff]
    %v1030 = vld [vmem:[%s1 + $0x1f40] sm:$0xff]
    %v1031 = vld [vmem:[%s1 + $0x1f48] sm:$0xff]
    %v1032 = vld [vmem:[%s1 + $0x1f50] sm:$0xff]
    %v1033 = vld [vmem:[%s1 + $0x1f58] sm:$0xff]
    %v1034 = vld [vmem:[%s1 + $0x1f60] sm:$0xff]
    %v1035 = vld [vmem:[%s1 + $0x1f68] sm:$0xff]
    %v1036 = vld [vmem:[%s1 + $0x1f70] sm:$0xff]
    %v1037 = vld [vmem:[%s1 + $0x1f78] sm:$0xff]
    %v1038 = vld [vmem:[%s1 + $0x1f80] sm:$0xff]
    %v1039 = vld [vmem:[%s1 + $0x1f88] sm:$0xff]
    %v1040 = vld [vmem:[%s1 + $0x1f90] sm:$0xff]
    %v1041 = vld [vmem:[%s1 + $0x1f98] sm:$0xff]
    %v1042 = vld [vmem:[%s1 + $0x1fa0] sm:$0xff]
    %v1043 = vld [vmem:[%s1 + $0x1fa8] sm:$0xff]
    %v1044 = vld [vmem:[%s1 + $0x1fb0] sm:$0xff]
    %v1045 = vld [vmem:[%s1 + $0x1fb8] sm:$0xff]
    %v1046 = vld [vmem:[%s1 + $0x1fc0] sm:$0xff]
    %v1047 = vld [vmem:[%s1 + $0x1fc8] sm:$0xff]
    %v1048 = vld [vmem:[%s1 + $0x1fd0] sm:$0xff]
    %v1049 = vld [vmem:[%s1 + $0x1fd8] sm:$0xff]
    %v1050 = vld [vmem:[%s1 + $0x1fe0] sm:$0xff]
    %v1051 = vld [vmem:[%s1 + $0x1fe8] sm:$0xff]
    %v1052 = vld [vmem:[%s1 + $0x1ff0] sm:$0xff]
    %v1053 = vld [vmem:[%s1 + $0x1ff8] sm:$0xff]
    %v1054 = vld [vmem:[%s1 + $0x2000] sm:$0xff]
    %v1055 = vld [vmem:[%s1 + $0x2008] sm:$0xff]
    %v1056 = vld [vmem:[%s1 + $0x2010] sm:$0xff]
    %v1057 = vld [vmem:[%s1 + $0x2018] sm:$0xff]
    %v1058 = vld [vmem:[%s1 + $0x2020] sm:$0xff]
    %v1059 = vld [vmem:[%s1 + $0x2028] sm:$0xff]
    %v1060 = vld [vmem:[%s1 + $0x2030] sm:$0xff]
    %v1061 = vld [vmem:[%s1 + $0x2038] sm:$0xff]
    %v1062 = vld [vmem:[%s1 + $0x2040] sm:$0xff]
    %v1063 = vld [vmem:[%s1 + $0x2048] sm:$0xff]
    %v1064 = vld [vmem:[%s1 + $0x2050] sm:$0xff]
    %v1065 = vld [vmem:[%s1 + $0x2058] sm:$0xff]
    %v1066 = vld [vmem:[%s1 + $0x2060] sm:$0xff]
    %v1067 = vld [vmem:[%s1 + $0x2068] sm:$0xff]
    %v1068 = vld [vmem:[%s1 + $0x2070] sm:$0xff]
    %v1069 = vld [vmem:[%s1 + $0x2078] sm:$0xff]
    %v1070 = vld [vmem:[%s1 + $0x2080] sm:$0xff]
    %v1071 = vld [vmem:[%s1 + $0x2088] sm:$0xff]
    %v1072 = vld [vmem:[%s1 + $0x2090] sm:$0xff]
    %v1073 = vld [vmem:[%s1 + $0x2098] sm:$0xff]
    %v1074 = vld [vmem:[%s1 + $0x20a0] sm:$0xff]
    %v1075 = vld [vmem:[%s1 + $0x20a8] sm:$0xff]
    %v1076 = vld [vmem:[%s1 + $0x20b0] sm:$0xff]
    %v1077 = vld [vmem:[%s1 + $0x20b8] sm:$0xff]
    %v1078 = vld [vmem:[%s1 + $0x20c0] sm:$0xff]
    %v1079 = vld [vmem:[%s1 + $0x20c8] sm:$0xff]
    %v1080 = vld [vmem:[%s1 + $0x20d0] sm:$0xff]
    %v1081 = vld [vmem:[%s1 + $0x20d8] sm:$0xff]
    %v1082 = vld [vmem:[%s1 + $0x20e0] sm:$0xff]
    %v1083 = vld [vmem:[%s1 + $0x20e8] sm:$0xff]
    %v1084 = vld [vmem:[%s1 + $0x20f0] sm:$0xff]
    %v1085 = vld [vmem:[%s1 + $0x20f8] sm:$0xff]
    %v1086 = vld [vmem:[%s1 + $0x2100] sm:$0xff]
    %v1087 = vld [vmem:[%s1 + $0x2108] sm:$0xff]
    %v1088 = vld [vmem:[%s1 + $0x2110] sm:$0xff]
    %v1089 = vld [vmem:[%s1 + $0x2118] sm:$0xff]
    %v1090 = vld [vmem:[%s1 + $0x2120] sm:$0xff]
    %v1091 = vld [vmem:[%s1 + $0x2128] sm:$0xff]
    %v1092 = vld [vmem:[%s1 + $0x2130] sm:$0xff]
    %v1093 = vld [vmem:[%s1 + $0x2138] sm:$0xff]
    %v1094 = vld [vmem:[%s1 + $0x2140] sm:$0xff]
    %v1095 = vld [vmem:[%s1 + $0x2148] sm:$0xff]
    %v1096 = vld [vmem:[%s1 + $0x2150] sm:$0xff]
    %v1097 = vld [vmem:[%s1 + $0x2158] sm:$0xff]
    %v1098 = vld [vmem:[%s1 + $0x2160] sm:$0xff]
    %v1099 = vld [vmem:[%s1 + $0x2168] sm:$0xff]
    %v1100 = vld [vmem:[%s1 + $0x2170] sm:$0xff]
    %v1101 = vld [vmem:[%s1 + $0x2178] sm:$0xff]
    %v1102 = vld [vmem:[%s1 + $0x2180] sm:$0xff]
    %v1103 = vld [vmem:[%s1 + $0x2188] sm:$0xff]
    %v1104 = vld [vmem:[%s1 + $0x2190] sm:$0xff]
    %v1105 = vld [vmem:[%s1 + $0x2198] sm:$0xff]
    %v1106 = vld [vmem:[%s1 + $0x21a0] sm:$0xff]
    %v1107 = vld [vmem:[%s1 + $0x21a8] sm:$0xff]
    %v1108 = vld [vmem:[%s1 + $0x21b0] sm:$0xff]
    %v1109 = vld [vmem:[%s1 + $0x21b8] sm:$0xff]
    %v1110 = vld [vmem:[%s1 + $0x21c0] sm:$0xff]
    %v1111 = vld [vmem:[%s1 + $0x21c8] sm:$0xff]
    %v1112 = vld [vmem:[%s1 + $0x21d0] sm:$0xff]
    %v1113 = vld [vmem:[%s1 + $0x21d8] sm:$0xff]
    %v1114 = vld [vmem:[%s1 + $0x21e0] sm:$0xff]
    %v1115 = vld [vmem:[%s1 + $0x21e8] sm:$0xff]
    %v1116 = vld [vmem:[%s1 + $0x21f0] sm:$0xff]
    %v1117 = vld [vmem:[%s1 + $0x21f8] sm:$0xff]
    %v1118 = vld [vmem:[%s1 + $0x2200] sm:$0xff]
    %v1119 = vld [vmem:[%s1 + $0x2208] sm:$0xff]
    %v1120 = vld [vmem:[%s1 + $0x2210] sm:$0xff]
    %v1121 = vld [vmem:[%s1 + $0x2218] sm:$0xff]
    %v1122 = vld [vmem:[%s1 + $0x2220] sm:$0xff]
    %v1123 = vld [vmem:[%s1 + $0x2228] sm:$0xff]
    %v1124 = vld [vmem:[%s1 + $0x2230] sm:$0xff]
    %v1125 = vld [vmem:[%s1 + $0x2238] sm:$0xff]
    %v1126 = vld [vmem:[%s1 + $0x2240] sm:$0xff]
    %v1127 = vld [vmem:[%s1 + $0x2248] sm:$0xff]
    %v1128 = vld [vmem:[%s1 + $0x2250] sm:$0xff]
    %v1129 = vld [vmem:[%s1 + $0x2258] sm:$0xff]
    %v1130 = vld [vmem:[%s1 + $0x2260] sm:$0xff]
    %v1131 = vld [vmem:[%s1 + $0x2268] sm:$0xff]
    %v1132 = vld [vmem:[%s1 + $0x2270] sm:$0xff]
    %v1133 = vld [vmem:[%s1 + $0x2278] sm:$0xff]
    %v1134 = vld [vmem:[%s1 + $0x2280] sm:$0xff]
    %v1135 = vld [vmem:[%s1 + $0x2288] sm:$0xff]
    %v1136 = vld [vmem:[%s1 + $0x2290] sm:$0xff]
    %v1137 = vld [vmem:[%s1 + $0x2298] sm:$0xff]
    %v1138 = vld [vmem:[%s1 + $0x22a0] sm:$0xff]
    %v1139 = vld [vmem:[%s1 + $0x22a8] sm:$0xff]
    %v1140 = vld [vmem:[%s1 + $0x22b0] sm:$0xff]
    %v1141 = vld [vmem:[%s1 + $0x22b8] sm:$0xff]
    %v1142 = vld [vmem:[%s1 + $0x22c0] sm:$0xff]
    %v1143 = vld [vmem:[%s1 + $0x22c8] sm:$0xff]
    %v1144 = vld [vmem:[%s1 + $0x22d0] sm:$0xff]
    %v1145 = vld [vmem:[%s1 + $0x22d8] sm:$0xff]
    %v1146 = vld [vmem:[%s1 + $0x22e0] sm:$0xff]
    %v1147 = vld [vmem:[%s1 + $0x22e8] sm:$0xff]
    %v1148 = vld [vmem:[%s1 + $0x22f0] sm:$0xff]
    %v1149 = vld [vmem:[%s1 + $0x22f8] sm:$0xff]
    %v1150 = vld [vmem:[%s1 + $0x2300] sm:$0xff]
    %v1151 = vld [vmem:[%s1 + $0x2308] sm:$0xff]
    %v1152 = vld [vmem:[%s1 + $0x2310] sm:$0xff]
    %v1153 = vld [vmem:[%s1 + $0x2318] sm:$0xff]
    %v1154 = vld [vmem:[%s1 + $0x2320] sm:$0xff]
    %v1155 = vld [vmem:[%s1 + $0x2328] sm:$0xff]
    %v1156 = vld [vmem:[%s1 + $0x2330] sm:$0xff]
    %v1157 = vld [vmem:[%s1 + $0x2338] sm:$0xff]
    %v1158 = vld [vmem:[%s1 + $0x2340] sm:$0xff]
    %v1159 = vld [vmem:[%s1 + $0x2348] sm:$0xff]
    %v1160 = vld [vmem:[%s1 + $0x2350] sm:$0xff]
    %v1161 = vld [vmem:[%s1 + $0x2358] sm:$0xff]
    %v1162 = vld [vmem:[%s1 + $0x2360] sm:$0xff]
    %v1163 = vld [vmem:[%s1 + $0x2368] sm:$0xff]
    %v1164 = vld [vmem:[%s1 + $0x2370] sm:$0xff]
    %v1165 = vld [vmem:[%s1 + $0x2378] sm:$0xff]
    %v1166 = vld [vmem:[%s1 + $0x2380] sm:$0xff]
    %v1167 = vld [vmem:[%s1 + $0x2388] sm:$0xff]
    %v1168 = vld [vmem:[%s1 + $0x2390] sm:$0xff]
    %v1169 = vld [vmem:[%s1 + $0x2398] sm:$0xff]
    %v1170 = vld [vmem:[%s1 + $0x23a0] sm:$0xff]
    %v1171 = vld [vmem:[%s1 + $0x23a8] sm:$0xff]
    %v1172 = vld [vmem:[%s1 + $0x23b0] sm:$0xff]
    %v1173 = vld [vmem:[%s1 + $0x23b8] sm:$0xff]
    %v1174 = vld [vmem:[%s1 + $0x23c0] sm:$0xff]
    %v1175 = vld [vmem:[%s1 + $0x23c8] sm:$0xff]
    %v1176 = vld [vmem:[%s1 + $0x23d0] sm:$0xff]
    %v1177 = vld [vmem:[%s1 + $0x23d8] sm:$0xff]
    %v1178 = vld [vmem:[%s1 + $0x23e0] sm:$0xff]
    %v1179 = vld [vmem:[%s1 + $0x23e8] sm:$0xff]
    %v1180 = vld [vmem:[%s1 + $0x23f0] sm:$0xff]
    %v1181 = vld [vmem:[%s1 + $0x23f8] sm:$0xff]
    %v1182 = vld [vmem:[%s1 + $0x2400] sm:$0xff]
    %v1183 = vld [vmem:[%s1 + $0x2408] sm:$0xff]
    %v1184 = vld [vmem:[%s1 + $0x2410] sm:$0xff]
    %v1185 = vld [vmem:[%s1 + $0x2418] sm:$0xff]
    %v1186 = vld [vmem:[%s1 + $0x2420] sm:$0xff]
    %v1187 = vld [vmem:[%s1 + $0x2428] sm:$0xff]
    %v1188 = vld [vmem:[%s1 + $0x2430] sm:$0xff]
    %v1189 = vld [vmem:[%s1 + $0x2438] sm:$0xff]
    %v1190 = vld [vmem:[%s1 + $0x2440] sm:$0xff]
    %v1191 = vld [vmem:[%s1 + $0x2448] sm:$0xff]
    %v1192 = vld [vmem:[%s1 + $0x2450] sm:$0xff]
    %v1193 = vld [vmem:[%s1 + $0x2458] sm:$0xff]
    %v1194 = vld [vmem:[%s1 + $0x2460] sm:$0xff]
    %v1195 = vld [vmem:[%s1 + $0x2468] sm:$0xff]
    %v1196 = vld [vmem:[%s1 + $0x2470] sm:$0xff]
    %v1197 = vld [vmem:[%s1 + $0x2478] sm:$0xff]
    %v1198 = vld [vmem:[%s1 + $0x2480] sm:$0xff]
    %v1199 = vld [vmem:[%s1 + $0x2488] sm:$0xff]
    %v1200 = vld [vmem:[%s1 + $0x2490] sm:$0xff]
    %v1201 = vld [vmem:[%s1 + $0x2498] sm:$0xff]
    %v1202 = vld [vmem:[%s1 + $0x24a0] sm:$0xff]
    %v1203 = vld [vmem:[%s1 + $0x24a8] sm:$0xff]
    %v1204 = vld [vmem:[%s1 + $0x24b0] sm:$0xff]
    %v1205 = vld [vmem:[%s1 + $0x24b8] sm:$0xff]
    %v1206 = vld [vmem:[%s1 + $0x24c0] sm:$0xff]
    %v1207 = vld [vmem:[%s1 + $0x24c8] sm:$0xff]
    %v1208 = vld [vmem:[%s1 + $0x24d0] sm:$0xff]
    %v1209 = vld [vmem:[%s1 + $0x24d8] sm:$0xff]
    %v1210 = vld [vmem:[%s1 + $0x24e0] sm:$0xff]
    %v1211 = vld [vmem:[%s1 + $0x24e8] sm:$0xff]
    %v1212 = vld [vmem:[%s1 + $0x24f0] sm:$0xff]
    %v1213 = vld [vmem:[%s1 + $0x24f8] sm:$0xff]
    %v1214 = vld [vmem:[%s1 + $0x2500] sm:$0xff]
    %v1215 = vld [vmem:[%s1 + $0x2508] sm:$0xff]
    %v1216 = vld [vmem:[%s1 + $0x2510] sm:$0xff]
    %v1217 = vld [vmem:[%s1 + $0x2518] sm:$0xff]
    %v1218 = vld [vmem:[%s1 + $0x2520] sm:$0xff]
    %v1219 = vld [vmem:[%s1 + $0x2528] sm:$0xff]
    %v1220 = vld [vmem:[%s1 + $0x2530] sm:$0xff]
    %v1221 = vld [vmem:[%s1 + $0x2538] sm:$0xff]
    %v1222 = vld [vmem:[%s1 + $0x2540] sm:$0xff]
    %v1223 = vld [vmem:[%s1 + $0x2548] sm:$0xff]
    %v1224 = vld [vmem:[%s1 + $0x2550] sm:$0xff]
    %v1225 = vld [vmem:[%s1 + $0x2558] sm:$0xff]
    %v1226 = vld [vmem:[%s1 + $0x2560] sm:$0xff]
    %v1227 = vld [vmem:[%s1 + $0x2568] sm:$0xff]
    %v1228 = vld [vmem:[%s1 + $0x2570] sm:$0xff]
    %v1229 = vld [vmem:[%s1 + $0x2578] sm:$0xff]
    %v1230 = vld [vmem:[%s1 + $0x2580] sm:$0xff]
    %v1231 = vld [vmem:[%s1 + $0x2588] sm:$0xff]
    %v1232 = vld [vmem:[%s1 + $0x2590] sm:$0xff]
    %v1233 = vld [vmem:[%s1 + $0x2598] sm:$0xff]
    %v1234 = vld [vmem:[%s1 + $0x25a0] sm:$0xff]
    %v1235 = vld [vmem:[%s1 + $0x25a8] sm:$0xff]
    %v1236 = vld [vmem:[%s1 + $0x25b0] sm:$0xff]
    %v1237 = vld [vmem:[%s1 + $0x25b8] sm:$0xff]
    %v1238 = vld [vmem:[%s1 + $0x25c0] sm:$0xff]
    %v1239 = vld [vmem:[%s1 + $0x25c8] sm:$0xff]
    %v1240 = vld [vmem:[%s1 + $0x25d0] sm:$0xff]
    %v1241 = vld [vmem:[%s1 + $0x25d8] sm:$0xff]
    %v1242 = vld [vmem:[%s1 + $0x25e0] sm:$0xff]
    %v1243 = vld [vmem:[%s1 + $0x25e8] sm:$0xff]
    %v1244 = vld [vmem:[%s1 + $0x25f0] sm:$0xff]
    %v1245 = vld [vmem:[%s1 + $0x25f8] sm:$0xff]
    %v1246 = vld [vmem:[%s1 + $0x2600] sm:$0xff]
    %v1247 = vld [vmem:[%s1 + $0x2608] sm:$0xff]
    %v1248 = vld [vmem:[%s1 + $0x2610] sm:$0xff]
    %v1249 = vld [vmem:[%s1 + $0x2618] sm:$0xff]
    %v1250 = vld [vmem:[%s1 + $0x2620] sm:$0xff]
    %v1251 = vld [vmem:[%s1 + $0x2628] sm:$0xff]
    %v1252 = vld [vmem:[%s1 + $0x2630] sm:$0xff]
    %v1253 = vld [vmem:[%s1 + $0x2638] sm:$0xff]
    %v1254 = vld [vmem:[%s1 + $0x2640] sm:$0xff]
    %v1255 = vld [vmem:[%s1 + $0x2648] sm:$0xff]
    %v1256 = vld [vmem:[%s1 + $0x2650] sm:$0xff]
    %v1257 = vld [vmem:[%s1 + $0x2658] sm:$0xff]
    %v1258 = vld [vmem:[%s1 + $0x2660] sm:$0xff]
    %v1259 = vld [vmem:[%s1 + $0x2668] sm:$0xff]
    %v1260 = vld [vmem:[%s1 + $0x2670] sm:$0xff]
    %v1261 = vld [vmem:[%s1 + $0x2678] sm:$0xff]
    %v1262 = vld [vmem:[%s1 + $0x2680] sm:$0xff]
    %v1263 = vld [vmem:[%s1 + $0x2688] sm:$0xff]
    %v1264 = vld [vmem:[%s1 + $0x2690] sm:$0xff]
    %v1265 = vld [vmem:[%s1 + $0x2698] sm:$0xff]
    %v1266 = vld [vmem:[%s1 + $0x26a0] sm:$0xff]
    %v1267 = vld [vmem:[%s1 + $0x26a8] sm:$0xff]
    %v1268 = vld [vmem:[%s1 + $0x26b0] sm:$0xff]
    %v1269 = vld [vmem:[%s1 + $0x26b8] sm:$0xff]
    %v1270 = vld [vmem:[%s1 + $0x26c0] sm:$0xff]
    %v1271 = vld [vmem:[%s1 + $0x26c8] sm:$0xff]
    %v1272 = vld [vmem:[%s1 + $0x26d0] sm:$0xff]
    %v1273 = vld [vmem:[%s1 + $0x26d8] sm:$0xff]
    %v1274 = vld [vmem:[%s1 + $0x26e0] sm:$0xff]
    %v1275 = vld [vmem:[%s1 + $0x26e8] sm:$0xff]
    %v1276 = vld [vmem:[%s1 + $0x26f0] sm:$0xff]
    %v1277 = vld [vmem:[%s1 + $0x26f8] sm:$0xff]
    %v1278 = vld [vmem:[%s1 + $0x2700] sm:$0xff]
    %v1279 = vld [vmem:[%s1 + $0x2708] sm:$0xff]
    %v1280 = vld [vmem:[%s1 + $0x2710] sm:$0xff]
    %v1281 = vld [vmem:[%s1 + $0x2718] sm:$0xff]
    %v1282 = vld [vmem:[%s1 + $0x2720] sm:$0xff]
    %v1283 = vld [vmem:[%s1 + $0x2728] sm:$0xff]
    %v1284 = vld [vmem:[%s1 + $0x2730] sm:$0xff]
    %v1285 = vld [vmem:[%s1 + $0x2738] sm:$0xff]
    %v1286 = vld [vmem:[%s1 + $0x2740] sm:$0xff]
    %v1287 = vld [vmem:[%s1 + $0x2748] sm:$0xff]
    %v1288 = vld [vmem:[%s1 + $0x2750] sm:$0xff]
    %v1289 = vld [vmem:[%s1 + $0x2758] sm:$0xff]
    %v1290 = vld [vmem:[%s1 + $0x2760] sm:$0xff]
    %v1291 = vld [vmem:[%s1 + $0x2768] sm:$0xff]
    %v1292 = vld [vmem:[%s1 + $0x2770] sm:$0xff]
    %v1293 = vld [vmem:[%s1 + $0x2778] sm:$0xff]
    %v1294 = vld [vmem:[%s1 + $0x2780] sm:$0xff]
    %v1295 = vld [vmem:[%s1 + $0x2788] sm:$0xff]
    %v1296 = vld [vmem:[%s1 + $0x2790] sm:$0xff]
    %v1297 = vld [vmem:[%s1 + $0x2798] sm:$0xff]
    %v1298 = vld [vmem:[%s1 + $0x27a0] sm:$0xff]
    %v1299 = vld [vmem:[%s1 + $0x27a8] sm:$0xff]
    %v1300 = vld [vmem:[%s1 + $0x27b0] sm:$0xff]
    %v1301 = vld [vmem:[%s1 + $0x27b8] sm:$0xff]
    %v1302 = vld [vmem:[%s1 + $0x27c0] sm:$0xff]
    %v1303 = vld [vmem:[%s1 + $0x27c8] sm:$0xff]
    %v1304 = vld [vmem:[%s1 + $0x27d0] sm:$0xff]
    %v1305 = vld [vmem:[%s1 + $0x27d8] sm:$0xff]
    %v1306 = vld [vmem:[%s1 + $0x27e0] sm:$0xff]
    %v1307 = vld [vmem:[%s1 + $0x27e8] sm:$0xff]
    %v1308 = vld [vmem:[%s1 + $0x27f0] sm:$0xff]
    %v1309 = vld [vmem:[%s1 + $0x27f8] sm:$0xff]
    %v1310 = vld [vmem:[%s1 + $0x2800] sm:$0xff]
    %v1311 = vld [vmem:[%s1 + $0x2808] sm:$0xff]
    %v1312 = vld [vmem:[%s1 + $0x2810] sm:$0xff]
    %v1313 = vld [vmem:[%s1 + $0x2818] sm:$0xff]
    %v1314 = vld [vmem:[%s1 + $0x2820] sm:$0xff]
    %v1315 = vld [vmem:[%s1 + $0x2828] sm:$0xff]
    %v1316 = vld [vmem:[%s1 + $0x2830] sm:$0xff]
    %v1317 = vld [vmem:[%s1 + $0x2838] sm:$0xff]
    %v1318 = vld [vmem:[%s1 + $0x2840] sm:$0xff]
    %v1319 = vld [vmem:[%s1 + $0x2848] sm:$0xff]
    %v1320 = vld [vmem:[%s1 + $0x2850] sm:$0xff]
    %v1321 = vld [vmem:[%s1 + $0x2858] sm:$0xff]
    %v1322 = vld [vmem:[%s1 + $0x2860] sm:$0xff]
    %v1323 = vld [vmem:[%s1 + $0x2868] sm:$0xff]
    %v1324 = vld [vmem:[%s1 + $0x2870] sm:$0xff]
    %v1325 = vld [vmem:[%s1 + $0x2878] sm:$0xff]
    %v1326 = vld [vmem:[%s1 + $0x2880] sm:$0xff]
    %v1327 = vld [vmem:[%s1 + $0x2888] sm:$0xff]
    %v1328 = vld [vmem:[%s1 + $0x2890] sm:$0xff]
    %v1329 = vld [vmem:[%s1 + $0x2898] sm:$0xff]
    %v1330 = vld [vmem:[%s1 + $0x28a0] sm:$0xff]
    %v1331 = vld [vmem:[%s1 + $0x28a8] sm:$0xff]
    %v1332 = vld [vmem:[%s1 + $0x28b0] sm:$0xff]
    %v1333 = vld [vmem:[%s1 + $0x28b8] sm:$0xff]
    %v1334 = vld [vmem:[%s1 + $0x28c0] sm:$0xff]
    %v1335 = vld [vmem:[%s1 + $0x28c8] sm:$0xff]
    %v1336 = vld [vmem:[%s1 + $0x28d0] sm:$0xff]
    %v1337 = vld [vmem:[%s1 + $0x28d8] sm:$0xff]
    %v1338 = vld [vmem:[%s1 + $0x28e0] sm:$0xff]
    %v1339 = vld [vmem:[%s1 + $0x28e8] sm:$0xff]
    %v1340 = vld [vmem:[%s1 + $0x28f0] sm:$0xff]
    %v1341 = vld [vmem:[%s1 + $0x28f8] sm:$0xff]
    %v1342 = vld [vmem:[%s1 + $0x2900] sm:$0xff]
    %v1343 = vld [vmem:[%s1 + $0x2908] sm:$0xff]
    %v1344 = vld [vmem:[%s1 + $0x2910] sm:$0xff]
    %v1345 = vld [vmem:[%s1 + $0x2918] sm:$0xff]
    %v1346 = vld [vmem:[%s1 + $0x2920] sm:$0xff]
    %v1347 = vld [vmem:[%s1 + $0x2928] sm:$0xff]
    %v1348 = vld [vmem:[%s1 + $0x2930] sm:$0xff]
    %v1349 = vld [vmem:[%s1 + $0x2938] sm:$0xff]
    %v1350 = vld [vmem:[%s1 + $0x2940] sm:$0xff]
    %v1351 = vld [vmem:[%s1 + $0x2948] sm:$0xff]
    %v1352 = vld [vmem:[%s1 + $0x2950] sm:$0xff]
    %v1353 = vld [vmem:[%s1 + $0x2958] sm:$0xff]
    %v1354 = vld [vmem:[%s1 + $0x2960] sm:$0xff]
    %v1355 = vld [vmem:[%s1 + $0x2968] sm:$0xff]
    %v1356 = vld [vmem:[%s1 + $0x2970] sm:$0xff]
    %v1357 = vld [vmem:[%s1 + $0x2978] sm:$0xff]
    %v1358 = vld [vmem:[%s1 + $0x2980] sm:$0xff]
    %v1359 = vld [vmem:[%s1 + $0x2988] sm:$0xff]
    %v1360 = vld [vmem:[%s1 + $0x2990] sm:$0xff]
    %v1361 = vld [vmem:[%s1 + $0x2998] sm:$0xff]
    %v1362 = vld [vmem:[%s1 + $0x29a0] sm:$0xff]
    %v1363 = vld [vmem:[%s1 + $0x29a8] sm:$0xff]
    %v1364 = vld [vmem:[%s1 + $0x29b0] sm:$0xff]
    %v1365 = vld [vmem:[%s1 + $0x29b8] sm:$0xff]
    %v1366 = vld [vmem:[%s1 + $0x29c0] sm:$0xff]
    %v1367 = vld [vmem:[%s1 + $0x29c8] sm:$0xff]
    %v1368 = vld [vmem:[%s1 + $0x29d0] sm:$0xff]
    %v1369 = vld [vmem:[%s1 + $0x29d8] sm:$0xff]
    %v1370 = vld [vmem:[%s1 + $0x29e0] sm:$0xff]
    %v1371 = vld [vmem:[%s1 + $0x29e8] sm:$0xff]
    %v1372 = vld [vmem:[%s1 + $0x29f0] sm:$0xff]
    %v1373 = vld [vmem:[%s1 + $0x29f8] sm:$0xff]
    %v1374 = vld [vmem:[%s1 + $0x2a00] sm:$0xff]
    %v1375 = vld [vmem:[%s1 + $0x2a08] sm:$0xff]
    %v1376 = vld [vmem:[%s1 + $0x2a10] sm:$0xff]
    %v1377 = vld [vmem:[%s1 + $0x2a18] sm:$0xff]
    %v1378 = vld [vmem:[%s1 + $0x2a20] sm:$0xff]
    %v1379 = vld [vmem:[%s1 + $0x2a28] sm:$0xff]
    %v1380 = vld [vmem:[%s1 + $0x2a30] sm:$0xff]
    %v1381 = vld [vmem:[%s1 + $0x2a38] sm:$0xff]
    %v1382 = vld [vmem:[%s1 + $0x2a40] sm:$0xff]
    %v1383 = vld [vmem:[%s1 + $0x2a48] sm:$0xff]
    %v1384 = vld [vmem:[%s1 + $0x2a50] sm:$0xff]
    %v1385 = vld [vmem:[%s1 + $0x2a58] sm:$0xff]
    %v1386 = vld [vmem:[%s1 + $0x2a60] sm:$0xff]
    %v1387 = vld [vmem:[%s1 + $0x2a68] sm:$0xff]
    %v1388 = vld [vmem:[%s1 + $0x2a70] sm:$0xff]
    %v1389 = vld [vmem:[%s1 + $0x2a78] sm:$0xff]
    %v1390 = vld [vmem:[%s1 + $0x2a80] sm:$0xff]
    %v1391 = vld [vmem:[%s1 + $0x2a88] sm:$0xff]
    %v1392 = vld [vmem:[%s1 + $0x2a90] sm:$0xff]
    %v1393 = vld [vmem:[%s1 + $0x2a98] sm:$0xff]
    %v1394 = vld [vmem:[%s1 + $0x2aa0] sm:$0xff]
    %v1395 = vld [vmem:[%s1 + $0x2aa8] sm:$0xff]
    %v1396 = vld [vmem:[%s1 + $0x2ab0] sm:$0xff]
    %v1397 = vld [vmem:[%s1 + $0x2ab8] sm:$0xff]
    %v1398 = vld [vmem:[%s1 + $0x2ac0] sm:$0xff]
    %v1399 = vld [vmem:[%s1 + $0x2ac8] sm:$0xff]
    %v1400 = vld [vmem:[%s1 + $0x2ad0] sm:$0xff]
    %v1401 = vld [vmem:[%s1 + $0x2ad8] sm:$0xff]
    %v1402 = vld [vmem:[%s1 + $0x2ae0] sm:$0xff]
    %v1403 = vld [vmem:[%s1 + $0x2ae8] sm:$0xff]
    %v1404 = vld [vmem:[%s1 + $0x2af0] sm:$0xff]
    %v1405 = vld [vmem:[%s1 + $0x2af8] sm:$0xff]
    %v1406 = vld [vmem:[%s1 + $0x2b00] sm:$0xff]
    %v1407 = vld [vmem:[%s1 + $0x2b08] sm:$0xff]
    %v1408 = vld [vmem:[%s1 + $0x2b10] sm:$0xff]
    %v1409 = vld [vmem:[%s1 + $0x2b18] sm:$0xff]
    %v1410 = vld [vmem:[%s1 + $0x2b20] sm:$0xff]
    %v1411 = vld [vmem:[%s1 + $0x2b28] sm:$0xff]
    %v1412 = vld [vmem:[%s1 + $0x2b30] sm:$0xff]
    %v1413 = vld [vmem:[%s1 + $0x2b38] sm:$0xff]
    %v1414 = vld [vmem:[%s1 + $0x2b40] sm:$0xff]
    %v1415 = vld [vmem:[%s1 + $0x2b48] sm:$0xff]
    %v1416 = vld [vmem:[%s1 + $0x2b50] sm:$0xff]
    %v1417 = vld [vmem:[%s1 + $0x2b58] sm:$0xff]
    %v1418 = vld [vmem:[%s1 + $0x2b60] sm:$0xff]
    %v1419 = vld [vmem:[%s1 + $0x2b68] sm:$0xff]
    %v1420 = vld [vmem:[%s1 + $0x2b70] sm:$0xff]
    %v1421 = vld [vmem:[%s1 + $0x2b78] sm:$0xff]
    %v1422 = vld [vmem:[%s1 + $0x2b80] sm:$0xff]
    %v1423 = vld [vmem:[%s1 + $0x2b88] sm:$0xff]
    %v1424 = vld [vmem:[%s1 + $0x2b90] sm:$0xff]
    %v1425 = vld [vmem:[%s1 + $0x2b98] sm:$0xff]
    %v1426 = vld [vmem:[%s1 + $0x2ba0] sm:$0xff]
    %v1427 = vld [vmem:[%s1 + $0x2ba8] sm:$0xff]
    %v1428 = vld [vmem:[%s1 + $0x2bb0] sm:$0xff]
    %v1429 = vld [vmem:[%s1 + $0x2bb8] sm:$0xff]
    %v1430 = vld [vmem:[%s1 + $0x2bc0] sm:$0xff]
    %v1431 = vld [vmem:[%s1 + $0x2bc8] sm:$0xff]
    %v1432 = vld [vmem:[%s1 + $0x2bd0] sm:$0xff]
    %v1433 = vld [vmem:[%s1 + $0x2bd8] sm:$0xff]
    %v1434 = vld [vmem:[%s1 + $0x2be0] sm:$0xff]
    %v1435 = vld [vmem:[%s1 + $0x2be8] sm:$0xff]
    %v1436 = vld [vmem:[%s1 + $0x2bf0] sm:$0xff]
    %v1437 = vld [vmem:[%s1 + $0x2bf8] sm:$0xff]
    %v1438 = vld [vmem:[%s1 + $0x2c00] sm:$0xff]
    %v1439 = vld [vmem:[%s1 + $0x2c08] sm:$0xff]
    %v1440 = vld [vmem:[%s1 + $0x2c10] sm:$0xff]
    %v1441 = vld [vmem:[%s1 + $0x2c18] sm:$0xff]
    %v1442 = vld [vmem:[%s1 + $0x2c20] sm:$0xff]
    %v1443 = vld [vmem:[%s1 + $0x2c28] sm:$0xff]
    %v1444 = vld [vmem:[%s1 + $0x2c30] sm:$0xff]
    %v1445 = vld [vmem:[%s1 + $0x2c38] sm:$0xff]
    %v1446 = vld [vmem:[%s1 + $0x2c40] sm:$0xff]
    %v1447 = vld [vmem:[%s1 + $0x2c48] sm:$0xff]
    %v1448 = vld [vmem:[%s1 + $0x2c50] sm:$0xff]
    %v1449 = vld [vmem:[%s1 + $0x2c58] sm:$0xff]
    %v1450 = vld [vmem:[%s1 + $0x2c60] sm:$0xff]
    %v1451 = vld [vmem:[%s1 + $0x2c68] sm:$0xff]
    %v1452 = vld [vmem:[%s1 + $0x2c70] sm:$0xff]
    %v1453 = vld [vmem:[%s1 + $0x2c78] sm:$0xff]
    %v1454 = vld [vmem:[%s1 + $0x2c80] sm:$0xff]
    %v1455 = vld [vmem:[%s1 + $0x2c88] sm:$0xff]
    %v1456 = vld [vmem:[%s1 + $0x2c90] sm:$0xff]
    %v1457 = vld [vmem:[%s1 + $0x2c98] sm:$0xff]
    %v1458 = vld [vmem:[%s1 + $0x2ca0] sm:$0xff]
    %v1459 = vld [vmem:[%s1 + $0x2ca8] sm:$0xff]
    %v1460 = vld [vmem:[%s1 + $0x2cb0] sm:$0xff]
    %v1461 = vld [vmem:[%s1 + $0x2cb8] sm:$0xff]
    %v1462 = vld [vmem:[%s1 + $0x2cc0] sm:$0xff]
    %v1463 = vld [vmem:[%s1 + $0x2cc8] sm:$0xff]
    %v1464 = vld [vmem:[%s1 + $0x2cd0] sm:$0xff]
    %v1465 = vld [vmem:[%s1 + $0x2cd8] sm:$0xff]
    %v1466 = vld [vmem:[%s1 + $0x2ce0] sm:$0xff]
    %v1467 = vld [vmem:[%s1 + $0x2ce8] sm:$0xff]
    %v1468 = vld [vmem:[%s1 + $0x2cf0] sm:$0xff]
    %v1469 = vld [vmem:[%s1 + $0x2cf8] sm:$0xff]
    %v1470 = vld [vmem:[%s1 + $0x2d00] sm:$0xff]
    %v1471 = vld [vmem:[%s1 + $0x2d08] sm:$0xff]
    %v1472 = vld [vmem:[%s1 + $0x2d10] sm:$0xff]
    %v1473 = vld [vmem:[%s1 + $0x2d18] sm:$0xff]
    %v1474 = vld [vmem:[%s1 + $0x2d20] sm:$0xff]
    %v1475 = vld [vmem:[%s1 + $0x2d28] sm:$0xff]
    %v1476 = vld [vmem:[%s1 + $0x2d30] sm:$0xff]
    %v1477 = vld [vmem:[%s1 + $0x2d38] sm:$0xff]
    %v1478 = vld [vmem:[%s1 + $0x2d40] sm:$0xff]
    %v1479 = vld [vmem:[%s1 + $0x2d48] sm:$0xff]
    %v1480 = vld [vmem:[%s1 + $0x2d50] sm:$0xff]
    %v1481 = vld [vmem:[%s1 + $0x2d58] sm:$0xff]
    %v1482 = vld [vmem:[%s1 + $0x2d60] sm:$0xff]
    %v1483 = vld [vmem:[%s1 + $0x2d68] sm:$0xff]
    %v1484 = vld [vmem:[%s1 + $0x2d70] sm:$0xff]
    %v1485 = vld [vmem:[%s1 + $0x2d78] sm:$0xff]
    %v1486 = vld [vmem:[%s1 + $0x2d80] sm:$0xff]
    %v1487 = vld [vmem:[%s1 + $0x2d88] sm:$0xff]
    %v1488 = vld [vmem:[%s1 + $0x2d90] sm:$0xff]
    %v1489 = vld [vmem:[%s1 + $0x2d98] sm:$0xff]
    %v1490 = vld [vmem:[%s1 + $0x2da0] sm:$0xff]
    %v1491 = vld [vmem:[%s1 + $0x2da8] sm:$0xff]
    %v1492 = vld [vmem:[%s1 + $0x2db0] sm:$0xff]
    %v1493 = vld [vmem:[%s1 + $0x2db8] sm:$0xff]
    %v1494 = vld [vmem:[%s1 + $0x2dc0] sm:$0xff]
    %v1495 = vld [vmem:[%s1 + $0x2dc8] sm:$0xff]
    %v1496 = vld [vmem:[%s1 + $0x2dd0] sm:$0xff]
    %v1497 = vld [vmem:[%s1 + $0x2dd8] sm:$0xff]
    %v1498 = vld [vmem:[%s1 + $0x2de0] sm:$0xff]
    %v1499 = vld [vmem:[%s1 + $0x2de8] sm:$0xff]
    %v1500 = vld [vmem:[%s1 + $0x2df0] sm:$0xff]
    %v1501 = vld [vmem:[%s1 + $0x2df8] sm:$0xff]
    %v1502 = vld [vmem:[%s1 + $0x2e00] sm:$0xff]
    %v1503 = vld [vmem:[%s1 + $0x2e08] sm:$0xff]
    %v1504 = vld [vmem:[%s1 + $0x2e10] sm:$0xff]
    %v1505 = vld [vmem:[%s1 + $0x2e18] sm:$0xff]
    %v1506 = vld [vmem:[%s1 + $0x2e20] sm:$0xff]
    %v1507 = vld [vmem:[%s1 + $0x2e28] sm:$0xff]
    %v1508 = vld [vmem:[%s1 + $0x2e30] sm:$0xff]
    %v1509 = vld [vmem:[%s1 + $0x2e38] sm:$0xff]
    %v1510 = vld [vmem:[%s1 + $0x2e40] sm:$0xff]
    %v1511 = vld [vmem:[%s1 + $0x2e48] sm:$0xff]
    %v1512 = vld [vmem:[%s1 + $0x2e50] sm:$0xff]
    %v1513 = vld [vmem:[%s1 + $0x2e58] sm:$0xff]
    %v1514 = vld [vmem:[%s1 + $0x2e60] sm:$0xff]
    %v1515 = vld [vmem:[%s1 + $0x2e68] sm:$0xff]
    %v1516 = vld [vmem:[%s1 + $0x2e70] sm:$0xff]
    %v1517 = vld [vmem:[%s1 + $0x2e78] sm:$0xff]
    %v1518 = vld [vmem:[%s1 + $0x2e80] sm:$0xff]
    %v1519 = vld [vmem:[%s1 + $0x2e88] sm:$0xff]
    %v1520 = vld [vmem:[%s1 + $0x2e90] sm:$0xff]
    %v1521 = vld [vmem:[%s1 + $0x2e98] sm:$0xff]
    %v1522 = vld [vmem:[%s1 + $0x2ea0] sm:$0xff]
    %v1523 = vld [vmem:[%s1 + $0x2ea8] sm:$0xff]
    %v1524 = vld [vmem:[%s1 + $0x2eb0] sm:$0xff]
    %v1525 = vld [vmem:[%s1 + $0x2eb8] sm:$0xff]
    %v1526 = vld [vmem:[%s1 + $0x2ec0] sm:$0xff]
    %v1527 = vld [vmem:[%s1 + $0x2ec8] sm:$0xff]
    %v1528 = vld [vmem:[%s1 + $0x2ed0] sm:$0xff]
    %v1529 = vld [vmem:[%s1 + $0x2ed8] sm:$0xff]
    %v1530 = vld [vmem:[%s1 + $0x2ee0] sm:$0xff]
    %v1531 = vld [vmem:[%s1 + $0x2ee8] sm:$0xff]
    %v1532 = vld [vmem:[%s1 + $0x2ef0] sm:$0xff]
    %v1533 = vld [vmem:[%s1 + $0x2ef8] sm:$0xff]
    %v1534 = vld [vmem:[%s1 + $0x2f00] sm:$0xff]
    %v1535 = vld [vmem:[%s1 + $0x2f08] sm:$0xff]
    %v1536 = vld [vmem:[%s1 + $0x2f10] sm:$0xff]
    %v1537 = vld [vmem:[%s1 + $0x2f18] sm:$0xff]
    %v1538 = vld [vmem:[%s1 + $0x2f20] sm:$0xff]
    %v1539 = vld [vmem:[%s1 + $0x2f28] sm:$0xff]
    %v1540 = vld [vmem:[%s1 + $0x2f30] sm:$0xff]
    %v1541 = vld [vmem:[%s1 + $0x2f38] sm:$0xff]
    %v1542 = vld [vmem:[%s1 + $0x2f40] sm:$0xff]
    %v1543 = vld [vmem:[%s1 + $0x2f48] sm:$0xff]
    %v1544 = vld [vmem:[%s1 + $0x2f50] sm:$0xff]
    %v1545 = vld [vmem:[%s1 + $0x2f58] sm:$0xff]
    %v1546 = vld [vmem:[%s1 + $0x2f60] sm:$0xff]
    %v1547 = vld [vmem:[%s1 + $0x2f68] sm:$0xff]
    %v1548 = vld [vmem:[%s1 + $0x2f70] sm:$0xff]
    %v1549 = vld [vmem:[%s1 + $0x2f78] sm:$0xff]
    %v1550 = vld [vmem:[%s1 + $0x2f80] sm:$0xff]
    %v1551 = vld [vmem:[%s1 + $0x2f88] sm:$0xff]
    %v1552 = vld [vmem:[%s1 + $0x2f90] sm:$0xff]
    %v1553 = vld [vmem:[%s1 + $0x2f98] sm:$0xff]
    %v1554 = vld [vmem:[%s1 + $0x2fa0] sm:$0xff]
    %v1555 = vld [vmem:[%s1 + $0x2fa8] sm:$0xff]
    %v1556 = vld [vmem:[%s1 + $0x2fb0] sm:$0xff]
    %v1557 = vld [vmem:[%s1 + $0x2fb8] sm:$0xff]
    %v1558 = vld [vmem:[%s1 + $0x2fc0] sm:$0xff]
    %v1559 = vld [vmem:[%s1 + $0x2fc8] sm:$0xff]
    %v1560 = vld [vmem:[%s1 + $0x2fd0] sm:$0xff]
    %v1561 = vld [vmem:[%s1 + $0x2fd8] sm:$0xff]
    %v1562 = vld [vmem:[%s1 + $0x2fe0] sm:$0xff]
    %v1563 = vld [vmem:[%s1 + $0x2fe8] sm:$0xff]
    %v1564 = vld [vmem:[%s1 + $0x2ff0] sm:$0xff]
    %v1565 = vld [vmem:[%s1 + $0x2ff8] sm:$0xff]
    %v1566 = vld [vmem:[%s1 + $0x3000] sm:$0xff]
    %v1567 = vld [vmem:[%s1 + $0x3008] sm:$0xff]
    %v1568 = vld [vmem:[%s1 + $0x3010] sm:$0xff]
    %v1569 = vld [vmem:[%s1 + $0x3018] sm:$0xff]
    %v1570 = vld [vmem:[%s1 + $0x3020] sm:$0xff]
    %v1571 = vld [vmem:[%s1 + $0x3028] sm:$0xff]
    %v1572 = vld [vmem:[%s1 + $0x3030] sm:$0xff]
    %v1573 = vld [vmem:[%s1 + $0x3038] sm:$0xff]
    %v1574 = vld [vmem:[%s1 + $0x3040] sm:$0xff]
    %v1575 = vld [vmem:[%s1 + $0x3048] sm:$0xff]
    %v1576 = vld [vmem:[%s1 + $0x3050] sm:$0xff]
    %v1577 = vld [vmem:[%s1 + $0x3058] sm:$0xff]
    %v1578 = vld [vmem:[%s1 + $0x3060] sm:$0xff]
    %v1579 = vld [vmem:[%s1 + $0x3068] sm:$0xff]
    %v1580 = vld [vmem:[%s1 + $0x3070] sm:$0xff]
    %v1581 = vld [vmem:[%s1 + $0x3078] sm:$0xff]
    %v1582 = vld [vmem:[%s1 + $0x3080] sm:$0xff]
    %v1583 = vld [vmem:[%s1 + $0x3088] sm:$0xff]
    %v1584 = vld [vmem:[%s1 + $0x3090] sm:$0xff]
    %v1585 = vld [vmem:[%s1 + $0x3098] sm:$0xff]
    %v1586 = vld [vmem:[%s1 + $0x30a0] sm:$0xff]
    %v1587 = vld [vmem:[%s1 + $0x30a8] sm:$0xff]
    %v1588 = vld [vmem:[%s1 + $0x30b0] sm:$0xff]
    %v1589 = vld [vmem:[%s1 + $0x30b8] sm:$0xff]
    %v1590 = vld [vmem:[%s1 + $0x30c0] sm:$0xff]
    %v1591 = vld [vmem:[%s1 + $0x30c8] sm:$0xff]
    %v1592 = vld [vmem:[%s1 + $0x30d0] sm:$0xff]
    %v1593 = vld [vmem:[%s1 + $0x30d8] sm:$0xff]
    %v1594 = vld [vmem:[%s1 + $0x30e0] sm:$0xff]
    %v1595 = vld [vmem:[%s1 + $0x30e8] sm:$0xff]
    %v1596 = vld [vmem:[%s1 + $0x30f0] sm:$0xff]
    %v1597 = vld [vmem:[%s1 + $0x30f8] sm:$0xff]
    %v1598 = vld [vmem:[%s2] sm:$0xf]
    %v1600 = vlaneseq
    %v1601 = vshrl.u32 %v1600, 7
    %v1602 = vsub.s32 0, %v1601
    %v1603 = vrot.slane %v1598, %v1602
    %v1604 = vlaneseq
    %v1605 = vshrl.u32 %v1604, 7
    %v1606 = vsub.s32 1, %v1605
    %v1607 = vrot.slane %v1598, %v1606
    %v1608 = vlaneseq
    %v1609 = vshrl.u32 %v1608, 7
    %v1610 = vsub.s32 2, %v1609
    %v1611 = vrot.slane %v1598, %v1610
    %v1612 = vlaneseq
    %v1613 = vshrl.u32 %v1612, 7
    %v1614 = vsub.s32 3, %v1613
    %v1615 = vrot.slane %v1598, %v1614
    %v1627 = vcombine.high %v23, %v23
    %v1629 = vunpack.c.l.s4 1983009808
    %v1630 = vunpack.c.0.s8 %v1629
    %v1631 = vlaneseq
    %v1632 = vshrl.u32 %v1631, 7
    %v1633 = vsub.s32 %v1630, %v1632
    %v1634 = vrot.slane %v23, %v1633
    %v1636 = vunpack.c.l.s4 1983009808
    %v1637 = vunpack.c.0.s8 %v1636
    %v1638 = vlaneseq
    %v1639 = vshrl.u32 %v1638, 7
    %v1640 = vsub.s32 %v1637, %v1639
    %v1641 = vrot.slane %v1627, %v1640
    %v1642 = vcombine.high %v1634, %v1634
    %v1643 = vcombine.high %v1641, %v1641
    %v1644 = vcombine.high %v24, %v24
    %v1646 = vunpack.c.l.s4 1983009808
    %v1647 = vunpack.c.0.s8 %v1646
    %v1648 = vlaneseq
    %v1649 = vshrl.u32 %v1648, 7
    %v1650 = vsub.s32 %v1647, %v1649
    %v1651 = vrot.slane %v24, %v1650
    %v1653 = vunpack.c.l.s4 1983009808
    %v1654 = vunpack.c.0.s8 %v1653
    %v1655 = vlaneseq
    %v1656 = vshrl.u32 %v1655, 7
    %v1657 = vsub.s32 %v1654, %v1656
    %v1658 = vrot.slane %v1644, %v1657
    %v1659 = vcombine.high %v1651, %v1651
    %v1660 = vcombine.high %v1658, %v1658
    %v1661 = vcombine.high %v25, %v25
    %v1663 = vunpack.c.l.s4 1983009808
    %v1664 = vunpack.c.0.s8 %v1663
    %v1665 = vlaneseq
    %v1666 = vshrl.u32 %v1665, 7
    %v1667 = vsub.s32 %v1664, %v1666
    %v1668 = vrot.slane %v25, %v1667
    %v1670 = vunpack.c.l.s4 1983009808
    %v1671 = vunpack.c.0.s8 %v1670
    %v1672 = vlaneseq
    %v1673 = vshrl.u32 %v1672, 7
    %v1674 = vsub.s32 %v1671, %v1673
    %v1675 = vrot.slane %v1661, %v1674
    %v1676 = vcombine.high %v1668, %v1668
    %v1677 = vcombine.high %v1675, %v1675
    %v1678 = vcombine.high %v26, %v26
    %v1680 = vunpack.c.l.s4 1983009808
    %v1681 = vunpack.c.0.s8 %v1680
    %v1682 = vlaneseq
    %v1683 = vshrl.u32 %v1682, 7
    %v1684 = vsub.s32 %v1681, %v1683
    %v1685 = vrot.slane %v26, %v1684
    %v1687 = vunpack.c.l.s4 1983009808
    %v1688 = vunpack.c.0.s8 %v1687
    %v1689 = vlaneseq
    %v1690 = vshrl.u32 %v1689, 7
    %v1691 = vsub.s32 %v1688, %v1690
    %v1692 = vrot.slane %v1678, %v1691
    %v1693 = vcombine.high %v1685, %v1685
    %v1694 = vcombine.high %v1692, %v1692
    %v1695 = vcombine.high %v27, %v27
    %v1697 = vunpack.c.l.s4 1983009808
    %v1698 = vunpack.c.0.s8 %v1697
    %v1699 = vlaneseq
    %v1700 = vshrl.u32 %v1699, 7
    %v1701 = vsub.s32 %v1698, %v1700
    %v1702 = vrot.slane %v27, %v1701
    %v1704 = vunpack.c.l.s4 1983009808
    %v1705 = vunpack.c.0.s8 %v1704
    %v1706 = vlaneseq
    %v1707 = vshrl.u32 %v1706, 7
    %v1708 = vsub.s32 %v1705, %v1707
    %v1709 = vrot.slane %v1695, %v1708
    %v1710 = vcombine.high %v1702, %v1702
    %v1711 = vcombine.high %v1709, %v1709
    %v1712 = vcombine.high %v28, %v28
    %v1714 = vunpack.c.l.s4 1983009808
    %v1715 = vunpack.c.0.s8 %v1714
    %v1716 = vlaneseq
    %v1717 = vshrl.u32 %v1716, 7
    %v1718 = vsub.s32 %v1715, %v1717
    %v1719 = vrot.slane %v28, %v1718
    %v1721 = vunpack.c.l.s4 1983009808
    %v1722 = vunpack.c.0.s8 %v1721
    %v1723 = vlaneseq
    %v1724 = vshrl.u32 %v1723, 7
    %v1725 = vsub.s32 %v1722, %v1724
    %v1726 = vrot.slane %v1712, %v1725
    %v1727 = vcombine.high %v1719, %v1719
    %v1728 = vcombine.high %v1726, %v1726
    %v1730 = vunpack.c.l.s4 1983009808
    %v1731 = vunpack.c.0.s8 %v1730
    %v1732 = vlaneseq
    %v1733 = vshrl.u32 %v1732, 7
    %v1734 = vsub.s32 %v1731, %v1733
    %v1735 = vrot.slane %v29, %v1734
    %vm1760 = vcmask 523264
    %v1761 = vsel %vm1760, %v1735, 0
    %1763 = vmatprep.subr.mxu0 %v91
    %1764 = vmatpush1.msra.mxu0 %v90
    %1765 = vmatprep.subr.mxu0 %v87
    %1766 = vmatpush1.msra.mxu0 %v86
    %1767 = vmatprep.subr.mxu0 %v83
    %1768 = vmatpush1.msra.mxu0 %v82
    %1769 = vmatprep.subr.mxu0 %v79
    %1770 = vmatpush1.msra.mxu0 %v78
    %1771 = vmatprep.subr.mxu0 %v75
    %1772 = vmatpush1.msra.mxu0 %v74
    %1773 = vmatprep.subr.mxu0 %v71
    %1774 = vmatpush1.msra.mxu0 %v70
    %1775 = vmatprep.subr.mxu0 %v67
    %1776 = vmatpush1.msra.mxu0 %v66
    %1777 = vmatprep.subr.mxu0 %v63
    %1778 = vmatpush1.msra.mxu0 %v62
    %1779 = vmatprep.subr.mxu0 %v59
    %1780 = vmatpush1.msra.mxu0 %v58
    %1781 = vmatprep.subr.mxu0 %v55
    %1782 = vmatpush1.msra.mxu0 %v54
    %1783 = vmatprep.subr.mxu0 %v51
    %1784 = vmatpush1.msra.mxu0 %v50
    %1785 = vmatprep.subr.mxu0 %v47
    %1786 = vmatpush1.msra.mxu0 %v46
    %1787 = vmatprep.subr.mxu0 %v43
    %1788 = vmatpush1.msra.mxu0 %v42
    %1789 = vmatprep.subr.mxu0 %v39
    %1790 = vmatpush1.msra.mxu0 %v38
    %1791 = vmatprep.subr.mxu0 %v35
    %1792 = vmatpush1.msra.mxu0 %v34
    %1793 = vmatprep.subr.mxu0 %v31
    %1794 = vmatpush1.msra.mxu0 %v30
    %1795 = vmatprep.subr.mxu0 %v155
    %1796 = vmatpush2.msra.mxu0 %v154
    %1797 = vmatprep.subr.mxu0 %v151
    %1798 = vmatpush2.msra.mxu0 %v150
    %1799 = vmatprep.subr.mxu0 %v147
    %1800 = vmatpush2.msra.mxu0 %v146
    %1801 = vmatprep.subr.mxu0 %v143
    %1802 = vmatpush2.msra.mxu0 %v142
    %1803 = vmatprep.subr.mxu0 %v139
    %1804 = vmatpush2.msra.mxu0 %v138
    %1805 = vmatprep.subr.mxu0 %v135
    %1806 = vmatpush2.msra.mxu0 %v134
    %1807 = vmatprep.subr.mxu0 %v131
    %1808 = vmatpush2.msra.mxu0 %v130
    %1809 = vmatprep.subr.mxu0 %v127
    %1810 = vmatpush2.msra.mxu0 %v126
    %1811 = vmatprep.subr.mxu0 %v123
    %1812 = vmatpush2.msra.mxu0 %v122
    %1813 = vmatprep.subr.mxu0 %v119
    %1814 = vmatpush2.msra.mxu0 %v118
    %1815 = vmatprep.subr.mxu0 %v115
    %1816 = vmatpush2.msra.mxu0 %v114
    %1817 = vmatprep.subr.mxu0 %v111
    %1818 = vmatpush2.msra.mxu0 %v110
    %1819 = vmatprep.subr.mxu0 %v107
    %1820 = vmatpush2.msra.mxu0 %v106
    %1821 = vmatprep.subr.mxu0 %v103
    %1822 = vmatpush2.msra.mxu0 %v102
    %1823 = vmatprep.subr.mxu0 %v99
    %1824 = vmatpush2.msra.mxu0 %v98
    %1825 = vmatprep.subr.mxu0 %v95
    %1826 = vmatpush2.msra.mxu0 %v94
    %1827 = vmatprep.mubr.f32.mxu0 %v1642
    %1828 = vmatmul.mubr.f32.gmra.mxu0 %v1634
    %v1829 = vpop.f32.mrf.mxu0
    %v1830 = vadd.f32 %v1603, %v1829
    %v1831 = vpop.f32.mrf.mxu0
    %v1832 = vadd.f32 %v1607, %v1831
    %1833 = vdwg.mxu0
    %1834 = vmatprep.subr.mxu0 %v219
    %1835 = vmatpush1.msra.mxu0 %v218
    %1836 = vmatprep.subr.mxu0 %v215
    %1837 = vmatpush1.msra.mxu0 %v214
    %1838 = vmatprep.subr.mxu0 %v211
    %1839 = vmatpush1.msra.mxu0 %v210
    %1840 = vmatprep.subr.mxu0 %v207
    %1841 = vmatpush1.msra.mxu0 %v206
    %1842 = vmatprep.subr.mxu0 %v203
    %1843 = vmatpush1.msra.mxu0 %v202
    %1844 = vmatprep.subr.mxu0 %v199
    %1845 = vmatpush1.msra.mxu0 %v198
    %1846 = vmatprep.subr.mxu0 %v195
    %1847 = vmatpush1.msra.mxu0 %v194
    %1848 = vmatprep.subr.mxu0 %v191
    %1849 = vmatpush1.msra.mxu0 %v190
    %1850 = vmatprep.subr.mxu0 %v187
    %1851 = vmatpush1.msra.mxu0 %v186
    %1852 = vmatprep.subr.mxu0 %v183
    %1853 = vmatpush1.msra.mxu0 %v182
    %1854 = vmatprep.subr.mxu0 %v179
    %1855 = vmatpush1.msra.mxu0 %v178
    %1856 = vmatprep.subr.mxu0 %v175
    %1857 = vmatpush1.msra.mxu0 %v174
    %1858 = vmatprep.subr.mxu0 %v171
    %1859 = vmatpush1.msra.mxu0 %v170
    %1860 = vmatprep.subr.mxu0 %v167
    %1861 = vmatpush1.msra.mxu0 %v166
    %1862 = vmatprep.subr.mxu0 %v163
    %1863 = vmatpush1.msra.mxu0 %v162
    %1864 = vmatprep.subr.mxu0 %v159
    %1865 = vmatpush1.msra.mxu0 %v158
    %1866 = vmatprep.subr.mxu0 %v283
    %1867 = vmatpush2.msra.mxu0 %v282
    %1868 = vmatprep.subr.mxu0 %v279
    %1869 = vmatpush2.msra.mxu0 %v278
    %1870 = vmatprep.subr.mxu0 %v275
    %1871 = vmatpush2.msra.mxu0 %v274
    %1872 = vmatprep.subr.mxu0 %v271
    %1873 = vmatpush2.msra.mxu0 %v270
    %1874 = vmatprep.subr.mxu0 %v267
    %1875 = vmatpush2.msra.mxu0 %v266
    %1876 = vmatprep.subr.mxu0 %v263
    %1877 = vmatpush2.msra.mxu0 %v262
    %1878 = vmatprep.subr.mxu0 %v259
    %1879 = vmatpush2.msra.mxu0 %v258
    %1880 = vmatprep.subr.mxu0 %v255
    %1881 = vmatpush2.msra.mxu0 %v254
    %1882 = vmatprep.subr.mxu0 %v251
    %1883 = vmatpush2.msra.mxu0 %v250
    %1884 = vmatprep.subr.mxu0 %v247
    %1885 = vmatpush2.msra.mxu0 %v246
    %1886 = vmatprep.subr.mxu0 %v243
    %1887 = vmatpush2.msra.mxu0 %v242
    %1888 = vmatprep.subr.mxu0 %v239
    %1889 = vmatpush2.msra.mxu0 %v238
    %1890 = vmatprep.subr.mxu0 %v235
    %1891 = vmatpush2.msra.mxu0 %v234
    %1892 = vmatprep.subr.mxu0 %v231
    %1893 = vmatpush2.msra.mxu0 %v230
    %1894 = vmatprep.subr.mxu0 %v227
    %1895 = vmatpush2.msra.mxu0 %v226
    %1896 = vmatprep.subr.mxu0 %v223
    %1897 = vmatpush2.msra.mxu0 %v222
    %1898 = vmatprep.mubr.f32.mxu0 %v1643
    %1899 = vmatmul.mubr.f32.gmra.mxu0 %v1641
    %v1900 = vpop.f32.mrf.mxu0
    %v1901 = vadd.f32 %v1830, %v1900
    %v1902 = vpop.f32.mrf.mxu0
    %v1903 = vadd.f32 %v1832, %v1902
    %1904 = vdwg.mxu0
    %1905 = vmatprep.subr.mxu0 %v347
    %1906 = vmatpush1.msra.mxu0 %v346
    %1907 = vmatprep.subr.mxu0 %v343
    %1908 = vmatpush1.msra.mxu0 %v342
    %1909 = vmatprep.subr.mxu0 %v339
    %1910 = vmatpush1.msra.mxu0 %v338
    %1911 = vmatprep.subr.mxu0 %v335
    %1912 = vmatpush1.msra.mxu0 %v334
    %1913 = vmatprep.subr.mxu0 %v331
    %1914 = vmatpush1.msra.mxu0 %v330
    %1915 = vmatprep.subr.mxu0 %v327
    %1916 = vmatpush1.msra.mxu0 %v326
    %1917 = vmatprep.subr.mxu0 %v323
    %1918 = vmatpush1.msra.mxu0 %v322
    %1919 = vmatprep.subr.mxu0 %v319
    %1920 = vmatpush1.msra.mxu0 %v318
    %1921 = vmatprep.subr.mxu0 %v315
    %1922 = vmatpush1.msra.mxu0 %v314
    %1923 = vmatprep.subr.mxu0 %v311
    %1924 = vmatpush1.msra.mxu0 %v310
    %1925 = vmatprep.subr.mxu0 %v307
    %1926 = vmatpush1.msra.mxu0 %v306
    %1927 = vmatprep.subr.mxu0 %v303
    %1928 = vmatpush1.msra.mxu0 %v302
    %1929 = vmatprep.subr.mxu0 %v299
    %1930 = vmatpush1.msra.mxu0 %v298
    %1931 = vmatprep.subr.mxu0 %v295
    %1932 = vmatpush1.msra.mxu0 %v294
    %1933 = vmatprep.subr.mxu0 %v291
    %1934 = vmatpush1.msra.mxu0 %v290
    %1935 = vmatprep.subr.mxu0 %v287
    %1936 = vmatpush1.msra.mxu0 %v286
    %1937 = vmatprep.subr.mxu0 %v411
    %1938 = vmatpush2.msra.mxu0 %v410
    %1939 = vmatprep.subr.mxu0 %v407
    %1940 = vmatpush2.msra.mxu0 %v406
    %1941 = vmatprep.subr.mxu0 %v403
    %1942 = vmatpush2.msra.mxu0 %v402
    %1943 = vmatprep.subr.mxu0 %v399
    %1944 = vmatpush2.msra.mxu0 %v398
    %1945 = vmatprep.subr.mxu0 %v395
    %1946 = vmatpush2.msra.mxu0 %v394
    %1947 = vmatprep.subr.mxu0 %v391
    %1948 = vmatpush2.msra.mxu0 %v390
    %1949 = vmatprep.subr.mxu0 %v387
    %1950 = vmatpush2.msra.mxu0 %v386
    %1951 = vmatprep.subr.mxu0 %v383
    %1952 = vmatpush2.msra.mxu0 %v382
    %1953 = vmatprep.subr.mxu0 %v379
    %1954 = vmatpush2.msra.mxu0 %v378
    %1955 = vmatprep.subr.mxu0 %v375
    %1956 = vmatpush2.msra.mxu0 %v374
    %1957 = vmatprep.subr.mxu0 %v371
    %1958 = vmatpush2.msra.mxu0 %v370
    %1959 = vmatprep.subr.mxu0 %v367
    %1960 = vmatpush2.msra.mxu0 %v366
    %1961 = vmatprep.subr.mxu0 %v363
    %1962 = vmatpush2.msra.mxu0 %v362
    %1963 = vmatprep.subr.mxu0 %v359
    %1964 = vmatpush2.msra.mxu0 %v358
    %1965 = vmatprep.subr.mxu0 %v355
    %1966 = vmatpush2.msra.mxu0 %v354
    %1967 = vmatprep.subr.mxu0 %v351
    %1968 = vmatpush2.msra.mxu0 %v350
    %1969 = vmatprep.mubr.f32.mxu0 %v1659
    %1970 = vmatmul.mubr.f32.gmra.mxu0 %v1651
    %v1971 = vpop.f32.mrf.mxu0
    %v1972 = vadd.f32 %v1901, %v1971
    %v1973 = vpop.f32.mrf.mxu0
    %v1974 = vadd.f32 %v1903, %v1973
    %1975 = vdwg.mxu0
    %1976 = vmatprep.subr.mxu0 %v475
    %1977 = vmatpush1.msra.mxu0 %v474
    %1978 = vmatprep.subr.mxu0 %v471
    %1979 = vmatpush1.msra.mxu0 %v470
    %1980 = vmatprep.subr.mxu0 %v467
    %1981 = vmatpush1.msra.mxu0 %v466
    %1982 = vmatprep.subr.mxu0 %v463
    %1983 = vmatpush1.msra.mxu0 %v462
    %1984 = vmatprep.subr.mxu0 %v459
    %1985 = vmatpush1.msra.mxu0 %v458
    %1986 = vmatprep.subr.mxu0 %v455
    %1987 = vmatpush1.msra.mxu0 %v454
    %1988 = vmatprep.subr.mxu0 %v451
    %1989 = vmatpush1.msra.mxu0 %v450
    %1990 = vmatprep.subr.mxu0 %v447
    %1991 = vmatpush1.msra.mxu0 %v446
    %1992 = vmatprep.subr.mxu0 %v443
    %1993 = vmatpush1.msra.mxu0 %v442
    %1994 = vmatprep.subr.mxu0 %v439
    %1995 = vmatpush1.msra.mxu0 %v438
    %1996 = vmatprep.subr.mxu0 %v435
    %1997 = vmatpush1.msra.mxu0 %v434
    %1998 = vmatprep.subr.mxu0 %v431
    %1999 = vmatpush1.msra.mxu0 %v430
    %2000 = vmatprep.subr.mxu0 %v427
    %2001 = vmatpush1.msra.mxu0 %v426
    %2002 = vmatprep.subr.mxu0 %v423
    %2003 = vmatpush1.msra.mxu0 %v422
    %2004 = vmatprep.subr.mxu0 %v419
    %2005 = vmatpush1.msra.mxu0 %v418
    %2006 = vmatprep.subr.mxu0 %v415
    %2007 = vmatpush1.msra.mxu0 %v414
    %2008 = vmatprep.subr.mxu0 %v539
    %2009 = vmatpush2.msra.mxu0 %v538
    %2010 = vmatprep.subr.mxu0 %v535
    %2011 = vmatpush2.msra.mxu0 %v534
    %2012 = vmatprep.subr.mxu0 %v531
    %2013 = vmatpush2.msra.mxu0 %v530
    %2014 = vmatprep.subr.mxu0 %v527
    %2015 = vmatpush2.msra.mxu0 %v526
    %2016 = vmatprep.subr.mxu0 %v523
    %2017 = vmatpush2.msra.mxu0 %v522
    %2018 = vmatprep.subr.mxu0 %v519
    %2019 = vmatpush2.msra.mxu0 %v518
    %2020 = vmatprep.subr.mxu0 %v515
    %2021 = vmatpush2.msra.mxu0 %v514
    %2022 = vmatprep.subr.mxu0 %v511
    %2023 = vmatpush2.msra.mxu0 %v510
    %2024 = vmatprep.subr.mxu0 %v507
    %2025 = vmatpush2.msra.mxu0 %v506
    %2026 = vmatprep.subr.mxu0 %v503
    %2027 = vmatpush2.msra.mxu0 %v502
    %2028 = vmatprep.subr.mxu0 %v499
    %2029 = vmatpush2.msra.mxu0 %v498
    %2030 = vmatprep.subr.mxu0 %v495
    %2031 = vmatpush2.msra.mxu0 %v494
    %2032 = vmatprep.subr.mxu0 %v491
    %2033 = vmatpush2.msra.mxu0 %v490
    %2034 = vmatprep.subr.mxu0 %v487
    %2035 = vmatpush2.msra.mxu0 %v486
    %2036 = vmatprep.subr.mxu0 %v483
    %2037 = vmatpush2.msra.mxu0 %v482
    %2038 = vmatprep.subr.mxu0 %v479
    %2039 = vmatpush2.msra.mxu0 %v478
    %2040 = vmatprep.mubr.f32.mxu0 %v1660
    %2041 = vmatmul.mubr.f32.gmra.mxu0 %v1658
    %v2042 = vpop.f32.mrf.mxu0
    %v2043 = vadd.f32 %v1972, %v2042
    %v2044 = vpop.f32.mrf.mxu0
    %v2045 = vadd.f32 %v1974, %v2044
    %2046 = vdwg.mxu0
    %2047 = vmatprep.subr.mxu0 %v603
    %2048 = vmatpush1.msra.mxu0 %v602
    %2049 = vmatprep.subr.mxu0 %v599
    %2050 = vmatpush1.msra.mxu0 %v598
    %2051 = vmatprep.subr.mxu0 %v595
    %2052 = vmatpush1.msra.mxu0 %v594
    %2053 = vmatprep.subr.mxu0 %v591
    %2054 = vmatpush1.msra.mxu0 %v590
    %2055 = vmatprep.subr.mxu0 %v587
    %2056 = vmatpush1.msra.mxu0 %v586
    %2057 = vmatprep.subr.mxu0 %v583
    %2058 = vmatpush1.msra.mxu0 %v582
    %2059 = vmatprep.subr.mxu0 %v579
    %2060 = vmatpush1.msra.mxu0 %v578
    %2061 = vmatprep.subr.mxu0 %v575
    %2062 = vmatpush1.msra.mxu0 %v574
    %2063 = vmatprep.subr.mxu0 %v571
    %2064 = vmatpush1.msra.mxu0 %v570
    %2065 = vmatprep.subr.mxu0 %v567
    %2066 = vmatpush1.msra.mxu0 %v566
    %2067 = vmatprep.subr.mxu0 %v563
    %2068 = vmatpush1.msra.mxu0 %v562
    %2069 = vmatprep.subr.mxu0 %v559
    %2070 = vmatpush1.msra.mxu0 %v558
    %2071 = vmatprep.subr.mxu0 %v555
    %2072 = vmatpush1.msra.mxu0 %v554
    %2073 = vmatprep.subr.mxu0 %v551
    %2074 = vmatpush1.msra.mxu0 %v550
    %2075 = vmatprep.subr.mxu0 %v547
    %2076 = vmatpush1.msra.mxu0 %v546
    %2077 = vmatprep.subr.mxu0 %v543
    %2078 = vmatpush1.msra.mxu0 %v542
    %2079 = vmatprep.subr.mxu0 %v667
    %2080 = vmatpush2.msra.mxu0 %v666
    %2081 = vmatprep.subr.mxu0 %v663
    %2082 = vmatpush2.msra.mxu0 %v662
    %2083 = vmatprep.subr.mxu0 %v659
    %2084 = vmatpush2.msra.mxu0 %v658
    %2085 = vmatprep.subr.mxu0 %v655
    %2086 = vmatpush2.msra.mxu0 %v654
    %2087 = vmatprep.subr.mxu0 %v651
    %2088 = vmatpush2.msra.mxu0 %v650
    %2089 = vmatprep.subr.mxu0 %v647
    %2090 = vmatpush2.msra.mxu0 %v646
    %2091 = vmatprep.subr.mxu0 %v643
    %2092 = vmatpush2.msra.mxu0 %v642
    %2093 = vmatprep.subr.mxu0 %v639
    %2094 = vmatpush2.msra.mxu0 %v638
    %2095 = vmatprep.subr.mxu0 %v635
    %2096 = vmatpush2.msra.mxu0 %v634
    %2097 = vmatprep.subr.mxu0 %v631
    %2098 = vmatpush2.msra.mxu0 %v630
    %2099 = vmatprep.subr.mxu0 %v627
    %2100 = vmatpush2.msra.mxu0 %v626
    %2101 = vmatprep.subr.mxu0 %v623
    %2102 = vmatpush2.msra.mxu0 %v622
    %2103 = vmatprep.subr.mxu0 %v619
    %2104 = vmatpush2.msra.mxu0 %v618
    %2105 = vmatprep.subr.mxu0 %v615
    %2106 = vmatpush2.msra.mxu0 %v614
    %2107 = vmatprep.subr.mxu0 %v611
    %2108 = vmatpush2.msra.mxu0 %v610
    %2109 = vmatprep.subr.mxu0 %v607
    %2110 = vmatpush2.msra.mxu0 %v606
    %2111 = vmatprep.mubr.f32.mxu0 %v1676
    %2112 = vmatmul.mubr.f32.gmra.mxu0 %v1668
    %v2113 = vpop.f32.mrf.mxu0
    %v2114 = vadd.f32 %v2043, %v2113
    %v2115 = vpop.f32.mrf.mxu0
    %v2116 = vadd.f32 %v2045, %v2115
    %2117 = vdwg.mxu0
    %2118 = vmatprep.subr.mxu0 %v731
    %2119 = vmatpush1.msra.mxu0 %v730
    %2120 = vmatprep.subr.mxu0 %v727
    %2121 = vmatpush1.msra.mxu0 %v726
    %2122 = vmatprep.subr.mxu0 %v723
    %2123 = vmatpush1.msra.mxu0 %v722
    %2124 = vmatprep.subr.mxu0 %v719
    %2125 = vmatpush1.msra.mxu0 %v718
    %2126 = vmatprep.subr.mxu0 %v715
    %2127 = vmatpush1.msra.mxu0 %v714
    %2128 = vmatprep.subr.mxu0 %v711
    %2129 = vmatpush1.msra.mxu0 %v710
    %2130 = vmatprep.subr.mxu0 %v707
    %2131 = vmatpush1.msra.mxu0 %v706
    %2132 = vmatprep.subr.mxu0 %v703
    %2133 = vmatpush1.msra.mxu0 %v702
    %2134 = vmatprep.subr.mxu0 %v699
    %2135 = vmatpush1.msra.mxu0 %v698
    %2136 = vmatprep.subr.mxu0 %v695
    %2137 = vmatpush1.msra.mxu0 %v694
    %2138 = vmatprep.subr.mxu0 %v691
    %2139 = vmatpush1.msra.mxu0 %v690
    %2140 = vmatprep.subr.mxu0 %v687
    %2141 = vmatpush1.msra.mxu0 %v686
    %2142 = vmatprep.subr.mxu0 %v683
    %2143 = vmatpush1.msra.mxu0 %v682
    %2144 = vmatprep.subr.mxu0 %v679
    %2145 = vmatpush1.msra.mxu0 %v678
    %2146 = vmatprep.subr.mxu0 %v675
    %2147 = vmatpush1.msra.mxu0 %v674
    %2148 = vmatprep.subr.mxu0 %v671
    %2149 = vmatpush1.msra.mxu0 %v670
    %2150 = vmatprep.subr.mxu0 %v795
    %2151 = vmatpush2.msra.mxu0 %v794
    %2152 = vmatprep.subr.mxu0 %v791
    %2153 = vmatpush2.msra.mxu0 %v790
    %2154 = vmatprep.subr.mxu0 %v787
    %2155 = vmatpush2.msra.mxu0 %v786
    %2156 = vmatprep.subr.mxu0 %v783
    %2157 = vmatpush2.msra.mxu0 %v782
    %2158 = vmatprep.subr.mxu0 %v779
    %2159 = vmatpush2.msra.mxu0 %v778
    %2160 = vmatprep.subr.mxu0 %v775
    %2161 = vmatpush2.msra.mxu0 %v774
    %2162 = vmatprep.subr.mxu0 %v771
    %2163 = vmatpush2.msra.mxu0 %v770
    %2164 = vmatprep.subr.mxu0 %v767
    %2165 = vmatpush2.msra.mxu0 %v766
    %2166 = vmatprep.subr.mxu0 %v763
    %2167 = vmatpush2.msra.mxu0 %v762
    %2168 = vmatprep.subr.mxu0 %v759
    %2169 = vmatpush2.msra.mxu0 %v758
    %2170 = vmatprep.subr.mxu0 %v755
    %2171 = vmatpush2.msra.mxu0 %v754
    %2172 = vmatprep.subr.mxu0 %v751
    %2173 = vmatpush2.msra.mxu0 %v750
    %2174 = vmatprep.subr.mxu0 %v747
    %2175 = vmatpush2.msra.mxu0 %v746
    %2176 = vmatprep.subr.mxu0 %v743
    %2177 = vmatpush2.msra.mxu0 %v742
    %2178 = vmatprep.subr.mxu0 %v739
    %2179 = vmatpush2.msra.mxu0 %v738
    %2180 = vmatprep.subr.mxu0 %v735
    %2181 = vmatpush2.msra.mxu0 %v734
    %2182 = vmatprep.mubr.f32.mxu0 %v1677
    %2183 = vmatmul.mubr.f32.gmra.mxu0 %v1675
    %v2184 = vpop.f32.mrf.mxu0
    %v2185 = vadd.f32 %v2114, %v2184
    %v2186 = vpop.f32.mrf.mxu0
    %v2187 = vadd.f32 %v2116, %v2186
    %2188 = vdwg.mxu0
    %2189 = vmatprep.subr.mxu0 %v859
    %2190 = vmatpush1.msra.mxu0 %v858
    %2191 = vmatprep.subr.mxu0 %v855
    %2192 = vmatpush1.msra.mxu0 %v854
    %2193 = vmatprep.subr.mxu0 %v851
    %2194 = vmatpush1.msra.mxu0 %v850
    %2195 = vmatprep.subr.mxu0 %v847
    %2196 = vmatpush1.msra.mxu0 %v846
    %2197 = vmatprep.subr.mxu0 %v843
    %2198 = vmatpush1.msra.mxu0 %v842
    %2199 = vmatprep.subr.mxu0 %v839
    %2200 = vmatpush1.msra.mxu0 %v838
    %2201 = vmatprep.subr.mxu0 %v835
    %2202 = vmatpush1.msra.mxu0 %v834
    %2203 = vmatprep.subr.mxu0 %v831
    %2204 = vmatpush1.msra.mxu0 %v830
    %2205 = vmatprep.subr.mxu0 %v827
    %2206 = vmatpush1.msra.mxu0 %v826
    %2207 = vmatprep.subr.mxu0 %v823
    %2208 = vmatpush1.msra.mxu0 %v822
    %2209 = vmatprep.subr.mxu0 %v819
    %2210 = vmatpush1.msra.mxu0 %v818
    %2211 = vmatprep.subr.mxu0 %v815
    %2212 = vmatpush1.msra.mxu0 %v814
    %2213 = vmatprep.subr.mxu0 %v811
    %2214 = vmatpush1.msra.mxu0 %v810
    %2215 = vmatprep.subr.mxu0 %v807
    %2216 = vmatpush1.msra.mxu0 %v806
    %2217 = vmatprep.subr.mxu0 %v803
    %2218 = vmatpush1.msra.mxu0 %v802
    %2219 = vmatprep.subr.mxu0 %v799
    %2220 = vmatpush1.msra.mxu0 %v798
    %2221 = vmatprep.subr.mxu0 %v923
    %2222 = vmatpush2.msra.mxu0 %v922
    %2223 = vmatprep.subr.mxu0 %v919
    %2224 = vmatpush2.msra.mxu0 %v918
    %2225 = vmatprep.subr.mxu0 %v915
    %2226 = vmatpush2.msra.mxu0 %v914
    %2227 = vmatprep.subr.mxu0 %v911
    %2228 = vmatpush2.msra.mxu0 %v910
    %2229 = vmatprep.subr.mxu0 %v907
    %2230 = vmatpush2.msra.mxu0 %v906
    %2231 = vmatprep.subr.mxu0 %v903
    %2232 = vmatpush2.msra.mxu0 %v902
    %2233 = vmatprep.subr.mxu0 %v899
    %2234 = vmatpush2.msra.mxu0 %v898
    %2235 = vmatprep.subr.mxu0 %v895
    %2236 = vmatpush2.msra.mxu0 %v894
    %2237 = vmatprep.subr.mxu0 %v891
    %2238 = vmatpush2.msra.mxu0 %v890
    %2239 = vmatprep.subr.mxu0 %v887
    %2240 = vmatpush2.msra.mxu0 %v886
    %2241 = vmatprep.subr.mxu0 %v883
    %2242 = vmatpush2.msra.mxu0 %v882
    %2243 = vmatprep.subr.mxu0 %v879
    %2244 = vmatpush2.msra.mxu0 %v878
    %2245 = vmatprep.subr.mxu0 %v875
    %2246 = vmatpush2.msra.mxu0 %v874
    %2247 = vmatprep.subr.mxu0 %v871
    %2248 = vmatpush2.msra.mxu0 %v870
    %2249 = vmatprep.subr.mxu0 %v867
    %2250 = vmatpush2.msra.mxu0 %v866
    %2251 = vmatprep.subr.mxu0 %v863
    %2252 = vmatpush2.msra.mxu0 %v862
    %2253 = vmatprep.mubr.f32.mxu0 %v1693
    %2254 = vmatmul.mubr.f32.gmra.mxu0 %v1685
    %v2255 = vpop.f32.mrf.mxu0
    %v2256 = vadd.f32 %v2185, %v2255
    %v2257 = vpop.f32.mrf.mxu0
    %v2258 = vadd.f32 %v2187, %v2257
    %2259 = vdwg.mxu0
    %2260 = vmatprep.subr.mxu0 %v987
    %2261 = vmatpush1.msra.mxu0 %v986
    %2262 = vmatprep.subr.mxu0 %v983
    %2263 = vmatpush1.msra.mxu0 %v982
    %2264 = vmatprep.subr.mxu0 %v979
    %2265 = vmatpush1.msra.mxu0 %v978
    %2266 = vmatprep.subr.mxu0 %v975
    %2267 = vmatpush1.msra.mxu0 %v974
    %2268 = vmatprep.subr.mxu0 %v971
    %2269 = vmatpush1.msra.mxu0 %v970
    %2270 = vmatprep.subr.mxu0 %v967
    %2271 = vmatpush1.msra.mxu0 %v966
    %2272 = vmatprep.subr.mxu0 %v963
    %2273 = vmatpush1.msra.mxu0 %v962
    %2274 = vmatprep.subr.mxu0 %v959
    %2275 = vmatpush1.msra.mxu0 %v958
    %2276 = vmatprep.subr.mxu0 %v955
    %2277 = vmatpush1.msra.mxu0 %v954
    %2278 = vmatprep.subr.mxu0 %v951
    %2279 = vmatpush1.msra.mxu0 %v950
    %2280 = vmatprep.subr.mxu0 %v947
    %2281 = vmatpush1.msra.mxu0 %v946
    %2282 = vmatprep.subr.mxu0 %v943
    %2283 = vmatpush1.msra.mxu0 %v942
    %2284 = vmatprep.subr.mxu0 %v939
    %2285 = vmatpush1.msra.mxu0 %v938
    %2286 = vmatprep.subr.mxu0 %v935
    %2287 = vmatpush1.msra.mxu0 %v934
    %2288 = vmatprep.subr.mxu0 %v931
    %2289 = vmatpush1.msra.mxu0 %v930
    %2290 = vmatprep.subr.mxu0 %v927
    %2291 = vmatpush1.msra.mxu0 %v926
    %2292 = vmatprep.subr.mxu0 %v1051
    %2293 = vmatpush2.msra.mxu0 %v1050
    %2294 = vmatprep.subr.mxu0 %v1047
    %2295 = vmatpush2.msra.mxu0 %v1046
    %2296 = vmatprep.subr.mxu0 %v1043
    %2297 = vmatpush2.msra.mxu0 %v1042
    %2298 = vmatprep.subr.mxu0 %v1039
    %2299 = vmatpush2.msra.mxu0 %v1038
    %2300 = vmatprep.subr.mxu0 %v1035
    %2301 = vmatpush2.msra.mxu0 %v1034
    %2302 = vmatprep.subr.mxu0 %v1031
    %2303 = vmatpush2.msra.mxu0 %v1030
    %2304 = vmatprep.subr.mxu0 %v1027
    %2305 = vmatpush2.msra.mxu0 %v1026
    %2306 = vmatprep.subr.mxu0 %v1023
    %2307 = vmatpush2.msra.mxu0 %v1022
    %2308 = vmatprep.subr.mxu0 %v1019
    %2309 = vmatpush2.msra.mxu0 %v1018
    %2310 = vmatprep.subr.mxu0 %v1015
    %2311 = vmatpush2.msra.mxu0 %v1014
    %2312 = vmatprep.subr.mxu0 %v1011
    %2313 = vmatpush2.msra.mxu0 %v1010
    %2314 = vmatprep.subr.mxu0 %v1007
    %2315 = vmatpush2.msra.mxu0 %v1006
    %2316 = vmatprep.subr.mxu0 %v1003
    %2317 = vmatpush2.msra.mxu0 %v1002
    %2318 = vmatprep.subr.mxu0 %v999
    %2319 = vmatpush2.msra.mxu0 %v998
    %2320 = vmatprep.subr.mxu0 %v995
    %2321 = vmatpush2.msra.mxu0 %v994
    %2322 = vmatprep.subr.mxu0 %v991
    %2323 = vmatpush2.msra.mxu0 %v990
    %2324 = vmatprep.mubr.f32.mxu0 %v1694
    %2325 = vmatmul.mubr.f32.gmra.mxu0 %v1692
    %v2326 = vpop.f32.mrf.mxu0
    %v2327 = vadd.f32 %v2256, %v2326
    %v2328 = vpop.f32.mrf.mxu0
    %v2329 = vadd.f32 %v2258, %v2328
    %2330 = vdwg.mxu0
    %2331 = vmatprep.subr.mxu0 %v1115
    %2332 = vmatpush1.msra.mxu0 %v1114
    %2333 = vmatprep.subr.mxu0 %v1111
    %2334 = vmatpush1.msra.mxu0 %v1110
    %2335 = vmatprep.subr.mxu0 %v1107
    %2336 = vmatpush1.msra.mxu0 %v1106
    %2337 = vmatprep.subr.mxu0 %v1103
    %2338 = vmatpush1.msra.mxu0 %v1102
    %2339 = vmatprep.subr.mxu0 %v1099
    %2340 = vmatpush1.msra.mxu0 %v1098
    %2341 = vmatprep.subr.mxu0 %v1095
    %2342 = vmatpush1.msra.mxu0 %v1094
    %2343 = vmatprep.subr.mxu0 %v1091
    %2344 = vmatpush1.msra.mxu0 %v1090
    %2345 = vmatprep.subr.mxu0 %v1087
    %2346 = vmatpush1.msra.mxu0 %v1086
    %2347 = vmatprep.subr.mxu0 %v1083
    %2348 = vmatpush1.msra.mxu0 %v1082
    %2349 = vmatprep.subr.mxu0 %v1079
    %2350 = vmatpush1.msra.mxu0 %v1078
    %2351 = vmatprep.subr.mxu0 %v1075
    %2352 = vmatpush1.msra.mxu0 %v1074
    %2353 = vmatprep.subr.mxu0 %v1071
    %2354 = vmatpush1.msra.mxu0 %v1070
    %2355 = vmatprep.subr.mxu0 %v1067
    %2356 = vmatpush1.msra.mxu0 %v1066
    %2357 = vmatprep.subr.mxu0 %v1063
    %2358 = vmatpush1.msra.mxu0 %v1062
    %2359 = vmatprep.subr.mxu0 %v1059
    %2360 = vmatpush1.msra.mxu0 %v1058
    %2361 = vmatprep.subr.mxu0 %v1055
    %2362 = vmatpush1.msra.mxu0 %v1054
    %2363 = vmatprep.subr.mxu0 %v1179
    %2364 = vmatpush2.msra.mxu0 %v1178
    %2365 = vmatprep.subr.mxu0 %v1175
    %2366 = vmatpush2.msra.mxu0 %v1174
    %2367 = vmatprep.subr.mxu0 %v1171
    %2368 = vmatpush2.msra.mxu0 %v1170
    %2369 = vmatprep.subr.mxu0 %v1167
    %2370 = vmatpush2.msra.mxu0 %v1166
    %2371 = vmatprep.subr.mxu0 %v1163
    %2372 = vmatpush2.msra.mxu0 %v1162
    %2373 = vmatprep.subr.mxu0 %v1159
    %2374 = vmatpush2.msra.mxu0 %v1158
    %2375 = vmatprep.subr.mxu0 %v1155
    %2376 = vmatpush2.msra.mxu0 %v1154
    %2377 = vmatprep.subr.mxu0 %v1151
    %2378 = vmatpush2.msra.mxu0 %v1150
    %2379 = vmatprep.subr.mxu0 %v1147
    %2380 = vmatpush2.msra.mxu0 %v1146
    %2381 = vmatprep.subr.mxu0 %v1143
    %2382 = vmatpush2.msra.mxu0 %v1142
    %2383 = vmatprep.subr.mxu0 %v1139
    %2384 = vmatpush2.msra.mxu0 %v1138
    %2385 = vmatprep.subr.mxu0 %v1135
    %2386 = vmatpush2.msra.mxu0 %v1134
    %2387 = vmatprep.subr.mxu0 %v1131
    %2388 = vmatpush2.msra.mxu0 %v1130
    %2389 = vmatprep.subr.mxu0 %v1127
    %2390 = vmatpush2.msra.mxu0 %v1126
    %2391 = vmatprep.subr.mxu0 %v1123
    %2392 = vmatpush2.msra.mxu0 %v1122
    %2393 = vmatprep.subr.mxu0 %v1119
    %2394 = vmatpush2.msra.mxu0 %v1118
    %2395 = vmatprep.mubr.f32.mxu0 %v1710
    %2396 = vmatmul.mubr.f32.gmra.mxu0 %v1702
    %v2397 = vpop.f32.mrf.mxu0
    %v2398 = vadd.f32 %v2327, %v2397
    %v2399 = vpop.f32.mrf.mxu0
    %v2400 = vadd.f32 %v2329, %v2399
    %2401 = vdwg.mxu0
    %2402 = vmatprep.subr.mxu0 %v1243
    %2403 = vmatpush1.msra.mxu0 %v1242
    %2404 = vmatprep.subr.mxu0 %v1239
    %2405 = vmatpush1.msra.mxu0 %v1238
    %2406 = vmatprep.subr.mxu0 %v1235
    %2407 = vmatpush1.msra.mxu0 %v1234
    %2408 = vmatprep.subr.mxu0 %v1231
    %2409 = vmatpush1.msra.mxu0 %v1230
    %2410 = vmatprep.subr.mxu0 %v1227
    %2411 = vmatpush1.msra.mxu0 %v1226
    %2412 = vmatprep.subr.mxu0 %v1223
    %2413 = vmatpush1.msra.mxu0 %v1222
    %2414 = vmatprep.subr.mxu0 %v1219
    %2415 = vmatpush1.msra.mxu0 %v1218
    %2416 = vmatprep.subr.mxu0 %v1215
    %2417 = vmatpush1.msra.mxu0 %v1214
    %2418 = vmatprep.subr.mxu0 %v1211
    %2419 = vmatpush1.msra.mxu0 %v1210
    %2420 = vmatprep.subr.mxu0 %v1207
    %2421 = vmatpush1.msra.mxu0 %v1206
    %2422 = vmatprep.subr.mxu0 %v1203
    %2423 = vmatpush1.msra.mxu0 %v1202
    %2424 = vmatprep.subr.mxu0 %v1199
    %2425 = vmatpush1.msra.mxu0 %v1198
    %2426 = vmatprep.subr.mxu0 %v1195
    %2427 = vmatpush1.msra.mxu0 %v1194
    %2428 = vmatprep.subr.mxu0 %v1191
    %2429 = vmatpush1.msra.mxu0 %v1190
    %2430 = vmatprep.subr.mxu0 %v1187
    %2431 = vmatpush1.msra.mxu0 %v1186
    %2432 = vmatprep.subr.mxu0 %v1183
    %2433 = vmatpush1.msra.mxu0 %v1182
    %2434 = vmatprep.subr.mxu0 %v1307
    %2435 = vmatpush2.msra.mxu0 %v1306
    %2436 = vmatprep.subr.mxu0 %v1303
    %2437 = vmatpush2.msra.mxu0 %v1302
    %2438 = vmatprep.subr.mxu0 %v1299
    %2439 = vmatpush2.msra.mxu0 %v1298
    %2440 = vmatprep.subr.mxu0 %v1295
    %2441 = vmatpush2.msra.mxu0 %v1294
    %2442 = vmatprep.subr.mxu0 %v1291
    %2443 = vmatpush2.msra.mxu0 %v1290
    %2444 = vmatprep.subr.mxu0 %v1287
    %2445 = vmatpush2.msra.mxu0 %v1286
    %2446 = vmatprep.subr.mxu0 %v1283
    %2447 = vmatpush2.msra.mxu0 %v1282
    %2448 = vmatprep.subr.mxu0 %v1279
    %2449 = vmatpush2.msra.mxu0 %v1278
    %2450 = vmatprep.subr.mxu0 %v1275
    %2451 = vmatpush2.msra.mxu0 %v1274
    %2452 = vmatprep.subr.mxu0 %v1271
    %2453 = vmatpush2.msra.mxu0 %v1270
    %2454 = vmatprep.subr.mxu0 %v1267
    %2455 = vmatpush2.msra.mxu0 %v1266
    %2456 = vmatprep.subr.mxu0 %v1263
    %2457 = vmatpush2.msra.mxu0 %v1262
    %2458 = vmatprep.subr.mxu0 %v1259
    %2459 = vmatpush2.msra.mxu0 %v1258
    %2460 = vmatprep.subr.mxu0 %v1255
    %2461 = vmatpush2.msra.mxu0 %v1254
    %2462 = vmatprep.subr.mxu0 %v1251
    %2463 = vmatpush2.msra.mxu0 %v1250
    %2464 = vmatprep.subr.mxu0 %v1247
    %2465 = vmatpush2.msra.mxu0 %v1246
    %2466 = vmatprep.mubr.f32.mxu0 %v1711
    %2467 = vmatmul.mubr.f32.gmra.mxu0 %v1709
    %v2468 = vpop.f32.mrf.mxu0
    %v2469 = vadd.f32 %v2398, %v2468
    %v2470 = vpop.f32.mrf.mxu0
    %v2471 = vadd.f32 %v2400, %v2470
    %2472 = vdwg.mxu0
    %2473 = vmatprep.subr.mxu0 %v1371
    %2474 = vmatpush1.msra.mxu0 %v1370
    %2475 = vmatprep.subr.mxu0 %v1367
    %2476 = vmatpush1.msra.mxu0 %v1366
    %2477 = vmatprep.subr.mxu0 %v1363
    %2478 = vmatpush1.msra.mxu0 %v1362
    %2479 = vmatprep.subr.mxu0 %v1359
    %2480 = vmatpush1.msra.mxu0 %v1358
    %2481 = vmatprep.subr.mxu0 %v1355
    %2482 = vmatpush1.msra.mxu0 %v1354
    %2483 = vmatprep.subr.mxu0 %v1351
    %2484 = vmatpush1.msra.mxu0 %v1350
    %2485 = vmatprep.subr.mxu0 %v1347
    %2486 = vmatpush1.msra.mxu0 %v1346
    %2487 = vmatprep.subr.mxu0 %v1343
    %2488 = vmatpush1.msra.mxu0 %v1342
    %2489 = vmatprep.subr.mxu0 %v1339
    %2490 = vmatpush1.msra.mxu0 %v1338
    %2491 = vmatprep.subr.mxu0 %v1335
    %2492 = vmatpush1.msra.mxu0 %v1334
    %2493 = vmatprep.subr.mxu0 %v1331
    %2494 = vmatpush1.msra.mxu0 %v1330
    %2495 = vmatprep.subr.mxu0 %v1327
    %2496 = vmatpush1.msra.mxu0 %v1326
    %2497 = vmatprep.subr.mxu0 %v1323
    %2498 = vmatpush1.msra.mxu0 %v1322
    %2499 = vmatprep.subr.mxu0 %v1319
    %2500 = vmatpush1.msra.mxu0 %v1318
    %2501 = vmatprep.subr.mxu0 %v1315
    %2502 = vmatpush1.msra.mxu0 %v1314
    %2503 = vmatprep.subr.mxu0 %v1311
    %2504 = vmatpush1.msra.mxu0 %v1310
    %2505 = vmatprep.subr.mxu0 %v1435
    %2506 = vmatpush2.msra.mxu0 %v1434
    %2507 = vmatprep.subr.mxu0 %v1431
    %2508 = vmatpush2.msra.mxu0 %v1430
    %2509 = vmatprep.subr.mxu0 %v1427
    %2510 = vmatpush2.msra.mxu0 %v1426
    %2511 = vmatprep.subr.mxu0 %v1423
    %2512 = vmatpush2.msra.mxu0 %v1422
    %2513 = vmatprep.subr.mxu0 %v1419
    %2514 = vmatpush2.msra.mxu0 %v1418
    %2515 = vmatprep.subr.mxu0 %v1415
    %2516 = vmatpush2.msra.mxu0 %v1414
    %2517 = vmatprep.subr.mxu0 %v1411
    %2518 = vmatpush2.msra.mxu0 %v1410
    %2519 = vmatprep.subr.mxu0 %v1407
    %2520 = vmatpush2.msra.mxu0 %v1406
    %2521 = vmatprep.subr.mxu0 %v1403
    %2522 = vmatpush2.msra.mxu0 %v1402
    %2523 = vmatprep.subr.mxu0 %v1399
    %2524 = vmatpush2.msra.mxu0 %v1398
    %2525 = vmatprep.subr.mxu0 %v1395
    %2526 = vmatpush2.msra.mxu0 %v1394
    %2527 = vmatprep.subr.mxu0 %v1391
    %2528 = vmatpush2.msra.mxu0 %v1390
    %2529 = vmatprep.subr.mxu0 %v1387
    %2530 = vmatpush2.msra.mxu0 %v1386
    %2531 = vmatprep.subr.mxu0 %v1383
    %2532 = vmatpush2.msra.mxu0 %v1382
    %2533 = vmatprep.subr.mxu0 %v1379
    %2534 = vmatpush2.msra.mxu0 %v1378
    %2535 = vmatprep.subr.mxu0 %v1375
    %2536 = vmatpush2.msra.mxu0 %v1374
    %2537 = vmatprep.mubr.f32.mxu0 %v1727
    %2538 = vmatmul.mubr.f32.gmra.mxu0 %v1719
    %v2539 = vpop.f32.mrf.mxu0
    %v2540 = vadd.f32 %v2469, %v2539
    %v2541 = vpop.f32.mrf.mxu0
    %v2542 = vadd.f32 %v2471, %v2541
    %2543 = vdwg.mxu0
    %2544 = vmatprep.subr.mxu0 %v1499
    %2545 = vmatpush1.msra.mxu0 %v1498
    %2546 = vmatprep.subr.mxu0 %v1495
    %2547 = vmatpush1.msra.mxu0 %v1494
    %2548 = vmatprep.subr.mxu0 %v1491
    %2549 = vmatpush1.msra.mxu0 %v1490
    %2550 = vmatprep.subr.mxu0 %v1487
    %2551 = vmatpush1.msra.mxu0 %v1486
    %2552 = vmatprep.subr.mxu0 %v1483
    %2553 = vmatpush1.msra.mxu0 %v1482
    %2554 = vmatprep.subr.mxu0 %v1479
    %2555 = vmatpush1.msra.mxu0 %v1478
    %2556 = vmatprep.subr.mxu0 %v1475
    %2557 = vmatpush1.msra.mxu0 %v1474
    %2558 = vmatprep.subr.mxu0 %v1471
    %2559 = vmatpush1.msra.mxu0 %v1470
    %2560 = vmatprep.subr.mxu0 %v1467
    %2561 = vmatpush1.msra.mxu0 %v1466
    %2562 = vmatprep.subr.mxu0 %v1463
    %2563 = vmatpush1.msra.mxu0 %v1462
    %2564 = vmatprep.subr.mxu0 %v1459
    %2565 = vmatpush1.msra.mxu0 %v1458
    %2566 = vmatprep.subr.mxu0 %v1455
    %2567 = vmatpush1.msra.mxu0 %v1454
    %2568 = vmatprep.subr.mxu0 %v1451
    %2569 = vmatpush1.msra.mxu0 %v1450
    %2570 = vmatprep.subr.mxu0 %v1447
    %2571 = vmatpush1.msra.mxu0 %v1446
    %2572 = vmatprep.subr.mxu0 %v1443
    %2573 = vmatpush1.msra.mxu0 %v1442
    %2574 = vmatprep.subr.mxu0 %v1439
    %2575 = vmatpush1.msra.mxu0 %v1438
    %2576 = vmatprep.subr.mxu0 %v1563
    %2577 = vmatpush2.msra.mxu0 %v1562
    %2578 = vmatprep.subr.mxu0 %v1559
    %2579 = vmatpush2.msra.mxu0 %v1558
    %2580 = vmatprep.subr.mxu0 %v1555
    %2581 = vmatpush2.msra.mxu0 %v1554
    %2582 = vmatprep.subr.mxu0 %v1551
    %2583 = vmatpush2.msra.mxu0 %v1550
    %2584 = vmatprep.subr.mxu0 %v1547
    %2585 = vmatpush2.msra.mxu0 %v1546
    %2586 = vmatprep.subr.mxu0 %v1543
    %2587 = vmatpush2.msra.mxu0 %v1542
    %2588 = vmatprep.subr.mxu0 %v1539
    %2589 = vmatpush2.msra.mxu0 %v1538
    %2590 = vmatprep.subr.mxu0 %v1535
    %2591 = vmatpush2.msra.mxu0 %v1534
    %2592 = vmatprep.subr.mxu0 %v1531
    %2593 = vmatpush2.msra.mxu0 %v1530
    %2594 = vmatprep.subr.mxu0 %v1527
    %2595 = vmatpush2.msra.mxu0 %v1526
    %2596 = vmatprep.subr.mxu0 %v1523
    %2597 = vmatpush2.msra.mxu0 %v1522
    %2598 = vmatprep.subr.mxu0 %v1519
    %2599 = vmatpush2.msra.mxu0 %v1518
    %2600 = vmatprep.subr.mxu0 %v1515
    %2601 = vmatpush2.msra.mxu0 %v1514
    %2602 = vmatprep.subr.mxu0 %v1511
    %2603 = vmatpush2.msra.mxu0 %v1510
    %2604 = vmatprep.subr.mxu0 %v1507
    %2605 = vmatpush2.msra.mxu0 %v1506
    %2606 = vmatprep.subr.mxu0 %v1503
    %2607 = vmatpush2.msra.mxu0 %v1502
    %2608 = vmatprep.mubr.f32.mxu0 %v1728
    %2609 = vmatmul.mubr.f32.gmra.mxu0 %v1726
    %v2610 = vpop.f32.mrf.mxu0
    %v2611 = vadd.f32 %v2540, %v2610
    %v2612 = vpop.f32.mrf.mxu0
    %v2613 = vadd.f32 %v2542, %v2612
    %2614 = vdwg.mxu0
    %2615 = vmatprep.subr.mxu0 0.0
    %2616 = vmatpush1.msra.mxu0 0.0
    %2617 = vmatprep.subr.mxu0 0.0
    %2618 = vmatpush1.msra.mxu0 0.0
    %2619 = vmatprep.subr.mxu0 0.0
    %2620 = vmatpush1.msra.mxu0 0.0
    %2621 = vmatprep.subr.mxu0 0.0
    %2622 = vmatpush1.msra.mxu0 0.0
    %2623 = vmatprep.subr.mxu0 0.0
    %2624 = vmatpush1.msra.mxu0 0.0
    %2625 = vmatprep.subr.mxu0 0.0
    %2626 = vmatpush1.msra.mxu0 0.0
    %2627 = vmatprep.subr.mxu0 0.0
    %2628 = vmatpush1.msra.mxu0 0.0
    %2629 = vmatprep.subr.mxu0 0.0
    %2630 = vmatpush1.msra.mxu0 0.0
    %2631 = vmatprep.subr.mxu0 %v1595
    %2632 = vmatpush1.msra.mxu0 %v1594
    %2633 = vmatprep.subr.mxu0 %v1591
    %2634 = vmatpush1.msra.mxu0 %v1590
    %2635 = vmatprep.subr.mxu0 %v1587
    %2636 = vmatpush1.msra.mxu0 %v1586
    %2637 = vmatprep.subr.mxu0 %v1583
    %2638 = vmatpush1.msra.mxu0 %v1582
    %2639 = vmatprep.subr.mxu0 %v1579
    %2640 = vmatpush1.msra.mxu0 %v1578
    %2641 = vmatprep.subr.mxu0 %v1575
    %2642 = vmatpush1.msra.mxu0 %v1574
    %2643 = vmatprep.subr.mxu0 %v1571
    %2644 = vmatpush1.msra.mxu0 %v1570
    %2645 = vmatprep.subr.mxu0 %v1567
    %2646 = vmatpush1.msra.mxu0 %v1566
    %2647 = vmatprep.subr.mxu0 0.0
    %2648 = vmatpush2.msra.mxu0 0.0
    %2649 = vmatprep.subr.mxu0 0.0
    %2650 = vmatpush2.msra.mxu0 0.0
    %2651 = vmatprep.subr.mxu0 0.0
    %2652 = vmatpush2.msra.mxu0 0.0
    %2653 = vmatprep.subr.mxu0 0.0
    %2654 = vmatpush2.msra.mxu0 0.0
    %2655 = vmatprep.subr.mxu0 0.0
    %2656 = vmatpush2.msra.mxu0 0.0
    %2657 = vmatprep.subr.mxu0 0.0
    %2658 = vmatpush2.msra.mxu0 0.0
    %2659 = vmatprep.subr.mxu0 0.0
    %2660 = vmatpush2.msra.mxu0 0.0
    %2661 = vmatprep.subr.mxu0 0.0
    %2662 = vmatpush2.msra.mxu0 0.0
    %2663 = vmatprep.subr.mxu0 0.0
    %2664 = vmatpush2.msra.mxu0 0.0
    %2665 = vmatprep.subr.mxu0 0.0
    %2666 = vmatpush2.msra.mxu0 0.0
    %2667 = vmatprep.subr.mxu0 0.0
    %2668 = vmatpush2.msra.mxu0 0.0
    %2669 = vmatprep.subr.mxu0 0.0
    %2670 = vmatpush2.msra.mxu0 0.0
    %2671 = vmatprep.subr.mxu0 0.0
    %2672 = vmatpush2.msra.mxu0 0.0
    %2673 = vmatprep.subr.mxu0 0.0
    %2674 = vmatpush2.msra.mxu0 0.0
    %2675 = vmatprep.subr.mxu0 0.0
    %2676 = vmatpush2.msra.mxu0 0.0
    %2677 = vmatprep.subr.mxu0 0.0
    %2678 = vmatpush2.msra.mxu0 0.0
    %2679 = vmatprep.mubr.f32.mxu0 0.0
    %2680 = vmatmul.mubr.f32.gmra.mxu0 %v1761
    %v2681 = vpop.f32.mrf.mxu0
    %v2682 = vadd.f32 %v2611, %v2681
    %v2683 = vpop.f32.mrf.mxu0
    %v2684 = vadd.f32 %v2613, %v2683
    %2685 = vdwg.mxu0
    %2686 = vmatprep.subr.mxu0 %v93
    %2687 = vmatpush1.msra.mxu0 %v92
    %2688 = vmatprep.subr.mxu0 %v89
    %2689 = vmatpush1.msra.mxu0 %v88
    %2690 = vmatprep.subr.mxu0 %v85
    %2691 = vmatpush1.msra.mxu0 %v84
    %2692 = vmatprep.subr.mxu0 %v81
    %2693 = vmatpush1.msra.mxu0 %v80
    %2694 = vmatprep.subr.mxu0 %v77
    %2695 = vmatpush1.msra.mxu0 %v76
    %2696 = vmatprep.subr.mxu0 %v73
    %2697 = vmatpush1.msra.mxu0 %v72
    %2698 = vmatprep.subr.mxu0 %v69
    %2699 = vmatpush1.msra.mxu0 %v68
    %2700 = vmatprep.subr.mxu0 %v65
    %2701 = vmatpush1.msra.mxu0 %v64
    %2702 = vmatprep.subr.mxu0 %v61
    %2703 = vmatpush1.msra.mxu0 %v60
    %2704 = vmatprep.subr.mxu0 %v57
    %2705 = vmatpush1.msra.mxu0 %v56
    %2706 = vmatprep.subr.mxu0 %v53
    %2707 = vmatpush1.msra.mxu0 %v52
    %2708 = vmatprep.subr.mxu0 %v49
    %2709 = vmatpush1.msra.mxu0 %v48
    %2710 = vmatprep.subr.mxu0 %v45
    %2711 = vmatpush1.msra.mxu0 %v44
    %2712 = vmatprep.subr.mxu0 %v41
    %2713 = vmatpush1.msra.mxu0 %v40
    %2714 = vmatprep.subr.mxu0 %v37
    %2715 = vmatpush1.msra.mxu0 %v36
    %2716 = vmatprep.subr.mxu0 %v33
    %2717 = vmatpush1.msra.mxu0 %v32
    %2718 = vmatprep.subr.mxu0 %v157
    %2719 = vmatpush2.msra.mxu0 %v156
    %2720 = vmatprep.subr.mxu0 %v153
    %2721 = vmatpush2.msra.mxu0 %v152
    %2722 = vmatprep.subr.mxu0 %v149
    %2723 = vmatpush2.msra.mxu0 %v148
    %2724 = vmatprep.subr.mxu0 %v145
    %2725 = vmatpush2.msra.mxu0 %v144
    %2726 = vmatprep.subr.mxu0 %v141
    %2727 = vmatpush2.msra.mxu0 %v140
    %2728 = vmatprep.subr.mxu0 %v137
    %2729 = vmatpush2.msra.mxu0 %v136
    %2730 = vmatprep.subr.mxu0 %v133
    %2731 = vmatpush2.msra.mxu0 %v132
    %2732 = vmatprep.subr.mxu0 %v129
    %2733 = vmatpush2.msra.mxu0 %v128
    %2734 = vmatprep.subr.mxu0 %v125
    %2735 = vmatpush2.msra.mxu0 %v124
    %2736 = vmatprep.subr.mxu0 %v121
    %2737 = vmatpush2.msra.mxu0 %v120
    %2738 = vmatprep.subr.mxu0 %v117
    %2739 = vmatpush2.msra.mxu0 %v116
    %2740 = vmatprep.subr.mxu0 %v113
    %2741 = vmatpush2.msra.mxu0 %v112
    %2742 = vmatprep.subr.mxu0 %v109
    %2743 = vmatpush2.msra.mxu0 %v108
    %2744 = vmatprep.subr.mxu0 %v105
    %2745 = vmatpush2.msra.mxu0 %v104
    %2746 = vmatprep.subr.mxu0 %v101
    %2747 = vmatpush2.msra.mxu0 %v100
    %2748 = vmatprep.subr.mxu0 %v97
    %2749 = vmatpush2.msra.mxu0 %v96
    %2750 = vmatprep.mubr.f32.mxu0 %v1642
    %2751 = vmatmul.mubr.f32.gmra.mxu0 %v1634
    %v2752 = vpop.f32.mrf.mxu0
    %v2753 = vadd.f32 %v1611, %v2752
    %v2754 = vpop.f32.mrf.mxu0
    %v2755 = vadd.f32 %v1615, %v2754
    %2756 = vdwg.mxu0
    %2757 = vmatprep.subr.mxu0 %v221
    %2758 = vmatpush1.msra.mxu0 %v220
    %2759 = vmatprep.subr.mxu0 %v217
    %2760 = vmatpush1.msra.mxu0 %v216
    %2761 = vmatprep.subr.mxu0 %v213
    %2762 = vmatpush1.msra.mxu0 %v212
    %2763 = vmatprep.subr.mxu0 %v209
    %2764 = vmatpush1.msra.mxu0 %v208
    %2765 = vmatprep.subr.mxu0 %v205
    %2766 = vmatpush1.msra.mxu0 %v204
    %2767 = vmatprep.subr.mxu0 %v201
    %2768 = vmatpush1.msra.mxu0 %v200
    %2769 = vmatprep.subr.mxu0 %v197
    %2770 = vmatpush1.msra.mxu0 %v196
    %2771 = vmatprep.subr.mxu0 %v193
    %2772 = vmatpush1.msra.mxu0 %v192
    %2773 = vmatprep.subr.mxu0 %v189
    %2774 = vmatpush1.msra.mxu0 %v188
    %2775 = vmatprep.subr.mxu0 %v185
    %2776 = vmatpush1.msra.mxu0 %v184
    %2777 = vmatprep.subr.mxu0 %v181
    %2778 = vmatpush1.msra.mxu0 %v180
    %2779 = vmatprep.subr.mxu0 %v177
    %2780 = vmatpush1.msra.mxu0 %v176
    %2781 = vmatprep.subr.mxu0 %v173
    %2782 = vmatpush1.msra.mxu0 %v172
    %2783 = vmatprep.subr.mxu0 %v169
    %2784 = vmatpush1.msra.mxu0 %v168
    %2785 = vmatprep.subr.mxu0 %v165
    %2786 = vmatpush1.msra.mxu0 %v164
    %2787 = vmatprep.subr.mxu0 %v161
    %2788 = vmatpush1.msra.mxu0 %v160
    %2789 = vmatprep.subr.mxu0 %v285
    %2790 = vmatpush2.msra.mxu0 %v284
    %2791 = vmatprep.subr.mxu0 %v281
    %2792 = vmatpush2.msra.mxu0 %v280
    %2793 = vmatprep.subr.mxu0 %v277
    %2794 = vmatpush2.msra.mxu0 %v276
    %2795 = vmatprep.subr.mxu0 %v273
    %2796 = vmatpush2.msra.mxu0 %v272
    %2797 = vmatprep.subr.mxu0 %v269
    %2798 = vmatpush2.msra.mxu0 %v268
    %2799 = vmatprep.subr.mxu0 %v265
    %2800 = vmatpush2.msra.mxu0 %v264
    %2801 = vmatprep.subr.mxu0 %v261
    %2802 = vmatpush2.msra.mxu0 %v260
    %2803 = vmatprep.subr.mxu0 %v257
    %2804 = vmatpush2.msra.mxu0 %v256
    %2805 = vmatprep.subr.mxu0 %v253
    %2806 = vmatpush2.msra.mxu0 %v252
    %2807 = vmatprep.subr.mxu0 %v249
    %2808 = vmatpush2.msra.mxu0 %v248
    %2809 = vmatprep.subr.mxu0 %v245
    %2810 = vmatpush2.msra.mxu0 %v244
    %2811 = vmatprep.subr.mxu0 %v241
    %2812 = vmatpush2.msra.mxu0 %v240
    %2813 = vmatprep.subr.mxu0 %v237
    %2814 = vmatpush2.msra.mxu0 %v236
    %2815 = vmatprep.subr.mxu0 %v233
    %2816 = vmatpush2.msra.mxu0 %v232
    %2817 = vmatprep.subr.mxu0 %v229
    %2818 = vmatpush2.msra.mxu0 %v228
    %2819 = vmatprep.subr.mxu0 %v225
    %2820 = vmatpush2.msra.mxu0 %v224
    %2821 = vmatprep.mubr.f32.mxu0 %v1643
    %2822 = vmatmul.mubr.f32.gmra.mxu0 %v1641
    %v2823 = vpop.f32.mrf.mxu0
    %v2824 = vadd.f32 %v2753, %v2823
    %v2825 = vpop.f32.mrf.mxu0
    %v2826 = vadd.f32 %v2755, %v2825
    %2827 = vdwg.mxu0
    %2828 = vmatprep.subr.mxu0 %v349
    %2829 = vmatpush1.msra.mxu0 %v348
    %2830 = vmatprep.subr.mxu0 %v345
    %2831 = vmatpush1.msra.mxu0 %v344
    %2832 = vmatprep.subr.mxu0 %v341
    %2833 = vmatpush1.msra.mxu0 %v340
    %2834 = vmatprep.subr.mxu0 %v337
    %2835 = vmatpush1.msra.mxu0 %v336
    %2836 = vmatprep.subr.mxu0 %v333
    %2837 = vmatpush1.msra.mxu0 %v332
    %2838 = vmatprep.subr.mxu0 %v329
    %2839 = vmatpush1.msra.mxu0 %v328
    %2840 = vmatprep.subr.mxu0 %v325
    %2841 = vmatpush1.msra.mxu0 %v324
    %2842 = vmatprep.subr.mxu0 %v321
    %2843 = vmatpush1.msra.mxu0 %v320
    %2844 = vmatprep.subr.mxu0 %v317
    %2845 = vmatpush1.msra.mxu0 %v316
    %2846 = vmatprep.subr.mxu0 %v313
    %2847 = vmatpush1.msra.mxu0 %v312
    %2848 = vmatprep.subr.mxu0 %v309
    %2849 = vmatpush1.msra.mxu0 %v308
    %2850 = vmatprep.subr.mxu0 %v305
    %2851 = vmatpush1.msra.mxu0 %v304
    %2852 = vmatprep.subr.mxu0 %v301
    %2853 = vmatpush1.msra.mxu0 %v300
    %2854 = vmatprep.subr.mxu0 %v297
    %2855 = vmatpush1.msra.mxu0 %v296
    %2856 = vmatprep.subr.mxu0 %v293
    %2857 = vmatpush1.msra.mxu0 %v292
    %2858 = vmatprep.subr.mxu0 %v289
    %2859 = vmatpush1.msra.mxu0 %v288
    %2860 = vmatprep.subr.mxu0 %v413
    %2861 = vmatpush2.msra.mxu0 %v412
    %2862 = vmatprep.subr.mxu0 %v409
    %2863 = vmatpush2.msra.mxu0 %v408
    %2864 = vmatprep.subr.mxu0 %v405
    %2865 = vmatpush2.msra.mxu0 %v404
    %2866 = vmatprep.subr.mxu0 %v401
    %2867 = vmatpush2.msra.mxu0 %v400
    %2868 = vmatprep.subr.mxu0 %v397
    %2869 = vmatpush2.msra.mxu0 %v396
    %2870 = vmatprep.subr.mxu0 %v393
    %2871 = vmatpush2.msra.mxu0 %v392
    %2872 = vmatprep.subr.mxu0 %v389
    %2873 = vmatpush2.msra.mxu0 %v388
    %2874 = vmatprep.subr.mxu0 %v385
    %2875 = vmatpush2.msra.mxu0 %v384
    %2876 = vmatprep.subr.mxu0 %v381
    %2877 = vmatpush2.msra.mxu0 %v380
    %2878 = vmatprep.subr.mxu0 %v377
    %2879 = vmatpush2.msra.mxu0 %v376
    %2880 = vmatprep.subr.mxu0 %v373
    %2881 = vmatpush2.msra.mxu0 %v372
    %2882 = vmatprep.subr.mxu0 %v369
    %2883 = vmatpush2.msra.mxu0 %v368
    %2884 = vmatprep.subr.mxu0 %v365
    %2885 = vmatpush2.msra.mxu0 %v364
    %2886 = vmatprep.subr.mxu0 %v361
    %2887 = vmatpush2.msra.mxu0 %v360
    %2888 = vmatprep.subr.mxu0 %v357
    %2889 = vmatpush2.msra.mxu0 %v356
    %2890 = vmatprep.subr.mxu0 %v353
    %2891 = vmatpush2.msra.mxu0 %v352
    %2892 = vmatprep.mubr.f32.mxu0 %v1659
    %2893 = vmatmul.mubr.f32.gmra.mxu0 %v1651
    %v2894 = vpop.f32.mrf.mxu0
    %v2895 = vadd.f32 %v2824, %v2894
    %v2896 = vpop.f32.mrf.mxu0
    %v2897 = vadd.f32 %v2826, %v2896
    %2898 = vdwg.mxu0
    %2899 = vmatprep.subr.mxu0 %v477
    %2900 = vmatpush1.msra.mxu0 %v476
    %2901 = vmatprep.subr.mxu0 %v473
    %2902 = vmatpush1.msra.mxu0 %v472
    %2903 = vmatprep.subr.mxu0 %v469
    %2904 = vmatpush1.msra.mxu0 %v468
    %2905 = vmatprep.subr.mxu0 %v465
    %2906 = vmatpush1.msra.mxu0 %v464
    %2907 = vmatprep.subr.mxu0 %v461
    %2908 = vmatpush1.msra.mxu0 %v460
    %2909 = vmatprep.subr.mxu0 %v457
    %2910 = vmatpush1.msra.mxu0 %v456
    %2911 = vmatprep.subr.mxu0 %v453
    %2912 = vmatpush1.msra.mxu0 %v452
    %2913 = vmatprep.subr.mxu0 %v449
    %2914 = vmatpush1.msra.mxu0 %v448
    %2915 = vmatprep.subr.mxu0 %v445
    %2916 = vmatpush1.msra.mxu0 %v444
    %2917 = vmatprep.subr.mxu0 %v441
    %2918 = vmatpush1.msra.mxu0 %v440
    %2919 = vmatprep.subr.mxu0 %v437
    %2920 = vmatpush1.msra.mxu0 %v436
    %2921 = vmatprep.subr.mxu0 %v433
    %2922 = vmatpush1.msra.mxu0 %v432
    %2923 = vmatprep.subr.mxu0 %v429
    %2924 = vmatpush1.msra.mxu0 %v428
    %2925 = vmatprep.subr.mxu0 %v425
    %2926 = vmatpush1.msra.mxu0 %v424
    %2927 = vmatprep.subr.mxu0 %v421
    %2928 = vmatpush1.msra.mxu0 %v420
    %2929 = vmatprep.subr.mxu0 %v417
    %2930 = vmatpush1.msra.mxu0 %v416
    %2931 = vmatprep.subr.mxu0 %v541
    %2932 = vmatpush2.msra.mxu0 %v540
    %2933 = vmatprep.subr.mxu0 %v537
    %2934 = vmatpush2.msra.mxu0 %v536
    %2935 = vmatprep.subr.mxu0 %v533
    %2936 = vmatpush2.msra.mxu0 %v532
    %2937 = vmatprep.subr.mxu0 %v529
    %2938 = vmatpush2.msra.mxu0 %v528
    %2939 = vmatprep.subr.mxu0 %v525
    %2940 = vmatpush2.msra.mxu0 %v524
    %2941 = vmatprep.subr.mxu0 %v521
    %2942 = vmatpush2.msra.mxu0 %v520
    %2943 = vmatprep.subr.mxu0 %v517
    %2944 = vmatpush2.msra.mxu0 %v516
    %2945 = vmatprep.subr.mxu0 %v513
    %2946 = vmatpush2.msra.mxu0 %v512
    %2947 = vmatprep.subr.mxu0 %v509
    %2948 = vmatpush2.msra.mxu0 %v508
    %2949 = vmatprep.subr.mxu0 %v505
    %2950 = vmatpush2.msra.mxu0 %v504
    %2951 = vmatprep.subr.mxu0 %v501
    %2952 = vmatpush2.msra.mxu0 %v500
    %2953 = vmatprep.subr.mxu0 %v497
    %2954 = vmatpush2.msra.mxu0 %v496
    %2955 = vmatprep.subr.mxu0 %v493
    %2956 = vmatpush2.msra.mxu0 %v492
    %2957 = vmatprep.subr.mxu0 %v489
    %2958 = vmatpush2.msra.mxu0 %v488
    %2959 = vmatprep.subr.mxu0 %v485
    %2960 = vmatpush2.msra.mxu0 %v484
    %2961 = vmatprep.subr.mxu0 %v481
    %2962 = vmatpush2.msra.mxu0 %v480
    %2963 = vmatprep.mubr.f32.mxu0 %v1660
    %2964 = vmatmul.mubr.f32.gmra.mxu0 %v1658
    %v2965 = vpop.f32.mrf.mxu0
    %v2966 = vadd.f32 %v2895, %v2965
    %v2967 = vpop.f32.mrf.mxu0
    %v2968 = vadd.f32 %v2897, %v2967
    %2969 = vdwg.mxu0
    %2970 = vmatprep.subr.mxu0 %v605
    %2971 = vmatpush1.msra.mxu0 %v604
    %2972 = vmatprep.subr.mxu0 %v601
    %2973 = vmatpush1.msra.mxu0 %v600
    %2974 = vmatprep.subr.mxu0 %v597
    %2975 = vmatpush1.msra.mxu0 %v596
    %2976 = vmatprep.subr.mxu0 %v593
    %2977 = vmatpush1.msra.mxu0 %v592
    %2978 = vmatprep.subr.mxu0 %v589
    %2979 = vmatpush1.msra.mxu0 %v588
    %2980 = vmatprep.subr.mxu0 %v585
    %2981 = vmatpush1.msra.mxu0 %v584
    %2982 = vmatprep.subr.mxu0 %v581
    %2983 = vmatpush1.msra.mxu0 %v580
    %2984 = vmatprep.subr.mxu0 %v577
    %2985 = vmatpush1.msra.mxu0 %v576
    %2986 = vmatprep.subr.mxu0 %v573
    %2987 = vmatpush1.msra.mxu0 %v572
    %2988 = vmatprep.subr.mxu0 %v569
    %2989 = vmatpush1.msra.mxu0 %v568
    %2990 = vmatprep.subr.mxu0 %v565
    %2991 = vmatpush1.msra.mxu0 %v564
    %2992 = vmatprep.subr.mxu0 %v561
    %2993 = vmatpush1.msra.mxu0 %v560
    %2994 = vmatprep.subr.mxu0 %v557
    %2995 = vmatpush1.msra.mxu0 %v556
    %2996 = vmatprep.subr.mxu0 %v553
    %2997 = vmatpush1.msra.mxu0 %v552
    %2998 = vmatprep.subr.mxu0 %v549
    %2999 = vmatpush1.msra.mxu0 %v548
    %3000 = vmatprep.subr.mxu0 %v545
    %3001 = vmatpush1.msra.mxu0 %v544
    %3002 = vmatprep.subr.mxu0 %v669
    %3003 = vmatpush2.msra.mxu0 %v668
    %3004 = vmatprep.subr.mxu0 %v665
    %3005 = vmatpush2.msra.mxu0 %v664
    %3006 = vmatprep.subr.mxu0 %v661
    %3007 = vmatpush2.msra.mxu0 %v660
    %3008 = vmatprep.subr.mxu0 %v657
    %3009 = vmatpush2.msra.mxu0 %v656
    %3010 = vmatprep.subr.mxu0 %v653
    %3011 = vmatpush2.msra.mxu0 %v652
    %3012 = vmatprep.subr.mxu0 %v649
    %3013 = vmatpush2.msra.mxu0 %v648
    %3014 = vmatprep.subr.mxu0 %v645
    %3015 = vmatpush2.msra.mxu0 %v644
    %3016 = vmatprep.subr.mxu0 %v641
    %3017 = vmatpush2.msra.mxu0 %v640
    %3018 = vmatprep.subr.mxu0 %v637
    %3019 = vmatpush2.msra.mxu0 %v636
    %3020 = vmatprep.subr.mxu0 %v633
    %3021 = vmatpush2.msra.mxu0 %v632
    %3022 = vmatprep.subr.mxu0 %v629
    %3023 = vmatpush2.msra.mxu0 %v628
    %3024 = vmatprep.subr.mxu0 %v625
    %3025 = vmatpush2.msra.mxu0 %v624
    %3026 = vmatprep.subr.mxu0 %v621
    %3027 = vmatpush2.msra.mxu0 %v620
    %3028 = vmatprep.subr.mxu0 %v617
    %3029 = vmatpush2.msra.mxu0 %v616
    %3030 = vmatprep.subr.mxu0 %v613
    %3031 = vmatpush2.msra.mxu0 %v612
    %3032 = vmatprep.subr.mxu0 %v609
    %3033 = vmatpush2.msra.mxu0 %v608
    %3034 = vmatprep.mubr.f32.mxu0 %v1676
    %3035 = vmatmul.mubr.f32.gmra.mxu0 %v1668
    %v3036 = vpop.f32.mrf.mxu0
    %v3037 = vadd.f32 %v2966, %v3036
    %v3038 = vpop.f32.mrf.mxu0
    %v3039 = vadd.f32 %v2968, %v3038
    %3040 = vdwg.mxu0
    %3041 = vmatprep.subr.mxu0 %v733
    %3042 = vmatpush1.msra.mxu0 %v732
    %3043 = vmatprep.subr.mxu0 %v729
    %3044 = vmatpush1.msra.mxu0 %v728
    %3045 = vmatprep.subr.mxu0 %v725
    %3046 = vmatpush1.msra.mxu0 %v724
    %3047 = vmatprep.subr.mxu0 %v721
    %3048 = vmatpush1.msra.mxu0 %v720
    %3049 = vmatprep.subr.mxu0 %v717
    %3050 = vmatpush1.msra.mxu0 %v716
    %3051 = vmatprep.subr.mxu0 %v713
    %3052 = vmatpush1.msra.mxu0 %v712
    %3053 = vmatprep.subr.mxu0 %v709
    %3054 = vmatpush1.msra.mxu0 %v708
    %3055 = vmatprep.subr.mxu0 %v705
    %3056 = vmatpush1.msra.mxu0 %v704
    %3057 = vmatprep.subr.mxu0 %v701
    %3058 = vmatpush1.msra.mxu0 %v700
    %3059 = vmatprep.subr.mxu0 %v697
    %3060 = vmatpush1.msra.mxu0 %v696
    %3061 = vmatprep.subr.mxu0 %v693
    %3062 = vmatpush1.msra.mxu0 %v692
    %3063 = vmatprep.subr.mxu0 %v689
    %3064 = vmatpush1.msra.mxu0 %v688
    %3065 = vmatprep.subr.mxu0 %v685
    %3066 = vmatpush1.msra.mxu0 %v684
    %3067 = vmatprep.subr.mxu0 %v681
    %3068 = vmatpush1.msra.mxu0 %v680
    %3069 = vmatprep.subr.mxu0 %v677
    %3070 = vmatpush1.msra.mxu0 %v676
    %3071 = vmatprep.subr.mxu0 %v673
    %3072 = vmatpush1.msra.mxu0 %v672
    %3073 = vmatprep.subr.mxu0 %v797
    %3074 = vmatpush2.msra.mxu0 %v796
    %3075 = vmatprep.subr.mxu0 %v793
    %3076 = vmatpush2.msra.mxu0 %v792
    %3077 = vmatprep.subr.mxu0 %v789
    %3078 = vmatpush2.msra.mxu0 %v788
    %3079 = vmatprep.subr.mxu0 %v785
    %3080 = vmatpush2.msra.mxu0 %v784
    %3081 = vmatprep.subr.mxu0 %v781
    %3082 = vmatpush2.msra.mxu0 %v780
    %3083 = vmatprep.subr.mxu0 %v777
    %3084 = vmatpush2.msra.mxu0 %v776
    %3085 = vmatprep.subr.mxu0 %v773
    %3086 = vmatpush2.msra.mxu0 %v772
    %3087 = vmatprep.subr.mxu0 %v769
    %3088 = vmatpush2.msra.mxu0 %v768
    %3089 = vmatprep.subr.mxu0 %v765
    %3090 = vmatpush2.msra.mxu0 %v764
    %3091 = vmatprep.subr.mxu0 %v761
    %3092 = vmatpush2.msra.mxu0 %v760
    %3093 = vmatprep.subr.mxu0 %v757
    %3094 = vmatpush2.msra.mxu0 %v756
    %3095 = vmatprep.subr.mxu0 %v753
    %3096 = vmatpush2.msra.mxu0 %v752
    %3097 = vmatprep.subr.mxu0 %v749
    %3098 = vmatpush2.msra.mxu0 %v748
    %3099 = vmatprep.subr.mxu0 %v745
    %3100 = vmatpush2.msra.mxu0 %v744
    %3101 = vmatprep.subr.mxu0 %v741
    %3102 = vmatpush2.msra.mxu0 %v740
    %3103 = vmatprep.subr.mxu0 %v737
    %3104 = vmatpush2.msra.mxu0 %v736
    %3105 = vmatprep.mubr.f32.mxu0 %v1677
    %3106 = vmatmul.mubr.f32.gmra.mxu0 %v1675
    %v3107 = vpop.f32.mrf.mxu0
    %v3108 = vadd.f32 %v3037, %v3107
    %v3109 = vpop.f32.mrf.mxu0
    %v3110 = vadd.f32 %v3039, %v3109
    %3111 = vdwg.mxu0
    %3112 = vmatprep.subr.mxu0 %v861
    %3113 = vmatpush1.msra.mxu0 %v860
    %3114 = vmatprep.subr.mxu0 %v857
    %3115 = vmatpush1.msra.mxu0 %v856
    %3116 = vmatprep.subr.mxu0 %v853
    %3117 = vmatpush1.msra.mxu0 %v852
    %3118 = vmatprep.subr.mxu0 %v849
    %3119 = vmatpush1.msra.mxu0 %v848
    %3120 = vmatprep.subr.mxu0 %v845
    %3121 = vmatpush1.msra.mxu0 %v844
    %3122 = vmatprep.subr.mxu0 %v841
    %3123 = vmatpush1.msra.mxu0 %v840
    %3124 = vmatprep.subr.mxu0 %v837
    %3125 = vmatpush1.msra.mxu0 %v836
    %3126 = vmatprep.subr.mxu0 %v833
    %3127 = vmatpush1.msra.mxu0 %v832
    %3128 = vmatprep.subr.mxu0 %v829
    %3129 = vmatpush1.msra.mxu0 %v828
    %3130 = vmatprep.subr.mxu0 %v825
    %3131 = vmatpush1.msra.mxu0 %v824
    %3132 = vmatprep.subr.mxu0 %v821
    %3133 = vmatpush1.msra.mxu0 %v820
    %3134 = vmatprep.subr.mxu0 %v817
    %3135 = vmatpush1.msra.mxu0 %v816
    %3136 = vmatprep.subr.mxu0 %v813
    %3137 = vmatpush1.msra.mxu0 %v812
    %3138 = vmatprep.subr.mxu0 %v809
    %3139 = vmatpush1.msra.mxu0 %v808
    %3140 = vmatprep.subr.mxu0 %v805
    %3141 = vmatpush1.msra.mxu0 %v804
    %3142 = vmatprep.subr.mxu0 %v801
    %3143 = vmatpush1.msra.mxu0 %v800
    %3144 = vmatprep.subr.mxu0 %v925
    %3145 = vmatpush2.msra.mxu0 %v924
    %3146 = vmatprep.subr.mxu0 %v921
    %3147 = vmatpush2.msra.mxu0 %v920
    %3148 = vmatprep.subr.mxu0 %v917
    %3149 = vmatpush2.msra.mxu0 %v916
    %3150 = vmatprep.subr.mxu0 %v913
    %3151 = vmatpush2.msra.mxu0 %v912
    %3152 = vmatprep.subr.mxu0 %v909
    %3153 = vmatpush2.msra.mxu0 %v908
    %3154 = vmatprep.subr.mxu0 %v905
    %3155 = vmatpush2.msra.mxu0 %v904
    %3156 = vmatprep.subr.mxu0 %v901
    %3157 = vmatpush2.msra.mxu0 %v900
    %3158 = vmatprep.subr.mxu0 %v897
    %3159 = vmatpush2.msra.mxu0 %v896
    %3160 = vmatprep.subr.mxu0 %v893
    %3161 = vmatpush2.msra.mxu0 %v892
    %3162 = vmatprep.subr.mxu0 %v889
    %3163 = vmatpush2.msra.mxu0 %v888
    %3164 = vmatprep.subr.mxu0 %v885
    %3165 = vmatpush2.msra.mxu0 %v884
    %3166 = vmatprep.subr.mxu0 %v881
    %3167 = vmatpush2.msra.mxu0 %v880
    %3168 = vmatprep.subr.mxu0 %v877
    %3169 = vmatpush2.msra.mxu0 %v876
    %3170 = vmatprep.subr.mxu0 %v873
    %3171 = vmatpush2.msra.mxu0 %v872
    %3172 = vmatprep.subr.mxu0 %v869
    %3173 = vmatpush2.msra.mxu0 %v868
    %3174 = vmatprep.subr.mxu0 %v865
    %3175 = vmatpush2.msra.mxu0 %v864
    %3176 = vmatprep.mubr.f32.mxu0 %v1693
    %3177 = vmatmul.mubr.f32.gmra.mxu0 %v1685
    %v3178 = vpop.f32.mrf.mxu0
    %v3179 = vadd.f32 %v3108, %v3178
    %v3180 = vpop.f32.mrf.mxu0
    %v3181 = vadd.f32 %v3110, %v3180
    %3182 = vdwg.mxu0
    %3183 = vmatprep.subr.mxu0 %v989
    %3184 = vmatpush1.msra.mxu0 %v988
    %3185 = vmatprep.subr.mxu0 %v985
    %3186 = vmatpush1.msra.mxu0 %v984
    %3187 = vmatprep.subr.mxu0 %v981
    %3188 = vmatpush1.msra.mxu0 %v980
    %3189 = vmatprep.subr.mxu0 %v977
    %3190 = vmatpush1.msra.mxu0 %v976
    %3191 = vmatprep.subr.mxu0 %v973
    %3192 = vmatpush1.msra.mxu0 %v972
    %3193 = vmatprep.subr.mxu0 %v969
    %3194 = vmatpush1.msra.mxu0 %v968
    %3195 = vmatprep.subr.mxu0 %v965
    %3196 = vmatpush1.msra.mxu0 %v964
    %3197 = vmatprep.subr.mxu0 %v961
    %3198 = vmatpush1.msra.mxu0 %v960
    %3199 = vmatprep.subr.mxu0 %v957
    %3200 = vmatpush1.msra.mxu0 %v956
    %3201 = vmatprep.subr.mxu0 %v953
    %3202 = vmatpush1.msra.mxu0 %v952
    %3203 = vmatprep.subr.mxu0 %v949
    %3204 = vmatpush1.msra.mxu0 %v948
    %3205 = vmatprep.subr.mxu0 %v945
    %3206 = vmatpush1.msra.mxu0 %v944
    %3207 = vmatprep.subr.mxu0 %v941
    %3208 = vmatpush1.msra.mxu0 %v940
    %3209 = vmatprep.subr.mxu0 %v937
    %3210 = vmatpush1.msra.mxu0 %v936
    %3211 = vmatprep.subr.mxu0 %v933
    %3212 = vmatpush1.msra.mxu0 %v932
    %3213 = vmatprep.subr.mxu0 %v929
    %3214 = vmatpush1.msra.mxu0 %v928
    %3215 = vmatprep.subr.mxu0 %v1053
    %3216 = vmatpush2.msra.mxu0 %v1052
    %3217 = vmatprep.subr.mxu0 %v1049
    %3218 = vmatpush2.msra.mxu0 %v1048
    %3219 = vmatprep.subr.mxu0 %v1045
    %3220 = vmatpush2.msra.mxu0 %v1044
    %3221 = vmatprep.subr.mxu0 %v1041
    %3222 = vmatpush2.msra.mxu0 %v1040
    %3223 = vmatprep.subr.mxu0 %v1037
    %3224 = vmatpush2.msra.mxu0 %v1036
    %3225 = vmatprep.subr.mxu0 %v1033
    %3226 = vmatpush2.msra.mxu0 %v1032
    %3227 = vmatprep.subr.mxu0 %v1029
    %3228 = vmatpush2.msra.mxu0 %v1028
    %3229 = vmatprep.subr.mxu0 %v1025
    %3230 = vmatpush2.msra.mxu0 %v1024
    %3231 = vmatprep.subr.mxu0 %v1021
    %3232 = vmatpush2.msra.mxu0 %v1020
    %3233 = vmatprep.subr.mxu0 %v1017
    %3234 = vmatpush2.msra.mxu0 %v1016
    %3235 = vmatprep.subr.mxu0 %v1013
    %3236 = vmatpush2.msra.mxu0 %v1012
    %3237 = vmatprep.subr.mxu0 %v1009
    %3238 = vmatpush2.msra.mxu0 %v1008
    %3239 = vmatprep.subr.mxu0 %v1005
    %3240 = vmatpush2.msra.mxu0 %v1004
    %3241 = vmatprep.subr.mxu0 %v1001
    %3242 = vmatpush2.msra.mxu0 %v1000
    %3243 = vmatprep.subr.mxu0 %v997
    %3244 = vmatpush2.msra.mxu0 %v996
    %3245 = vmatprep.subr.mxu0 %v993
    %3246 = vmatpush2.msra.mxu0 %v992
    %3247 = vmatprep.mubr.f32.mxu0 %v1694
    %3248 = vmatmul.mubr.f32.gmra.mxu0 %v1692
    %v3249 = vpop.f32.mrf.mxu0
    %v3250 = vadd.f32 %v3179, %v3249
    %v3251 = vpop.f32.mrf.mxu0
    %v3252 = vadd.f32 %v3181, %v3251
    %3253 = vdwg.mxu0
    %3254 = vmatprep.subr.mxu0 %v1117
    %3255 = vmatpush1.msra.mxu0 %v1116
    %3256 = vmatprep.subr.mxu0 %v1113
    %3257 = vmatpush1.msra.mxu0 %v1112
    %3258 = vmatprep.subr.mxu0 %v1109
    %3259 = vmatpush1.msra.mxu0 %v1108
    %3260 = vmatprep.subr.mxu0 %v1105
    %3261 = vmatpush1.msra.mxu0 %v1104
    %3262 = vmatprep.subr.mxu0 %v1101
    %3263 = vmatpush1.msra.mxu0 %v1100
    %3264 = vmatprep.subr.mxu0 %v1097
    %3265 = vmatpush1.msra.mxu0 %v1096
    %3266 = vmatprep.subr.mxu0 %v1093
    %3267 = vmatpush1.msra.mxu0 %v1092
    %3268 = vmatprep.subr.mxu0 %v1089
    %3269 = vmatpush1.msra.mxu0 %v1088
    %3270 = vmatprep.subr.mxu0 %v1085
    %3271 = vmatpush1.msra.mxu0 %v1084
    %3272 = vmatprep.subr.mxu0 %v1081
    %3273 = vmatpush1.msra.mxu0 %v1080
    %3274 = vmatprep.subr.mxu0 %v1077
    %3275 = vmatpush1.msra.mxu0 %v1076
    %3276 = vmatprep.subr.mxu0 %v1073
    %3277 = vmatpush1.msra.mxu0 %v1072
    %3278 = vmatprep.subr.mxu0 %v1069
    %3279 = vmatpush1.msra.mxu0 %v1068
    %3280 = vmatprep.subr.mxu0 %v1065
    %3281 = vmatpush1.msra.mxu0 %v1064
    %3282 = vmatprep.subr.mxu0 %v1061
    %3283 = vmatpush1.msra.mxu0 %v1060
    %3284 = vmatprep.subr.mxu0 %v1057
    %3285 = vmatpush1.msra.mxu0 %v1056
    %3286 = vmatprep.subr.mxu0 %v1181
    %3287 = vmatpush2.msra.mxu0 %v1180
    %3288 = vmatprep.subr.mxu0 %v1177
    %3289 = vmatpush2.msra.mxu0 %v1176
    %3290 = vmatprep.subr.mxu0 %v1173
    %3291 = vmatpush2.msra.mxu0 %v1172
    %3292 = vmatprep.subr.mxu0 %v1169
    %3293 = vmatpush2.msra.mxu0 %v1168
    %3294 = vmatprep.subr.mxu0 %v1165
    %3295 = vmatpush2.msra.mxu0 %v1164
    %3296 = vmatprep.subr.mxu0 %v1161
    %3297 = vmatpush2.msra.mxu0 %v1160
    %3298 = vmatprep.subr.mxu0 %v1157
    %3299 = vmatpush2.msra.mxu0 %v1156
    %3300 = vmatprep.subr.mxu0 %v1153
    %3301 = vmatpush2.msra.mxu0 %v1152
    %3302 = vmatprep.subr.mxu0 %v1149
    %3303 = vmatpush2.msra.mxu0 %v1148
    %3304 = vmatprep.subr.mxu0 %v1145
    %3305 = vmatpush2.msra.mxu0 %v1144
    %3306 = vmatprep.subr.mxu0 %v1141
    %3307 = vmatpush2.msra.mxu0 %v1140
    %3308 = vmatprep.subr.mxu0 %v1137
    %3309 = vmatpush2.msra.mxu0 %v1136
    %3310 = vmatprep.subr.mxu0 %v1133
    %3311 = vmatpush2.msra.mxu0 %v1132
    %3312 = vmatprep.subr.mxu0 %v1129
    %3313 = vmatpush2.msra.mxu0 %v1128
    %3314 = vmatprep.subr.mxu0 %v1125
    %3315 = vmatpush2.msra.mxu0 %v1124
    %3316 = vmatprep.subr.mxu0 %v1121
    %3317 = vmatpush2.msra.mxu0 %v1120
    %3318 = vmatprep.mubr.f32.mxu0 %v1710
    %3319 = vmatmul.mubr.f32.gmra.mxu0 %v1702
    %v3320 = vpop.f32.mrf.mxu0
    %v3321 = vadd.f32 %v3250, %v3320
    %v3322 = vpop.f32.mrf.mxu0
    %v3323 = vadd.f32 %v3252, %v3322
    %3324 = vdwg.mxu0
    %3325 = vmatprep.subr.mxu0 %v1245
    %3326 = vmatpush1.msra.mxu0 %v1244
    %3327 = vmatprep.subr.mxu0 %v1241
    %3328 = vmatpush1.msra.mxu0 %v1240
    %3329 = vmatprep.subr.mxu0 %v1237
    %3330 = vmatpush1.msra.mxu0 %v1236
    %3331 = vmatprep.subr.mxu0 %v1233
    %3332 = vmatpush1.msra.mxu0 %v1232
    %3333 = vmatprep.subr.mxu0 %v1229
    %3334 = vmatpush1.msra.mxu0 %v1228
    %3335 = vmatprep.subr.mxu0 %v1225
    %3336 = vmatpush1.msra.mxu0 %v1224
    %3337 = vmatprep.subr.mxu0 %v1221
    %3338 = vmatpush1.msra.mxu0 %v1220
    %3339 = vmatprep.subr.mxu0 %v1217
    %3340 = vmatpush1.msra.mxu0 %v1216
    %3341 = vmatprep.subr.mxu0 %v1213
    %3342 = vmatpush1.msra.mxu0 %v1212
    %3343 = vmatprep.subr.mxu0 %v1209
    %3344 = vmatpush1.msra.mxu0 %v1208
    %3345 = vmatprep.subr.mxu0 %v1205
    %3346 = vmatpush1.msra.mxu0 %v1204
    %3347 = vmatprep.subr.mxu0 %v1201
    %3348 = vmatpush1.msra.mxu0 %v1200
    %3349 = vmatprep.subr.mxu0 %v1197
    %3350 = vmatpush1.msra.mxu0 %v1196
    %3351 = vmatprep.subr.mxu0 %v1193
    %3352 = vmatpush1.msra.mxu0 %v1192
    %3353 = vmatprep.subr.mxu0 %v1189
    %3354 = vmatpush1.msra.mxu0 %v1188
    %3355 = vmatprep.subr.mxu0 %v1185
    %3356 = vmatpush1.msra.mxu0 %v1184
    %3357 = vmatprep.subr.mxu0 %v1309
    %3358 = vmatpush2.msra.mxu0 %v1308
    %3359 = vmatprep.subr.mxu0 %v1305
    %3360 = vmatpush2.msra.mxu0 %v1304
    %3361 = vmatprep.subr.mxu0 %v1301
    %3362 = vmatpush2.msra.mxu0 %v1300
    %3363 = vmatprep.subr.mxu0 %v1297
    %3364 = vmatpush2.msra.mxu0 %v1296
    %3365 = vmatprep.subr.mxu0 %v1293
    %3366 = vmatpush2.msra.mxu0 %v1292
    %3367 = vmatprep.subr.mxu0 %v1289
    %3368 = vmatpush2.msra.mxu0 %v1288
    %3369 = vmatprep.subr.mxu0 %v1285
    %3370 = vmatpush2.msra.mxu0 %v1284
    %3371 = vmatprep.subr.mxu0 %v1281
    %3372 = vmatpush2.msra.mxu0 %v1280
    %3373 = vmatprep.subr.mxu0 %v1277
    %3374 = vmatpush2.msra.mxu0 %v1276
    %3375 = vmatprep.subr.mxu0 %v1273
    %3376 = vmatpush2.msra.mxu0 %v1272
    %3377 = vmatprep.subr.mxu0 %v1269
    %3378 = vmatpush2.msra.mxu0 %v1268
    %3379 = vmatprep.subr.mxu0 %v1265
    %3380 = vmatpush2.msra.mxu0 %v1264
    %3381 = vmatprep.subr.mxu0 %v1261
    %3382 = vmatpush2.msra.mxu0 %v1260
    %3383 = vmatprep.subr.mxu0 %v1257
    %3384 = vmatpush2.msra.mxu0 %v1256
    %3385 = vmatprep.subr.mxu0 %v1253
    %3386 = vmatpush2.msra.mxu0 %v1252
    %3387 = vmatprep.subr.mxu0 %v1249
    %3388 = vmatpush2.msra.mxu0 %v1248
    %3389 = vmatprep.mubr.f32.mxu0 %v1711
    %3390 = vmatmul.mubr.f32.gmra.mxu0 %v1709
    %v3391 = vpop.f32.mrf.mxu0
    %v3392 = vadd.f32 %v3321, %v3391
    %v3393 = vpop.f32.mrf.mxu0
    %v3394 = vadd.f32 %v3323, %v3393
    %3395 = vdwg.mxu0
    %3396 = vmatprep.subr.mxu0 %v1373
    %3397 = vmatpush1.msra.mxu0 %v1372
    %3398 = vmatprep.subr.mxu0 %v1369
    %3399 = vmatpush1.msra.mxu0 %v1368
    %3400 = vmatprep.subr.mxu0 %v1365
    %3401 = vmatpush1.msra.mxu0 %v1364
    %3402 = vmatprep.subr.mxu0 %v1361
    %3403 = vmatpush1.msra.mxu0 %v1360
    %3404 = vmatprep.subr.mxu0 %v1357
    %3405 = vmatpush1.msra.mxu0 %v1356
    %3406 = vmatprep.subr.mxu0 %v1353
    %3407 = vmatpush1.msra.mxu0 %v1352
    %3408 = vmatprep.subr.mxu0 %v1349
    %3409 = vmatpush1.msra.mxu0 %v1348
    %3410 = vmatprep.subr.mxu0 %v1345
    %3411 = vmatpush1.msra.mxu0 %v1344
    %3412 = vmatprep.subr.mxu0 %v1341
    %3413 = vmatpush1.msra.mxu0 %v1340
    %3414 = vmatprep.subr.mxu0 %v1337
    %3415 = vmatpush1.msra.mxu0 %v1336
    %3416 = vmatprep.subr.mxu0 %v1333
    %3417 = vmatpush1.msra.mxu0 %v1332
    %3418 = vmatprep.subr.mxu0 %v1329
    %3419 = vmatpush1.msra.mxu0 %v1328
    %3420 = vmatprep.subr.mxu0 %v1325
    %3421 = vmatpush1.msra.mxu0 %v1324
    %3422 = vmatprep.subr.mxu0 %v1321
    %3423 = vmatpush1.msra.mxu0 %v1320
    %3424 = vmatprep.subr.mxu0 %v1317
    %3425 = vmatpush1.msra.mxu0 %v1316
    %3426 = vmatprep.subr.mxu0 %v1313
    %3427 = vmatpush1.msra.mxu0 %v1312
    %3428 = vmatprep.subr.mxu0 %v1437
    %3429 = vmatpush2.msra.mxu0 %v1436
    %3430 = vmatprep.subr.mxu0 %v1433
    %3431 = vmatpush2.msra.mxu0 %v1432
    %3432 = vmatprep.subr.mxu0 %v1429
    %3433 = vmatpush2.msra.mxu0 %v1428
    %3434 = vmatprep.subr.mxu0 %v1425
    %3435 = vmatpush2.msra.mxu0 %v1424
    %3436 = vmatprep.subr.mxu0 %v1421
    %3437 = vmatpush2.msra.mxu0 %v1420
    %3438 = vmatprep.subr.mxu0 %v1417
    %3439 = vmatpush2.msra.mxu0 %v1416
    %3440 = vmatprep.subr.mxu0 %v1413
    %3441 = vmatpush2.msra.mxu0 %v1412
    %3442 = vmatprep.subr.mxu0 %v1409
    %3443 = vmatpush2.msra.mxu0 %v1408
    %3444 = vmatprep.subr.mxu0 %v1405
    %3445 = vmatpush2.msra.mxu0 %v1404
    %3446 = vmatprep.subr.mxu0 %v1401
    %3447 = vmatpush2.msra.mxu0 %v1400
    %3448 = vmatprep.subr.mxu0 %v1397
    %3449 = vmatpush2.msra.mxu0 %v1396
    %3450 = vmatprep.subr.mxu0 %v1393
    %3451 = vmatpush2.msra.mxu0 %v1392
    %3452 = vmatprep.subr.mxu0 %v1389
    %3453 = vmatpush2.msra.mxu0 %v1388
    %3454 = vmatprep.subr.mxu0 %v1385
    %3455 = vmatpush2.msra.mxu0 %v1384
    %3456 = vmatprep.subr.mxu0 %v1381
    %3457 = vmatpush2.msra.mxu0 %v1380
    %3458 = vmatprep.subr.mxu0 %v1377
    %3459 = vmatpush2.msra.mxu0 %v1376
    %3460 = vmatprep.mubr.f32.mxu0 %v1727
    %3461 = vmatmul.mubr.f32.gmra.mxu0 %v1719
    %v3462 = vpop.f32.mrf.mxu0
    %v3463 = vadd.f32 %v3392, %v3462
    %v3464 = vpop.f32.mrf.mxu0
    %v3465 = vadd.f32 %v3394, %v3464
    %3466 = vdwg.mxu0
    %3467 = vmatprep.subr.mxu0 %v1501
    %3468 = vmatpush1.msra.mxu0 %v1500
    %3469 = vmatprep.subr.mxu0 %v1497
    %3470 = vmatpush1.msra.mxu0 %v1496
    %3471 = vmatprep.subr.mxu0 %v1493
    %3472 = vmatpush1.msra.mxu0 %v1492
    %3473 = vmatprep.subr.mxu0 %v1489
    %3474 = vmatpush1.msra.mxu0 %v1488
    %3475 = vmatprep.subr.mxu0 %v1485
    %3476 = vmatpush1.msra.mxu0 %v1484
    %3477 = vmatprep.subr.mxu0 %v1481
    %3478 = vmatpush1.msra.mxu0 %v1480
    %3479 = vmatprep.subr.mxu0 %v1477
    %3480 = vmatpush1.msra.mxu0 %v1476
    %3481 = vmatprep.subr.mxu0 %v1473
    %3482 = vmatpush1.msra.mxu0 %v1472
    %3483 = vmatprep.subr.mxu0 %v1469
    %3484 = vmatpush1.msra.mxu0 %v1468
    %3485 = vmatprep.subr.mxu0 %v1465
    %3486 = vmatpush1.msra.mxu0 %v1464
    %3487 = vmatprep.subr.mxu0 %v1461
    %3488 = vmatpush1.msra.mxu0 %v1460
    %3489 = vmatprep.subr.mxu0 %v1457
    %3490 = vmatpush1.msra.mxu0 %v1456
    %3491 = vmatprep.subr.mxu0 %v1453
    %3492 = vmatpush1.msra.mxu0 %v1452
    %3493 = vmatprep.subr.mxu0 %v1449
    %3494 = vmatpush1.msra.mxu0 %v1448
    %3495 = vmatprep.subr.mxu0 %v1445
    %3496 = vmatpush1.msra.mxu0 %v1444
    %3497 = vmatprep.subr.mxu0 %v1441
    %3498 = vmatpush1.msra.mxu0 %v1440
    %3499 = vmatprep.subr.mxu0 %v1565
    %3500 = vmatpush2.msra.mxu0 %v1564
    %3501 = vmatprep.subr.mxu0 %v1561
    %3502 = vmatpush2.msra.mxu0 %v1560
    %3503 = vmatprep.subr.mxu0 %v1557
    %3504 = vmatpush2.msra.mxu0 %v1556
    %3505 = vmatprep.subr.mxu0 %v1553
    %3506 = vmatpush2.msra.mxu0 %v1552
    %3507 = vmatprep.subr.mxu0 %v1549
    %3508 = vmatpush2.msra.mxu0 %v1548
    %3509 = vmatprep.subr.mxu0 %v1545
    %3510 = vmatpush2.msra.mxu0 %v1544
    %3511 = vmatprep.subr.mxu0 %v1541
    %3512 = vmatpush2.msra.mxu0 %v1540
    %3513 = vmatprep.subr.mxu0 %v1537
    %3514 = vmatpush2.msra.mxu0 %v1536
    %3515 = vmatprep.subr.mxu0 %v1533
    %3516 = vmatpush2.msra.mxu0 %v1532
    %3517 = vmatprep.subr.mxu0 %v1529
    %3518 = vmatpush2.msra.mxu0 %v1528
    %3519 = vmatprep.subr.mxu0 %v1525
    %3520 = vmatpush2.msra.mxu0 %v1524
    %3521 = vmatprep.subr.mxu0 %v1521
    %3522 = vmatpush2.msra.mxu0 %v1520
    %3523 = vmatprep.subr.mxu0 %v1517
    %3524 = vmatpush2.msra.mxu0 %v1516
    %3525 = vmatprep.subr.mxu0 %v1513
    %3526 = vmatpush2.msra.mxu0 %v1512
    %3527 = vmatprep.subr.mxu0 %v1509
    %3528 = vmatpush2.msra.mxu0 %v1508
    %3529 = vmatprep.subr.mxu0 %v1505
    %3530 = vmatpush2.msra.mxu0 %v1504
    %3531 = vmatprep.mubr.f32.mxu0 %v1728
    %3532 = vmatmul.mubr.f32.gmra.mxu0 %v1726
    %v3533 = vpop.f32.mrf.mxu0
    %v3534 = vadd.f32 %v3463, %v3533
    %v3535 = vpop.f32.mrf.mxu0
    %v3536 = vadd.f32 %v3465, %v3535
    %3537 = vdwg.mxu0
    %3538 = vmatprep.subr.mxu0 0.0
    %3539 = vmatpush1.msra.mxu0 0.0
    %3540 = vmatprep.subr.mxu0 0.0
    %3541 = vmatpush1.msra.mxu0 0.0
    %3542 = vmatprep.subr.mxu0 0.0
    %3543 = vmatpush1.msra.mxu0 0.0
    %3544 = vmatprep.subr.mxu0 0.0
    %3545 = vmatpush1.msra.mxu0 0.0
    %3546 = vmatprep.subr.mxu0 0.0
    %3547 = vmatpush1.msra.mxu0 0.0
    %3548 = vmatprep.subr.mxu0 0.0
    %3549 = vmatpush1.msra.mxu0 0.0
    %3550 = vmatprep.subr.mxu0 0.0
    %3551 = vmatpush1.msra.mxu0 0.0
    %3552 = vmatprep.subr.mxu0 0.0
    %3553 = vmatpush1.msra.mxu0 0.0
    %3554 = vmatprep.subr.mxu0 %v1597
    %3555 = vmatpush1.msra.mxu0 %v1596
    %3556 = vmatprep.subr.mxu0 %v1593
    %3557 = vmatpush1.msra.mxu0 %v1592
    %3558 = vmatprep.subr.mxu0 %v1589
    %3559 = vmatpush1.msra.mxu0 %v1588
    %3560 = vmatprep.subr.mxu0 %v1585
    %3561 = vmatpush1.msra.mxu0 %v1584
    %3562 = vmatprep.subr.mxu0 %v1581
    %3563 = vmatpush1.msra.mxu0 %v1580
    %3564 = vmatprep.subr.mxu0 %v1577
    %3565 = vmatpush1.msra.mxu0 %v1576
    %3566 = vmatprep.subr.mxu0 %v1573
    %3567 = vmatpush1.msra.mxu0 %v1572
    %3568 = vmatprep.subr.mxu0 %v1569
    %3569 = vmatpush1.msra.mxu0 %v1568
    %3570 = vmatprep.subr.mxu0 0.0
    %3571 = vmatpush2.msra.mxu0 0.0
    %3572 = vmatprep.subr.mxu0 0.0
    %3573 = vmatpush2.msra.mxu0 0.0
    %3574 = vmatprep.subr.mxu0 0.0
    %3575 = vmatpush2.msra.mxu0 0.0
    %3576 = vmatprep.subr.mxu0 0.0
    %3577 = vmatpush2.msra.mxu0 0.0
    %3578 = vmatprep.subr.mxu0 0.0
    %3579 = vmatpush2.msra.mxu0 0.0
    %3580 = vmatprep.subr.mxu0 0.0
    %3581 = vmatpush2.msra.mxu0 0.0
    %3582 = vmatprep.subr.mxu0 0.0
    %3583 = vmatpush2.msra.mxu0 0.0
    %3584 = vmatprep.subr.mxu0 0.0
    %3585 = vmatpush2.msra.mxu0 0.0
    %3586 = vmatprep.subr.mxu0 0.0
    %3587 = vmatpush2.msra.mxu0 0.0
    %3588 = vmatprep.subr.mxu0 0.0
    %3589 = vmatpush2.msra.mxu0 0.0
    %3590 = vmatprep.subr.mxu0 0.0
    %3591 = vmatpush2.msra.mxu0 0.0
    %3592 = vmatprep.subr.mxu0 0.0
    %3593 = vmatpush2.msra.mxu0 0.0
    %3594 = vmatprep.subr.mxu0 0.0
    %3595 = vmatpush2.msra.mxu0 0.0
    %3596 = vmatprep.subr.mxu0 0.0
    %3597 = vmatpush2.msra.mxu0 0.0
    %3598 = vmatprep.subr.mxu0 0.0
    %3599 = vmatpush2.msra.mxu0 0.0
    %3600 = vmatprep.subr.mxu0 0.0
    %3601 = vmatpush2.msra.mxu0 0.0
    %3602 = vmatprep.mubr.f32.mxu0 0.0
    %3603 = vmatmul.mubr.f32.gmra.mxu0 %v1761
    %v3604 = vpop.f32.mrf.mxu0
    %v3605 = vadd.f32 %v3534, %v3604
    %v3606 = vpop.f32.mrf.mxu0
    %v3607 = vadd.f32 %v3536, %v3606
    %3608 = vdwg.mxu0
    %v3609 = vmax.f32 %v2682, 0.0
    %v3610 = vmax.f32 %v2684, 0.0
    %v3611 = vmax.f32 %v3605, 0.0
    %v3612 = vmax.f32 %v3607, 0.0
    %v3613 = vld [vmem:[%s3] sm:$0xff]
    %v3614 = vld [vmem:[%s3 + $0x8] sm:$0xff]
    %v3615 = vld [vmem:[%s3 + $0x10] sm:$0xff]
    %v3616 = vld [vmem:[%s3 + $0x18] sm:$0xff]
    %v3617 = vld [vmem:[%s3 + $0x20] sm:$0xff]
    %v3618 = vld [vmem:[%s3 + $0x28] sm:$0xff]
    %v3619 = vld [vmem:[%s3 + $0x30] sm:$0xff]
    %v3620 = vld [vmem:[%s3 + $0x38] sm:$0xff]
    %v3621 = vld [vmem:[%s3 + $0x40] sm:$0xff]
    %v3622 = vld [vmem:[%s3 + $0x48] sm:$0xff]
    %v3623 = vld [vmem:[%s3 + $0x50] sm:$0xff]
    %v3624 = vld [vmem:[%s3 + $0x58] sm:$0xff]
    %v3625 = vld [vmem:[%s3 + $0x60] sm:$0xff]
    %v3626 = vld [vmem:[%s3 + $0x68] sm:$0xff]
    %v3627 = vld [vmem:[%s3 + $0x70] sm:$0xff]
    %v3628 = vld [vmem:[%s3 + $0x78] sm:$0xff]
    %v3629 = vld [vmem:[%s3 + $0x80] sm:$0xff]
    %v3630 = vld [vmem:[%s3 + $0x88] sm:$0xff]
    %v3631 = vld [vmem:[%s3 + $0x90] sm:$0xff]
    %v3632 = vld [vmem:[%s3 + $0x98] sm:$0xff]
    %v3633 = vld [vmem:[%s3 + $0xa0] sm:$0xff]
    %v3634 = vld [vmem:[%s3 + $0xa8] sm:$0xff]
    %v3635 = vld [vmem:[%s3 + $0xb0] sm:$0xff]
    %v3636 = vld [vmem:[%s3 + $0xb8] sm:$0xff]
    %v3637 = vld [vmem:[%s3 + $0xc0] sm:$0xff]
    %v3638 = vld [vmem:[%s3 + $0xc8] sm:$0xff]
    %v3639 = vld [vmem:[%s3 + $0xd0] sm:$0xff]
    %v3640 = vld [vmem:[%s3 + $0xd8] sm:$0xff]
    %v3641 = vld [vmem:[%s3 + $0xe0] sm:$0xff]
    %v3642 = vld [vmem:[%s3 + $0xe8] sm:$0xff]
    %v3643 = vld [vmem:[%s3 + $0xf0] sm:$0xff]
    %v3644 = vld [vmem:[%s3 + $0xf8] sm:$0xff]
    %v3645 = vld [vmem:[%s3 + $0x100] sm:$0xff]
    %v3646 = vld [vmem:[%s3 + $0x108] sm:$0xff]
    %v3647 = vld [vmem:[%s3 + $0x110] sm:$0xff]
    %v3648 = vld [vmem:[%s3 + $0x118] sm:$0xff]
    %v3649 = vld [vmem:[%s3 + $0x120] sm:$0xff]
    %v3650 = vld [vmem:[%s3 + $0x128] sm:$0xff]
    %v3651 = vld [vmem:[%s3 + $0x130] sm:$0xff]
    %v3652 = vld [vmem:[%s3 + $0x138] sm:$0xff]
    %v3653 = vld [vmem:[%s3 + $0x140] sm:$0xff]
    %v3654 = vld [vmem:[%s3 + $0x148] sm:$0xff]
    %v3655 = vld [vmem:[%s3 + $0x150] sm:$0xff]
    %v3656 = vld [vmem:[%s3 + $0x158] sm:$0xff]
    %v3657 = vld [vmem:[%s3 + $0x160] sm:$0xff]
    %v3658 = vld [vmem:[%s3 + $0x168] sm:$0xff]
    %v3659 = vld [vmem:[%s3 + $0x170] sm:$0xff]
    %v3660 = vld [vmem:[%s3 + $0x178] sm:$0xff]
    %v3661 = vld [vmem:[%s3 + $0x180] sm:$0xff]
    %v3662 = vld [vmem:[%s3 + $0x188] sm:$0xff]
    %v3663 = vld [vmem:[%s3 + $0x190] sm:$0xff]
    %v3664 = vld [vmem:[%s3 + $0x198] sm:$0xff]
    %v3665 = vld [vmem:[%s3 + $0x1a0] sm:$0xff]
    %v3666 = vld [vmem:[%s3 + $0x1a8] sm:$0xff]
    %v3667 = vld [vmem:[%s3 + $0x1b0] sm:$0xff]
    %v3668 = vld [vmem:[%s3 + $0x1b8] sm:$0xff]
    %v3669 = vld [vmem:[%s3 + $0x1c0] sm:$0xff]
    %v3670 = vld [vmem:[%s3 + $0x1c8] sm:$0xff]
    %v3671 = vld [vmem:[%s3 + $0x1d0] sm:$0xff]
    %v3672 = vld [vmem:[%s3 + $0x1d8] sm:$0xff]
    %v3673 = vld [vmem:[%s3 + $0x1e0] sm:$0xff]
    %v3674 = vld [vmem:[%s3 + $0x1e8] sm:$0xff]
    %v3675 = vld [vmem:[%s3 + $0x1f0] sm:$0xff]
    %v3676 = vld [vmem:[%s3 + $0x1f8] sm:$0xff]
    %v3677 = vld [vmem:[%s4] sm:$0x1]
    %v3679 = vlaneseq
    %v3680 = vshrl.u32 %v3679, 7
    %v3681 = vsub.s32 0, %v3680
    %v3682 = vrot.slane %v3677, %v3681
    %3684 = vmatprep.subr.mxu0 0.0
    %3685 = vmatpush1.msra.mxu0 %v3628
    %3686 = vmatprep.subr.mxu0 0.0
    %3687 = vmatpush1.msra.mxu0 %v3627
    %3688 = vmatprep.subr.mxu0 0.0
    %3689 = vmatpush1.msra.mxu0 %v3626
    %3690 = vmatprep.subr.mxu0 0.0
    %3691 = vmatpush1.msra.mxu0 %v3625
    %3692 = vmatprep.subr.mxu0 0.0
    %3693 = vmatpush1.msra.mxu0 %v3624
    %3694 = vmatprep.subr.mxu0 0.0
    %3695 = vmatpush1.msra.mxu0 %v3623
    %3696 = vmatprep.subr.mxu0 0.0
    %3697 = vmatpush1.msra.mxu0 %v3622
    %3698 = vmatprep.subr.mxu0 0.0
    %3699 = vmatpush1.msra.mxu0 %v3621
    %3700 = vmatprep.subr.mxu0 0.0
    %3701 = vmatpush1.msra.mxu0 %v3620
    %3702 = vmatprep.subr.mxu0 0.0
    %3703 = vmatpush1.msra.mxu0 %v3619
    %3704 = vmatprep.subr.mxu0 0.0
    %3705 = vmatpush1.msra.mxu0 %v3618
    %3706 = vmatprep.subr.mxu0 0.0
    %3707 = vmatpush1.msra.mxu0 %v3617
    %3708 = vmatprep.subr.mxu0 0.0
    %3709 = vmatpush1.msra.mxu0 %v3616
    %3710 = vmatprep.subr.mxu0 0.0
    %3711 = vmatpush1.msra.mxu0 %v3615
    %3712 = vmatprep.subr.mxu0 0.0
    %3713 = vmatpush1.msra.mxu0 %v3614
    %3714 = vmatprep.subr.mxu0 0.0
    %3715 = vmatpush1.msra.mxu0 %v3613
    %3716 = vmatprep.subr.mxu0 0.0
    %3717 = vmatpush2.msra.mxu0 %v3644
    %3718 = vmatprep.subr.mxu0 0.0
    %3719 = vmatpush2.msra.mxu0 %v3643
    %3720 = vmatprep.subr.mxu0 0.0
    %3721 = vmatpush2.msra.mxu0 %v3642
    %3722 = vmatprep.subr.mxu0 0.0
    %3723 = vmatpush2.msra.mxu0 %v3641
    %3724 = vmatprep.subr.mxu0 0.0
    %3725 = vmatpush2.msra.mxu0 %v3640
    %3726 = vmatprep.subr.mxu0 0.0
    %3727 = vmatpush2.msra.mxu0 %v3639
    %3728 = vmatprep.subr.mxu0 0.0
    %3729 = vmatpush2.msra.mxu0 %v3638
    %3730 = vmatprep.subr.mxu0 0.0
    %3731 = vmatpush2.msra.mxu0 %v3637
    %3732 = vmatprep.subr.mxu0 0.0
    %3733 = vmatpush2.msra.mxu0 %v3636
    %3734 = vmatprep.subr.mxu0 0.0
    %3735 = vmatpush2.msra.mxu0 %v3635
    %3736 = vmatprep.subr.mxu0 0.0
    %3737 = vmatpush2.msra.mxu0 %v3634
    %3738 = vmatprep.subr.mxu0 0.0
    %3739 = vmatpush2.msra.mxu0 %v3633
    %3740 = vmatprep.subr.mxu0 0.0
    %3741 = vmatpush2.msra.mxu0 %v3632
    %3742 = vmatprep.subr.mxu0 0.0
    %3743 = vmatpush2.msra.mxu0 %v3631
    %3744 = vmatprep.subr.mxu0 0.0
    %3745 = vmatpush2.msra.mxu0 %v3630
    %3746 = vmatprep.subr.mxu0 0.0
    %3747 = vmatpush2.msra.mxu0 %v3629
    %3748 = vmatprep.mubr.f32.mxu0 %v3610
    %3749 = vmatmul.mubr.f32.gmra.mxu0 %v3609
    %v3750 = vpop.f32.mrf.mxu0
    %v3751 = vadd.f32 %v3682, %v3750
    %v3752 = vpop.f32.mrf.mxu0
    %3753 = vdwg.mxu0
    %3754 = vmatprep.subr.mxu0 0.0
    %3755 = vmatpush1.msra.mxu0 %v3660
    %3756 = vmatprep.subr.mxu0 0.0
    %3757 = vmatpush1.msra.mxu0 %v3659
    %3758 = vmatprep.subr.mxu0 0.0
    %3759 = vmatpush1.msra.mxu0 %v3658
    %3760 = vmatprep.subr.mxu0 0.0
    %3761 = vmatpush1.msra.mxu0 %v3657
    %3762 = vmatprep.subr.mxu0 0.0
    %3763 = vmatpush1.msra.mxu0 %v3656
    %3764 = vmatprep.subr.mxu0 0.0
    %3765 = vmatpush1.msra.mxu0 %v3655
    %3766 = vmatprep.subr.mxu0 0.0
    %3767 = vmatpush1.msra.mxu0 %v3654
    %3768 = vmatprep.subr.mxu0 0.0
    %3769 = vmatpush1.msra.mxu0 %v3653
    %3770 = vmatprep.subr.mxu0 0.0
    %3771 = vmatpush1.msra.mxu0 %v3652
    %3772 = vmatprep.subr.mxu0 0.0
    %3773 = vmatpush1.msra.mxu0 %v3651
    %3774 = vmatprep.subr.mxu0 0.0
    %3775 = vmatpush1.msra.mxu0 %v3650
    %3776 = vmatprep.subr.mxu0 0.0
    %3777 = vmatpush1.msra.mxu0 %v3649
    %3778 = vmatprep.subr.mxu0 0.0
    %3779 = vmatpush1.msra.mxu0 %v3648
    %3780 = vmatprep.subr.mxu0 0.0
    %3781 = vmatpush1.msra.mxu0 %v3647
    %3782 = vmatprep.subr.mxu0 0.0
    %3783 = vmatpush1.msra.mxu0 %v3646
    %3784 = vmatprep.subr.mxu0 0.0
    %3785 = vmatpush1.msra.mxu0 %v3645
    %3786 = vmatprep.subr.mxu0 0.0
    %3787 = vmatpush2.msra.mxu0 %v3676
    %3788 = vmatprep.subr.mxu0 0.0
    %3789 = vmatpush2.msra.mxu0 %v3675
    %3790 = vmatprep.subr.mxu0 0.0
    %3791 = vmatpush2.msra.mxu0 %v3674
    %3792 = vmatprep.subr.mxu0 0.0
    %3793 = vmatpush2.msra.mxu0 %v3673
    %3794 = vmatprep.subr.mxu0 0.0
    %3795 = vmatpush2.msra.mxu0 %v3672
    %3796 = vmatprep.subr.mxu0 0.0
    %3797 = vmatpush2.msra.mxu0 %v3671
    %3798 = vmatprep.subr.mxu0 0.0
    %3799 = vmatpush2.msra.mxu0 %v3670
    %3800 = vmatprep.subr.mxu0 0.0
    %3801 = vmatpush2.msra.mxu0 %v3669
    %3802 = vmatprep.subr.mxu0 0.0
    %3803 = vmatpush2.msra.mxu0 %v3668
    %3804 = vmatprep.subr.mxu0 0.0
    %3805 = vmatpush2.msra.mxu0 %v3667
    %3806 = vmatprep.subr.mxu0 0.0
    %3807 = vmatpush2.msra.mxu0 %v3666
    %3808 = vmatprep.subr.mxu0 0.0
    %3809 = vmatpush2.msra.mxu0 %v3665
    %3810 = vmatprep.subr.mxu0 0.0
    %3811 = vmatpush2.msra.mxu0 %v3664
    %3812 = vmatprep.subr.mxu0 0.0
    %3813 = vmatpush2.msra.mxu0 %v3663
    %3814 = vmatprep.subr.mxu0 0.0
    %3815 = vmatpush2.msra.mxu0 %v3662
    %3816 = vmatprep.subr.mxu0 0.0
    %3817 = vmatpush2.msra.mxu0 %v3661
    %3818 = vmatprep.mubr.f32.mxu0 %v3612
    %3819 = vmatmul.mubr.f32.gmra.mxu0 %v3611
    %v3820 = vpop.f32.mrf.mxu0
    %v3821 = vadd.f32 %v3751, %v3820
    %v3822 = vpop.f32.mrf.mxu0
    %3823 = vdwg.mxu0
    %vm3824 = vcmask 25600
    %v3825 = vsel %vm3824, %v3821, -inf
    %3826 = vmax.xlane.f32.xlu0 %v3825
    %v3827 = vpop.xlane.xlu0 %3826
    %v3828 = vsub.f32 %v3821, %v3827
    %v3829 = vmul.f32 %v3828, 1.442695
    %v3830 = vpow.pop %v3829
    %v3831 = vsel %vm3824, %v3830, 0.0
    %3832 = vadd.xlane.f32.xlu0 %v3831
    %v3833 = vpop.xlane.xlu0 %3832
    %v3834 = vrcp.pop %v3833
    %v3835 = vmul.f32 %v3830, %v3834
    %3836 = vst.msk [vmem:[#allocation2] sm:$0x3] %vm3824, %v3835
    %3838 = vrot.lane.b32.xlu0 %v3821, 124
    %v3839 = vpop.permute.xlu0 %3838
    %vm3841 = vcmask 1024
    %3842 = vst.msk [vmem:[%s6] sm:$0x3] %vm3841, %v3839
    // Predicated region
    $region22: #{mynet_forward.7} parent=1 // pred_check
      _
    $region23: #{mynet_forward.7} parent=1 // pred_check_branch
      %3844 = sbr.rel (0) target = $region25
    $region24: #{mynet_forward.7} parent=1 // pred_region
      %s3846 = ssub.s32 32, 32
      %3847 = vsyncadd [#allocation3], %s3846
      %s3849 = sshll.u32 [#allocation2], 4
      %s3850 = int_to_ptr.vmem [resolvable:$true] %s3849
      %3852 = dma.vmem_to_hbm [thread:$0]  %s3850, 32, %s5, [#allocation3]
    $region25: #{mynet_forward.7} parent=1 // pred_fallthru
      _
    // Predicated region
    $region26: #{mynet_forward.7} parent=1 // pred_check
      _
    $region27: #{mynet_forward.7} parent=1 // pred_check_branch
      %3854 = sbr.rel (0) target = $region29
    $region28: #{mynet_forward.7} parent=1 // pred_region
      _
    $region29: #{mynet_forward.7} parent=1 // pred_fallthru
      _
    // Predicated region
    $region30: #{mynet_forward.7} parent=1 // pred_check
      _
    $region31: #{mynet_forward.7} parent=1 // pred_check_branch
      %3856 = sbr.rel (0) target = $region33
    $region32: #{mynet_forward.7} parent=1 // pred_region
      %3857 = dma.done [#allocation3], 32
    $region33: #{mynet_forward.7} parent=1 // pred_fallthru
      _
    // Predicated region
    $region34: #{mynet_forward.7} parent=1 // pred_check
      _
    $region35: #{mynet_forward.7} parent=1 // pred_check_branch
      %3859 = sbr.rel (0) target = $region37
    $region36: #{mynet_forward.7} parent=1 // pred_region
      _
    $region37: #{mynet_forward.7} parent=1 // pred_fallthru
      _
    %3860 = vsyncpa [#allocation3], 1

</llo_original>
